<compile_context>
chip_gen: v5e
topology: v5e:2x2
jax: 0.10.0
libtpu: 0.0.40
codegen_flags: <defaults>
</compile_context>

<pallas_src>
import functools

import numpy as np
import jax
import jax.numpy as jnp
from jax import lax
from jax.experimental import pallas as pl
from jax.experimental.pallas import tpu as pltpu

nc = 3
ndf = 64
K = 4                  # every conv uses a 4x4 kernel
LRELU_SLOPE = 0.2
BN_EPS = 1e-5


# ------------------------------ kernel body --------------------------------

def _leaky_relu(x):
    return jnp.maximum(x, LRELU_SLOPE * x)


def _batchnorm(x, gamma, beta):
    # BatchNorm2d (training mode): biased stats over rows == (N, H, W).
    mean = jnp.mean(x, axis=0, keepdims=True)
    var = jnp.mean(jnp.square(x - mean), axis=0, keepdims=True)
    return (x - mean) * lax.rsqrt(var + BN_EPS) * gamma + beta


def _stride2_conv(y_prev, s_ref, w_ref, patch_ref, n):
    """4x4 / stride-2 / pad-1 conv on a VMEM-resident activation matrix.

    y_prev    : (N*Q, C_in) f32, rows ordered (n, h, w), lanes = channels.
    s_ref     : (16*P, Q) bf16 batch-independent 0/1 spatial gather table;
                row (t, p) selects input position (2h'+ki-1, 2w'+kj-1) for
                output position p=(h',w') and tap t=(ki,kj); all-zero rows
                implement the conv zero-padding for free.
    w_ref     : (16*C_in, C_out) bf16 weights, rows ordered (ki, kj, ci).
    patch_ref : (P, 16*C_in) f32 VMEM scratch used to assemble the im2col
                patch matrix (per-tap slabs stored at lane offset t*C_in).
    Returns (N*P, C_out) f32.
    """
    q_in = s_ref.shape[1]
    p_out = s_ref.shape[0] // (K * K)
    c_in = y_prev.shape[1]
    s = s_ref[...]
    w = w_ref[...]
    outs = []
    for b in range(n):
        y_img = y_prev[b * q_in:(b + 1) * q_in, :].astype(jnp.bfloat16)
        # One (16*P, Q) @ (Q, C_in) gather matmul per image (O(N), not O(N^2)).
        g = jnp.dot(s, y_img, preferred_element_type=jnp.float32)
        # Assemble (P, 16*C_in) patch matrix: tap t lands at lanes [t*C_in, ...).
        for t in range(K * K):
            patch_ref[:, t * c_in:(t + 1) * c_in] = g[t * p_out:(t + 1) * p_out, :]
        # Single big-K channel matmul (K = 16*C_in) feeding the MXU deeply.
        outs.append(jnp.dot(patch_ref[...].astype(jnp.bfloat16), w,
                            preferred_element_type=jnp.float32))
    return jnp.concatenate(outs, axis=0)


def _dcdisc_kernel(p1_ref, w1_ref, s2_ref, w2_ref, g2_ref, b2_ref,
                   s3_ref, w3_ref, g3_ref, b3_ref, w4_ref, out_ref,
                   patch2_ref, patch3_ref):
    n = out_ref.shape[0]

    # layer 1: Conv(3->64, k4 s2 p1) + LeakyReLU(0.2)  (im2col done host-side)
    y1 = _leaky_relu(jnp.dot(p1_ref[...], w1_ref[...],
                             preferred_element_type=jnp.float32))     # (N*256, 64)

    # layer 2: Conv(64->128, k4 s2 p1) + BatchNorm + LeakyReLU(0.2)
    a2 = _stride2_conv(y1, s2_ref, w2_ref, patch2_ref, n)             # (N*64, 128)
    y2 = _leaky_relu(_batchnorm(a2, g2_ref[...], b2_ref[...]))

    # layer 3: Conv(128->256, k4 s2 p1) + BatchNorm + LeakyReLU(0.2)
    a3 = _stride2_conv(y2, s3_ref, w3_ref, patch3_ref, n)             # (N*16, 256)
    y3 = _leaky_relu(_batchnorm(a3, g3_ref[...], b3_ref[...]))

    # layer 4: Conv(256->1, k4 valid) + Sigmoid, as broadcast-multiply +
    # lane/sublane reductions (no seg matmul, no tiled w4).
    c3 = w4_ref.shape[1]
    prod = y3.reshape(n, K * K, c3) * w4_ref[...][None, :, :]         # (N, 16, 256)
    per_pos = jnp.sum(prod, axis=2)                                   # (N, 16)
    logit = jnp.sum(per_pos, axis=1, keepdims=True)                   # (N, 1)
    sig = 1.0 / (1.0 + jnp.exp(-logit))
    out_ref[...] = jnp.broadcast_to(sig, out_ref.shape)               # (N, 128)


# --------------------------- host-side constants ----------------------------

@functools.lru_cache(maxsize=None)
def _spatial_gather(h_in, w_in):
    """Batch-independent 0/1 gather table for a 4x4 / stride-2 / pad-1 conv."""
    h_out, w_out = (h_in - 2) // 2 + 1, (w_in - 2) // 2 + 1
    p_out, q_in = h_out * w_out, h_in * w_in
    s = np.zeros((K * K * p_out, q_in), np.float32)
    for ki in range(K):
        for kj in range(K):
            t = ki * K + kj
            for ho in range(h_out):
                hi = 2 * ho + ki - 1
                if hi < 0 or hi >= h_in:
                    continue
                for wo in range(w_out):
                    wi = 2 * wo + kj - 1
                    if wi < 0 or wi >= w_in:
                        continue
                    s[t * p_out + ho * w_out + wo, hi * w_in + wi] = 1.0
    return s


# ------------------------------ JAX wrapper ---------------------------------

def _im2col(x_nhwc, k, stride, pad):
    """Layer-1 patch extraction (pure data movement, runs in the wrapper)."""
    if pad:
        x_nhwc = jnp.pad(x_nhwc, ((0, 0), (pad, pad), (pad, pad), (0, 0)))
    n, h, w, c = x_nhwc.shape
    ho = (h - k) // stride + 1
    wo = (w - k) // stride + 1
    cols = []
    for ki in range(k):
        for kj in range(k):
            cols.append(
                x_nhwc[:, ki:ki + stride * ho:stride, kj:kj + stride * wo:stride, :])
    p = jnp.stack(cols, axis=3)                      # (n, ho, wo, k*k, c)
    return p.reshape(n * ho * wo, k * k * c), (n, ho, wo)


def _w_to_matrix(w_oihw):
    """(C_out, C_in, kh, kw) -> (kh*kw*C_in, C_out), rows ordered (kh, kw, ci)."""
    co, ci, kh, kw = w_oihw.shape
    return jnp.transpose(w_oihw, (2, 3, 1, 0)).reshape(kh * kw * ci, co)


def init_params(key):
    ks = jax.random.split(key, 4)

    def conv_w(k, co, ci, kk):
        fan_in = ci * kk * kk
        bound = (1.0 / fan_in) ** 0.5
        return jax.random.uniform(k, (co, ci, kk, kk), jnp.float32, -bound, bound)

    return {
        "w1": conv_w(ks[0], ndf, nc, K),
        "w2": conv_w(ks[1], ndf * 2, ndf, K),
        "w3": conv_w(ks[2], ndf * 4, ndf * 2, K),
        "w4": conv_w(ks[3], 1, ndf * 4, K),
        "g2": jnp.ones((1, ndf * 2), jnp.float32),
        "b2": jnp.zeros((1, ndf * 2), jnp.float32),
        "g3": jnp.ones((1, ndf * 4), jnp.float32),
        "b3": jnp.zeros((1, ndf * 4), jnp.float32),
    }


def dc_discriminator(params, x_nchw):
    n = x_nchw.shape[0]
    x = jnp.transpose(x_nchw, (0, 2, 3, 1)).astype(jnp.float32)       # NCHW -> NHWC

    # layer-1 im2col in the wrapper; pad contraction dim 48 -> 128 (lane dense).
    p1, (_, ho1, wo1) = _im2col(x, K, 2, 1)                           # (N*256, 48)
    kdim = p1.shape[1]
    kpad = 128
    p1 = jnp.pad(p1, ((0, 0), (0, kpad - kdim))).astype(jnp.bfloat16)
    w1m = jnp.pad(_w_to_matrix(params["w1"]), ((0, kpad - kdim), (0, 0)))
    w1m = w1m.astype(jnp.bfloat16)

    ho2, wo2 = ho1 // 2, wo1 // 2
    ho3, wo3 = ho2 // 2, wo2 // 2

    # batch-independent spatial gather tables (constant size, O(1) in batch)
    s2 = jnp.asarray(_spatial_gather(ho1, wo1), jnp.bfloat16)         # (1024, 256)
    s3 = jnp.asarray(_spatial_gather(ho2, wo2), jnp.bfloat16)         # (256, 64)

    w2m = _w_to_matrix(params["w2"]).astype(jnp.bfloat16)             # (1024, 128)
    w3m = _w_to_matrix(params["w3"]).astype(jnp.bfloat16)             # (2048, 256)
    w4m = jnp.transpose(params["w4"], (2, 3, 1, 0)).reshape(K * K, ndf * 4)
    w4m = w4m.astype(jnp.float32)                                     # (16, 256)

    inputs = (p1, w1m, s2, w2m, params["g2"], params["b2"],
              s3, w3m, params["g3"], params["b3"], w4m)

    # ---- VMEM budget: inputs + output + scratch + resident intermediates ---
    def nbytes(a):
        return int(np.prod(a.shape)) * a.dtype.itemsize

    patch2_shape = (ho2 * wo2, K * K * ndf)                           # (64, 1024)
    patch3_shape = (ho3 * wo3, K * K * ndf * 2)                       # (16, 2048)
    resident = (sum(nbytes(a) for a in inputs)
                + n * 128 * 4                                         # output
                + int(np.prod(patch2_shape)) * 4
                + int(np.prod(patch3_shape)) * 4
                + n * ho1 * wo1 * ndf * 4                             # y1
                + n * ho2 * wo2 * ndf * 2 * 4                         # y2
                + n * ho3 * wo3 * ndf * 4 * 4                         # y3
                + K * K * ho2 * wo2 * ndf * 4)                        # gather temp
    vmem_limit = int(min(max(2 * resident + (8 << 20), 32 << 20), 64 << 20))

    # ---- cost estimate so XLA schedules around the big fused call ----------
    flops = 2 * n * (ho1 * wo1 * kdim * ndf
                     + (K * K * ho2 * wo2) * (ho1 * wo1) * ndf          # l2 gather
                     + ho2 * wo2 * (K * K * ndf) * (ndf * 2)            # l2 conv
                     + (K * K * ho3 * wo3) * (ho2 * wo2) * (ndf * 2)    # l3 gather
                     + ho3 * wo3 * (K * K * ndf * 2) * (ndf * 4)        # l3 conv
                     + ho3 * wo3 * ndf * 4)                             # l4
    bytes_accessed = sum(nbytes(a) for a in inputs) + n * 128 * 4
    cost = pl.CostEstimate(flops=int(flops),
                           transcendentals=int(n + 2 * (ndf * 2 + ndf * 4)),
                           bytes_accessed=int(bytes_accessed))

    out = pl.pallas_call(
        _dcdisc_kernel,
        out_shape=jax.ShapeDtypeStruct((n, 128), jnp.float32),
        in_specs=[pl.BlockSpec(memory_space=pltpu.MemorySpace.VMEM)] * len(inputs),
        out_specs=pl.BlockSpec(memory_space=pltpu.MemorySpace.VMEM),
        scratch_shapes=[pltpu.VMEM(patch2_shape, jnp.float32),
                        pltpu.VMEM(patch3_shape, jnp.float32)],
        compiler_params=pltpu.CompilerParams(vmem_limit_bytes=vmem_limit),
        cost_estimate=cost,
    )(*inputs)

    return out[:, :1].reshape(n, 1, 1, 1)                             # (N,1,1,1) NCHW


if __name__ == "__main__":
    key = jax.random.PRNGKey(0)
    pk, xk = jax.random.split(key)
    params = init_params(pk)
    # DCGAN discriminator needs 32x32 input: three stride-2 convs -> 4x4, then
    # the final 4x4 valid conv -> 1x1.
    x = jax.random.normal(xk, (2, nc, 32, 32), jnp.float32)           # NCHW
    out = jax.jit(dc_discriminator)(params, x)
    jax.block_until_ready(out)
    assert out.shape == (2, 1, 1, 1)
    assert bool(jnp.all((out >= 0) & (out <= 1)))
    print("KERNEL_OK")
</pallas_src>

<mosaic_0001>
module attributes {stable_mosaic.version = 11 : i64} {
  func.func @_dcdisc_kernel(%arg0: memref<512x128xbf16, #tpu.memory_space<vmem>>, %arg1: memref<128x64xbf16, #tpu.memory_space<vmem>>, %arg2: memref<1024x256xbf16, #tpu.memory_space<vmem>>, %arg3: memref<1024x128xbf16, #tpu.memory_space<vmem>>, %arg4: memref<1x128xf32, #tpu.memory_space<vmem>>, %arg5: memref<1x128xf32, #tpu.memory_space<vmem>>, %arg6: memref<256x64xbf16, #tpu.memory_space<vmem>>, %arg7: memref<2048x256xbf16, #tpu.memory_space<vmem>>, %arg8: memref<1x256xf32, #tpu.memory_space<vmem>>, %arg9: memref<1x256xf32, #tpu.memory_space<vmem>>, %arg10: memref<16x256xf32, #tpu.memory_space<vmem>>, %arg11: memref<2x128xf32, #tpu.memory_space<vmem>>, %arg12: memref<64x1024xf32, #tpu.memory_space<vmem>>, %arg13: memref<16x2048xf32, #tpu.memory_space<vmem>>) attributes {dimension_semantics = [], scalar_prefetch = 0 : i64, scratch_operands = 2 : i64, tpu.core_type = #tpu.core_type<tc>} {
    %c0 = arith.constant 0 : index
    %c0_0 = arith.constant 0 : index
    %0 = vector.load %arg0[%c0, %c0_0] : memref<512x128xbf16, #tpu.memory_space<vmem>>, vector<512x128xbf16>
    %c0_1 = arith.constant 0 : index
    %c0_2 = arith.constant 0 : index
    %1 = vector.load %arg1[%c0_1, %c0_2] : memref<128x64xbf16, #tpu.memory_space<vmem>>, vector<128x64xbf16>
    %cst = arith.constant dense<0.000000e+00> : vector<512x64xf32>
    %2 = tpu.matmul %0, %1, %cst {dimension_numbers = #tpu.dot_dimension_numbers<[1], [0], [0], [1], [0, 0, 1, 1], [], []>} : vector<512x128xbf16>, vector<128x64xbf16>, vector<512x64xf32> -> vector<512x64xf32>
    %cst_3 = arith.constant 2.000000e-01 : f32
    %3 = vector.broadcast %cst_3 : f32 to vector<512x64xf32>
    %4 = arith.mulf %3, %2 : vector<512x64xf32>
    %5 = arith.maximumf %2, %4 : vector<512x64xf32>
    %c0_4 = arith.constant 0 : index
    %c0_5 = arith.constant 0 : index
    %6 = vector.load %arg2[%c0_4, %c0_5] : memref<1024x256xbf16, #tpu.memory_space<vmem>>, vector<1024x256xbf16>
    %c0_6 = arith.constant 0 : index
    %c0_7 = arith.constant 0 : index
    %7 = vector.load %arg3[%c0_6, %c0_7] : memref<1024x128xbf16, #tpu.memory_space<vmem>>, vector<1024x128xbf16>
    %8 = vector.extract_strided_slice %5 {offsets = [0, 0], sizes = [256, 64], strides = [1, 1]} : vector<512x64xf32> to vector<256x64xf32>
    %9 = arith.truncf %8 : vector<256x64xf32> to vector<256x64xbf16>
    %cst_8 = arith.constant dense<0.000000e+00> : vector<1024x64xf32>
    %10 = tpu.matmul %6, %9, %cst_8 {dimension_numbers = #tpu.dot_dimension_numbers<[1], [0], [0], [1], [0, 0, 1, 1], [], []>} : vector<1024x256xbf16>, vector<256x64xbf16>, vector<1024x64xf32> -> vector<1024x64xf32>
    %11 = vector.extract_strided_slice %10 {offsets = [0, 0], sizes = [64, 64], strides = [1, 1]} : vector<1024x64xf32> to vector<64x64xf32>
    %c0_9 = arith.constant 0 : index
    %c0_10 = arith.constant 0 : index
    %12 = vector.load %arg12[%c0_9, %c0_10] : memref<64x1024xf32, #tpu.memory_space<vmem>>, vector<64x64xf32>
    tpu.vector_store %arg12[%c0_9, %c0_10], %11 {strides = array<i32>} : memref<64x1024xf32, #tpu.memory_space<vmem>>, vector<64x64xf32>,
    %13 = vector.extract_strided_slice %10 {offsets = [64, 0], sizes = [64, 64], strides = [1, 1]} : vector<1024x64xf32> to vector<64x64xf32>
    %c0_11 = arith.constant 0 : index
    %c64 = arith.constant 64 : index
    %14 = vector.load %arg12[%c0_11, %c64] : memref<64x1024xf32, #tpu.memory_space<vmem>>, vector<64x64xf32>
    tpu.vector_store %arg12[%c0_11, %c64], %13 {strides = array<i32>} : memref<64x1024xf32, #tpu.memory_space<vmem>>, vector<64x64xf32>,
    %15 = vector.extract_strided_slice %10 {offsets = [128, 0], sizes = [64, 64], strides = [1, 1]} : vector<1024x64xf32> to vector<64x64xf32>
    %c0_12 = arith.constant 0 : index
    %c128 = arith.constant 128 : index
    %16 = vector.load %arg12[%c0_12, %c128] : memref<64x1024xf32, #tpu.memory_space<vmem>>, vector<64x64xf32>
    tpu.vector_store %arg12[%c0_12, %c128], %15 {strides = array<i32>} : memref<64x1024xf32, #tpu.memory_space<vmem>>, vector<64x64xf32>,
    %17 = vector.extract_strided_slice %10 {offsets = [192, 0], sizes = [64, 64], strides = [1, 1]} : vector<1024x64xf32> to vector<64x64xf32>
    %c0_13 = arith.constant 0 : index
    %c192 = arith.constant 192 : index
    %18 = vector.load %arg12[%c0_13, %c192] : memref<64x1024xf32, #tpu.memory_space<vmem>>, vector<64x64xf32>
    tpu.vector_store %arg12[%c0_13, %c192], %17 {strides = array<i32>} : memref<64x1024xf32, #tpu.memory_space<vmem>>, vector<64x64xf32>,
    %19 = vector.extract_strided_slice %10 {offsets = [256, 0], sizes = [64, 64], strides = [1, 1]} : vector<1024x64xf32> to vector<64x64xf32>
    %c0_14 = arith.constant 0 : index
    %c256 = arith.constant 256 : index
    %20 = vector.load %arg12[%c0_14, %c256] : memref<64x1024xf32, #tpu.memory_space<vmem>>, vector<64x64xf32>
    tpu.vector_store %arg12[%c0_14, %c256], %19 {strides = array<i32>} : memref<64x1024xf32, #tpu.memory_space<vmem>>, vector<64x64xf32>,
    %21 = vector.extract_strided_slice %10 {offsets = [320, 0], sizes = [64, 64], strides = [1, 1]} : vector<1024x64xf32> to vector<64x64xf32>
    %c0_15 = arith.constant 0 : index
    %c320 = arith.constant 320 : index
    %22 = vector.load %arg12[%c0_15, %c320] : memref<64x1024xf32, #tpu.memory_space<vmem>>, vector<64x64xf32>
    tpu.vector_store %arg12[%c0_15, %c320], %21 {strides = array<i32>} : memref<64x1024xf32, #tpu.memory_space<vmem>>, vector<64x64xf32>,
    %23 = vector.extract_strided_slice %10 {offsets = [384, 0], sizes = [64, 64], strides = [1, 1]} : vector<1024x64xf32> to vector<64x64xf32>
    %c0_16 = arith.constant 0 : index
    %c384 = arith.constant 384 : index
    %24 = vector.load %arg12[%c0_16, %c384] : memref<64x1024xf32, #tpu.memory_space<vmem>>, vector<64x64xf32>
    tpu.vector_store %arg12[%c0_16, %c384], %23 {strides = array<i32>} : memref<64x1024xf32, #tpu.memory_space<vmem>>, vector<64x64xf32>,
    %25 = vector.extract_strided_slice %10 {offsets = [448, 0], sizes = [64, 64], strides = [1, 1]} : vector<1024x64xf32> to vector<64x64xf32>
    %c0_17 = arith.constant 0 : index
    %c448 = arith.constant 448 : index
    %26 = vector.load %arg12[%c0_17, %c448] : memref<64x1024xf32, #tpu.memory_space<vmem>>, vector<64x64xf32>
    tpu.vector_store %arg12[%c0_17, %c448], %25 {strides = array<i32>} : memref<64x1024xf32, #tpu.memory_space<vmem>>, vector<64x64xf32>,
    %27 = vector.extract_strided_slice %10 {offsets = [512, 0], sizes = [64, 64], strides = [1, 1]} : vector<1024x64xf32> to vector<64x64xf32>
    %c0_18 = arith.constant 0 : index
    %c512 = arith.constant 512 : index
    %28 = vector.load %arg12[%c0_18, %c512] : memref<64x1024xf32, #tpu.memory_space<vmem>>, vector<64x64xf32>
    tpu.vector_store %arg12[%c0_18, %c512], %27 {strides = array<i32>} : memref<64x1024xf32, #tpu.memory_space<vmem>>, vector<64x64xf32>,
    %29 = vector.extract_strided_slice %10 {offsets = [576, 0], sizes = [64, 64], strides = [1, 1]} : vector<1024x64xf32> to vector<64x64xf32>
    %c0_19 = arith.constant 0 : index
    %c576 = arith.constant 576 : index
    %30 = vector.load %arg12[%c0_19, %c576] : memref<64x1024xf32, #tpu.memory_space<vmem>>, vector<64x64xf32>
    tpu.vector_store %arg12[%c0_19, %c576], %29 {strides = array<i32>} : memref<64x1024xf32, #tpu.memory_space<vmem>>, vector<64x64xf32>,
    %31 = vector.extract_strided_slice %10 {offsets = [640, 0], sizes = [64, 64], strides = [1, 1]} : vector<1024x64xf32> to vector<64x64xf32>
    %c0_20 = arith.constant 0 : index
    %c640 = arith.constant 640 : index
    %32 = vector.load %arg12[%c0_20, %c640] : memref<64x1024xf32, #tpu.memory_space<vmem>>, vector<64x64xf32>
    tpu.vector_store %arg12[%c0_20, %c640], %31 {strides = array<i32>} : memref<64x1024xf32, #tpu.memory_space<vmem>>, vector<64x64xf32>,
    %33 = vector.extract_strided_slice %10 {offsets = [704, 0], sizes = [64, 64], strides = [1, 1]} : vector<1024x64xf32> to vector<64x64xf32>
    %c0_21 = arith.constant 0 : index
    %c704 = arith.constant 704 : index
    %34 = vector.load %arg12[%c0_21, %c704] : memref<64x1024xf32, #tpu.memory_space<vmem>>, vector<64x64xf32>
    tpu.vector_store %arg12[%c0_21, %c704], %33 {strides = array<i32>} : memref<64x1024xf32, #tpu.memory_space<vmem>>, vector<64x64xf32>,
    %35 = vector.extract_strided_slice %10 {offsets = [768, 0], sizes = [64, 64], strides = [1, 1]} : vector<1024x64xf32> to vector<64x64xf32>
    %c0_22 = arith.constant 0 : index
    %c768 = arith.constant 768 : index
    %36 = vector.load %arg12[%c0_22, %c768] : memref<64x1024xf32, #tpu.memory_space<vmem>>, vector<64x64xf32>
    tpu.vector_store %arg12[%c0_22, %c768], %35 {strides = array<i32>} : memref<64x1024xf32, #tpu.memory_space<vmem>>, vector<64x64xf32>,
    %37 = vector.extract_strided_slice %10 {offsets = [832, 0], sizes = [64, 64], strides = [1, 1]} : vector<1024x64xf32> to vector<64x64xf32>
    %c0_23 = arith.constant 0 : index
    %c832 = arith.constant 832 : index
    %38 = vector.load %arg12[%c0_23, %c832] : memref<64x1024xf32, #tpu.memory_space<vmem>>, vector<64x64xf32>
    tpu.vector_store %arg12[%c0_23, %c832], %37 {strides = array<i32>} : memref<64x1024xf32, #tpu.memory_space<vmem>>, vector<64x64xf32>,
    %39 = vector.extract_strided_slice %10 {offsets = [896, 0], sizes = [64, 64], strides = [1, 1]} : vector<1024x64xf32> to vector<64x64xf32>
    %c0_24 = arith.constant 0 : index
    %c896 = arith.constant 896 : index
    %40 = vector.load %arg12[%c0_24, %c896] : memref<64x1024xf32, #tpu.memory_space<vmem>>, vector<64x64xf32>
    tpu.vector_store %arg12[%c0_24, %c896], %39 {strides = array<i32>} : memref<64x1024xf32, #tpu.memory_space<vmem>>, vector<64x64xf32>,
    %41 = vector.extract_strided_slice %10 {offsets = [960, 0], sizes = [64, 64], strides = [1, 1]} : vector<1024x64xf32> to vector<64x64xf32>
    %c0_25 = arith.constant 0 : index
    %c960 = arith.constant 960 : index
    %42 = vector.load %arg12[%c0_25, %c960] : memref<64x1024xf32, #tpu.memory_space<vmem>>, vector<64x64xf32>
    tpu.vector_store %arg12[%c0_25, %c960], %41 {strides = array<i32>} : memref<64x1024xf32, #tpu.memory_space<vmem>>, vector<64x64xf32>,
    %c0_26 = arith.constant 0 : index
    %c0_27 = arith.constant 0 : index
    %43 = vector.load %arg12[%c0_26, %c0_27] : memref<64x1024xf32, #tpu.memory_space<vmem>>, vector<64x1024xf32>
    %44 = arith.truncf %43 : vector<64x1024xf32> to vector<64x1024xbf16>
    %cst_28 = arith.constant dense<0.000000e+00> : vector<64x128xf32>
    %45 = tpu.matmul %44, %7, %cst_28 {dimension_numbers = #tpu.dot_dimension_numbers<[1], [0], [0], [1], [0, 0, 1, 1], [], []>} : vector<64x1024xbf16>, vector<1024x128xbf16>, vector<64x128xf32> -> vector<64x128xf32>
    %46 = vector.extract_strided_slice %5 {offsets = [256, 0], sizes = [256, 64], strides = [1, 1]} : vector<512x64xf32> to vector<256x64xf32>
    %47 = arith.truncf %46 : vector<256x64xf32> to vector<256x64xbf16>
    %cst_29 = arith.constant dense<0.000000e+00> : vector<1024x64xf32>
    %48 = tpu.matmul %6, %47, %cst_29 {dimension_numbers = #tpu.dot_dimension_numbers<[1], [0], [0], [1], [0, 0, 1, 1], [], []>} : vector<1024x256xbf16>, vector<256x64xbf16>, vector<1024x64xf32> -> vector<1024x64xf32>
    %49 = vector.extract_strided_slice %48 {offsets = [0, 0], sizes = [64, 64], strides = [1, 1]} : vector<1024x64xf32> to vector<64x64xf32>
    %c0_30 = arith.constant 0 : index
    %c0_31 = arith.constant 0 : index
    %50 = vector.load %arg12[%c0_30, %c0_31] : memref<64x1024xf32, #tpu.memory_space<vmem>>, vector<64x64xf32>
    tpu.vector_store %arg12[%c0_30, %c0_31], %49 {strides = array<i32>} : memref<64x1024xf32, #tpu.memory_space<vmem>>, vector<64x64xf32>,
    %51 = vector.extract_strided_slice %48 {offsets = [64, 0], sizes = [64, 64], strides = [1, 1]} : vector<1024x64xf32> to vector<64x64xf32>
    %c0_32 = arith.constant 0 : index
    %c64_33 = arith.constant 64 : index
    %52 = vector.load %arg12[%c0_32, %c64_33] : memref<64x1024xf32, #tpu.memory_space<vmem>>, vector<64x64xf32>
    tpu.vector_store %arg12[%c0_32, %c64_33], %51 {strides = array<i32>} : memref<64x1024xf32, #tpu.memory_space<vmem>>, vector<64x64xf32>,
    %53 = vector.extract_strided_slice %48 {offsets = [128, 0], sizes = [64, 64], strides = [1, 1]} : vector<1024x64xf32> to vector<64x64xf32>
    %c0_34 = arith.constant 0 : index
    %c128_35 = arith.constant 128 : index
    %54 = vector.load %arg12[%c0_34, %c128_35] : memref<64x1024xf32, #tpu.memory_space<vmem>>, vector<64x64xf32>
    tpu.vector_store %arg12[%c0_34, %c128_35], %53 {strides = array<i32>} : memref<64x1024xf32, #tpu.memory_space<vmem>>, vector<64x64xf32>,
    %55 = vector.extract_strided_slice %48 {offsets = [192, 0], sizes = [64, 64], strides = [1, 1]} : vector<1024x64xf32> to vector<64x64xf32>
    %c0_36 = arith.constant 0 : index
    %c192_37 = arith.constant 192 : index
    %56 = vector.load %arg12[%c0_36, %c192_37] : memref<64x1024xf32, #tpu.memory_space<vmem>>, vector<64x64xf32>
    tpu.vector_store %arg12[%c0_36, %c192_37], %55 {strides = array<i32>} : memref<64x1024xf32, #tpu.memory_space<vmem>>, vector<64x64xf32>,
    %57 = vector.extract_strided_slice %48 {offsets = [256, 0], sizes = [64, 64], strides = [1, 1]} : vector<1024x64xf32> to vector<64x64xf32>
    %c0_38 = arith.constant 0 : index
    %c256_39 = arith.constant 256 : index
    %58 = vector.load %arg12[%c0_38, %c256_39] : memref<64x1024xf32, #tpu.memory_space<vmem>>, vector<64x64xf32>
    tpu.vector_store %arg12[%c0_38, %c256_39], %57 {strides = array<i32>} : memref<64x1024xf32, #tpu.memory_space<vmem>>, vector<64x64xf32>,
    %59 = vector.extract_strided_slice %48 {offsets = [320, 0], sizes = [64, 64], strides = [1, 1]} : vector<1024x64xf32> to vector<64x64xf32>
    %c0_40 = arith.constant 0 : index
    %c320_41 = arith.constant 320 : index
    %60 = vector.load %arg12[%c0_40, %c320_41] : memref<64x1024xf32, #tpu.memory_space<vmem>>, vector<64x64xf32>
    tpu.vector_store %arg12[%c0_40, %c320_41], %59 {strides = array<i32>} : memref<64x1024xf32, #tpu.memory_space<vmem>>, vector<64x64xf32>,
    %61 = vector.extract_strided_slice %48 {offsets = [384, 0], sizes = [64, 64], strides = [1, 1]} : vector<1024x64xf32> to vector<64x64xf32>
    %c0_42 = arith.constant 0 : index
    %c384_43 = arith.constant 384 : index
    %62 = vector.load %arg12[%c0_42, %c384_43] : memref<64x1024xf32, #tpu.memory_space<vmem>>, vector<64x64xf32>
    tpu.vector_store %arg12[%c0_42, %c384_43], %61 {strides = array<i32>} : memref<64x1024xf32, #tpu.memory_space<vmem>>, vector<64x64xf32>,
    %63 = vector.extract_strided_slice %48 {offsets = [448, 0], sizes = [64, 64], strides = [1, 1]} : vector<1024x64xf32> to vector<64x64xf32>
    %c0_44 = arith.constant 0 : index
    %c448_45 = arith.constant 448 : index
    %64 = vector.load %arg12[%c0_44, %c448_45] : memref<64x1024xf32, #tpu.memory_space<vmem>>, vector<64x64xf32>
    tpu.vector_store %arg12[%c0_44, %c448_45], %63 {strides = array<i32>} : memref<64x1024xf32, #tpu.memory_space<vmem>>, vector<64x64xf32>,
    %65 = vector.extract_strided_slice %48 {offsets = [512, 0], sizes = [64, 64], strides = [1, 1]} : vector<1024x64xf32> to vector<64x64xf32>
    %c0_46 = arith.constant 0 : index
    %c512_47 = arith.constant 512 : index
    %66 = vector.load %arg12[%c0_46, %c512_47] : memref<64x1024xf32, #tpu.memory_space<vmem>>, vector<64x64xf32>
    tpu.vector_store %arg12[%c0_46, %c512_47], %65 {strides = array<i32>} : memref<64x1024xf32, #tpu.memory_space<vmem>>, vector<64x64xf32>,
    %67 = vector.extract_strided_slice %48 {offsets = [576, 0], sizes = [64, 64], strides = [1, 1]} : vector<1024x64xf32> to vector<64x64xf32>
    %c0_48 = arith.constant 0 : index
    %c576_49 = arith.constant 576 : index
    %68 = vector.load %arg12[%c0_48, %c576_49] : memref<64x1024xf32, #tpu.memory_space<vmem>>, vector<64x64xf32>
    tpu.vector_store %arg12[%c0_48, %c576_49], %67 {strides = array<i32>} : memref<64x1024xf32, #tpu.memory_space<vmem>>, vector<64x64xf32>,
    %69 = vector.extract_strided_slice %48 {offsets = [640, 0], sizes = [64, 64], strides = [1, 1]} : vector<1024x64xf32> to vector<64x64xf32>
    %c0_50 = arith.constant 0 : index
    %c640_51 = arith.constant 640 : index
    %70 = vector.load %arg12[%c0_50, %c640_51] : memref<64x1024xf32, #tpu.memory_space<vmem>>, vector<64x64xf32>
    tpu.vector_store %arg12[%c0_50, %c640_51], %69 {strides = array<i32>} : memref<64x1024xf32, #tpu.memory_space<vmem>>, vector<64x64xf32>,
    %71 = vector.extract_strided_slice %48 {offsets = [704, 0], sizes = [64, 64], strides = [1, 1]} : vector<1024x64xf32> to vector<64x64xf32>
    %c0_52 = arith.constant 0 : index
    %c704_53 = arith.constant 704 : index
    %72 = vector.load %arg12[%c0_52, %c704_53] : memref<64x1024xf32, #tpu.memory_space<vmem>>, vector<64x64xf32>
    tpu.vector_store %arg12[%c0_52, %c704_53], %71 {strides = array<i32>} : memref<64x1024xf32, #tpu.memory_space<vmem>>, vector<64x64xf32>,
    %73 = vector.extract_strided_slice %48 {offsets = [768, 0], sizes = [64, 64], strides = [1, 1]} : vector<1024x64xf32> to vector<64x64xf32>
    %c0_54 = arith.constant 0 : index
    %c768_55 = arith.constant 768 : index
    %74 = vector.load %arg12[%c0_54, %c768_55] : memref<64x1024xf32, #tpu.memory_space<vmem>>, vector<64x64xf32>
    tpu.vector_store %arg12[%c0_54, %c768_55], %73 {strides = array<i32>} : memref<64x1024xf32, #tpu.memory_space<vmem>>, vector<64x64xf32>,
    %75 = vector.extract_strided_slice %48 {offsets = [832, 0], sizes = [64, 64], strides = [1, 1]} : vector<1024x64xf32> to vector<64x64xf32>
    %c0_56 = arith.constant 0 : index
    %c832_57 = arith.constant 832 : index
    %76 = vector.load %arg12[%c0_56, %c832_57] : memref<64x1024xf32, #tpu.memory_space<vmem>>, vector<64x64xf32>
    tpu.vector_store %arg12[%c0_56, %c832_57], %75 {strides = array<i32>} : memref<64x1024xf32, #tpu.memory_space<vmem>>, vector<64x64xf32>,
    %77 = vector.extract_strided_slice %48 {offsets = [896, 0], sizes = [64, 64], strides = [1, 1]} : vector<1024x64xf32> to vector<64x64xf32>
    %c0_58 = arith.constant 0 : index
    %c896_59 = arith.constant 896 : index
    %78 = vector.load %arg12[%c0_58, %c896_59] : memref<64x1024xf32, #tpu.memory_space<vmem>>, vector<64x64xf32>
    tpu.vector_store %arg12[%c0_58, %c896_59], %77 {strides = array<i32>} : memref<64x1024xf32, #tpu.memory_space<vmem>>, vector<64x64xf32>,
    %79 = vector.extract_strided_slice %48 {offsets = [960, 0], sizes = [64, 64], strides = [1, 1]} : vector<1024x64xf32> to vector<64x64xf32>
    %c0_60 = arith.constant 0 : index
    %c960_61 = arith.constant 960 : index
    %80 = vector.load %arg12[%c0_60, %c960_61] : memref<64x1024xf32, #tpu.memory_space<vmem>>, vector<64x64xf32>
    tpu.vector_store %arg12[%c0_60, %c960_61], %79 {strides = array<i32>} : memref<64x1024xf32, #tpu.memory_space<vmem>>, vector<64x64xf32>,
    %c0_62 = arith.constant 0 : index
    %c0_63 = arith.constant 0 : index
    %81 = vector.load %arg12[%c0_62, %c0_63] : memref<64x1024xf32, #tpu.memory_space<vmem>>, vector<64x1024xf32>
    %82 = arith.truncf %81 : vector<64x1024xf32> to vector<64x1024xbf16>
    %cst_64 = arith.constant dense<0.000000e+00> : vector<64x128xf32>
    %83 = tpu.matmul %82, %7, %cst_64 {dimension_numbers = #tpu.dot_dimension_numbers<[1], [0], [0], [1], [0, 0, 1, 1], [], []>} : vector<64x1024xbf16>, vector<1024x128xbf16>, vector<64x128xf32> -> vector<64x128xf32>
    %84 = tpu.concatenate %45, %83 in 0 : vector<64x128xf32>, vector<64x128xf32> -> vector<128x128xf32>
    %c0_65 = arith.constant 0 : index
    %c0_66 = arith.constant 0 : index
    %85 = vector.load %arg4[%c0_65, %c0_66] : memref<1x128xf32, #tpu.memory_space<vmem>>, vector<1x128xf32>
    %c0_67 = arith.constant 0 : index
    %c0_68 = arith.constant 0 : index
    %86 = vector.load %arg5[%c0_67, %c0_68] : memref<1x128xf32, #tpu.memory_space<vmem>>, vector<1x128xf32>
    %cst_69 = arith.constant dense<0.000000e+00> : vector<128xf32>
    %87 = vector.multi_reduction <add>, %84, %cst_69 [0] : vector<128x128xf32> to vector<128xf32>
    %88 = vector.shape_cast %87 : vector<128xf32> to vector<1x128xf32>
    %cst_70 = arith.constant 1.280000e+02 : f32
    %89 = vector.broadcast %cst_70 : f32 to vector<1x128xf32>
    %90 = arith.divf %88, %89 : vector<1x128xf32>
    %91 = vector.broadcast %90 : vector<1x128xf32> to vector<128x128xf32>
    %92 = arith.subf %84, %91 : vector<128x128xf32>
    %93 = arith.mulf %92, %92 : vector<128x128xf32>
    %cst_71 = arith.constant dense<0.000000e+00> : vector<128xf32>
    %94 = vector.multi_reduction <add>, %93, %cst_71 [0] : vector<128x128xf32> to vector<128xf32>
    %95 = vector.shape_cast %94 : vector<128xf32> to vector<1x128xf32>
    %cst_72 = arith.constant 1.280000e+02 : f32
    %96 = vector.broadcast %cst_72 : f32 to vector<1x128xf32>
    %97 = arith.divf %95, %96 : vector<1x128xf32>
    %98 = vector.broadcast %90 : vector<1x128xf32> to vector<128x128xf32>
    %99 = arith.subf %84, %98 : vector<128x128xf32>
    %cst_73 = arith.constant 9.99999974E-6 : f32
    %100 = vector.broadcast %cst_73 : f32 to vector<1x128xf32>
    %101 = arith.addf %97, %100 : vector<1x128xf32>
    %102 = math.rsqrt %101 : vector<1x128xf32>
    %103 = vector.broadcast %102 : vector<1x128xf32> to vector<128x128xf32>
    %104 = arith.mulf %99, %103 : vector<128x128xf32>
    %105 = vector.broadcast %85 : vector<1x128xf32> to vector<128x128xf32>
    %106 = arith.mulf %104, %105 : vector<128x128xf32>
    %107 = vector.broadcast %86 : vector<1x128xf32> to vector<128x128xf32>
    %108 = arith.addf %106, %107 : vector<128x128xf32>
    %cst_74 = arith.constant 2.000000e-01 : f32
    %109 = vector.broadcast %cst_74 : f32 to vector<128x128xf32>
    %110 = arith.mulf %109, %108 : vector<128x128xf32>
    %111 = arith.maximumf %108, %110 : vector<128x128xf32>
    %c0_75 = arith.constant 0 : index
    %c0_76 = arith.constant 0 : index
    %112 = vector.load %arg6[%c0_75, %c0_76] : memref<256x64xbf16, #tpu.memory_space<vmem>>, vector<256x64xbf16>
    %c0_77 = arith.constant 0 : index
    %c0_78 = arith.constant 0 : index
    %113 = vector.load %arg7[%c0_77, %c0_78] : memref<2048x256xbf16, #tpu.memory_space<vmem>>, vector<2048x256xbf16>
    %114 = vector.extract_strided_slice %111 {offsets = [0, 0], sizes = [64, 128], strides = [1, 1]} : vector<128x128xf32> to vector<64x128xf32>
    %115 = arith.truncf %114 : vector<64x128xf32> to vector<64x128xbf16>
    %cst_79 = arith.constant dense<0.000000e+00> : vector<256x128xf32>
    %116 = tpu.matmul %112, %115, %cst_79 {dimension_numbers = #tpu.dot_dimension_numbers<[1], [0], [0], [1], [0, 0, 1, 1], [], []>} : vector<256x64xbf16>, vector<64x128xbf16>, vector<256x128xf32> -> vector<256x128xf32>
    %117 = vector.extract_strided_slice %116 {offsets = [0, 0], sizes = [16, 128], strides = [1, 1]} : vector<256x128xf32> to vector<16x128xf32>
    %c0_80 = arith.constant 0 : index
    %c0_81 = arith.constant 0 : index
    %118 = vector.load %arg13[%c0_80, %c0_81] : memref<16x2048xf32, #tpu.memory_space<vmem>>, vector<16x128xf32>
    tpu.vector_store %arg13[%c0_80, %c0_81], %117 {strides = array<i32>} : memref<16x2048xf32, #tpu.memory_space<vmem>>, vector<16x128xf32>,
    %119 = vector.extract_strided_slice %116 {offsets = [16, 0], sizes = [16, 128], strides = [1, 1]} : vector<256x128xf32> to vector<16x128xf32>
    %c0_82 = arith.constant 0 : index
    %c128_83 = arith.constant 128 : index
    %120 = vector.load %arg13[%c0_82, %c128_83] : memref<16x2048xf32, #tpu.memory_space<vmem>>, vector<16x128xf32>
    tpu.vector_store %arg13[%c0_82, %c128_83], %119 {strides = array<i32>} : memref<16x2048xf32, #tpu.memory_space<vmem>>, vector<16x128xf32>,
    %121 = vector.extract_strided_slice %116 {offsets = [32, 0], sizes = [16, 128], strides = [1, 1]} : vector<256x128xf32> to vector<16x128xf32>
    %c0_84 = arith.constant 0 : index
    %c256_85 = arith.constant 256 : index
    %122 = vector.load %arg13[%c0_84, %c256_85] : memref<16x2048xf32, #tpu.memory_space<vmem>>, vector<16x128xf32>
    tpu.vector_store %arg13[%c0_84, %c256_85], %121 {strides = array<i32>} : memref<16x2048xf32, #tpu.memory_space<vmem>>, vector<16x128xf32>,
    %123 = vector.extract_strided_slice %116 {offsets = [48, 0], sizes = [16, 128], strides = [1, 1]} : vector<256x128xf32> to vector<16x128xf32>
    %c0_86 = arith.constant 0 : index
    %c384_87 = arith.constant 384 : index
    %124 = vector.load %arg13[%c0_86, %c384_87] : memref<16x2048xf32, #tpu.memory_space<vmem>>, vector<16x128xf32>
    tpu.vector_store %arg13[%c0_86, %c384_87], %123 {strides = array<i32>} : memref<16x2048xf32, #tpu.memory_space<vmem>>, vector<16x128xf32>,
    %125 = vector.extract_strided_slice %116 {offsets = [64, 0], sizes = [16, 128], strides = [1, 1]} : vector<256x128xf32> to vector<16x128xf32>
    %c0_88 = arith.constant 0 : index
    %c512_89 = arith.constant 512 : index
    %126 = vector.load %arg13[%c0_88, %c512_89] : memref<16x2048xf32, #tpu.memory_space<vmem>>, vector<16x128xf32>
    tpu.vector_store %arg13[%c0_88, %c512_89], %125 {strides = array<i32>} : memref<16x2048xf32, #tpu.memory_space<vmem>>, vector<16x128xf32>,
    %127 = vector.extract_strided_slice %116 {offsets = [80, 0], sizes = [16, 128], strides = [1, 1]} : vector<256x128xf32> to vector<16x128xf32>
    %c0_90 = arith.constant 0 : index
    %c640_91 = arith.constant 640 : index
    %128 = vector.load %arg13[%c0_90, %c640_91] : memref<16x2048xf32, #tpu.memory_space<vmem>>, vector<16x128xf32>
    tpu.vector_store %arg13[%c0_90, %c640_91], %127 {strides = array<i32>} : memref<16x2048xf32, #tpu.memory_space<vmem>>, vector<16x128xf32>,
    %129 = vector.extract_strided_slice %116 {offsets = [96, 0], sizes = [16, 128], strides = [1, 1]} : vector<256x128xf32> to vector<16x128xf32>
    %c0_92 = arith.constant 0 : index
    %c768_93 = arith.constant 768 : index
    %130 = vector.load %arg13[%c0_92, %c768_93] : memref<16x2048xf32, #tpu.memory_space<vmem>>, vector<16x128xf32>
    tpu.vector_store %arg13[%c0_92, %c768_93], %129 {strides = array<i32>} : memref<16x2048xf32, #tpu.memory_space<vmem>>, vector<16x128xf32>,
    %131 = vector.extract_strided_slice %116 {offsets = [112, 0], sizes = [16, 128], strides = [1, 1]} : vector<256x128xf32> to vector<16x128xf32>
    %c0_94 = arith.constant 0 : index
    %c896_95 = arith.constant 896 : index
    %132 = vector.load %arg13[%c0_94, %c896_95] : memref<16x2048xf32, #tpu.memory_space<vmem>>, vector<16x128xf32>
    tpu.vector_store %arg13[%c0_94, %c896_95], %131 {strides = array<i32>} : memref<16x2048xf32, #tpu.memory_space<vmem>>, vector<16x128xf32>,
    %133 = vector.extract_strided_slice %116 {offsets = [128, 0], sizes = [16, 128], strides = [1, 1]} : vector<256x128xf32> to vector<16x128xf32>
    %c0_96 = arith.constant 0 : index
    %c1024 = arith.constant 1024 : index
    %134 = vector.load %arg13[%c0_96, %c1024] : memref<16x2048xf32, #tpu.memory_space<vmem>>, vector<16x128xf32>
    tpu.vector_store %arg13[%c0_96, %c1024], %133 {strides = array<i32>} : memref<16x2048xf32, #tpu.memory_space<vmem>>, vector<16x128xf32>,
    %135 = vector.extract_strided_slice %116 {offsets = [144, 0], sizes = [16, 128], strides = [1, 1]} : vector<256x128xf32> to vector<16x128xf32>
    %c0_97 = arith.constant 0 : index
    %c1152 = arith.constant 1152 : index
    %136 = vector.load %arg13[%c0_97, %c1152] : memref<16x2048xf32, #tpu.memory_space<vmem>>, vector<16x128xf32>
    tpu.vector_store %arg13[%c0_97, %c1152], %135 {strides = array<i32>} : memref<16x2048xf32, #tpu.memory_space<vmem>>, vector<16x128xf32>,
    %137 = vector.extract_strided_slice %116 {offsets = [160, 0], sizes = [16, 128], strides = [1, 1]} : vector<256x128xf32> to vector<16x128xf32>
    %c0_98 = arith.constant 0 : index
    %c1280 = arith.constant 1280 : index
    %138 = vector.load %arg13[%c0_98, %c1280] : memref<16x2048xf32, #tpu.memory_space<vmem>>, vector<16x128xf32>
    tpu.vector_store %arg13[%c0_98, %c1280], %137 {strides = array<i32>} : memref<16x2048xf32, #tpu.memory_space<vmem>>, vector<16x128xf32>,
    %139 = vector.extract_strided_slice %116 {offsets = [176, 0], sizes = [16, 128], strides = [1, 1]} : vector<256x128xf32> to vector<16x128xf32>
    %c0_99 = arith.constant 0 : index
    %c1408 = arith.constant 1408 : index
    %140 = vector.load %arg13[%c0_99, %c1408] : memref<16x2048xf32, #tpu.memory_space<vmem>>, vector<16x128xf32>
    tpu.vector_store %arg13[%c0_99, %c1408], %139 {strides = array<i32>} : memref<16x2048xf32, #tpu.memory_space<vmem>>, vector<16x128xf32>,
    %141 = vector.extract_strided_slice %116 {offsets = [192, 0], sizes = [16, 128], strides = [1, 1]} : vector<256x128xf32> to vector<16x128xf32>
    %c0_100 = arith.constant 0 : index
    %c1536 = arith.constant 1536 : index
    %142 = vector.load %arg13[%c0_100, %c1536] : memref<16x2048xf32, #tpu.memory_space<vmem>>, vector<16x128xf32>
    tpu.vector_store %arg13[%c0_100, %c1536], %141 {strides = array<i32>} : memref<16x2048xf32, #tpu.memory_space<vmem>>, vector<16x128xf32>,
    %143 = vector.extract_strided_slice %116 {offsets = [208, 0], sizes = [16, 128], strides = [1, 1]} : vector<256x128xf32> to vector<16x128xf32>
    %c0_101 = arith.constant 0 : index
    %c1664 = arith.constant 1664 : index
    %144 = vector.load %arg13[%c0_101, %c1664] : memref<16x2048xf32, #tpu.memory_space<vmem>>, vector<16x128xf32>
    tpu.vector_store %arg13[%c0_101, %c1664], %143 {strides = array<i32>} : memref<16x2048xf32, #tpu.memory_space<vmem>>, vector<16x128xf32>,
    %145 = vector.extract_strided_slice %116 {offsets = [224, 0], sizes = [16, 128], strides = [1, 1]} : vector<256x128xf32> to vector<16x128xf32>
    %c0_102 = arith.constant 0 : index
    %c1792 = arith.constant 1792 : index
    %146 = vector.load %arg13[%c0_102, %c1792] : memref<16x2048xf32, #tpu.memory_space<vmem>>, vector<16x128xf32>
    tpu.vector_store %arg13[%c0_102, %c1792], %145 {strides = array<i32>} : memref<16x2048xf32, #tpu.memory_space<vmem>>, vector<16x128xf32>,
    %147 = vector.extract_strided_slice %116 {offsets = [240, 0], sizes = [16, 128], strides = [1, 1]} : vector<256x128xf32> to vector<16x128xf32>
    %c0_103 = arith.constant 0 : index
    %c1920 = arith.constant 1920 : index
    %148 = vector.load %arg13[%c0_103, %c1920] : memref<16x2048xf32, #tpu.memory_space<vmem>>, vector<16x128xf32>
    tpu.vector_store %arg13[%c0_103, %c1920], %147 {strides = array<i32>} : memref<16x2048xf32, #tpu.memory_space<vmem>>, vector<16x128xf32>,
    %c0_104 = arith.constant 0 : index
    %c0_105 = arith.constant 0 : index
    %149 = vector.load %arg13[%c0_104, %c0_105] : memref<16x2048xf32, #tpu.memory_space<vmem>>, vector<16x2048xf32>
    %150 = arith.truncf %149 : vector<16x2048xf32> to vector<16x2048xbf16>
    %cst_106 = arith.constant dense<0.000000e+00> : vector<16x256xf32>
    %151 = tpu.matmul %150, %113, %cst_106 {dimension_numbers = #tpu.dot_dimension_numbers<[1], [0], [0], [1], [0, 0, 1, 1], [], []>} : vector<16x2048xbf16>, vector<2048x256xbf16>, vector<16x256xf32> -> vector<16x256xf32>
    %152 = vector.extract_strided_slice %111 {offsets = [64, 0], sizes = [64, 128], strides = [1, 1]} : vector<128x128xf32> to vector<64x128xf32>
    %153 = arith.truncf %152 : vector<64x128xf32> to vector<64x128xbf16>
    %cst_107 = arith.constant dense<0.000000e+00> : vector<256x128xf32>
    %154 = tpu.matmul %112, %153, %cst_107 {dimension_numbers = #tpu.dot_dimension_numbers<[1], [0], [0], [1], [0, 0, 1, 1], [], []>} : vector<256x64xbf16>, vector<64x128xbf16>, vector<256x128xf32> -> vector<256x128xf32>
    %155 = vector.extract_strided_slice %154 {offsets = [0, 0], sizes = [16, 128], strides = [1, 1]} : vector<256x128xf32> to vector<16x128xf32>
    %c0_108 = arith.constant 0 : index
    %c0_109 = arith.constant 0 : index
    %156 = vector.load %arg13[%c0_108, %c0_109] : memref<16x2048xf32, #tpu.memory_space<vmem>>, vector<16x128xf32>
    tpu.vector_store %arg13[%c0_108, %c0_109], %155 {strides = array<i32>} : memref<16x2048xf32, #tpu.memory_space<vmem>>, vector<16x128xf32>,
    %157 = vector.extract_strided_slice %154 {offsets = [16, 0], sizes = [16, 128], strides = [1, 1]} : vector<256x128xf32> to vector<16x128xf32>
    %c0_110 = arith.constant 0 : index
    %c128_111 = arith.constant 128 : index
    %158 = vector.load %arg13[%c0_110, %c128_111] : memref<16x2048xf32, #tpu.memory_space<vmem>>, vector<16x128xf32>
    tpu.vector_store %arg13[%c0_110, %c128_111], %157 {strides = array<i32>} : memref<16x2048xf32, #tpu.memory_space<vmem>>, vector<16x128xf32>,
    %159 = vector.extract_strided_slice %154 {offsets = [32, 0], sizes = [16, 128], strides = [1, 1]} : vector<256x128xf32> to vector<16x128xf32>
    %c0_112 = arith.constant 0 : index
    %c256_113 = arith.constant 256 : index
    %160 = vector.load %arg13[%c0_112, %c256_113] : memref<16x2048xf32, #tpu.memory_space<vmem>>, vector<16x128xf32>
    tpu.vector_store %arg13[%c0_112, %c256_113], %159 {strides = array<i32>} : memref<16x2048xf32, #tpu.memory_space<vmem>>, vector<16x128xf32>,
    %161 = vector.extract_strided_slice %154 {offsets = [48, 0], sizes = [16, 128], strides = [1, 1]} : vector<256x128xf32> to vector<16x128xf32>
    %c0_114 = arith.constant 0 : index
    %c384_115 = arith.constant 384 : index
    %162 = vector.load %arg13[%c0_114, %c384_115] : memref<16x2048xf32, #tpu.memory_space<vmem>>, vector<16x128xf32>
    tpu.vector_store %arg13[%c0_114, %c384_115], %161 {strides = array<i32>} : memref<16x2048xf32, #tpu.memory_space<vmem>>, vector<16x128xf32>,
    %163 = vector.extract_strided_slice %154 {offsets = [64, 0], sizes = [16, 128], strides = [1, 1]} : vector<256x128xf32> to vector<16x128xf32>
    %c0_116 = arith.constant 0 : index
    %c512_117 = arith.constant 512 : index
    %164 = vector.load %arg13[%c0_116, %c512_117] : memref<16x2048xf32, #tpu.memory_space<vmem>>, vector<16x128xf32>
    tpu.vector_store %arg13[%c0_116, %c512_117], %163 {strides = array<i32>} : memref<16x2048xf32, #tpu.memory_space<vmem>>, vector<16x128xf32>,
    %165 = vector.extract_strided_slice %154 {offsets = [80, 0], sizes = [16, 128], strides = [1, 1]} : vector<256x128xf32> to vector<16x128xf32>
    %c0_118 = arith.constant 0 : index
    %c640_119 = arith.constant 640 : index
    %166 = vector.load %arg13[%c0_118, %c640_119] : memref<16x2048xf32, #tpu.memory_space<vmem>>, vector<16x128xf32>
    tpu.vector_store %arg13[%c0_118, %c640_119], %165 {strides = array<i32>} : memref<16x2048xf32, #tpu.memory_space<vmem>>, vector<16x128xf32>,
    %167 = vector.extract_strided_slice %154 {offsets = [96, 0], sizes = [16, 128], strides = [1, 1]} : vector<256x128xf32> to vector<16x128xf32>
    %c0_120 = arith.constant 0 : index
    %c768_121 = arith.constant 768 : index
    %168 = vector.load %arg13[%c0_120, %c768_121] : memref<16x2048xf32, #tpu.memory_space<vmem>>, vector<16x128xf32>
    tpu.vector_store %arg13[%c0_120, %c768_121], %167 {strides = array<i32>} : memref<16x2048xf32, #tpu.memory_space<vmem>>, vector<16x128xf32>,
    %169 = vector.extract_strided_slice %154 {offsets = [112, 0], sizes = [16, 128], strides = [1, 1]} : vector<256x128xf32> to vector<16x128xf32>
    %c0_122 = arith.constant 0 : index
    %c896_123 = arith.constant 896 : index
    %170 = vector.load %arg13[%c0_122, %c896_123] : memref<16x2048xf32, #tpu.memory_space<vmem>>, vector<16x128xf32>
    tpu.vector_store %arg13[%c0_122, %c896_123], %169 {strides = array<i32>} : memref<16x2048xf32, #tpu.memory_space<vmem>>, vector<16x128xf32>,
    %171 = vector.extract_strided_slice %154 {offsets = [128, 0], sizes = [16, 128], strides = [1, 1]} : vector<256x128xf32> to vector<16x128xf32>
    %c0_124 = arith.constant 0 : index
    %c1024_125 = arith.constant 1024 : index
    %172 = vector.load %arg13[%c0_124, %c1024_125] : memref<16x2048xf32, #tpu.memory_space<vmem>>, vector<16x128xf32>
    tpu.vector_store %arg13[%c0_124, %c1024_125], %171 {strides = array<i32>} : memref<16x2048xf32, #tpu.memory_space<vmem>>, vector<16x128xf32>,
    %173 = vector.extract_strided_slice %154 {offsets = [144, 0], sizes = [16, 128], strides = [1, 1]} : vector<256x128xf32> to vector<16x128xf32>
    %c0_126 = arith.constant 0 : index
    %c1152_127 = arith.constant 1152 : index
    %174 = vector.load %arg13[%c0_126, %c1152_127] : memref<16x2048xf32, #tpu.memory_space<vmem>>, vector<16x128xf32>
    tpu.vector_store %arg13[%c0_126, %c1152_127], %173 {strides = array<i32>} : memref<16x2048xf32, #tpu.memory_space<vmem>>, vector<16x128xf32>,
    %175 = vector.extract_strided_slice %154 {offsets = [160, 0], sizes = [16, 128], strides = [1, 1]} : vector<256x128xf32> to vector<16x128xf32>
    %c0_128 = arith.constant 0 : index
    %c1280_129 = arith.constant 1280 : index
    %176 = vector.load %arg13[%c0_128, %c1280_129] : memref<16x2048xf32, #tpu.memory_space<vmem>>, vector<16x128xf32>
    tpu.vector_store %arg13[%c0_128, %c1280_129], %175 {strides = array<i32>} : memref<16x2048xf32, #tpu.memory_space<vmem>>, vector<16x128xf32>,
    %177 = vector.extract_strided_slice %154 {offsets = [176, 0], sizes = [16, 128], strides = [1, 1]} : vector<256x128xf32> to vector<16x128xf32>
    %c0_130 = arith.constant 0 : index
    %c1408_131 = arith.constant 1408 : index
    %178 = vector.load %arg13[%c0_130, %c1408_131] : memref<16x2048xf32, #tpu.memory_space<vmem>>, vector<16x128xf32>
    tpu.vector_store %arg13[%c0_130, %c1408_131], %177 {strides = array<i32>} : memref<16x2048xf32, #tpu.memory_space<vmem>>, vector<16x128xf32>,
    %179 = vector.extract_strided_slice %154 {offsets = [192, 0], sizes = [16, 128], strides = [1, 1]} : vector<256x128xf32> to vector<16x128xf32>
    %c0_132 = arith.constant 0 : index
    %c1536_133 = arith.constant 1536 : index
    %180 = vector.load %arg13[%c0_132, %c1536_133] : memref<16x2048xf32, #tpu.memory_space<vmem>>, vector<16x128xf32>
    tpu.vector_store %arg13[%c0_132, %c1536_133], %179 {strides = array<i32>} : memref<16x2048xf32, #tpu.memory_space<vmem>>, vector<16x128xf32>,
    %181 = vector.extract_strided_slice %154 {offsets = [208, 0], sizes = [16, 128], strides = [1, 1]} : vector<256x128xf32> to vector<16x128xf32>
    %c0_134 = arith.constant 0 : index
    %c1664_135 = arith.constant 1664 : index
    %182 = vector.load %arg13[%c0_134, %c1664_135] : memref<16x2048xf32, #tpu.memory_space<vmem>>, vector<16x128xf32>
    tpu.vector_store %arg13[%c0_134, %c1664_135], %181 {strides = array<i32>} : memref<16x2048xf32, #tpu.memory_space<vmem>>, vector<16x128xf32>,
    %183 = vector.extract_strided_slice %154 {offsets = [224, 0], sizes = [16, 128], strides = [1, 1]} : vector<256x128xf32> to vector<16x128xf32>
    %c0_136 = arith.constant 0 : index
    %c1792_137 = arith.constant 1792 : index
    %184 = vector.load %arg13[%c0_136, %c1792_137] : memref<16x2048xf32, #tpu.memory_space<vmem>>, vector<16x128xf32>
    tpu.vector_store %arg13[%c0_136, %c1792_137], %183 {strides = array<i32>} : memref<16x2048xf32, #tpu.memory_space<vmem>>, vector<16x128xf32>,
    %185 = vector.extract_strided_slice %154 {offsets = [240, 0], sizes = [16, 128], strides = [1, 1]} : vector<256x128xf32> to vector<16x128xf32>
    %c0_138 = arith.constant 0 : index
    %c1920_139 = arith.constant 1920 : index
    %186 = vector.load %arg13[%c0_138, %c1920_139] : memref<16x2048xf32, #tpu.memory_space<vmem>>, vector<16x128xf32>
    tpu.vector_store %arg13[%c0_138, %c1920_139], %185 {strides = array<i32>} : memref<16x2048xf32, #tpu.memory_space<vmem>>, vector<16x128xf32>,
    %c0_140 = arith.constant 0 : index
    %c0_141 = arith.constant 0 : index
    %187 = vector.load %arg13[%c0_140, %c0_141] : memref<16x2048xf32, #tpu.memory_space<vmem>>, vector<16x2048xf32>
    %188 = arith.truncf %187 : vector<16x2048xf32> to vector<16x2048xbf16>
    %cst_142 = arith.constant dense<0.000000e+00> : vector<16x256xf32>
    %189 = tpu.matmul %188, %113, %cst_142 {dimension_numbers = #tpu.dot_dimension_numbers<[1], [0], [0], [1], [0, 0, 1, 1], [], []>} : vector<16x2048xbf16>, vector<2048x256xbf16>, vector<16x256xf32> -> vector<16x256xf32>
    %190 = tpu.concatenate %151, %189 in 0 : vector<16x256xf32>, vector<16x256xf32> -> vector<32x256xf32>
    %c0_143 = arith.constant 0 : index
    %c0_144 = arith.constant 0 : index
    %191 = vector.load %arg8[%c0_143, %c0_144] : memref<1x256xf32, #tpu.memory_space<vmem>>, vector<1x256xf32>
    %c0_145 = arith.constant 0 : index
    %c0_146 = arith.constant 0 : index
    %192 = vector.load %arg9[%c0_145, %c0_146] : memref<1x256xf32, #tpu.memory_space<vmem>>, vector<1x256xf32>
    %cst_147 = arith.constant dense<0.000000e+00> : vector<256xf32>
    %193 = vector.multi_reduction <add>, %190, %cst_147 [0] : vector<32x256xf32> to vector<256xf32>
    %194 = vector.shape_cast %193 : vector<256xf32> to vector<1x256xf32>
    %cst_148 = arith.constant 3.200000e+01 : f32
    %195 = vector.broadcast %cst_148 : f32 to vector<1x256xf32>
    %196 = arith.divf %194, %195 : vector<1x256xf32>
    %197 = vector.broadcast %196 : vector<1x256xf32> to vector<32x256xf32>
    %198 = arith.subf %190, %197 : vector<32x256xf32>
    %199 = arith.mulf %198, %198 : vector<32x256xf32>
    %cst_149 = arith.constant dense<0.000000e+00> : vector<256xf32>
    %200 = vector.multi_reduction <add>, %199, %cst_149 [0] : vector<32x256xf32> to vector<256xf32>
    %201 = vector.shape_cast %200 : vector<256xf32> to vector<1x256xf32>
    %cst_150 = arith.constant 3.200000e+01 : f32
    %202 = vector.broadcast %cst_150 : f32 to vector<1x256xf32>
    %203 = arith.divf %201, %202 : vector<1x256xf32>
    %204 = vector.broadcast %196 : vector<1x256xf32> to vector<32x256xf32>
    %205 = arith.subf %190, %204 : vector<32x256xf32>
    %cst_151 = arith.constant 9.99999974E-6 : f32
    %206 = vector.broadcast %cst_151 : f32 to vector<1x256xf32>
    %207 = arith.addf %203, %206 : vector<1x256xf32>
    %208 = math.rsqrt %207 : vector<1x256xf32>
    %209 = vector.broadcast %208 : vector<1x256xf32> to vector<32x256xf32>
    %210 = arith.mulf %205, %209 : vector<32x256xf32>
    %211 = vector.broadcast %191 : vector<1x256xf32> to vector<32x256xf32>
    %212 = arith.mulf %210, %211 : vector<32x256xf32>
    %213 = vector.broadcast %192 : vector<1x256xf32> to vector<32x256xf32>
    %214 = arith.addf %212, %213 : vector<32x256xf32>
    %cst_152 = arith.constant 2.000000e-01 : f32
    %215 = vector.broadcast %cst_152 : f32 to vector<32x256xf32>
    %216 = arith.mulf %215, %214 : vector<32x256xf32>
    %217 = arith.maximumf %214, %216 : vector<32x256xf32>
    %218 = vector.shape_cast %217 : vector<32x256xf32> to vector<2x16x256xf32>
    %c0_153 = arith.constant 0 : index
    %c0_154 = arith.constant 0 : index
    %219 = vector.load %arg10[%c0_153, %c0_154] : memref<16x256xf32, #tpu.memory_space<vmem>>, vector<16x256xf32>
    %220 = vector.shape_cast %219 : vector<16x256xf32> to vector<1x16x256xf32>
    %221 = vector.broadcast %220 : vector<1x16x256xf32> to vector<2x16x256xf32>
    %222 = arith.mulf %218, %221 : vector<2x16x256xf32>
    %cst_155 = arith.constant dense<0.000000e+00> : vector<2x16xf32>
    %223 = vector.multi_reduction <add>, %222, %cst_155 [2] : vector<2x16x256xf32> to vector<2x16xf32>
    %cst_156 = arith.constant dense<0.000000e+00> : vector<2xf32>
    %224 = vector.multi_reduction <add>, %223, %cst_156 [1] : vector<2x16xf32> to vector<2xf32>
    %225 = vector.shape_cast %224 : vector<2xf32> to vector<2x1xf32>
    %cst_157 = arith.constant 0.000000e+00 : f32
    %226 = vector.broadcast %cst_157 : f32 to vector<2x1xf32>
    %227 = arith.subf %226, %225 : vector<2x1xf32>
    %228 = math.exp %227 : vector<2x1xf32>
    %cst_158 = arith.constant 1.000000e+00 : f32
    %229 = vector.broadcast %cst_158 : f32 to vector<2x1xf32>
    %230 = arith.addf %229, %228 : vector<2x1xf32>
    %cst_159 = arith.constant 1.000000e+00 : f32
    %231 = vector.broadcast %cst_159 : f32 to vector<2x1xf32>
    %232 = arith.divf %231, %230 : vector<2x1xf32>
    %233 = vector.shape_cast %232 : vector<2x1xf32> to vector<2x1xf32>
    %234 = vector.broadcast %233 : vector<2x1xf32> to vector<2x128xf32>
    %c0_160 = arith.constant 0 : index
    %c0_161 = arith.constant 0 : index
    %235 = vector.load %arg11[%c0_160, %c0_161] : memref<2x128xf32, #tpu.memory_space<vmem>>, vector<2x128xf32>
    tpu.vector_store %arg11[%c0_160, %c0_161], %234 {strides = array<i32>} : memref<2x128xf32, #tpu.memory_space<vmem>>, vector<2x128xf32>,
    return
  }
}

</mosaic_0001>

<llo_original>
// kernel: dc_discriminator.1
$region0: #{dc_discriminator.1}
  #allocation0 [shape = 'u32[]', space=smem, size = 0x4, offset = 0x4, fixed_abs, tag = 'smem constant byte address 0x4 - core index']
  #allocation1 [shape = 'u32[72,128]{1,0:T(1,128)}', space=vmem, size = 0x9000, scoped, tag = 'internal scratch']
  #allocation2 [shape = 'f32[64,1024]{1,0:T(8,128)}', space=vmem, size = 0x40000, scoped, tag = 'scratch operand']
  #allocation3 [shape = 'f32[16,2048]{1,0:T(8,128)}', space=vmem, size = 0x20000, scoped, tag = 'scratch operand']
  %s0 = inlined_call_operand.vmem [shape: bf16[512,128], index: 0, kind: input, shape index: {}]
  %s1 = inlined_call_operand.vmem [shape: bf16[128,64], index: 1, kind: input, shape index: {}]
  %s2 = inlined_call_operand.vmem [shape: bf16[1024,256], index: 2, kind: input, shape index: {}]
  %s3 = inlined_call_operand.vmem [shape: bf16[1024,128], index: 3, kind: input, shape index: {}]
  %s4 = inlined_call_operand.vmem [shape: f32[1,128], index: 4, kind: input, shape index: {}]
  %s5 = inlined_call_operand.vmem [shape: f32[1,128], index: 5, kind: input, shape index: {}]
  %s6 = inlined_call_operand.vmem [shape: bf16[256,64], index: 6, kind: input, shape index: {}]
  %s7 = inlined_call_operand.vmem [shape: bf16[2048,256], index: 7, kind: input, shape index: {}]
  %s8 = inlined_call_operand.vmem [shape: f32[1,256], index: 8, kind: input, shape index: {}]
  %s9 = inlined_call_operand.vmem [shape: f32[1,256], index: 9, kind: input, shape index: {}]
  %s10 = inlined_call_operand.vmem [shape: f32[16,256], index: 10, kind: input, shape index: {}]
  %s11 = inlined_call_operand.vmem [shape: f32[2,128], index: 11, kind: output, shape index: {}]
  %s12 = sld [smem:[#allocation0]]
  $region54: #{dc_discriminator.1} parent=0
    _
  %s14 = ssub.s32 1, %s12
  %s15 = scalar_select 0, %s14, %s12
  // Predicated region
  $region2: #{dc_discriminator.1} parent=0 // pred_check
    _
  $region3: #{dc_discriminator.1} parent=0 // pred_check_branch
    %17 = sbr.rel (0) target = $region5
  $region4: #{dc_discriminator.1} parent=0 // pred_region
    _
  $region5: #{dc_discriminator.1} parent=0 // pred_fallthru
    _
  // Predicated region
  $region6: #{dc_discriminator.1} parent=0 // pred_check
    _
  $region7: #{dc_discriminator.1} parent=0 // pred_check_branch
    %19 = sbr.rel (0) target = $region9
  $region8: #{dc_discriminator.1} parent=0 // pred_region
    _
  $region9: #{dc_discriminator.1} parent=0 // pred_fallthru
    _
  // Predicated region
  $region10: #{dc_discriminator.1} parent=0 // pred_check
    _
  $region11: #{dc_discriminator.1} parent=0 // pred_check_branch
    %21 = sbr.rel (0) target = $region13
  $region12: #{dc_discriminator.1} parent=0 // pred_region
    _
  $region13: #{dc_discriminator.1} parent=0 // pred_fallthru
    _
  // Predicated region
  $region14: #{dc_discriminator.1} parent=0 // pred_check
    _
  $region15: #{dc_discriminator.1} parent=0 // pred_check_branch
    %23 = sbr.rel (0) target = $region17
  $region16: #{dc_discriminator.1} parent=0 // pred_region
    _
  $region17: #{dc_discriminator.1} parent=0 // pred_fallthru
    _
  // Predicated region
  $region18: #{dc_discriminator.1} parent=0 // pred_check
    _
  $region19: #{dc_discriminator.1} parent=0 // pred_check_branch
    %25 = sbr.rel (0) target = $region21
  $region20: #{dc_discriminator.1} parent=0 // pred_region
    _
  $region21: #{dc_discriminator.1} parent=0 // pred_fallthru
    _
  // Predicated region
  $region22: #{dc_discriminator.1} parent=0 // pred_check
    _
  $region23: #{dc_discriminator.1} parent=0 // pred_check_branch
    %27 = sbr.rel (0) target = $region25
  $region24: #{dc_discriminator.1} parent=0 // pred_region
    _
  $region25: #{dc_discriminator.1} parent=0 // pred_fallthru
    _
  // Predicated region
  $region26: #{dc_discriminator.1} parent=0 // pred_check
    _
  $region27: #{dc_discriminator.1} parent=0 // pred_check_branch
    %29 = sbr.rel (0) target = $region29
  $region28: #{dc_discriminator.1} parent=0 // pred_region
    _
  $region29: #{dc_discriminator.1} parent=0 // pred_fallthru
    _
  // Predicated region
  $region30: #{dc_discriminator.1} parent=0 // pred_check
    _
  $region31: #{dc_discriminator.1} parent=0 // pred_check_branch
    %31 = sbr.rel (0) target = $region33
  $region32: #{dc_discriminator.1} parent=0 // pred_region
    _
  $region33: #{dc_discriminator.1} parent=0 // pred_fallthru
    _
  // Predicated region
  $region34: #{dc_discriminator.1} parent=0 // pred_check
    _
  $region35: #{dc_discriminator.1} parent=0 // pred_check_branch
    %33 = sbr.rel (0) target = $region37
  $region36: #{dc_discriminator.1} parent=0 // pred_region
    _
  $region37: #{dc_discriminator.1} parent=0 // pred_fallthru
    _
  // Predicated region
  $region38: #{dc_discriminator.1} parent=0 // pred_check
    _
  $region39: #{dc_discriminator.1} parent=0 // pred_check_branch
    %35 = sbr.rel (0) target = $region41
  $region40: #{dc_discriminator.1} parent=0 // pred_region
    _
  $region41: #{dc_discriminator.1} parent=0 // pred_fallthru
    _
  // Predicated region
  $region42: #{dc_discriminator.1} parent=0 // pred_check
    _
  $region43: #{dc_discriminator.1} parent=0 // pred_check_branch
    %37 = sbr.rel (0) target = $region45
  $region44: #{dc_discriminator.1} parent=0 // pred_region
    _
  $region45: #{dc_discriminator.1} parent=0 // pred_fallthru
    _
  %v39 = vld [vmem:[%s0] sm:$0xf]
  %v40 = vld [vmem:[%s0 + $0x4] sm:$0xf]
  %v41 = vld [vmem:[%s0 + $0x8] sm:$0xf]
  %v42 = vld [vmem:[%s0 + $0xc] sm:$0xf]
  %v43 = vld [vmem:[%s0 + $0x10] sm:$0xf]
  %v44 = vld [vmem:[%s0 + $0x14] sm:$0xf]
  %v45 = vld [vmem:[%s0 + $0x18] sm:$0xf]
  %v46 = vld [vmem:[%s0 + $0x1c] sm:$0xf]
  %v47 = vld [vmem:[%s0 + $0x20] sm:$0xf]
  %v48 = vld [vmem:[%s0 + $0x24] sm:$0xf]
  %v49 = vld [vmem:[%s0 + $0x28] sm:$0xf]
  %v50 = vld [vmem:[%s0 + $0x2c] sm:$0xf]
  %v51 = vld [vmem:[%s0 + $0x30] sm:$0xf]
  %v52 = vld [vmem:[%s0 + $0x34] sm:$0xf]
  %v53 = vld [vmem:[%s0 + $0x38] sm:$0xf]
  %v54 = vld [vmem:[%s0 + $0x3c] sm:$0xf]
  %v55 = vld [vmem:[%s0 + $0x40] sm:$0xf]
  %v56 = vld [vmem:[%s0 + $0x44] sm:$0xf]
  %v57 = vld [vmem:[%s0 + $0x48] sm:$0xf]
  %v58 = vld [vmem:[%s0 + $0x4c] sm:$0xf]
  %v59 = vld [vmem:[%s0 + $0x50] sm:$0xf]
  %v60 = vld [vmem:[%s0 + $0x54] sm:$0xf]
  %v61 = vld [vmem:[%s0 + $0x58] sm:$0xf]
  %v62 = vld [vmem:[%s0 + $0x5c] sm:$0xf]
  %v63 = vld [vmem:[%s0 + $0x60] sm:$0xf]
  %v64 = vld [vmem:[%s0 + $0x64] sm:$0xf]
  %v65 = vld [vmem:[%s0 + $0x68] sm:$0xf]
  %v66 = vld [vmem:[%s0 + $0x6c] sm:$0xf]
  %v67 = vld [vmem:[%s0 + $0x70] sm:$0xf]
  %v68 = vld [vmem:[%s0 + $0x74] sm:$0xf]
  %v69 = vld [vmem:[%s0 + $0x78] sm:$0xf]
  %v70 = vld [vmem:[%s0 + $0x7c] sm:$0xf]
  %v71 = vld [vmem:[%s0 + $0x80] sm:$0xf]
  %v72 = vld [vmem:[%s0 + $0x84] sm:$0xf]
  %v73 = vld [vmem:[%s0 + $0x88] sm:$0xf]
  %v74 = vld [vmem:[%s0 + $0x8c] sm:$0xf]
  %v75 = vld [vmem:[%s0 + $0x90] sm:$0xf]
  %v76 = vld [vmem:[%s0 + $0x94] sm:$0xf]
  %v77 = vld [vmem:[%s0 + $0x98] sm:$0xf]
  %v78 = vld [vmem:[%s0 + $0x9c] sm:$0xf]
  %v79 = vld [vmem:[%s0 + $0xa0] sm:$0xf]
  %v80 = vld [vmem:[%s0 + $0xa4] sm:$0xf]
  %v81 = vld [vmem:[%s0 + $0xa8] sm:$0xf]
  %v82 = vld [vmem:[%s0 + $0xac] sm:$0xf]
  %v83 = vld [vmem:[%s0 + $0xb0] sm:$0xf]
  %v84 = vld [vmem:[%s0 + $0xb4] sm:$0xf]
  %v85 = vld [vmem:[%s0 + $0xb8] sm:$0xf]
  %v86 = vld [vmem:[%s0 + $0xbc] sm:$0xf]
  %v87 = vld [vmem:[%s0 + $0xc0] sm:$0xf]
  %v88 = vld [vmem:[%s0 + $0xc4] sm:$0xf]
  %v89 = vld [vmem:[%s0 + $0xc8] sm:$0xf]
  %v90 = vld [vmem:[%s0 + $0xcc] sm:$0xf]
  %v91 = vld [vmem:[%s0 + $0xd0] sm:$0xf]
  %v92 = vld [vmem:[%s0 + $0xd4] sm:$0xf]
  %v93 = vld [vmem:[%s0 + $0xd8] sm:$0xf]
  %v94 = vld [vmem:[%s0 + $0xdc] sm:$0xf]
  %v95 = vld [vmem:[%s0 + $0xe0] sm:$0xf]
  %v96 = vld [vmem:[%s0 + $0xe4] sm:$0xf]
  %v97 = vld [vmem:[%s0 + $0xe8] sm:$0xf]
  %v98 = vld [vmem:[%s0 + $0xec] sm:$0xf]
  %v99 = vld [vmem:[%s0 + $0xf0] sm:$0xf]
  %v100 = vld [vmem:[%s0 + $0xf4] sm:$0xf]
  %v101 = vld [vmem:[%s0 + $0xf8] sm:$0xf]
  %v102 = vld [vmem:[%s0 + $0xfc] sm:$0xf]
  %v103 = vld [vmem:[%s1] sm:$0xf]
  %v104 = vld [vmem:[%s1 + $0x4] sm:$0xf]
  %v105 = vld [vmem:[%s1 + $0x8] sm:$0xf]
  %v106 = vld [vmem:[%s1 + $0xc] sm:$0xf]
  %v107 = vld [vmem:[%s1 + $0x10] sm:$0xf]
  %v108 = vld [vmem:[%s1 + $0x14] sm:$0xf]
  %v109 = vld [vmem:[%s1 + $0x18] sm:$0xf]
  %v110 = vld [vmem:[%s1 + $0x1c] sm:$0xf]
  %v111 = vld [vmem:[%s1 + $0x20] sm:$0xf]
  %v112 = vld [vmem:[%s1 + $0x24] sm:$0xf]
  %v113 = vld [vmem:[%s1 + $0x28] sm:$0xf]
  %v114 = vld [vmem:[%s1 + $0x2c] sm:$0xf]
  %v115 = vld [vmem:[%s1 + $0x30] sm:$0xf]
  %v116 = vld [vmem:[%s1 + $0x34] sm:$0xf]
  %v117 = vld [vmem:[%s1 + $0x38] sm:$0xf]
  %v118 = vld [vmem:[%s1 + $0x3c] sm:$0xf]
  %v183 = vunpack.c.l.b16 %v39
  %v184 = vunpack.c.l.b16 %v40
  %v185 = vunpack.c.l.b16 %v41
  %v186 = vunpack.c.l.b16 %v42
  %v187 = vunpack.c.l.b16 %v43
  %v188 = vunpack.c.l.b16 %v44
  %v189 = vunpack.c.l.b16 %v45
  %v190 = vunpack.c.l.b16 %v46
  %v191 = vunpack.c.l.b16 %v47
  %v192 = vunpack.c.l.b16 %v48
  %v193 = vunpack.c.l.b16 %v49
  %v194 = vunpack.c.l.b16 %v50
  %v195 = vunpack.c.l.b16 %v51
  %v196 = vunpack.c.l.b16 %v52
  %v197 = vunpack.c.l.b16 %v53
  %v198 = vunpack.c.l.b16 %v54
  %v199 = vunpack.c.l.b16 %v55
  %v200 = vunpack.c.l.b16 %v56
  %v201 = vunpack.c.l.b16 %v57
  %v202 = vunpack.c.l.b16 %v58
  %v203 = vunpack.c.l.b16 %v59
  %v204 = vunpack.c.l.b16 %v60
  %v205 = vunpack.c.l.b16 %v61
  %v206 = vunpack.c.l.b16 %v62
  %v207 = vunpack.c.l.b16 %v63
  %v208 = vunpack.c.l.b16 %v64
  %v209 = vunpack.c.l.b16 %v65
  %v210 = vunpack.c.l.b16 %v66
  %v211 = vunpack.c.l.b16 %v67
  %v212 = vunpack.c.l.b16 %v68
  %v213 = vunpack.c.l.b16 %v69
  %v214 = vunpack.c.l.b16 %v70
  %v215 = vunpack.c.l.b16 %v71
  %v216 = vunpack.c.l.b16 %v72
  %v217 = vunpack.c.l.b16 %v73
  %v218 = vunpack.c.l.b16 %v74
  %v219 = vunpack.c.l.b16 %v75
  %v220 = vunpack.c.l.b16 %v76
  %v221 = vunpack.c.l.b16 %v77
  %v222 = vunpack.c.l.b16 %v78
  %v223 = vunpack.c.l.b16 %v79
  %v224 = vunpack.c.l.b16 %v80
  %v225 = vunpack.c.l.b16 %v81
  %v226 = vunpack.c.l.b16 %v82
  %v227 = vunpack.c.l.b16 %v83
  %v228 = vunpack.c.l.b16 %v84
  %v229 = vunpack.c.l.b16 %v85
  %v230 = vunpack.c.l.b16 %v86
  %v231 = vunpack.c.l.b16 %v87
  %v232 = vunpack.c.l.b16 %v88
  %v233 = vunpack.c.l.b16 %v89
  %v234 = vunpack.c.l.b16 %v90
  %v235 = vunpack.c.l.b16 %v91
  %v236 = vunpack.c.l.b16 %v92
  %v237 = vunpack.c.l.b16 %v93
  %v238 = vunpack.c.l.b16 %v94
  %v239 = vunpack.c.l.b16 %v95
  %v240 = vunpack.c.l.b16 %v96
  %v241 = vunpack.c.l.b16 %v97
  %v242 = vunpack.c.l.b16 %v98
  %v243 = vunpack.c.l.b16 %v99
  %v244 = vunpack.c.l.b16 %v100
  %v245 = vunpack.c.l.b16 %v101
  %v246 = vunpack.c.l.b16 %v102
  %v247 = vpack.c.b16 %v184, %v183
  %v248 = vpack.c.b16 %v186, %v185
  %v249 = vpack.c.b16 %v188, %v187
  %v250 = vpack.c.b16 %v190, %v189
  %v251 = vpack.c.b16 %v192, %v191
  %v252 = vpack.c.b16 %v194, %v193
  %v253 = vpack.c.b16 %v196, %v195
  %v254 = vpack.c.b16 %v198, %v197
  %v255 = vpack.c.b16 %v200, %v199
  %v256 = vpack.c.b16 %v202, %v201
  %v257 = vpack.c.b16 %v204, %v203
  %v258 = vpack.c.b16 %v206, %v205
  %v259 = vpack.c.b16 %v208, %v207
  %v260 = vpack.c.b16 %v210, %v209
  %v261 = vpack.c.b16 %v212, %v211
  %v262 = vpack.c.b16 %v214, %v213
  %v263 = vpack.c.b16 %v216, %v215
  %v264 = vpack.c.b16 %v218, %v217
  %v265 = vpack.c.b16 %v220, %v219
  %v266 = vpack.c.b16 %v222, %v221
  %v267 = vpack.c.b16 %v224, %v223
  %v268 = vpack.c.b16 %v226, %v225
  %v269 = vpack.c.b16 %v228, %v227
  %v270 = vpack.c.b16 %v230, %v229
  %v271 = vpack.c.b16 %v232, %v231
  %v272 = vpack.c.b16 %v234, %v233
  %v273 = vpack.c.b16 %v236, %v235
  %v274 = vpack.c.b16 %v238, %v237
  %v275 = vpack.c.b16 %v240, %v239
  %v276 = vpack.c.b16 %v242, %v241
  %v277 = vpack.c.b16 %v244, %v243
  %v278 = vpack.c.b16 %v246, %v245
  %v327 = vunpack.c.l.b16 %v103
  %v328 = vunpack.c.l.b16 %v104
  %v329 = vunpack.c.l.b16 %v105
  %v330 = vunpack.c.l.b16 %v106
  %v331 = vunpack.c.l.b16 %v107
  %v332 = vunpack.c.l.b16 %v108
  %v333 = vunpack.c.l.b16 %v109
  %v334 = vunpack.c.l.b16 %v110
  %v335 = vunpack.c.l.b16 %v111
  %v336 = vunpack.c.l.b16 %v112
  %v337 = vunpack.c.l.b16 %v113
  %v338 = vunpack.c.l.b16 %v114
  %v339 = vunpack.c.l.b16 %v115
  %v340 = vunpack.c.l.b16 %v116
  %v341 = vunpack.c.l.b16 %v117
  %v342 = vunpack.c.l.b16 %v118
  %v343 = vpack.c.b16 %v328, %v327
  %v344 = vpack.c.b16 %v330, %v329
  %v345 = vpack.c.b16 %v332, %v331
  %v346 = vpack.c.b16 %v334, %v333
  %v347 = vpack.c.b16 %v336, %v335
  %v348 = vpack.c.b16 %v338, %v337
  %v349 = vpack.c.b16 %v340, %v339
  %v350 = vpack.c.b16 %v342, %v341
  %359 = vmatpush.bf16.msra.mxu0 %v350
  %360 = vmatpush.bf16.msra.mxu0 %v349
  %361 = vmatpush.bf16.msra.mxu0 %v348
  %362 = vmatpush.bf16.msra.mxu0 %v347
  %363 = vmatpush.bf16.msra.mxu0 %v346
  %364 = vmatpush.bf16.msra.mxu0 %v345
  %365 = vmatpush.bf16.msra.mxu0 %v344
  %366 = vmatpush.bf16.msra.mxu0 %v343
  %367 = vmatmul.bf16.gmra.mxu0 %v247
  %v368 = vpop.f32.mrf.mxu0
  %v369 = vadd.f32 0.0, %v368
  %v370 = vpop.f32.mrf.mxu0
  %v371 = vadd.f32 0.0, %v370
  %372 = vmatmul.bf16.gmra.mxu0 %v248
  %v373 = vpop.f32.mrf.mxu0
  %v374 = vadd.f32 0.0, %v373
  %v375 = vpop.f32.mrf.mxu0
  %v376 = vadd.f32 0.0, %v375
  %377 = vmatmul.bf16.gmra.mxu0 %v249
  %v378 = vpop.f32.mrf.mxu0
  %v379 = vadd.f32 0.0, %v378
  %v380 = vpop.f32.mrf.mxu0
  %v381 = vadd.f32 0.0, %v380
  %382 = vmatmul.bf16.gmra.mxu0 %v250
  %v383 = vpop.f32.mrf.mxu0
  %v384 = vadd.f32 0.0, %v383
  %v385 = vpop.f32.mrf.mxu0
  %v386 = vadd.f32 0.0, %v385
  %387 = vmatmul.bf16.gmra.mxu0 %v251
  %v388 = vpop.f32.mrf.mxu0
  %v389 = vadd.f32 0.0, %v388
  %v390 = vpop.f32.mrf.mxu0
  %v391 = vadd.f32 0.0, %v390
  %392 = vmatmul.bf16.gmra.mxu0 %v252
  %v393 = vpop.f32.mrf.mxu0
  %v394 = vadd.f32 0.0, %v393
  %v395 = vpop.f32.mrf.mxu0
  %v396 = vadd.f32 0.0, %v395
  %397 = vmatmul.bf16.gmra.mxu0 %v253
  %v398 = vpop.f32.mrf.mxu0
  %v399 = vadd.f32 0.0, %v398
  %v400 = vpop.f32.mrf.mxu0
  %v401 = vadd.f32 0.0, %v400
  %402 = vmatmul.bf16.gmra.mxu0 %v254
  %v403 = vpop.f32.mrf.mxu0
  %v404 = vadd.f32 0.0, %v403
  %v405 = vpop.f32.mrf.mxu0
  %v406 = vadd.f32 0.0, %v405
  %407 = vmatmul.bf16.gmra.mxu0 %v255
  %v408 = vpop.f32.mrf.mxu0
  %v409 = vadd.f32 0.0, %v408
  %v410 = vpop.f32.mrf.mxu0
  %v411 = vadd.f32 0.0, %v410
  %412 = vmatmul.bf16.gmra.mxu0 %v256
  %v413 = vpop.f32.mrf.mxu0
  %v414 = vadd.f32 0.0, %v413
  %v415 = vpop.f32.mrf.mxu0
  %v416 = vadd.f32 0.0, %v415
  %417 = vmatmul.bf16.gmra.mxu0 %v257
  %v418 = vpop.f32.mrf.mxu0
  %v419 = vadd.f32 0.0, %v418
  %v420 = vpop.f32.mrf.mxu0
  %v421 = vadd.f32 0.0, %v420
  %422 = vmatmul.bf16.gmra.mxu0 %v258
  %v423 = vpop.f32.mrf.mxu0
  %v424 = vadd.f32 0.0, %v423
  %v425 = vpop.f32.mrf.mxu0
  %v426 = vadd.f32 0.0, %v425
  %427 = vmatmul.bf16.gmra.mxu0 %v259
  %v428 = vpop.f32.mrf.mxu0
  %v429 = vadd.f32 0.0, %v428
  %v430 = vpop.f32.mrf.mxu0
  %v431 = vadd.f32 0.0, %v430
  %432 = vmatmul.bf16.gmra.mxu0 %v260
  %v433 = vpop.f32.mrf.mxu0
  %v434 = vadd.f32 0.0, %v433
  %v435 = vpop.f32.mrf.mxu0
  %v436 = vadd.f32 0.0, %v435
  %437 = vmatmul.bf16.gmra.mxu0 %v261
  %v438 = vpop.f32.mrf.mxu0
  %v439 = vadd.f32 0.0, %v438
  %v440 = vpop.f32.mrf.mxu0
  %v441 = vadd.f32 0.0, %v440
  %442 = vmatmul.bf16.gmra.mxu0 %v262
  %v443 = vpop.f32.mrf.mxu0
  %v444 = vadd.f32 0.0, %v443
  %v445 = vpop.f32.mrf.mxu0
  %v446 = vadd.f32 0.0, %v445
  %447 = vmatmul.bf16.gmra.mxu0 %v263
  %v448 = vpop.f32.mrf.mxu0
  %v449 = vadd.f32 0.0, %v448
  %v450 = vpop.f32.mrf.mxu0
  %v451 = vadd.f32 0.0, %v450
  %452 = vmatmul.bf16.gmra.mxu0 %v264
  %v453 = vpop.f32.mrf.mxu0
  %v454 = vadd.f32 0.0, %v453
  %v455 = vpop.f32.mrf.mxu0
  %v456 = vadd.f32 0.0, %v455
  %457 = vmatmul.bf16.gmra.mxu0 %v265
  %v458 = vpop.f32.mrf.mxu0
  %v459 = vadd.f32 0.0, %v458
  %v460 = vpop.f32.mrf.mxu0
  %v461 = vadd.f32 0.0, %v460
  %462 = vmatmul.bf16.gmra.mxu0 %v266
  %v463 = vpop.f32.mrf.mxu0
  %v464 = vadd.f32 0.0, %v463
  %v465 = vpop.f32.mrf.mxu0
  %v466 = vadd.f32 0.0, %v465
  %467 = vmatmul.bf16.gmra.mxu0 %v267
  %v468 = vpop.f32.mrf.mxu0
  %v469 = vadd.f32 0.0, %v468
  %v470 = vpop.f32.mrf.mxu0
  %v471 = vadd.f32 0.0, %v470
  %472 = vmatmul.bf16.gmra.mxu0 %v268
  %v473 = vpop.f32.mrf.mxu0
  %v474 = vadd.f32 0.0, %v473
  %v475 = vpop.f32.mrf.mxu0
  %v476 = vadd.f32 0.0, %v475
  %477 = vmatmul.bf16.gmra.mxu0 %v269
  %v478 = vpop.f32.mrf.mxu0
  %v479 = vadd.f32 0.0, %v478
  %v480 = vpop.f32.mrf.mxu0
  %v481 = vadd.f32 0.0, %v480
  %482 = vmatmul.bf16.gmra.mxu0 %v270
  %v483 = vpop.f32.mrf.mxu0
  %v484 = vadd.f32 0.0, %v483
  %v485 = vpop.f32.mrf.mxu0
  %v486 = vadd.f32 0.0, %v485
  %487 = vmatmul.bf16.gmra.mxu0 %v271
  %v488 = vpop.f32.mrf.mxu0
  %v489 = vadd.f32 0.0, %v488
  %v490 = vpop.f32.mrf.mxu0
  %v491 = vadd.f32 0.0, %v490
  %492 = vmatmul.bf16.gmra.mxu0 %v272
  %v493 = vpop.f32.mrf.mxu0
  %v494 = vadd.f32 0.0, %v493
  %v495 = vpop.f32.mrf.mxu0
  %v496 = vadd.f32 0.0, %v495
  %497 = vmatmul.bf16.gmra.mxu0 %v273
  %v498 = vpop.f32.mrf.mxu0
  %v499 = vadd.f32 0.0, %v498
  %v500 = vpop.f32.mrf.mxu0
  %v501 = vadd.f32 0.0, %v500
  %502 = vmatmul.bf16.gmra.mxu0 %v274
  %v503 = vpop.f32.mrf.mxu0
  %v504 = vadd.f32 0.0, %v503
  %v505 = vpop.f32.mrf.mxu0
  %v506 = vadd.f32 0.0, %v505
  %507 = vmatmul.bf16.gmra.mxu0 %v275
  %v508 = vpop.f32.mrf.mxu0
  %v509 = vadd.f32 0.0, %v508
  %v510 = vpop.f32.mrf.mxu0
  %v511 = vadd.f32 0.0, %v510
  %512 = vmatmul.bf16.gmra.mxu0 %v276
  %v513 = vpop.f32.mrf.mxu0
  %v514 = vadd.f32 0.0, %v513
  %v515 = vpop.f32.mrf.mxu0
  %v516 = vadd.f32 0.0, %v515
  %517 = vmatmul.bf16.gmra.mxu0 %v277
  %v518 = vpop.f32.mrf.mxu0
  %v519 = vadd.f32 0.0, %v518
  %v520 = vpop.f32.mrf.mxu0
  %v521 = vadd.f32 0.0, %v520
  %522 = vmatmul.bf16.gmra.mxu0 %v278
  %v523 = vpop.f32.mrf.mxu0
  %v524 = vadd.f32 0.0, %v523
  %v525 = vpop.f32.mrf.mxu0
  %v526 = vadd.f32 0.0, %v525
  %527 = vdwg.mxu0
  %v528 = vmul.f32 %v369, 0.2
  %v529 = vmul.f32 %v371, 0.2
  %v530 = vmul.f32 %v374, 0.2
  %v531 = vmul.f32 %v376, 0.2
  %v532 = vmul.f32 %v379, 0.2
  %v533 = vmul.f32 %v381, 0.2
  %v534 = vmul.f32 %v384, 0.2
  %v535 = vmul.f32 %v386, 0.2
  %v536 = vmul.f32 %v389, 0.2
  %v537 = vmul.f32 %v391, 0.2
  %v538 = vmul.f32 %v394, 0.2
  %v539 = vmul.f32 %v396, 0.2
  %v540 = vmul.f32 %v399, 0.2
  %v541 = vmul.f32 %v401, 0.2
  %v542 = vmul.f32 %v404, 0.2
  %v543 = vmul.f32 %v406, 0.2
  %v544 = vmul.f32 %v409, 0.2
  %v545 = vmul.f32 %v411, 0.2
  %v546 = vmul.f32 %v414, 0.2
  %v547 = vmul.f32 %v416, 0.2
  %v548 = vmul.f32 %v419, 0.2
  %v549 = vmul.f32 %v421, 0.2
  %v550 = vmul.f32 %v424, 0.2
  %v551 = vmul.f32 %v426, 0.2
  %v552 = vmul.f32 %v429, 0.2
  %v553 = vmul.f32 %v431, 0.2
  %v554 = vmul.f32 %v434, 0.2
  %v555 = vmul.f32 %v436, 0.2
  %v556 = vmul.f32 %v439, 0.2
  %v557 = vmul.f32 %v441, 0.2
  %v558 = vmul.f32 %v444, 0.2
  %v559 = vmul.f32 %v446, 0.2
  %v560 = vmul.f32 %v449, 0.2
  %v561 = vmul.f32 %v451, 0.2
  %v562 = vmul.f32 %v454, 0.2
  %v563 = vmul.f32 %v456, 0.2
  %v564 = vmul.f32 %v459, 0.2
  %v565 = vmul.f32 %v461, 0.2
  %v566 = vmul.f32 %v464, 0.2
  %v567 = vmul.f32 %v466, 0.2
  %v568 = vmul.f32 %v469, 0.2
  %v569 = vmul.f32 %v471, 0.2
  %v570 = vmul.f32 %v474, 0.2
  %v571 = vmul.f32 %v476, 0.2
  %v572 = vmul.f32 %v479, 0.2
  %v573 = vmul.f32 %v481, 0.2
  %v574 = vmul.f32 %v484, 0.2
  %v575 = vmul.f32 %v486, 0.2
  %v576 = vmul.f32 %v489, 0.2
  %v577 = vmul.f32 %v491, 0.2
  %v578 = vmul.f32 %v494, 0.2
  %v579 = vmul.f32 %v496, 0.2
  %v580 = vmul.f32 %v499, 0.2
  %v581 = vmul.f32 %v501, 0.2
  %v582 = vmul.f32 %v504, 0.2
  %v583 = vmul.f32 %v506, 0.2
  %v584 = vmul.f32 %v509, 0.2
  %v585 = vmul.f32 %v511, 0.2
  %v586 = vmul.f32 %v514, 0.2
  %v587 = vmul.f32 %v516, 0.2
  %v588 = vmul.f32 %v519, 0.2
  %v589 = vmul.f32 %v521, 0.2
  %v590 = vmul.f32 %v524, 0.2
  %v591 = vmul.f32 %v526, 0.2
  %v592 = vmax.f32 %v369, %v528
  %v593 = vmax.f32 %v371, %v529
  %v594 = vmax.f32 %v374, %v530
  %v595 = vmax.f32 %v376, %v531
  %v596 = vmax.f32 %v379, %v532
  %v597 = vmax.f32 %v381, %v533
  %v598 = vmax.f32 %v384, %v534
  %v599 = vmax.f32 %v386, %v535
  %v600 = vmax.f32 %v389, %v536
  %v601 = vmax.f32 %v391, %v537
  %v602 = vmax.f32 %v394, %v538
  %v603 = vmax.f32 %v396, %v539
  %v604 = vmax.f32 %v399, %v540
  %v605 = vmax.f32 %v401, %v541
  %v606 = vmax.f32 %v404, %v542
  %v607 = vmax.f32 %v406, %v543
  %v608 = vmax.f32 %v409, %v544
  %v609 = vmax.f32 %v411, %v545
  %v610 = vmax.f32 %v414, %v546
  %v611 = vmax.f32 %v416, %v547
  %v612 = vmax.f32 %v419, %v548
  %v613 = vmax.f32 %v421, %v549
  %v614 = vmax.f32 %v424, %v550
  %v615 = vmax.f32 %v426, %v551
  %v616 = vmax.f32 %v429, %v552
  %v617 = vmax.f32 %v431, %v553
  %v618 = vmax.f32 %v434, %v554
  %v619 = vmax.f32 %v436, %v555
  %v620 = vmax.f32 %v439, %v556
  %v621 = vmax.f32 %v441, %v557
  %v622 = vmax.f32 %v444, %v558
  %v623 = vmax.f32 %v446, %v559
  %v624 = vmax.f32 %v449, %v560
  %v625 = vmax.f32 %v451, %v561
  %v626 = vmax.f32 %v454, %v562
  %v627 = vmax.f32 %v456, %v563
  %v628 = vmax.f32 %v459, %v564
  %v629 = vmax.f32 %v461, %v565
  %v630 = vmax.f32 %v464, %v566
  %v631 = vmax.f32 %v466, %v567
  %v632 = vmax.f32 %v469, %v568
  %v633 = vmax.f32 %v471, %v569
  %v634 = vmax.f32 %v474, %v570
  %v635 = vmax.f32 %v476, %v571
  %v636 = vmax.f32 %v479, %v572
  %v637 = vmax.f32 %v481, %v573
  %v638 = vmax.f32 %v484, %v574
  %v639 = vmax.f32 %v486, %v575
  %v640 = vmax.f32 %v489, %v576
  %v641 = vmax.f32 %v491, %v577
  %v642 = vmax.f32 %v494, %v578
  %v643 = vmax.f32 %v496, %v579
  %v644 = vmax.f32 %v499, %v580
  %v645 = vmax.f32 %v501, %v581
  %v646 = vmax.f32 %v504, %v582
  %v647 = vmax.f32 %v506, %v583
  %v648 = vmax.f32 %v509, %v584
  %v649 = vmax.f32 %v511, %v585
  %v650 = vmax.f32 %v514, %v586
  %v651 = vmax.f32 %v516, %v587
  %v652 = vmax.f32 %v519, %v588
  %v653 = vmax.f32 %v521, %v589
  %v654 = vmax.f32 %v524, %v590
  %v655 = vmax.f32 %v526, %v591
  %v656 = vld [vmem:[%s2] sm:$0xff]
  %v657 = vld [vmem:[%s2 + $0x8] sm:$0xff]
  %v658 = vld [vmem:[%s2 + $0x10] sm:$0xff]
  %v659 = vld [vmem:[%s2 + $0x18] sm:$0xff]
  %v660 = vld [vmem:[%s2 + $0x20] sm:$0xff]
  %v661 = vld [vmem:[%s2 + $0x28] sm:$0xff]
  %v662 = vld [vmem:[%s2 + $0x30] sm:$0xff]
  %v663 = vld [vmem:[%s2 + $0x38] sm:$0xff]
  %v664 = vld [vmem:[%s2 + $0x40] sm:$0xff]
  %v665 = vld [vmem:[%s2 + $0x48] sm:$0xff]
  %v666 = vld [vmem:[%s2 + $0x50] sm:$0xff]
  %v667 = vld [vmem:[%s2 + $0x58] sm:$0xff]
  %v668 = vld [vmem:[%s2 + $0x60] sm:$0xff]
  %v669 = vld [vmem:[%s2 + $0x68] sm:$0xff]
  %v670 = vld [vmem:[%s2 + $0x70] sm:$0xff]
  %v671 = vld [vmem:[%s2 + $0x78] sm:$0xff]
  %v672 = vld [vmem:[%s2 + $0x80] sm:$0xff]
  %v673 = vld [vmem:[%s2 + $0x88] sm:$0xff]
  %v674 = vld [vmem:[%s2 + $0x90] sm:$0xff]
  %v675 = vld [vmem:[%s2 + $0x98] sm:$0xff]
  %v676 = vld [vmem:[%s2 + $0xa0] sm:$0xff]
  %v677 = vld [vmem:[%s2 + $0xa8] sm:$0xff]
  %v678 = vld [vmem:[%s2 + $0xb0] sm:$0xff]
  %v679 = vld [vmem:[%s2 + $0xb8] sm:$0xff]
  %v680 = vld [vmem:[%s2 + $0xc0] sm:$0xff]
  %v681 = vld [vmem:[%s2 + $0xc8] sm:$0xff]
  %v682 = vld [vmem:[%s2 + $0xd0] sm:$0xff]
  %v683 = vld [vmem:[%s2 + $0xd8] sm:$0xff]
  %v684 = vld [vmem:[%s2 + $0xe0] sm:$0xff]
  %v685 = vld [vmem:[%s2 + $0xe8] sm:$0xff]
  %v686 = vld [vmem:[%s2 + $0xf0] sm:$0xff]
  %v687 = vld [vmem:[%s2 + $0xf8] sm:$0xff]
  %v688 = vld [vmem:[%s2 + $0x100] sm:$0xff]
  %v689 = vld [vmem:[%s2 + $0x108] sm:$0xff]
  %v690 = vld [vmem:[%s2 + $0x110] sm:$0xff]
  %v691 = vld [vmem:[%s2 + $0x118] sm:$0xff]
  %v692 = vld [vmem:[%s2 + $0x120] sm:$0xff]
  %v693 = vld [vmem:[%s2 + $0x128] sm:$0xff]
  %v694 = vld [vmem:[%s2 + $0x130] sm:$0xff]
  %v695 = vld [vmem:[%s2 + $0x138] sm:$0xff]
  %v696 = vld [vmem:[%s2 + $0x140] sm:$0xff]
  %v697 = vld [vmem:[%s2 + $0x148] sm:$0xff]
  %v698 = vld [vmem:[%s2 + $0x150] sm:$0xff]
  %v699 = vld [vmem:[%s2 + $0x158] sm:$0xff]
  %v700 = vld [vmem:[%s2 + $0x160] sm:$0xff]
  %v701 = vld [vmem:[%s2 + $0x168] sm:$0xff]
  %v702 = vld [vmem:[%s2 + $0x170] sm:$0xff]
  %v703 = vld [vmem:[%s2 + $0x178] sm:$0xff]
  %v704 = vld [vmem:[%s2 + $0x180] sm:$0xff]
  %v705 = vld [vmem:[%s2 + $0x188] sm:$0xff]
  %v706 = vld [vmem:[%s2 + $0x190] sm:$0xff]
  %v707 = vld [vmem:[%s2 + $0x198] sm:$0xff]
  %v708 = vld [vmem:[%s2 + $0x1a0] sm:$0xff]
  %v709 = vld [vmem:[%s2 + $0x1a8] sm:$0xff]
  %v710 = vld [vmem:[%s2 + $0x1b0] sm:$0xff]
  %v711 = vld [vmem:[%s2 + $0x1b8] sm:$0xff]
  %v712 = vld [vmem:[%s2 + $0x1c0] sm:$0xff]
  %v713 = vld [vmem:[%s2 + $0x1c8] sm:$0xff]
  %v714 = vld [vmem:[%s2 + $0x1d0] sm:$0xff]
  %v715 = vld [vmem:[%s2 + $0x1d8] sm:$0xff]
  %v716 = vld [vmem:[%s2 + $0x1e0] sm:$0xff]
  %v717 = vld [vmem:[%s2 + $0x1e8] sm:$0xff]
  %v718 = vld [vmem:[%s2 + $0x1f0] sm:$0xff]
  %v719 = vld [vmem:[%s2 + $0x1f8] sm:$0xff]
  %v720 = vld [vmem:[%s2 + $0x200] sm:$0xff]
  %v721 = vld [vmem:[%s2 + $0x208] sm:$0xff]
  %v722 = vld [vmem:[%s2 + $0x210] sm:$0xff]
  %v723 = vld [vmem:[%s2 + $0x218] sm:$0xff]
  %v724 = vld [vmem:[%s2 + $0x220] sm:$0xff]
  %v725 = vld [vmem:[%s2 + $0x228] sm:$0xff]
  %v726 = vld [vmem:[%s2 + $0x230] sm:$0xff]
  %v727 = vld [vmem:[%s2 + $0x238] sm:$0xff]
  %v728 = vld [vmem:[%s2 + $0x240] sm:$0xff]
  %v729 = vld [vmem:[%s2 + $0x248] sm:$0xff]
  %v730 = vld [vmem:[%s2 + $0x250] sm:$0xff]
  %v731 = vld [vmem:[%s2 + $0x258] sm:$0xff]
  %v732 = vld [vmem:[%s2 + $0x260] sm:$0xff]
  %v733 = vld [vmem:[%s2 + $0x268] sm:$0xff]
  %v734 = vld [vmem:[%s2 + $0x270] sm:$0xff]
  %v735 = vld [vmem:[%s2 + $0x278] sm:$0xff]
  %v736 = vld [vmem:[%s2 + $0x280] sm:$0xff]
  %v737 = vld [vmem:[%s2 + $0x288] sm:$0xff]
  %v738 = vld [vmem:[%s2 + $0x290] sm:$0xff]
  %v739 = vld [vmem:[%s2 + $0x298] sm:$0xff]
  %v740 = vld [vmem:[%s2 + $0x2a0] sm:$0xff]
  %v741 = vld [vmem:[%s2 + $0x2a8] sm:$0xff]
  %v742 = vld [vmem:[%s2 + $0x2b0] sm:$0xff]
  %v743 = vld [vmem:[%s2 + $0x2b8] sm:$0xff]
  %v744 = vld [vmem:[%s2 + $0x2c0] sm:$0xff]
  %v745 = vld [vmem:[%s2 + $0x2c8] sm:$0xff]
  %v746 = vld [vmem:[%s2 + $0x2d0] sm:$0xff]
  %v747 = vld [vmem:[%s2 + $0x2d8] sm:$0xff]
  %v748 = vld [vmem:[%s2 + $0x2e0] sm:$0xff]
  %v749 = vld [vmem:[%s2 + $0x2e8] sm:$0xff]
  %v750 = vld [vmem:[%s2 + $0x2f0] sm:$0xff]
  %v751 = vld [vmem:[%s2 + $0x2f8] sm:$0xff]
  %v752 = vld [vmem:[%s2 + $0x300] sm:$0xff]
  %v753 = vld [vmem:[%s2 + $0x308] sm:$0xff]
  %v754 = vld [vmem:[%s2 + $0x310] sm:$0xff]
  %v755 = vld [vmem:[%s2 + $0x318] sm:$0xff]
  %v756 = vld [vmem:[%s2 + $0x320] sm:$0xff]
  %v757 = vld [vmem:[%s2 + $0x328] sm:$0xff]
  %v758 = vld [vmem:[%s2 + $0x330] sm:$0xff]
  %v759 = vld [vmem:[%s2 + $0x338] sm:$0xff]
  %v760 = vld [vmem:[%s2 + $0x340] sm:$0xff]
  %v761 = vld [vmem:[%s2 + $0x348] sm:$0xff]
  %v762 = vld [vmem:[%s2 + $0x350] sm:$0xff]
  %v763 = vld [vmem:[%s2 + $0x358] sm:$0xff]
  %v764 = vld [vmem:[%s2 + $0x360] sm:$0xff]
  %v765 = vld [vmem:[%s2 + $0x368] sm:$0xff]
  %v766 = vld [vmem:[%s2 + $0x370] sm:$0xff]
  %v767 = vld [vmem:[%s2 + $0x378] sm:$0xff]
  %v768 = vld [vmem:[%s2 + $0x380] sm:$0xff]
  %v769 = vld [vmem:[%s2 + $0x388] sm:$0xff]
  %v770 = vld [vmem:[%s2 + $0x390] sm:$0xff]
  %v771 = vld [vmem:[%s2 + $0x398] sm:$0xff]
  %v772 = vld [vmem:[%s2 + $0x3a0] sm:$0xff]
  %v773 = vld [vmem:[%s2 + $0x3a8] sm:$0xff]
  %v774 = vld [vmem:[%s2 + $0x3b0] sm:$0xff]
  %v775 = vld [vmem:[%s2 + $0x3b8] sm:$0xff]
  %v776 = vld [vmem:[%s2 + $0x3c0] sm:$0xff]
  %v777 = vld [vmem:[%s2 + $0x3c8] sm:$0xff]
  %v778 = vld [vmem:[%s2 + $0x3d0] sm:$0xff]
  %v779 = vld [vmem:[%s2 + $0x3d8] sm:$0xff]
  %v780 = vld [vmem:[%s2 + $0x3e0] sm:$0xff]
  %v781 = vld [vmem:[%s2 + $0x3e8] sm:$0xff]
  %v782 = vld [vmem:[%s2 + $0x3f0] sm:$0xff]
  %v783 = vld [vmem:[%s2 + $0x3f8] sm:$0xff]
  %v784 = vld [vmem:[%s3] sm:$0xf]
  %v785 = vld [vmem:[%s3 + $0x4] sm:$0xf]
  %v786 = vld [vmem:[%s3 + $0x8] sm:$0xf]
  %v787 = vld [vmem:[%s3 + $0xc] sm:$0xf]
  %v788 = vld [vmem:[%s3 + $0x10] sm:$0xf]
  %v789 = vld [vmem:[%s3 + $0x14] sm:$0xf]
  %v790 = vld [vmem:[%s3 + $0x18] sm:$0xf]
  %v791 = vld [vmem:[%s3 + $0x1c] sm:$0xf]
  %v792 = vld [vmem:[%s3 + $0x20] sm:$0xf]
  %v793 = vld [vmem:[%s3 + $0x24] sm:$0xf]
  %v794 = vld [vmem:[%s3 + $0x28] sm:$0xf]
  %v795 = vld [vmem:[%s3 + $0x2c] sm:$0xf]
  %v796 = vld [vmem:[%s3 + $0x30] sm:$0xf]
  %v797 = vld [vmem:[%s3 + $0x34] sm:$0xf]
  %v798 = vld [vmem:[%s3 + $0x38] sm:$0xf]
  %v799 = vld [vmem:[%s3 + $0x3c] sm:$0xf]
  %v800 = vld [vmem:[%s3 + $0x40] sm:$0xf]
  %v801 = vld [vmem:[%s3 + $0x44] sm:$0xf]
  %v802 = vld [vmem:[%s3 + $0x48] sm:$0xf]
  %v803 = vld [vmem:[%s3 + $0x4c] sm:$0xf]
  %v804 = vld [vmem:[%s3 + $0x50] sm:$0xf]
  %v805 = vld [vmem:[%s3 + $0x54] sm:$0xf]
  %v806 = vld [vmem:[%s3 + $0x58] sm:$0xf]
  %v807 = vld [vmem:[%s3 + $0x5c] sm:$0xf]
  %v808 = vld [vmem:[%s3 + $0x60] sm:$0xf]
  %v809 = vld [vmem:[%s3 + $0x64] sm:$0xf]
  %v810 = vld [vmem:[%s3 + $0x68] sm:$0xf]
  %v811 = vld [vmem:[%s3 + $0x6c] sm:$0xf]
  %v812 = vld [vmem:[%s3 + $0x70] sm:$0xf]
  %v813 = vld [vmem:[%s3 + $0x74] sm:$0xf]
  %v814 = vld [vmem:[%s3 + $0x78] sm:$0xf]
  %v815 = vld [vmem:[%s3 + $0x7c] sm:$0xf]
  %v816 = vld [vmem:[%s3 + $0x80] sm:$0xf]
  %v817 = vld [vmem:[%s3 + $0x84] sm:$0xf]
  %v818 = vld [vmem:[%s3 + $0x88] sm:$0xf]
  %v819 = vld [vmem:[%s3 + $0x8c] sm:$0xf]
  %v820 = vld [vmem:[%s3 + $0x90] sm:$0xf]
  %v821 = vld [vmem:[%s3 + $0x94] sm:$0xf]
  %v822 = vld [vmem:[%s3 + $0x98] sm:$0xf]
  %v823 = vld [vmem:[%s3 + $0x9c] sm:$0xf]
  %v824 = vld [vmem:[%s3 + $0xa0] sm:$0xf]
  %v825 = vld [vmem:[%s3 + $0xa4] sm:$0xf]
  %v826 = vld [vmem:[%s3 + $0xa8] sm:$0xf]
  %v827 = vld [vmem:[%s3 + $0xac] sm:$0xf]
  %v828 = vld [vmem:[%s3 + $0xb0] sm:$0xf]
  %v829 = vld [vmem:[%s3 + $0xb4] sm:$0xf]
  %v830 = vld [vmem:[%s3 + $0xb8] sm:$0xf]
  %v831 = vld [vmem:[%s3 + $0xbc] sm:$0xf]
  %v832 = vld [vmem:[%s3 + $0xc0] sm:$0xf]
  %v833 = vld [vmem:[%s3 + $0xc4] sm:$0xf]
  %v834 = vld [vmem:[%s3 + $0xc8] sm:$0xf]
  %v835 = vld [vmem:[%s3 + $0xcc] sm:$0xf]
  %v836 = vld [vmem:[%s3 + $0xd0] sm:$0xf]
  %v837 = vld [vmem:[%s3 + $0xd4] sm:$0xf]
  %v838 = vld [vmem:[%s3 + $0xd8] sm:$0xf]
  %v839 = vld [vmem:[%s3 + $0xdc] sm:$0xf]
  %v840 = vld [vmem:[%s3 + $0xe0] sm:$0xf]
  %v841 = vld [vmem:[%s3 + $0xe4] sm:$0xf]
  %v842 = vld [vmem:[%s3 + $0xe8] sm:$0xf]
  %v843 = vld [vmem:[%s3 + $0xec] sm:$0xf]
  %v844 = vld [vmem:[%s3 + $0xf0] sm:$0xf]
  %v845 = vld [vmem:[%s3 + $0xf4] sm:$0xf]
  %v846 = vld [vmem:[%s3 + $0xf8] sm:$0xf]
  %v847 = vld [vmem:[%s3 + $0xfc] sm:$0xf]
  %v848 = vld [vmem:[%s3 + $0x100] sm:$0xf]
  %v849 = vld [vmem:[%s3 + $0x104] sm:$0xf]
  %v850 = vld [vmem:[%s3 + $0x108] sm:$0xf]
  %v851 = vld [vmem:[%s3 + $0x10c] sm:$0xf]
  %v852 = vld [vmem:[%s3 + $0x110] sm:$0xf]
  %v853 = vld [vmem:[%s3 + $0x114] sm:$0xf]
  %v854 = vld [vmem:[%s3 + $0x118] sm:$0xf]
  %v855 = vld [vmem:[%s3 + $0x11c] sm:$0xf]
  %v856 = vld [vmem:[%s3 + $0x120] sm:$0xf]
  %v857 = vld [vmem:[%s3 + $0x124] sm:$0xf]
  %v858 = vld [vmem:[%s3 + $0x128] sm:$0xf]
  %v859 = vld [vmem:[%s3 + $0x12c] sm:$0xf]
  %v860 = vld [vmem:[%s3 + $0x130] sm:$0xf]
  %v861 = vld [vmem:[%s3 + $0x134] sm:$0xf]
  %v862 = vld [vmem:[%s3 + $0x138] sm:$0xf]
  %v863 = vld [vmem:[%s3 + $0x13c] sm:$0xf]
  %v864 = vld [vmem:[%s3 + $0x140] sm:$0xf]
  %v865 = vld [vmem:[%s3 + $0x144] sm:$0xf]
  %v866 = vld [vmem:[%s3 + $0x148] sm:$0xf]
  %v867 = vld [vmem:[%s3 + $0x14c] sm:$0xf]
  %v868 = vld [vmem:[%s3 + $0x150] sm:$0xf]
  %v869 = vld [vmem:[%s3 + $0x154] sm:$0xf]
  %v870 = vld [vmem:[%s3 + $0x158] sm:$0xf]
  %v871 = vld [vmem:[%s3 + $0x15c] sm:$0xf]
  %v872 = vld [vmem:[%s3 + $0x160] sm:$0xf]
  %v873 = vld [vmem:[%s3 + $0x164] sm:$0xf]
  %v874 = vld [vmem:[%s3 + $0x168] sm:$0xf]
  %v875 = vld [vmem:[%s3 + $0x16c] sm:$0xf]
  %v876 = vld [vmem:[%s3 + $0x170] sm:$0xf]
  %v877 = vld [vmem:[%s3 + $0x174] sm:$0xf]
  %v878 = vld [vmem:[%s3 + $0x178] sm:$0xf]
  %v879 = vld [vmem:[%s3 + $0x17c] sm:$0xf]
  %v880 = vld [vmem:[%s3 + $0x180] sm:$0xf]
  %v881 = vld [vmem:[%s3 + $0x184] sm:$0xf]
  %v882 = vld [vmem:[%s3 + $0x188] sm:$0xf]
  %v883 = vld [vmem:[%s3 + $0x18c] sm:$0xf]
  %v884 = vld [vmem:[%s3 + $0x190] sm:$0xf]
  %v885 = vld [vmem:[%s3 + $0x194] sm:$0xf]
  %v886 = vld [vmem:[%s3 + $0x198] sm:$0xf]
  %v887 = vld [vmem:[%s3 + $0x19c] sm:$0xf]
  %v888 = vld [vmem:[%s3 + $0x1a0] sm:$0xf]
  %v889 = vld [vmem:[%s3 + $0x1a4] sm:$0xf]
  %v890 = vld [vmem:[%s3 + $0x1a8] sm:$0xf]
  %v891 = vld [vmem:[%s3 + $0x1ac] sm:$0xf]
  %v892 = vld [vmem:[%s3 + $0x1b0] sm:$0xf]
  %v893 = vld [vmem:[%s3 + $0x1b4] sm:$0xf]
  %v894 = vld [vmem:[%s3 + $0x1b8] sm:$0xf]
  %v895 = vld [vmem:[%s3 + $0x1bc] sm:$0xf]
  %v896 = vld [vmem:[%s3 + $0x1c0] sm:$0xf]
  %v897 = vld [vmem:[%s3 + $0x1c4] sm:$0xf]
  %v898 = vld [vmem:[%s3 + $0x1c8] sm:$0xf]
  %v899 = vld [vmem:[%s3 + $0x1cc] sm:$0xf]
  %v900 = vld [vmem:[%s3 + $0x1d0] sm:$0xf]
  %v901 = vld [vmem:[%s3 + $0x1d4] sm:$0xf]
  %v902 = vld [vmem:[%s3 + $0x1d8] sm:$0xf]
  %v903 = vld [vmem:[%s3 + $0x1dc] sm:$0xf]
  %v904 = vld [vmem:[%s3 + $0x1e0] sm:$0xf]
  %v905 = vld [vmem:[%s3 + $0x1e4] sm:$0xf]
  %v906 = vld [vmem:[%s3 + $0x1e8] sm:$0xf]
  %v907 = vld [vmem:[%s3 + $0x1ec] sm:$0xf]
  %v908 = vld [vmem:[%s3 + $0x1f0] sm:$0xf]
  %v909 = vld [vmem:[%s3 + $0x1f4] sm:$0xf]
  %v910 = vld [vmem:[%s3 + $0x1f8] sm:$0xf]
  %v911 = vld [vmem:[%s3 + $0x1fc] sm:$0xf]
  %v912 = vpack.c.bf16 %v593, %v592
  %v913 = vpack.c.bf16 %v595, %v594
  %v914 = vpack.c.bf16 %v597, %v596
  %v915 = vpack.c.bf16 %v599, %v598
  %v916 = vpack.c.bf16 %v601, %v600
  %v917 = vpack.c.bf16 %v603, %v602
  %v918 = vpack.c.bf16 %v605, %v604
  %v919 = vpack.c.bf16 %v607, %v606
  %v920 = vpack.c.bf16 %v609, %v608
  %v921 = vpack.c.bf16 %v611, %v610
  %v922 = vpack.c.bf16 %v613, %v612
  %v923 = vpack.c.bf16 %v615, %v614
  %v924 = vpack.c.bf16 %v617, %v616
  %v925 = vpack.c.bf16 %v619, %v618
  %v926 = vpack.c.bf16 %v621, %v620
  %v927 = vpack.c.bf16 %v623, %v622
  %v1056 = vunpack.c.l.b16 %v656
  %v1057 = vunpack.c.h.b16 %v656
  %v1058 = vunpack.c.l.b16 %v657
  %v1059 = vunpack.c.h.b16 %v657
  %v1060 = vunpack.c.l.b16 %v658
  %v1061 = vunpack.c.h.b16 %v658
  %v1062 = vunpack.c.l.b16 %v659
  %v1063 = vunpack.c.h.b16 %v659
  %v1064 = vunpack.c.l.b16 %v660
  %v1065 = vunpack.c.h.b16 %v660
  %v1066 = vunpack.c.l.b16 %v661
  %v1067 = vunpack.c.h.b16 %v661
  %v1068 = vunpack.c.l.b16 %v662
  %v1069 = vunpack.c.h.b16 %v662
  %v1070 = vunpack.c.l.b16 %v663
  %v1071 = vunpack.c.h.b16 %v663
  %v1072 = vunpack.c.l.b16 %v664
  %v1073 = vunpack.c.h.b16 %v664
  %v1074 = vunpack.c.l.b16 %v665
  %v1075 = vunpack.c.h.b16 %v665
  %v1076 = vunpack.c.l.b16 %v666
  %v1077 = vunpack.c.h.b16 %v666
  %v1078 = vunpack.c.l.b16 %v667
  %v1079 = vunpack.c.h.b16 %v667
  %v1080 = vunpack.c.l.b16 %v668
  %v1081 = vunpack.c.h.b16 %v668
  %v1082 = vunpack.c.l.b16 %v669
  %v1083 = vunpack.c.h.b16 %v669
  %v1084 = vunpack.c.l.b16 %v670
  %v1085 = vunpack.c.h.b16 %v670
  %v1086 = vunpack.c.l.b16 %v671
  %v1087 = vunpack.c.h.b16 %v671
  %v1088 = vunpack.c.l.b16 %v672
  %v1089 = vunpack.c.h.b16 %v672
  %v1090 = vunpack.c.l.b16 %v673
  %v1091 = vunpack.c.h.b16 %v673
  %v1092 = vunpack.c.l.b16 %v674
  %v1093 = vunpack.c.h.b16 %v674
  %v1094 = vunpack.c.l.b16 %v675
  %v1095 = vunpack.c.h.b16 %v675
  %v1096 = vunpack.c.l.b16 %v676
  %v1097 = vunpack.c.h.b16 %v676
  %v1098 = vunpack.c.l.b16 %v677
  %v1099 = vunpack.c.h.b16 %v677
  %v1100 = vunpack.c.l.b16 %v678
  %v1101 = vunpack.c.h.b16 %v678
  %v1102 = vunpack.c.l.b16 %v679
  %v1103 = vunpack.c.h.b16 %v679
  %v1104 = vunpack.c.l.b16 %v680
  %v1105 = vunpack.c.h.b16 %v680
  %v1106 = vunpack.c.l.b16 %v681
  %v1107 = vunpack.c.h.b16 %v681
  %v1108 = vunpack.c.l.b16 %v682
  %v1109 = vunpack.c.h.b16 %v682
  %v1110 = vunpack.c.l.b16 %v683
  %v1111 = vunpack.c.h.b16 %v683
  %v1112 = vunpack.c.l.b16 %v684
  %v1113 = vunpack.c.h.b16 %v684
  %v1114 = vunpack.c.l.b16 %v685
  %v1115 = vunpack.c.h.b16 %v685
  %v1116 = vunpack.c.l.b16 %v686
  %v1117 = vunpack.c.h.b16 %v686
  %v1118 = vunpack.c.l.b16 %v687
  %v1119 = vunpack.c.h.b16 %v687
  %v1120 = vunpack.c.l.b16 %v688
  %v1121 = vunpack.c.h.b16 %v688
  %v1122 = vunpack.c.l.b16 %v689
  %v1123 = vunpack.c.h.b16 %v689
  %v1124 = vunpack.c.l.b16 %v690
  %v1125 = vunpack.c.h.b16 %v690
  %v1126 = vunpack.c.l.b16 %v691
  %v1127 = vunpack.c.h.b16 %v691
  %v1128 = vunpack.c.l.b16 %v692
  %v1129 = vunpack.c.h.b16 %v692
  %v1130 = vunpack.c.l.b16 %v693
  %v1131 = vunpack.c.h.b16 %v693
  %v1132 = vunpack.c.l.b16 %v694
  %v1133 = vunpack.c.h.b16 %v694
  %v1134 = vunpack.c.l.b16 %v695
  %v1135 = vunpack.c.h.b16 %v695
  %v1136 = vunpack.c.l.b16 %v696
  %v1137 = vunpack.c.h.b16 %v696
  %v1138 = vunpack.c.l.b16 %v697
  %v1139 = vunpack.c.h.b16 %v697
  %v1140 = vunpack.c.l.b16 %v698
  %v1141 = vunpack.c.h.b16 %v698
  %v1142 = vunpack.c.l.b16 %v699
  %v1143 = vunpack.c.h.b16 %v699
  %v1144 = vunpack.c.l.b16 %v700
  %v1145 = vunpack.c.h.b16 %v700
  %v1146 = vunpack.c.l.b16 %v701
  %v1147 = vunpack.c.h.b16 %v701
  %v1148 = vunpack.c.l.b16 %v702
  %v1149 = vunpack.c.h.b16 %v702
  %v1150 = vunpack.c.l.b16 %v703
  %v1151 = vunpack.c.h.b16 %v703
  %v1152 = vunpack.c.l.b16 %v704
  %v1153 = vunpack.c.h.b16 %v704
  %v1154 = vunpack.c.l.b16 %v705
  %v1155 = vunpack.c.h.b16 %v705
  %v1156 = vunpack.c.l.b16 %v706
  %v1157 = vunpack.c.h.b16 %v706
  %v1158 = vunpack.c.l.b16 %v707
  %v1159 = vunpack.c.h.b16 %v707
  %v1160 = vunpack.c.l.b16 %v708
  %v1161 = vunpack.c.h.b16 %v708
  %v1162 = vunpack.c.l.b16 %v709
  %v1163 = vunpack.c.h.b16 %v709
  %v1164 = vunpack.c.l.b16 %v710
  %v1165 = vunpack.c.h.b16 %v710
  %v1166 = vunpack.c.l.b16 %v711
  %v1167 = vunpack.c.h.b16 %v711
  %v1168 = vunpack.c.l.b16 %v712
  %v1169 = vunpack.c.h.b16 %v712
  %v1170 = vunpack.c.l.b16 %v713
  %v1171 = vunpack.c.h.b16 %v713
  %v1172 = vunpack.c.l.b16 %v714
  %v1173 = vunpack.c.h.b16 %v714
  %v1174 = vunpack.c.l.b16 %v715
  %v1175 = vunpack.c.h.b16 %v715
  %v1176 = vunpack.c.l.b16 %v716
  %v1177 = vunpack.c.h.b16 %v716
  %v1178 = vunpack.c.l.b16 %v717
  %v1179 = vunpack.c.h.b16 %v717
  %v1180 = vunpack.c.l.b16 %v718
  %v1181 = vunpack.c.h.b16 %v718
  %v1182 = vunpack.c.l.b16 %v719
  %v1183 = vunpack.c.h.b16 %v719
  %v1184 = vunpack.c.l.b16 %v720
  %v1185 = vunpack.c.h.b16 %v720
  %v1186 = vunpack.c.l.b16 %v721
  %v1187 = vunpack.c.h.b16 %v721
  %v1188 = vunpack.c.l.b16 %v722
  %v1189 = vunpack.c.h.b16 %v722
  %v1190 = vunpack.c.l.b16 %v723
  %v1191 = vunpack.c.h.b16 %v723
  %v1192 = vunpack.c.l.b16 %v724
  %v1193 = vunpack.c.h.b16 %v724
  %v1194 = vunpack.c.l.b16 %v725
  %v1195 = vunpack.c.h.b16 %v725
  %v1196 = vunpack.c.l.b16 %v726
  %v1197 = vunpack.c.h.b16 %v726
  %v1198 = vunpack.c.l.b16 %v727
  %v1199 = vunpack.c.h.b16 %v727
  %v1200 = vunpack.c.l.b16 %v728
  %v1201 = vunpack.c.h.b16 %v728
  %v1202 = vunpack.c.l.b16 %v729
  %v1203 = vunpack.c.h.b16 %v729
  %v1204 = vunpack.c.l.b16 %v730
  %v1205 = vunpack.c.h.b16 %v730
  %v1206 = vunpack.c.l.b16 %v731
  %v1207 = vunpack.c.h.b16 %v731
  %v1208 = vunpack.c.l.b16 %v732
  %v1209 = vunpack.c.h.b16 %v732
  %v1210 = vunpack.c.l.b16 %v733
  %v1211 = vunpack.c.h.b16 %v733
  %v1212 = vunpack.c.l.b16 %v734
  %v1213 = vunpack.c.h.b16 %v734
  %v1214 = vunpack.c.l.b16 %v735
  %v1215 = vunpack.c.h.b16 %v735
  %v1216 = vunpack.c.l.b16 %v736
  %v1217 = vunpack.c.h.b16 %v736
  %v1218 = vunpack.c.l.b16 %v737
  %v1219 = vunpack.c.h.b16 %v737
  %v1220 = vunpack.c.l.b16 %v738
  %v1221 = vunpack.c.h.b16 %v738
  %v1222 = vunpack.c.l.b16 %v739
  %v1223 = vunpack.c.h.b16 %v739
  %v1224 = vunpack.c.l.b16 %v740
  %v1225 = vunpack.c.h.b16 %v740
  %v1226 = vunpack.c.l.b16 %v741
  %v1227 = vunpack.c.h.b16 %v741
  %v1228 = vunpack.c.l.b16 %v742
  %v1229 = vunpack.c.h.b16 %v742
  %v1230 = vunpack.c.l.b16 %v743
  %v1231 = vunpack.c.h.b16 %v743
  %v1232 = vunpack.c.l.b16 %v744
  %v1233 = vunpack.c.h.b16 %v744
  %v1234 = vunpack.c.l.b16 %v745
  %v1235 = vunpack.c.h.b16 %v745
  %v1236 = vunpack.c.l.b16 %v746
  %v1237 = vunpack.c.h.b16 %v746
  %v1238 = vunpack.c.l.b16 %v747
  %v1239 = vunpack.c.h.b16 %v747
  %v1240 = vunpack.c.l.b16 %v748
  %v1241 = vunpack.c.h.b16 %v748
  %v1242 = vunpack.c.l.b16 %v749
  %v1243 = vunpack.c.h.b16 %v749
  %v1244 = vunpack.c.l.b16 %v750
  %v1245 = vunpack.c.h.b16 %v750
  %v1246 = vunpack.c.l.b16 %v751
  %v1247 = vunpack.c.h.b16 %v751
  %v1248 = vunpack.c.l.b16 %v752
  %v1249 = vunpack.c.h.b16 %v752
  %v1250 = vunpack.c.l.b16 %v753
  %v1251 = vunpack.c.h.b16 %v753
  %v1252 = vunpack.c.l.b16 %v754
  %v1253 = vunpack.c.h.b16 %v754
  %v1254 = vunpack.c.l.b16 %v755
  %v1255 = vunpack.c.h.b16 %v755
  %v1256 = vunpack.c.l.b16 %v756
  %v1257 = vunpack.c.h.b16 %v756
  %v1258 = vunpack.c.l.b16 %v757
  %v1259 = vunpack.c.h.b16 %v757
  %v1260 = vunpack.c.l.b16 %v758
  %v1261 = vunpack.c.h.b16 %v758
  %v1262 = vunpack.c.l.b16 %v759
  %v1263 = vunpack.c.h.b16 %v759
  %v1264 = vunpack.c.l.b16 %v760
  %v1265 = vunpack.c.h.b16 %v760
  %v1266 = vunpack.c.l.b16 %v761
  %v1267 = vunpack.c.h.b16 %v761
  %v1268 = vunpack.c.l.b16 %v762
  %v1269 = vunpack.c.h.b16 %v762
  %v1270 = vunpack.c.l.b16 %v763
  %v1271 = vunpack.c.h.b16 %v763
  %v1272 = vunpack.c.l.b16 %v764
  %v1273 = vunpack.c.h.b16 %v764
  %v1274 = vunpack.c.l.b16 %v765
  %v1275 = vunpack.c.h.b16 %v765
  %v1276 = vunpack.c.l.b16 %v766
  %v1277 = vunpack.c.h.b16 %v766
  %v1278 = vunpack.c.l.b16 %v767
  %v1279 = vunpack.c.h.b16 %v767
  %v1280 = vunpack.c.l.b16 %v768
  %v1281 = vunpack.c.h.b16 %v768
  %v1282 = vunpack.c.l.b16 %v769
  %v1283 = vunpack.c.h.b16 %v769
  %v1284 = vunpack.c.l.b16 %v770
  %v1285 = vunpack.c.h.b16 %v770
  %v1286 = vunpack.c.l.b16 %v771
  %v1287 = vunpack.c.h.b16 %v771
  %v1288 = vunpack.c.l.b16 %v772
  %v1289 = vunpack.c.h.b16 %v772
  %v1290 = vunpack.c.l.b16 %v773
  %v1291 = vunpack.c.h.b16 %v773
  %v1292 = vunpack.c.l.b16 %v774
  %v1293 = vunpack.c.h.b16 %v774
  %v1294 = vunpack.c.l.b16 %v775
  %v1295 = vunpack.c.h.b16 %v775
  %v1296 = vunpack.c.l.b16 %v776
  %v1297 = vunpack.c.h.b16 %v776
  %v1298 = vunpack.c.l.b16 %v777
  %v1299 = vunpack.c.h.b16 %v777
  %v1300 = vunpack.c.l.b16 %v778
  %v1301 = vunpack.c.h.b16 %v778
  %v1302 = vunpack.c.l.b16 %v779
  %v1303 = vunpack.c.h.b16 %v779
  %v1304 = vunpack.c.l.b16 %v780
  %v1305 = vunpack.c.h.b16 %v780
  %v1306 = vunpack.c.l.b16 %v781
  %v1307 = vunpack.c.h.b16 %v781
  %v1308 = vunpack.c.l.b16 %v782
  %v1309 = vunpack.c.h.b16 %v782
  %v1310 = vunpack.c.l.b16 %v783
  %v1311 = vunpack.c.h.b16 %v783
  %v1312 = vpack.c.b16 %v1058, %v1056
  %v1313 = vpack.c.b16 %v1059, %v1057
  %v1314 = vpack.c.b16 %v1062, %v1060
  %v1315 = vpack.c.b16 %v1063, %v1061
  %v1316 = vpack.c.b16 %v1066, %v1064
  %v1317 = vpack.c.b16 %v1067, %v1065
  %v1318 = vpack.c.b16 %v1070, %v1068
  %v1319 = vpack.c.b16 %v1071, %v1069
  %v1320 = vpack.c.b16 %v1074, %v1072
  %v1321 = vpack.c.b16 %v1075, %v1073
  %v1322 = vpack.c.b16 %v1078, %v1076
  %v1323 = vpack.c.b16 %v1079, %v1077
  %v1324 = vpack.c.b16 %v1082, %v1080
  %v1325 = vpack.c.b16 %v1083, %v1081
  %v1326 = vpack.c.b16 %v1086, %v1084
  %v1327 = vpack.c.b16 %v1087, %v1085
  %v1328 = vpack.c.b16 %v1090, %v1088
  %v1329 = vpack.c.b16 %v1091, %v1089
  %v1330 = vpack.c.b16 %v1094, %v1092
  %v1331 = vpack.c.b16 %v1095, %v1093
  %v1332 = vpack.c.b16 %v1098, %v1096
  %v1333 = vpack.c.b16 %v1099, %v1097
  %v1334 = vpack.c.b16 %v1102, %v1100
  %v1335 = vpack.c.b16 %v1103, %v1101
  %v1336 = vpack.c.b16 %v1106, %v1104
  %v1337 = vpack.c.b16 %v1107, %v1105
  %v1338 = vpack.c.b16 %v1110, %v1108
  %v1339 = vpack.c.b16 %v1111, %v1109
  %v1340 = vpack.c.b16 %v1114, %v1112
  %v1341 = vpack.c.b16 %v1115, %v1113
  %v1342 = vpack.c.b16 %v1118, %v1116
  %v1343 = vpack.c.b16 %v1119, %v1117
  %v1344 = vpack.c.b16 %v1122, %v1120
  %v1345 = vpack.c.b16 %v1123, %v1121
  %v1346 = vpack.c.b16 %v1126, %v1124
  %v1347 = vpack.c.b16 %v1127, %v1125
  %v1348 = vpack.c.b16 %v1130, %v1128
  %v1349 = vpack.c.b16 %v1131, %v1129
  %v1350 = vpack.c.b16 %v1134, %v1132
  %v1351 = vpack.c.b16 %v1135, %v1133
  %v1352 = vpack.c.b16 %v1138, %v1136
  %v1353 = vpack.c.b16 %v1139, %v1137
  %v1354 = vpack.c.b16 %v1142, %v1140
  %v1355 = vpack.c.b16 %v1143, %v1141
  %v1356 = vpack.c.b16 %v1146, %v1144
  %v1357 = vpack.c.b16 %v1147, %v1145
  %v1358 = vpack.c.b16 %v1150, %v1148
  %v1359 = vpack.c.b16 %v1151, %v1149
  %v1360 = vpack.c.b16 %v1154, %v1152
  %v1361 = vpack.c.b16 %v1155, %v1153
  %v1362 = vpack.c.b16 %v1158, %v1156
  %v1363 = vpack.c.b16 %v1159, %v1157
  %v1364 = vpack.c.b16 %v1162, %v1160
  %v1365 = vpack.c.b16 %v1163, %v1161
  %v1366 = vpack.c.b16 %v1166, %v1164
  %v1367 = vpack.c.b16 %v1167, %v1165
  %v1368 = vpack.c.b16 %v1170, %v1168
  %v1369 = vpack.c.b16 %v1171, %v1169
  %v1370 = vpack.c.b16 %v1174, %v1172
  %v1371 = vpack.c.b16 %v1175, %v1173
  %v1372 = vpack.c.b16 %v1178, %v1176
  %v1373 = vpack.c.b16 %v1179, %v1177
  %v1374 = vpack.c.b16 %v1182, %v1180
  %v1375 = vpack.c.b16 %v1183, %v1181
  %v1376 = vpack.c.b16 %v1186, %v1184
  %v1377 = vpack.c.b16 %v1187, %v1185
  %v1378 = vpack.c.b16 %v1190, %v1188
  %v1379 = vpack.c.b16 %v1191, %v1189
  %v1380 = vpack.c.b16 %v1194, %v1192
  %v1381 = vpack.c.b16 %v1195, %v1193
  %v1382 = vpack.c.b16 %v1198, %v1196
  %v1383 = vpack.c.b16 %v1199, %v1197
  %v1384 = vpack.c.b16 %v1202, %v1200
  %v1385 = vpack.c.b16 %v1203, %v1201
  %v1386 = vpack.c.b16 %v1206, %v1204
  %v1387 = vpack.c.b16 %v1207, %v1205
  %v1388 = vpack.c.b16 %v1210, %v1208
  %v1389 = vpack.c.b16 %v1211, %v1209
  %v1390 = vpack.c.b16 %v1214, %v1212
  %v1391 = vpack.c.b16 %v1215, %v1213
  %v1392 = vpack.c.b16 %v1218, %v1216
  %v1393 = vpack.c.b16 %v1219, %v1217
  %v1394 = vpack.c.b16 %v1222, %v1220
  %v1395 = vpack.c.b16 %v1223, %v1221
  %v1396 = vpack.c.b16 %v1226, %v1224
  %v1397 = vpack.c.b16 %v1227, %v1225
  %v1398 = vpack.c.b16 %v1230, %v1228
  %v1399 = vpack.c.b16 %v1231, %v1229
  %v1400 = vpack.c.b16 %v1234, %v1232
  %v1401 = vpack.c.b16 %v1235, %v1233
  %v1402 = vpack.c.b16 %v1238, %v1236
  %v1403 = vpack.c.b16 %v1239, %v1237
  %v1404 = vpack.c.b16 %v1242, %v1240
  %v1405 = vpack.c.b16 %v1243, %v1241
  %v1406 = vpack.c.b16 %v1246, %v1244
  %v1407 = vpack.c.b16 %v1247, %v1245
  %v1408 = vpack.c.b16 %v1250, %v1248
  %v1409 = vpack.c.b16 %v1251, %v1249
  %v1410 = vpack.c.b16 %v1254, %v1252
  %v1411 = vpack.c.b16 %v1255, %v1253
  %v1412 = vpack.c.b16 %v1258, %v1256
  %v1413 = vpack.c.b16 %v1259, %v1257
  %v1414 = vpack.c.b16 %v1262, %v1260
  %v1415 = vpack.c.b16 %v1263, %v1261
  %v1416 = vpack.c.b16 %v1266, %v1264
  %v1417 = vpack.c.b16 %v1267, %v1265
  %v1418 = vpack.c.b16 %v1270, %v1268
  %v1419 = vpack.c.b16 %v1271, %v1269
  %v1420 = vpack.c.b16 %v1274, %v1272
  %v1421 = vpack.c.b16 %v1275, %v1273
  %v1422 = vpack.c.b16 %v1278, %v1276
  %v1423 = vpack.c.b16 %v1279, %v1277
  %v1424 = vpack.c.b16 %v1282, %v1280
  %v1425 = vpack.c.b16 %v1283, %v1281
  %v1426 = vpack.c.b16 %v1286, %v1284
  %v1427 = vpack.c.b16 %v1287, %v1285
  %v1428 = vpack.c.b16 %v1290, %v1288
  %v1429 = vpack.c.b16 %v1291, %v1289
  %v1430 = vpack.c.b16 %v1294, %v1292
  %v1431 = vpack.c.b16 %v1295, %v1293
  %v1432 = vpack.c.b16 %v1298, %v1296
  %v1433 = vpack.c.b16 %v1299, %v1297
  %v1434 = vpack.c.b16 %v1302, %v1300
  %v1435 = vpack.c.b16 %v1303, %v1301
  %v1436 = vpack.c.b16 %v1306, %v1304
  %v1437 = vpack.c.b16 %v1307, %v1305
  %v1438 = vpack.c.b16 %v1310, %v1308
  %v1439 = vpack.c.b16 %v1311, %v1309
  %1568 = vmatpush.bf16.msra.mxu0 %v919
  %1569 = vmatpush.bf16.msra.mxu0 %v918
  %1570 = vmatpush.bf16.msra.mxu0 %v917
  %1571 = vmatpush.bf16.msra.mxu0 %v916
  %1572 = vmatpush.bf16.msra.mxu0 %v915
  %1573 = vmatpush.bf16.msra.mxu0 %v914
  %1574 = vmatpush.bf16.msra.mxu0 %v913
  %1575 = vmatpush.bf16.msra.mxu0 %v912
  %1576 = vmatmul.bf16.gmra.mxu0 %v1312
  %v1577 = vpop.f32.mrf.mxu0
  %v1578 = vadd.f32 0.0, %v1577
  %v1579 = vpop.f32.mrf.mxu0
  %v1580 = vadd.f32 0.0, %v1579
  %1581 = vmatmul.bf16.gmra.mxu0 %v1314
  %v1582 = vpop.f32.mrf.mxu0
  %v1583 = vadd.f32 0.0, %v1582
  %v1584 = vpop.f32.mrf.mxu0
  %v1585 = vadd.f32 0.0, %v1584
  %1586 = vmatmul.bf16.gmra.mxu0 %v1316
  %v1587 = vpop.f32.mrf.mxu0
  %v1588 = vadd.f32 0.0, %v1587
  %v1589 = vpop.f32.mrf.mxu0
  %v1590 = vadd.f32 0.0, %v1589
  %1591 = vmatmul.bf16.gmra.mxu0 %v1318
  %v1592 = vpop.f32.mrf.mxu0
  %v1593 = vadd.f32 0.0, %v1592
  %v1594 = vpop.f32.mrf.mxu0
  %v1595 = vadd.f32 0.0, %v1594
  %1596 = vmatmul.bf16.gmra.mxu0 %v1320
  %v1597 = vpop.f32.mrf.mxu0
  %v1598 = vadd.f32 0.0, %v1597
  %v1599 = vpop.f32.mrf.mxu0
  %v1600 = vadd.f32 0.0, %v1599
  %1601 = vmatmul.bf16.gmra.mxu0 %v1322
  %v1602 = vpop.f32.mrf.mxu0
  %v1603 = vadd.f32 0.0, %v1602
  %v1604 = vpop.f32.mrf.mxu0
  %v1605 = vadd.f32 0.0, %v1604
  %1606 = vmatmul.bf16.gmra.mxu0 %v1324
  %v1607 = vpop.f32.mrf.mxu0
  %v1608 = vadd.f32 0.0, %v1607
  %v1609 = vpop.f32.mrf.mxu0
  %v1610 = vadd.f32 0.0, %v1609
  %1611 = vmatmul.bf16.gmra.mxu0 %v1326
  %v1612 = vpop.f32.mrf.mxu0
  %v1613 = vadd.f32 0.0, %v1612
  %v1614 = vpop.f32.mrf.mxu0
  %v1615 = vadd.f32 0.0, %v1614
  %1616 = vmatmul.bf16.gmra.mxu0 %v1328
  %v1617 = vpop.f32.mrf.mxu0
  %v1618 = vadd.f32 0.0, %v1617
  %v1619 = vpop.f32.mrf.mxu0
  %v1620 = vadd.f32 0.0, %v1619
  %1621 = vmatmul.bf16.gmra.mxu0 %v1330
  %v1622 = vpop.f32.mrf.mxu0
  %v1623 = vadd.f32 0.0, %v1622
  %v1624 = vpop.f32.mrf.mxu0
  %v1625 = vadd.f32 0.0, %v1624
  %1626 = vmatmul.bf16.gmra.mxu0 %v1332
  %v1627 = vpop.f32.mrf.mxu0
  %v1628 = vadd.f32 0.0, %v1627
  %v1629 = vpop.f32.mrf.mxu0
  %v1630 = vadd.f32 0.0, %v1629
  %1631 = vmatmul.bf16.gmra.mxu0 %v1334
  %v1632 = vpop.f32.mrf.mxu0
  %v1633 = vadd.f32 0.0, %v1632
  %v1634 = vpop.f32.mrf.mxu0
  %v1635 = vadd.f32 0.0, %v1634
  %1636 = vmatmul.bf16.gmra.mxu0 %v1336
  %v1637 = vpop.f32.mrf.mxu0
  %v1638 = vadd.f32 0.0, %v1637
  %v1639 = vpop.f32.mrf.mxu0
  %v1640 = vadd.f32 0.0, %v1639
  %1641 = vmatmul.bf16.gmra.mxu0 %v1338
  %v1642 = vpop.f32.mrf.mxu0
  %v1643 = vadd.f32 0.0, %v1642
  %v1644 = vpop.f32.mrf.mxu0
  %v1645 = vadd.f32 0.0, %v1644
  %1646 = vmatmul.bf16.gmra.mxu0 %v1340
  %v1647 = vpop.f32.mrf.mxu0
  %v1648 = vadd.f32 0.0, %v1647
  %v1649 = vpop.f32.mrf.mxu0
  %v1650 = vadd.f32 0.0, %v1649
  %1651 = vmatmul.bf16.gmra.mxu0 %v1342
  %v1652 = vpop.f32.mrf.mxu0
  %v1653 = vadd.f32 0.0, %v1652
  %v1654 = vpop.f32.mrf.mxu0
  %v1655 = vadd.f32 0.0, %v1654
  %1656 = vmatmul.bf16.gmra.mxu0 %v1344
  %v1657 = vpop.f32.mrf.mxu0
  %v1658 = vadd.f32 0.0, %v1657
  %v1659 = vpop.f32.mrf.mxu0
  %v1660 = vadd.f32 0.0, %v1659
  %1661 = vmatmul.bf16.gmra.mxu0 %v1346
  %v1662 = vpop.f32.mrf.mxu0
  %v1663 = vadd.f32 0.0, %v1662
  %v1664 = vpop.f32.mrf.mxu0
  %v1665 = vadd.f32 0.0, %v1664
  %1666 = vmatmul.bf16.gmra.mxu0 %v1348
  %v1667 = vpop.f32.mrf.mxu0
  %v1668 = vadd.f32 0.0, %v1667
  %v1669 = vpop.f32.mrf.mxu0
  %v1670 = vadd.f32 0.0, %v1669
  %1671 = vmatmul.bf16.gmra.mxu0 %v1350
  %v1672 = vpop.f32.mrf.mxu0
  %v1673 = vadd.f32 0.0, %v1672
  %v1674 = vpop.f32.mrf.mxu0
  %v1675 = vadd.f32 0.0, %v1674
  %1676 = vmatmul.bf16.gmra.mxu0 %v1352
  %v1677 = vpop.f32.mrf.mxu0
  %v1678 = vadd.f32 0.0, %v1677
  %v1679 = vpop.f32.mrf.mxu0
  %v1680 = vadd.f32 0.0, %v1679
  %1681 = vmatmul.bf16.gmra.mxu0 %v1354
  %v1682 = vpop.f32.mrf.mxu0
  %v1683 = vadd.f32 0.0, %v1682
  %v1684 = vpop.f32.mrf.mxu0
  %v1685 = vadd.f32 0.0, %v1684
  %1686 = vmatmul.bf16.gmra.mxu0 %v1356
  %v1687 = vpop.f32.mrf.mxu0
  %v1688 = vadd.f32 0.0, %v1687
  %v1689 = vpop.f32.mrf.mxu0
  %v1690 = vadd.f32 0.0, %v1689
  %1691 = vmatmul.bf16.gmra.mxu0 %v1358
  %v1692 = vpop.f32.mrf.mxu0
  %v1693 = vadd.f32 0.0, %v1692
  %v1694 = vpop.f32.mrf.mxu0
  %v1695 = vadd.f32 0.0, %v1694
  %1696 = vmatmul.bf16.gmra.mxu0 %v1360
  %v1697 = vpop.f32.mrf.mxu0
  %v1698 = vadd.f32 0.0, %v1697
  %v1699 = vpop.f32.mrf.mxu0
  %v1700 = vadd.f32 0.0, %v1699
  %1701 = vmatmul.bf16.gmra.mxu0 %v1362
  %v1702 = vpop.f32.mrf.mxu0
  %v1703 = vadd.f32 0.0, %v1702
  %v1704 = vpop.f32.mrf.mxu0
  %v1705 = vadd.f32 0.0, %v1704
  %1706 = vmatmul.bf16.gmra.mxu0 %v1364
  %v1707 = vpop.f32.mrf.mxu0
  %v1708 = vadd.f32 0.0, %v1707
  %v1709 = vpop.f32.mrf.mxu0
  %v1710 = vadd.f32 0.0, %v1709
  %1711 = vmatmul.bf16.gmra.mxu0 %v1366
  %v1712 = vpop.f32.mrf.mxu0
  %v1713 = vadd.f32 0.0, %v1712
  %v1714 = vpop.f32.mrf.mxu0
  %v1715 = vadd.f32 0.0, %v1714
  %1716 = vmatmul.bf16.gmra.mxu0 %v1368
  %v1717 = vpop.f32.mrf.mxu0
  %v1718 = vadd.f32 0.0, %v1717
  %v1719 = vpop.f32.mrf.mxu0
  %v1720 = vadd.f32 0.0, %v1719
  %1721 = vmatmul.bf16.gmra.mxu0 %v1370
  %v1722 = vpop.f32.mrf.mxu0
  %v1723 = vadd.f32 0.0, %v1722
  %v1724 = vpop.f32.mrf.mxu0
  %v1725 = vadd.f32 0.0, %v1724
  %1726 = vmatmul.bf16.gmra.mxu0 %v1372
  %v1727 = vpop.f32.mrf.mxu0
  %v1728 = vadd.f32 0.0, %v1727
  %v1729 = vpop.f32.mrf.mxu0
  %v1730 = vadd.f32 0.0, %v1729
  %1731 = vmatmul.bf16.gmra.mxu0 %v1374
  %v1732 = vpop.f32.mrf.mxu0
  %v1733 = vadd.f32 0.0, %v1732
  %v1734 = vpop.f32.mrf.mxu0
  %v1735 = vadd.f32 0.0, %v1734
  %1736 = vmatmul.bf16.gmra.mxu0 %v1376
  %v1737 = vpop.f32.mrf.mxu0
  %v1738 = vadd.f32 0.0, %v1737
  %v1739 = vpop.f32.mrf.mxu0
  %v1740 = vadd.f32 0.0, %v1739
  %1741 = vmatmul.bf16.gmra.mxu0 %v1378
  %v1742 = vpop.f32.mrf.mxu0
  %v1743 = vadd.f32 0.0, %v1742
  %v1744 = vpop.f32.mrf.mxu0
  %v1745 = vadd.f32 0.0, %v1744
  %1746 = vmatmul.bf16.gmra.mxu0 %v1380
  %v1747 = vpop.f32.mrf.mxu0
  %v1748 = vadd.f32 0.0, %v1747
  %v1749 = vpop.f32.mrf.mxu0
  %v1750 = vadd.f32 0.0, %v1749
  %1751 = vmatmul.bf16.gmra.mxu0 %v1382
  %v1752 = vpop.f32.mrf.mxu0
  %v1753 = vadd.f32 0.0, %v1752
  %v1754 = vpop.f32.mrf.mxu0
  %v1755 = vadd.f32 0.0, %v1754
  %1756 = vmatmul.bf16.gmra.mxu0 %v1384
  %v1757 = vpop.f32.mrf.mxu0
  %v1758 = vadd.f32 0.0, %v1757
  %v1759 = vpop.f32.mrf.mxu0
  %v1760 = vadd.f32 0.0, %v1759
  %1761 = vmatmul.bf16.gmra.mxu0 %v1386
  %v1762 = vpop.f32.mrf.mxu0
  %v1763 = vadd.f32 0.0, %v1762
  %v1764 = vpop.f32.mrf.mxu0
  %v1765 = vadd.f32 0.0, %v1764
  %1766 = vmatmul.bf16.gmra.mxu0 %v1388
  %v1767 = vpop.f32.mrf.mxu0
  %v1768 = vadd.f32 0.0, %v1767
  %v1769 = vpop.f32.mrf.mxu0
  %v1770 = vadd.f32 0.0, %v1769
  %1771 = vmatmul.bf16.gmra.mxu0 %v1390
  %v1772 = vpop.f32.mrf.mxu0
  %v1773 = vadd.f32 0.0, %v1772
  %v1774 = vpop.f32.mrf.mxu0
  %v1775 = vadd.f32 0.0, %v1774
  %1776 = vmatmul.bf16.gmra.mxu0 %v1392
  %v1777 = vpop.f32.mrf.mxu0
  %v1778 = vadd.f32 0.0, %v1777
  %v1779 = vpop.f32.mrf.mxu0
  %v1780 = vadd.f32 0.0, %v1779
  %1781 = vmatmul.bf16.gmra.mxu0 %v1394
  %v1782 = vpop.f32.mrf.mxu0
  %v1783 = vadd.f32 0.0, %v1782
  %v1784 = vpop.f32.mrf.mxu0
  %v1785 = vadd.f32 0.0, %v1784
  %1786 = vmatmul.bf16.gmra.mxu0 %v1396
  %v1787 = vpop.f32.mrf.mxu0
  %v1788 = vadd.f32 0.0, %v1787
  %v1789 = vpop.f32.mrf.mxu0
  %v1790 = vadd.f32 0.0, %v1789
  %1791 = vmatmul.bf16.gmra.mxu0 %v1398
  %v1792 = vpop.f32.mrf.mxu0
  %v1793 = vadd.f32 0.0, %v1792
  %v1794 = vpop.f32.mrf.mxu0
  %v1795 = vadd.f32 0.0, %v1794
  %1796 = vmatmul.bf16.gmra.mxu0 %v1400
  %v1797 = vpop.f32.mrf.mxu0
  %v1798 = vadd.f32 0.0, %v1797
  %v1799 = vpop.f32.mrf.mxu0
  %v1800 = vadd.f32 0.0, %v1799
  %1801 = vmatmul.bf16.gmra.mxu0 %v1402
  %v1802 = vpop.f32.mrf.mxu0
  %v1803 = vadd.f32 0.0, %v1802
  %v1804 = vpop.f32.mrf.mxu0
  %v1805 = vadd.f32 0.0, %v1804
  %1806 = vmatmul.bf16.gmra.mxu0 %v1404
  %v1807 = vpop.f32.mrf.mxu0
  %v1808 = vadd.f32 0.0, %v1807
  %v1809 = vpop.f32.mrf.mxu0
  %v1810 = vadd.f32 0.0, %v1809
  %1811 = vmatmul.bf16.gmra.mxu0 %v1406
  %v1812 = vpop.f32.mrf.mxu0
  %v1813 = vadd.f32 0.0, %v1812
  %v1814 = vpop.f32.mrf.mxu0
  %v1815 = vadd.f32 0.0, %v1814
  %1816 = vmatmul.bf16.gmra.mxu0 %v1408
  %v1817 = vpop.f32.mrf.mxu0
  %v1818 = vadd.f32 0.0, %v1817
  %v1819 = vpop.f32.mrf.mxu0
  %v1820 = vadd.f32 0.0, %v1819
  %1821 = vmatmul.bf16.gmra.mxu0 %v1410
  %v1822 = vpop.f32.mrf.mxu0
  %v1823 = vadd.f32 0.0, %v1822
  %v1824 = vpop.f32.mrf.mxu0
  %v1825 = vadd.f32 0.0, %v1824
  %1826 = vmatmul.bf16.gmra.mxu0 %v1412
  %v1827 = vpop.f32.mrf.mxu0
  %v1828 = vadd.f32 0.0, %v1827
  %v1829 = vpop.f32.mrf.mxu0
  %v1830 = vadd.f32 0.0, %v1829
  %1831 = vmatmul.bf16.gmra.mxu0 %v1414
  %v1832 = vpop.f32.mrf.mxu0
  %v1833 = vadd.f32 0.0, %v1832
  %v1834 = vpop.f32.mrf.mxu0
  %v1835 = vadd.f32 0.0, %v1834
  %1836 = vmatmul.bf16.gmra.mxu0 %v1416
  %v1837 = vpop.f32.mrf.mxu0
  %v1838 = vadd.f32 0.0, %v1837
  %v1839 = vpop.f32.mrf.mxu0
  %v1840 = vadd.f32 0.0, %v1839
  %1841 = vmatmul.bf16.gmra.mxu0 %v1418
  %v1842 = vpop.f32.mrf.mxu0
  %v1843 = vadd.f32 0.0, %v1842
  %v1844 = vpop.f32.mrf.mxu0
  %v1845 = vadd.f32 0.0, %v1844
  %1846 = vmatmul.bf16.gmra.mxu0 %v1420
  %v1847 = vpop.f32.mrf.mxu0
  %v1848 = vadd.f32 0.0, %v1847
  %v1849 = vpop.f32.mrf.mxu0
  %v1850 = vadd.f32 0.0, %v1849
  %1851 = vmatmul.bf16.gmra.mxu0 %v1422
  %v1852 = vpop.f32.mrf.mxu0
  %v1853 = vadd.f32 0.0, %v1852
  %v1854 = vpop.f32.mrf.mxu0
  %v1855 = vadd.f32 0.0, %v1854
  %1856 = vmatmul.bf16.gmra.mxu0 %v1424
  %v1857 = vpop.f32.mrf.mxu0
  %v1858 = vadd.f32 0.0, %v1857
  %v1859 = vpop.f32.mrf.mxu0
  %v1860 = vadd.f32 0.0, %v1859
  %1861 = vmatmul.bf16.gmra.mxu0 %v1426
  %v1862 = vpop.f32.mrf.mxu0
  %v1863 = vadd.f32 0.0, %v1862
  %v1864 = vpop.f32.mrf.mxu0
  %v1865 = vadd.f32 0.0, %v1864
  %1866 = vmatmul.bf16.gmra.mxu0 %v1428
  %v1867 = vpop.f32.mrf.mxu0
  %v1868 = vadd.f32 0.0, %v1867
  %v1869 = vpop.f32.mrf.mxu0
  %v1870 = vadd.f32 0.0, %v1869
  %1871 = vmatmul.bf16.gmra.mxu0 %v1430
  %v1872 = vpop.f32.mrf.mxu0
  %v1873 = vadd.f32 0.0, %v1872
  %v1874 = vpop.f32.mrf.mxu0
  %v1875 = vadd.f32 0.0, %v1874
  %1876 = vmatmul.bf16.gmra.mxu0 %v1432
  %v1877 = vpop.f32.mrf.mxu0
  %v1878 = vadd.f32 0.0, %v1877
  %v1879 = vpop.f32.mrf.mxu0
  %v1880 = vadd.f32 0.0, %v1879
  %1881 = vmatmul.bf16.gmra.mxu0 %v1434
  %v1882 = vpop.f32.mrf.mxu0
  %v1883 = vadd.f32 0.0, %v1882
  %v1884 = vpop.f32.mrf.mxu0
  %v1885 = vadd.f32 0.0, %v1884
  %1886 = vmatmul.bf16.gmra.mxu0 %v1436
  %v1887 = vpop.f32.mrf.mxu0
  %v1888 = vadd.f32 0.0, %v1887
  %v1889 = vpop.f32.mrf.mxu0
  %v1890 = vadd.f32 0.0, %v1889
  %1891 = vmatmul.bf16.gmra.mxu0 %v1438
  %v1892 = vpop.f32.mrf.mxu0
  %v1893 = vadd.f32 0.0, %v1892
  %v1894 = vpop.f32.mrf.mxu0
  %v1895 = vadd.f32 0.0, %v1894
  %1896 = vdwg.mxu0
  %1897 = vmatpush.bf16.msra.mxu0 %v927
  %1898 = vmatpush.bf16.msra.mxu0 %v926
  %1899 = vmatpush.bf16.msra.mxu0 %v925
  %1900 = vmatpush.bf16.msra.mxu0 %v924
  %1901 = vmatpush.bf16.msra.mxu0 %v923
  %1902 = vmatpush.bf16.msra.mxu0 %v922
  %1903 = vmatpush.bf16.msra.mxu0 %v921
  %1904 = vmatpush.bf16.msra.mxu0 %v920
  %1905 = vmatmul.bf16.gmra.mxu0 %v1313
  %v1906 = vpop.f32.mrf.mxu0
  %v1907 = vadd.f32 %v1578, %v1906
  %v1908 = vpop.f32.mrf.mxu0
  %v1909 = vadd.f32 %v1580, %v1908
  %1910 = vmatmul.bf16.gmra.mxu0 %v1315
  %v1911 = vpop.f32.mrf.mxu0
  %v1912 = vadd.f32 %v1583, %v1911
  %v1913 = vpop.f32.mrf.mxu0
  %v1914 = vadd.f32 %v1585, %v1913
  %1915 = vmatmul.bf16.gmra.mxu0 %v1317
  %v1916 = vpop.f32.mrf.mxu0
  %v1917 = vadd.f32 %v1588, %v1916
  %v1918 = vpop.f32.mrf.mxu0
  %v1919 = vadd.f32 %v1590, %v1918
  %1920 = vmatmul.bf16.gmra.mxu0 %v1319
  %v1921 = vpop.f32.mrf.mxu0
  %v1922 = vadd.f32 %v1593, %v1921
  %v1923 = vpop.f32.mrf.mxu0
  %v1924 = vadd.f32 %v1595, %v1923
  %1925 = vmatmul.bf16.gmra.mxu0 %v1321
  %v1926 = vpop.f32.mrf.mxu0
  %v1927 = vadd.f32 %v1598, %v1926
  %v1928 = vpop.f32.mrf.mxu0
  %v1929 = vadd.f32 %v1600, %v1928
  %1930 = vmatmul.bf16.gmra.mxu0 %v1323
  %v1931 = vpop.f32.mrf.mxu0
  %v1932 = vadd.f32 %v1603, %v1931
  %v1933 = vpop.f32.mrf.mxu0
  %v1934 = vadd.f32 %v1605, %v1933
  %1935 = vmatmul.bf16.gmra.mxu0 %v1325
  %v1936 = vpop.f32.mrf.mxu0
  %v1937 = vadd.f32 %v1608, %v1936
  %v1938 = vpop.f32.mrf.mxu0
  %v1939 = vadd.f32 %v1610, %v1938
  %1940 = vmatmul.bf16.gmra.mxu0 %v1327
  %v1941 = vpop.f32.mrf.mxu0
  %v1942 = vadd.f32 %v1613, %v1941
  %v1943 = vpop.f32.mrf.mxu0
  %v1944 = vadd.f32 %v1615, %v1943
  %1945 = vmatmul.bf16.gmra.mxu0 %v1329
  %v1946 = vpop.f32.mrf.mxu0
  %v1947 = vadd.f32 %v1618, %v1946
  %v1948 = vpop.f32.mrf.mxu0
  %v1949 = vadd.f32 %v1620, %v1948
  %1950 = vmatmul.bf16.gmra.mxu0 %v1331
  %v1951 = vpop.f32.mrf.mxu0
  %v1952 = vadd.f32 %v1623, %v1951
  %v1953 = vpop.f32.mrf.mxu0
  %v1954 = vadd.f32 %v1625, %v1953
  %1955 = vmatmul.bf16.gmra.mxu0 %v1333
  %v1956 = vpop.f32.mrf.mxu0
  %v1957 = vadd.f32 %v1628, %v1956
  %v1958 = vpop.f32.mrf.mxu0
  %v1959 = vadd.f32 %v1630, %v1958
  %1960 = vmatmul.bf16.gmra.mxu0 %v1335
  %v1961 = vpop.f32.mrf.mxu0
  %v1962 = vadd.f32 %v1633, %v1961
  %v1963 = vpop.f32.mrf.mxu0
  %v1964 = vadd.f32 %v1635, %v1963
  %1965 = vmatmul.bf16.gmra.mxu0 %v1337
  %v1966 = vpop.f32.mrf.mxu0
  %v1967 = vadd.f32 %v1638, %v1966
  %v1968 = vpop.f32.mrf.mxu0
  %v1969 = vadd.f32 %v1640, %v1968
  %1970 = vmatmul.bf16.gmra.mxu0 %v1339
  %v1971 = vpop.f32.mrf.mxu0
  %v1972 = vadd.f32 %v1643, %v1971
  %v1973 = vpop.f32.mrf.mxu0
  %v1974 = vadd.f32 %v1645, %v1973
  %1975 = vmatmul.bf16.gmra.mxu0 %v1341
  %v1976 = vpop.f32.mrf.mxu0
  %v1977 = vadd.f32 %v1648, %v1976
  %v1978 = vpop.f32.mrf.mxu0
  %v1979 = vadd.f32 %v1650, %v1978
  %1980 = vmatmul.bf16.gmra.mxu0 %v1343
  %v1981 = vpop.f32.mrf.mxu0
  %v1982 = vadd.f32 %v1653, %v1981
  %v1983 = vpop.f32.mrf.mxu0
  %v1984 = vadd.f32 %v1655, %v1983
  %1985 = vmatmul.bf16.gmra.mxu0 %v1345
  %v1986 = vpop.f32.mrf.mxu0
  %v1987 = vadd.f32 %v1658, %v1986
  %v1988 = vpop.f32.mrf.mxu0
  %v1989 = vadd.f32 %v1660, %v1988
  %1990 = vmatmul.bf16.gmra.mxu0 %v1347
  %v1991 = vpop.f32.mrf.mxu0
  %v1992 = vadd.f32 %v1663, %v1991
  %v1993 = vpop.f32.mrf.mxu0
  %v1994 = vadd.f32 %v1665, %v1993
  %1995 = vmatmul.bf16.gmra.mxu0 %v1349
  %v1996 = vpop.f32.mrf.mxu0
  %v1997 = vadd.f32 %v1668, %v1996
  %v1998 = vpop.f32.mrf.mxu0
  %v1999 = vadd.f32 %v1670, %v1998
  %2000 = vmatmul.bf16.gmra.mxu0 %v1351
  %v2001 = vpop.f32.mrf.mxu0
  %v2002 = vadd.f32 %v1673, %v2001
  %v2003 = vpop.f32.mrf.mxu0
  %v2004 = vadd.f32 %v1675, %v2003
  %2005 = vmatmul.bf16.gmra.mxu0 %v1353
  %v2006 = vpop.f32.mrf.mxu0
  %v2007 = vadd.f32 %v1678, %v2006
  %v2008 = vpop.f32.mrf.mxu0
  %v2009 = vadd.f32 %v1680, %v2008
  %2010 = vmatmul.bf16.gmra.mxu0 %v1355
  %v2011 = vpop.f32.mrf.mxu0
  %v2012 = vadd.f32 %v1683, %v2011
  %v2013 = vpop.f32.mrf.mxu0
  %v2014 = vadd.f32 %v1685, %v2013
  %2015 = vmatmul.bf16.gmra.mxu0 %v1357
  %v2016 = vpop.f32.mrf.mxu0
  %v2017 = vadd.f32 %v1688, %v2016
  %v2018 = vpop.f32.mrf.mxu0
  %v2019 = vadd.f32 %v1690, %v2018
  %2020 = vmatmul.bf16.gmra.mxu0 %v1359
  %v2021 = vpop.f32.mrf.mxu0
  %v2022 = vadd.f32 %v1693, %v2021
  %v2023 = vpop.f32.mrf.mxu0
  %v2024 = vadd.f32 %v1695, %v2023
  %2025 = vmatmul.bf16.gmra.mxu0 %v1361
  %v2026 = vpop.f32.mrf.mxu0
  %v2027 = vadd.f32 %v1698, %v2026
  %v2028 = vpop.f32.mrf.mxu0
  %v2029 = vadd.f32 %v1700, %v2028
  %2030 = vmatmul.bf16.gmra.mxu0 %v1363
  %v2031 = vpop.f32.mrf.mxu0
  %v2032 = vadd.f32 %v1703, %v2031
  %v2033 = vpop.f32.mrf.mxu0
  %v2034 = vadd.f32 %v1705, %v2033
  %2035 = vmatmul.bf16.gmra.mxu0 %v1365
  %v2036 = vpop.f32.mrf.mxu0
  %v2037 = vadd.f32 %v1708, %v2036
  %v2038 = vpop.f32.mrf.mxu0
  %v2039 = vadd.f32 %v1710, %v2038
  %2040 = vmatmul.bf16.gmra.mxu0 %v1367
  %v2041 = vpop.f32.mrf.mxu0
  %v2042 = vadd.f32 %v1713, %v2041
  %v2043 = vpop.f32.mrf.mxu0
  %v2044 = vadd.f32 %v1715, %v2043
  %2045 = vmatmul.bf16.gmra.mxu0 %v1369
  %v2046 = vpop.f32.mrf.mxu0
  %v2047 = vadd.f32 %v1718, %v2046
  %v2048 = vpop.f32.mrf.mxu0
  %v2049 = vadd.f32 %v1720, %v2048
  %2050 = vmatmul.bf16.gmra.mxu0 %v1371
  %v2051 = vpop.f32.mrf.mxu0
  %v2052 = vadd.f32 %v1723, %v2051
  %v2053 = vpop.f32.mrf.mxu0
  %v2054 = vadd.f32 %v1725, %v2053
  %2055 = vmatmul.bf16.gmra.mxu0 %v1373
  %v2056 = vpop.f32.mrf.mxu0
  %v2057 = vadd.f32 %v1728, %v2056
  %v2058 = vpop.f32.mrf.mxu0
  %v2059 = vadd.f32 %v1730, %v2058
  %2060 = vmatmul.bf16.gmra.mxu0 %v1375
  %v2061 = vpop.f32.mrf.mxu0
  %v2062 = vadd.f32 %v1733, %v2061
  %v2063 = vpop.f32.mrf.mxu0
  %v2064 = vadd.f32 %v1735, %v2063
  %2065 = vmatmul.bf16.gmra.mxu0 %v1377
  %v2066 = vpop.f32.mrf.mxu0
  %v2067 = vadd.f32 %v1738, %v2066
  %v2068 = vpop.f32.mrf.mxu0
  %v2069 = vadd.f32 %v1740, %v2068
  %2070 = vmatmul.bf16.gmra.mxu0 %v1379
  %v2071 = vpop.f32.mrf.mxu0
  %v2072 = vadd.f32 %v1743, %v2071
  %v2073 = vpop.f32.mrf.mxu0
  %v2074 = vadd.f32 %v1745, %v2073
  %2075 = vmatmul.bf16.gmra.mxu0 %v1381
  %v2076 = vpop.f32.mrf.mxu0
  %v2077 = vadd.f32 %v1748, %v2076
  %v2078 = vpop.f32.mrf.mxu0
  %v2079 = vadd.f32 %v1750, %v2078
  %2080 = vmatmul.bf16.gmra.mxu0 %v1383
  %v2081 = vpop.f32.mrf.mxu0
  %v2082 = vadd.f32 %v1753, %v2081
  %v2083 = vpop.f32.mrf.mxu0
  %v2084 = vadd.f32 %v1755, %v2083
  %2085 = vmatmul.bf16.gmra.mxu0 %v1385
  %v2086 = vpop.f32.mrf.mxu0
  %v2087 = vadd.f32 %v1758, %v2086
  %v2088 = vpop.f32.mrf.mxu0
  %v2089 = vadd.f32 %v1760, %v2088
  %2090 = vmatmul.bf16.gmra.mxu0 %v1387
  %v2091 = vpop.f32.mrf.mxu0
  %v2092 = vadd.f32 %v1763, %v2091
  %v2093 = vpop.f32.mrf.mxu0
  %v2094 = vadd.f32 %v1765, %v2093
  %2095 = vmatmul.bf16.gmra.mxu0 %v1389
  %v2096 = vpop.f32.mrf.mxu0
  %v2097 = vadd.f32 %v1768, %v2096
  %v2098 = vpop.f32.mrf.mxu0
  %v2099 = vadd.f32 %v1770, %v2098
  %2100 = vmatmul.bf16.gmra.mxu0 %v1391
  %v2101 = vpop.f32.mrf.mxu0
  %v2102 = vadd.f32 %v1773, %v2101
  %v2103 = vpop.f32.mrf.mxu0
  %v2104 = vadd.f32 %v1775, %v2103
  %2105 = vmatmul.bf16.gmra.mxu0 %v1393
  %v2106 = vpop.f32.mrf.mxu0
  %v2107 = vadd.f32 %v1778, %v2106
  %v2108 = vpop.f32.mrf.mxu0
  %v2109 = vadd.f32 %v1780, %v2108
  %2110 = vmatmul.bf16.gmra.mxu0 %v1395
  %v2111 = vpop.f32.mrf.mxu0
  %v2112 = vadd.f32 %v1783, %v2111
  %v2113 = vpop.f32.mrf.mxu0
  %v2114 = vadd.f32 %v1785, %v2113
  %2115 = vmatmul.bf16.gmra.mxu0 %v1397
  %v2116 = vpop.f32.mrf.mxu0
  %v2117 = vadd.f32 %v1788, %v2116
  %v2118 = vpop.f32.mrf.mxu0
  %v2119 = vadd.f32 %v1790, %v2118
  %2120 = vmatmul.bf16.gmra.mxu0 %v1399
  %v2121 = vpop.f32.mrf.mxu0
  %v2122 = vadd.f32 %v1793, %v2121
  %v2123 = vpop.f32.mrf.mxu0
  %v2124 = vadd.f32 %v1795, %v2123
  %2125 = vmatmul.bf16.gmra.mxu0 %v1401
  %v2126 = vpop.f32.mrf.mxu0
  %v2127 = vadd.f32 %v1798, %v2126
  %v2128 = vpop.f32.mrf.mxu0
  %v2129 = vadd.f32 %v1800, %v2128
  %2130 = vmatmul.bf16.gmra.mxu0 %v1403
  %v2131 = vpop.f32.mrf.mxu0
  %v2132 = vadd.f32 %v1803, %v2131
  %v2133 = vpop.f32.mrf.mxu0
  %v2134 = vadd.f32 %v1805, %v2133
  %2135 = vmatmul.bf16.gmra.mxu0 %v1405
  %v2136 = vpop.f32.mrf.mxu0
  %v2137 = vadd.f32 %v1808, %v2136
  %v2138 = vpop.f32.mrf.mxu0
  %v2139 = vadd.f32 %v1810, %v2138
  %2140 = vmatmul.bf16.gmra.mxu0 %v1407
  %v2141 = vpop.f32.mrf.mxu0
  %v2142 = vadd.f32 %v1813, %v2141
  %v2143 = vpop.f32.mrf.mxu0
  %v2144 = vadd.f32 %v1815, %v2143
  %2145 = vmatmul.bf16.gmra.mxu0 %v1409
  %v2146 = vpop.f32.mrf.mxu0
  %v2147 = vadd.f32 %v1818, %v2146
  %v2148 = vpop.f32.mrf.mxu0
  %v2149 = vadd.f32 %v1820, %v2148
  %2150 = vmatmul.bf16.gmra.mxu0 %v1411
  %v2151 = vpop.f32.mrf.mxu0
  %v2152 = vadd.f32 %v1823, %v2151
  %v2153 = vpop.f32.mrf.mxu0
  %v2154 = vadd.f32 %v1825, %v2153
  %2155 = vmatmul.bf16.gmra.mxu0 %v1413
  %v2156 = vpop.f32.mrf.mxu0
  %v2157 = vadd.f32 %v1828, %v2156
  %v2158 = vpop.f32.mrf.mxu0
  %v2159 = vadd.f32 %v1830, %v2158
  %2160 = vmatmul.bf16.gmra.mxu0 %v1415
  %v2161 = vpop.f32.mrf.mxu0
  %v2162 = vadd.f32 %v1833, %v2161
  %v2163 = vpop.f32.mrf.mxu0
  %v2164 = vadd.f32 %v1835, %v2163
  %2165 = vmatmul.bf16.gmra.mxu0 %v1417
  %v2166 = vpop.f32.mrf.mxu0
  %v2167 = vadd.f32 %v1838, %v2166
  %v2168 = vpop.f32.mrf.mxu0
  %v2169 = vadd.f32 %v1840, %v2168
  %2170 = vmatmul.bf16.gmra.mxu0 %v1419
  %v2171 = vpop.f32.mrf.mxu0
  %v2172 = vadd.f32 %v1843, %v2171
  %v2173 = vpop.f32.mrf.mxu0
  %v2174 = vadd.f32 %v1845, %v2173
  %2175 = vmatmul.bf16.gmra.mxu0 %v1421
  %v2176 = vpop.f32.mrf.mxu0
  %v2177 = vadd.f32 %v1848, %v2176
  %v2178 = vpop.f32.mrf.mxu0
  %v2179 = vadd.f32 %v1850, %v2178
  %2180 = vmatmul.bf16.gmra.mxu0 %v1423
  %v2181 = vpop.f32.mrf.mxu0
  %v2182 = vadd.f32 %v1853, %v2181
  %v2183 = vpop.f32.mrf.mxu0
  %v2184 = vadd.f32 %v1855, %v2183
  %2185 = vmatmul.bf16.gmra.mxu0 %v1425
  %v2186 = vpop.f32.mrf.mxu0
  %v2187 = vadd.f32 %v1858, %v2186
  %v2188 = vpop.f32.mrf.mxu0
  %v2189 = vadd.f32 %v1860, %v2188
  %2190 = vmatmul.bf16.gmra.mxu0 %v1427
  %v2191 = vpop.f32.mrf.mxu0
  %v2192 = vadd.f32 %v1863, %v2191
  %v2193 = vpop.f32.mrf.mxu0
  %v2194 = vadd.f32 %v1865, %v2193
  %2195 = vmatmul.bf16.gmra.mxu0 %v1429
  %v2196 = vpop.f32.mrf.mxu0
  %v2197 = vadd.f32 %v1868, %v2196
  %v2198 = vpop.f32.mrf.mxu0
  %v2199 = vadd.f32 %v1870, %v2198
  %2200 = vmatmul.bf16.gmra.mxu0 %v1431
  %v2201 = vpop.f32.mrf.mxu0
  %v2202 = vadd.f32 %v1873, %v2201
  %v2203 = vpop.f32.mrf.mxu0
  %v2204 = vadd.f32 %v1875, %v2203
  %2205 = vmatmul.bf16.gmra.mxu0 %v1433
  %v2206 = vpop.f32.mrf.mxu0
  %v2207 = vadd.f32 %v1878, %v2206
  %v2208 = vpop.f32.mrf.mxu0
  %v2209 = vadd.f32 %v1880, %v2208
  %2210 = vmatmul.bf16.gmra.mxu0 %v1435
  %v2211 = vpop.f32.mrf.mxu0
  %v2212 = vadd.f32 %v1883, %v2211
  %v2213 = vpop.f32.mrf.mxu0
  %v2214 = vadd.f32 %v1885, %v2213
  %2215 = vmatmul.bf16.gmra.mxu0 %v1437
  %v2216 = vpop.f32.mrf.mxu0
  %v2217 = vadd.f32 %v1888, %v2216
  %v2218 = vpop.f32.mrf.mxu0
  %v2219 = vadd.f32 %v1890, %v2218
  %2220 = vmatmul.bf16.gmra.mxu0 %v1439
  %v2221 = vpop.f32.mrf.mxu0
  %v2222 = vadd.f32 %v1893, %v2221
  %v2223 = vpop.f32.mrf.mxu0
  %v2224 = vadd.f32 %v1895, %v2223
  %2225 = vdwg.mxu0
  %vm2226 = vcmask 523264
  %2227 = vst.msk [vmem:[#allocation2] sm:$0xff] %vm2226, %v1907
  %2228 = vst.msk [vmem:[#allocation2 + $0x40] sm:$0xff] %vm2226, %v1909
  %2229 = vst.msk [vmem:[#allocation2 + $0x80] sm:$0xff] %vm2226, %v1912
  %2230 = vst.msk [vmem:[#allocation2 + $0xc0] sm:$0xff] %vm2226, %v1914
  %2231 = vst.msk [vmem:[#allocation2 + $0x100] sm:$0xff] %vm2226, %v1917
  %2232 = vst.msk [vmem:[#allocation2 + $0x140] sm:$0xff] %vm2226, %v1919
  %2233 = vst.msk [vmem:[#allocation2 + $0x180] sm:$0xff] %vm2226, %v1922
  %2234 = vst.msk [vmem:[#allocation2 + $0x1c0] sm:$0xff] %vm2226, %v1924
  %2243 = vrot.lane.b32.xlu0 %v1927, 64
  %v2244 = vpop.permute.xlu0 %2243
  %2245 = vrot.lane.b32.xlu0 %v1929, 64
  %v2246 = vpop.permute.xlu0 %2245
  %2247 = vrot.lane.b32.xlu0 %v1932, 64
  %v2248 = vpop.permute.xlu0 %2247
  %2249 = vrot.lane.b32.xlu0 %v1934, 64
  %v2250 = vpop.permute.xlu0 %2249
  %2251 = vrot.lane.b32.xlu0 %v1937, 64
  %v2252 = vpop.permute.xlu0 %2251
  %2253 = vrot.lane.b32.xlu0 %v1939, 64
  %v2254 = vpop.permute.xlu0 %2253
  %2255 = vrot.lane.b32.xlu0 %v1942, 64
  %v2256 = vpop.permute.xlu0 %2255
  %2257 = vrot.lane.b32.xlu0 %v1944, 64
  %v2258 = vpop.permute.xlu0 %2257
  %vm2267 = vcmask 1048064
  %2268 = vst.msk [vmem:[#allocation2] sm:$0xff] %vm2267, %v2244
  %2269 = vst.msk [vmem:[#allocation2 + $0x40] sm:$0xff] %vm2267, %v2246
  %2270 = vst.msk [vmem:[#allocation2 + $0x80] sm:$0xff] %vm2267, %v2248
  %2271 = vst.msk [vmem:[#allocation2 + $0xc0] sm:$0xff] %vm2267, %v2250
  %2272 = vst.msk [vmem:[#allocation2 + $0x100] sm:$0xff] %vm2267, %v2252
  %2273 = vst.msk [vmem:[#allocation2 + $0x140] sm:$0xff] %vm2267, %v2254
  %2274 = vst.msk [vmem:[#allocation2 + $0x180] sm:$0xff] %vm2267, %v2256
  %2275 = vst.msk [vmem:[#allocation2 + $0x1c0] sm:$0xff] %vm2267, %v2258
  %2276 = vst.msk [vmem:[#allocation2 + $0x8] sm:$0xff] %vm2226, %v1947
  %2277 = vst.msk [vmem:[#allocation2 + $0x48] sm:$0xff] %vm2226, %v1949
  %2278 = vst.msk [vmem:[#allocation2 + $0x88] sm:$0xff] %vm2226, %v1952
  %2279 = vst.msk [vmem:[#allocation2 + $0xc8] sm:$0xff] %vm2226, %v1954
  %2280 = vst.msk [vmem:[#allocation2 + $0x108] sm:$0xff] %vm2226, %v1957
  %2281 = vst.msk [vmem:[#allocation2 + $0x148] sm:$0xff] %vm2226, %v1959
  %2282 = vst.msk [vmem:[#allocation2 + $0x188] sm:$0xff] %vm2226, %v1962
  %2283 = vst.msk [vmem:[#allocation2 + $0x1c8] sm:$0xff] %vm2226, %v1964
  %2292 = vrot.lane.b32.xlu0 %v1967, 64
  %v2293 = vpop.permute.xlu0 %2292
  %2294 = vrot.lane.b32.xlu0 %v1969, 64
  %v2295 = vpop.permute.xlu0 %2294
  %2296 = vrot.lane.b32.xlu0 %v1972, 64
  %v2297 = vpop.permute.xlu0 %2296
  %2298 = vrot.lane.b32.xlu0 %v1974, 64
  %v2299 = vpop.permute.xlu0 %2298
  %2300 = vrot.lane.b32.xlu0 %v1977, 64
  %v2301 = vpop.permute.xlu0 %2300
  %2302 = vrot.lane.b32.xlu0 %v1979, 64
  %v2303 = vpop.permute.xlu0 %2302
  %2304 = vrot.lane.b32.xlu0 %v1982, 64
  %v2305 = vpop.permute.xlu0 %2304
  %2306 = vrot.lane.b32.xlu0 %v1984, 64
  %v2307 = vpop.permute.xlu0 %2306
  %2316 = vst.msk [vmem:[#allocation2 + $0x8] sm:$0xff] %vm2267, %v2293
  %2317 = vst.msk [vmem:[#allocation2 + $0x48] sm:$0xff] %vm2267, %v2295
  %2318 = vst.msk [vmem:[#allocation2 + $0x88] sm:$0xff] %vm2267, %v2297
  %2319 = vst.msk [vmem:[#allocation2 + $0xc8] sm:$0xff] %vm2267, %v2299
  %2320 = vst.msk [vmem:[#allocation2 + $0x108] sm:$0xff] %vm2267, %v2301
  %2321 = vst.msk [vmem:[#allocation2 + $0x148] sm:$0xff] %vm2267, %v2303
  %2322 = vst.msk [vmem:[#allocation2 + $0x188] sm:$0xff] %vm2267, %v2305
  %2323 = vst.msk [vmem:[#allocation2 + $0x1c8] sm:$0xff] %vm2267, %v2307
  %2324 = vst.msk [vmem:[#allocation2 + $0x10] sm:$0xff] %vm2226, %v1987
  %2325 = vst.msk [vmem:[#allocation2 + $0x50] sm:$0xff] %vm2226, %v1989
  %2326 = vst.msk [vmem:[#allocation2 + $0x90] sm:$0xff] %vm2226, %v1992
  %2327 = vst.msk [vmem:[#allocation2 + $0xd0] sm:$0xff] %vm2226, %v1994
  %2328 = vst.msk [vmem:[#allocation2 + $0x110] sm:$0xff] %vm2226, %v1997
  %2329 = vst.msk [vmem:[#allocation2 + $0x150] sm:$0xff] %vm2226, %v1999
  %2330 = vst.msk [vmem:[#allocation2 + $0x190] sm:$0xff] %vm2226, %v2002
  %2331 = vst.msk [vmem:[#allocation2 + $0x1d0] sm:$0xff] %vm2226, %v2004
  %2340 = vrot.lane.b32.xlu0 %v2007, 64
  %v2341 = vpop.permute.xlu0 %2340
  %2342 = vrot.lane.b32.xlu0 %v2009, 64
  %v2343 = vpop.permute.xlu0 %2342
  %2344 = vrot.lane.b32.xlu0 %v2012, 64
  %v2345 = vpop.permute.xlu0 %2344
  %2346 = vrot.lane.b32.xlu0 %v2014, 64
  %v2347 = vpop.permute.xlu0 %2346
  %2348 = vrot.lane.b32.xlu0 %v2017, 64
  %v2349 = vpop.permute.xlu0 %2348
  %2350 = vrot.lane.b32.xlu0 %v2019, 64
  %v2351 = vpop.permute.xlu0 %2350
  %2352 = vrot.lane.b32.xlu0 %v2022, 64
  %v2353 = vpop.permute.xlu0 %2352
  %2354 = vrot.lane.b32.xlu0 %v2024, 64
  %v2355 = vpop.permute.xlu0 %2354
  %2364 = vst.msk [vmem:[#allocation2 + $0x10] sm:$0xff] %vm2267, %v2341
  %2365 = vst.msk [vmem:[#allocation2 + $0x50] sm:$0xff] %vm2267, %v2343
  %2366 = vst.msk [vmem:[#allocation2 + $0x90] sm:$0xff] %vm2267, %v2345
  %2367 = vst.msk [vmem:[#allocation2 + $0xd0] sm:$0xff] %vm2267, %v2347
  %2368 = vst.msk [vmem:[#allocation2 + $0x110] sm:$0xff] %vm2267, %v2349
  %2369 = vst.msk [vmem:[#allocation2 + $0x150] sm:$0xff] %vm2267, %v2351
  %2370 = vst.msk [vmem:[#allocation2 + $0x190] sm:$0xff] %vm2267, %v2353
  %2371 = vst.msk [vmem:[#allocation2 + $0x1d0] sm:$0xff] %vm2267, %v2355
  %2372 = vst.msk [vmem:[#allocation2 + $0x18] sm:$0xff] %vm2226, %v2027
  %2373 = vst.msk [vmem:[#allocation2 + $0x58] sm:$0xff] %vm2226, %v2029
  %2374 = vst.msk [vmem:[#allocation2 + $0x98] sm:$0xff] %vm2226, %v2032
  %2375 = vst.msk [vmem:[#allocation2 + $0xd8] sm:$0xff] %vm2226, %v2034
  %2376 = vst.msk [vmem:[#allocation2 + $0x118] sm:$0xff] %vm2226, %v2037
  %2377 = vst.msk [vmem:[#allocation2 + $0x158] sm:$0xff] %vm2226, %v2039
  %2378 = vst.msk [vmem:[#allocation2 + $0x198] sm:$0xff] %vm2226, %v2042
  %2379 = vst.msk [vmem:[#allocation2 + $0x1d8] sm:$0xff] %vm2226, %v2044
  %2388 = vrot.lane.b32.xlu0 %v2047, 64
  %v2389 = vpop.permute.xlu0 %2388
  %2390 = vrot.lane.b32.xlu0 %v2049, 64
  %v2391 = vpop.permute.xlu0 %2390
  %2392 = vrot.lane.b32.xlu0 %v2052, 64
  %v2393 = vpop.permute.xlu0 %2392
  %2394 = vrot.lane.b32.xlu0 %v2054, 64
  %v2395 = vpop.permute.xlu0 %2394
  %2396 = vrot.lane.b32.xlu0 %v2057, 64
  %v2397 = vpop.permute.xlu0 %2396
  %2398 = vrot.lane.b32.xlu0 %v2059, 64
  %v2399 = vpop.permute.xlu0 %2398
  %2400 = vrot.lane.b32.xlu0 %v2062, 64
  %v2401 = vpop.permute.xlu0 %2400
  %2402 = vrot.lane.b32.xlu0 %v2064, 64
  %v2403 = vpop.permute.xlu0 %2402
  %2412 = vst.msk [vmem:[#allocation2 + $0x18] sm:$0xff] %vm2267, %v2389
  %2413 = vst.msk [vmem:[#allocation2 + $0x58] sm:$0xff] %vm2267, %v2391
  %2414 = vst.msk [vmem:[#allocation2 + $0x98] sm:$0xff] %vm2267, %v2393
  %2415 = vst.msk [vmem:[#allocation2 + $0xd8] sm:$0xff] %vm2267, %v2395
  %2416 = vst.msk [vmem:[#allocation2 + $0x118] sm:$0xff] %vm2267, %v2397
  %2417 = vst.msk [vmem:[#allocation2 + $0x158] sm:$0xff] %vm2267, %v2399
  %2418 = vst.msk [vmem:[#allocation2 + $0x198] sm:$0xff] %vm2267, %v2401
  %2419 = vst.msk [vmem:[#allocation2 + $0x1d8] sm:$0xff] %vm2267, %v2403
  %2420 = vst.msk [vmem:[#allocation2 + $0x20] sm:$0xff] %vm2226, %v2067
  %2421 = vst.msk [vmem:[#allocation2 + $0x60] sm:$0xff] %vm2226, %v2069
  %2422 = vst.msk [vmem:[#allocation2 + $0xa0] sm:$0xff] %vm2226, %v2072
  %2423 = vst.msk [vmem:[#allocation2 + $0xe0] sm:$0xff] %vm2226, %v2074
  %2424 = vst.msk [vmem:[#allocation2 + $0x120] sm:$0xff] %vm2226, %v2077
  %2425 = vst.msk [vmem:[#allocation2 + $0x160] sm:$0xff] %vm2226, %v2079
  %2426 = vst.msk [vmem:[#allocation2 + $0x1a0] sm:$0xff] %vm2226, %v2082
  %2427 = vst.msk [vmem:[#allocation2 + $0x1e0] sm:$0xff] %vm2226, %v2084
  %2436 = vrot.lane.b32.xlu0 %v2087, 64
  %v2437 = vpop.permute.xlu0 %2436
  %2438 = vrot.lane.b32.xlu0 %v2089, 64
  %v2439 = vpop.permute.xlu0 %2438
  %2440 = vrot.lane.b32.xlu0 %v2092, 64
  %v2441 = vpop.permute.xlu0 %2440
  %2442 = vrot.lane.b32.xlu0 %v2094, 64
  %v2443 = vpop.permute.xlu0 %2442
  %2444 = vrot.lane.b32.xlu0 %v2097, 64
  %v2445 = vpop.permute.xlu0 %2444
  %2446 = vrot.lane.b32.xlu0 %v2099, 64
  %v2447 = vpop.permute.xlu0 %2446
  %2448 = vrot.lane.b32.xlu0 %v2102, 64
  %v2449 = vpop.permute.xlu0 %2448
  %2450 = vrot.lane.b32.xlu0 %v2104, 64
  %v2451 = vpop.permute.xlu0 %2450
  %2460 = vst.msk [vmem:[#allocation2 + $0x20] sm:$0xff] %vm2267, %v2437
  %2461 = vst.msk [vmem:[#allocation2 + $0x60] sm:$0xff] %vm2267, %v2439
  %2462 = vst.msk [vmem:[#allocation2 + $0xa0] sm:$0xff] %vm2267, %v2441
  %2463 = vst.msk [vmem:[#allocation2 + $0xe0] sm:$0xff] %vm2267, %v2443
  %2464 = vst.msk [vmem:[#allocation2 + $0x120] sm:$0xff] %vm2267, %v2445
  %2465 = vst.msk [vmem:[#allocation2 + $0x160] sm:$0xff] %vm2267, %v2447
  %2466 = vst.msk [vmem:[#allocation2 + $0x1a0] sm:$0xff] %vm2267, %v2449
  %2467 = vst.msk [vmem:[#allocation2 + $0x1e0] sm:$0xff] %vm2267, %v2451
  %2468 = vst.msk [vmem:[#allocation2 + $0x28] sm:$0xff] %vm2226, %v2107
  %2469 = vst.msk [vmem:[#allocation2 + $0x68] sm:$0xff] %vm2226, %v2109
  %2470 = vst.msk [vmem:[#allocation2 + $0xa8] sm:$0xff] %vm2226, %v2112
  %2471 = vst.msk [vmem:[#allocation2 + $0xe8] sm:$0xff] %vm2226, %v2114
  %2472 = vst.msk [vmem:[#allocation2 + $0x128] sm:$0xff] %vm2226, %v2117
  %2473 = vst.msk [vmem:[#allocation2 + $0x168] sm:$0xff] %vm2226, %v2119
  %2474 = vst.msk [vmem:[#allocation2 + $0x1a8] sm:$0xff] %vm2226, %v2122
  %2475 = vst.msk [vmem:[#allocation2 + $0x1e8] sm:$0xff] %vm2226, %v2124
  %2484 = vrot.lane.b32.xlu0 %v2127, 64
  %v2485 = vpop.permute.xlu0 %2484
  %2486 = vrot.lane.b32.xlu0 %v2129, 64
  %v2487 = vpop.permute.xlu0 %2486
  %2488 = vrot.lane.b32.xlu0 %v2132, 64
  %v2489 = vpop.permute.xlu0 %2488
  %2490 = vrot.lane.b32.xlu0 %v2134, 64
  %v2491 = vpop.permute.xlu0 %2490
  %2492 = vrot.lane.b32.xlu0 %v2137, 64
  %v2493 = vpop.permute.xlu0 %2492
  %2494 = vrot.lane.b32.xlu0 %v2139, 64
  %v2495 = vpop.permute.xlu0 %2494
  %2496 = vrot.lane.b32.xlu0 %v2142, 64
  %v2497 = vpop.permute.xlu0 %2496
  %2498 = vrot.lane.b32.xlu0 %v2144, 64
  %v2499 = vpop.permute.xlu0 %2498
  %2508 = vst.msk [vmem:[#allocation2 + $0x28] sm:$0xff] %vm2267, %v2485
  %2509 = vst.msk [vmem:[#allocation2 + $0x68] sm:$0xff] %vm2267, %v2487
  %2510 = vst.msk [vmem:[#allocation2 + $0xa8] sm:$0xff] %vm2267, %v2489
  %2511 = vst.msk [vmem:[#allocation2 + $0xe8] sm:$0xff] %vm2267, %v2491
  %2512 = vst.msk [vmem:[#allocation2 + $0x128] sm:$0xff] %vm2267, %v2493
  %2513 = vst.msk [vmem:[#allocation2 + $0x168] sm:$0xff] %vm2267, %v2495
  %2514 = vst.msk [vmem:[#allocation2 + $0x1a8] sm:$0xff] %vm2267, %v2497
  %2515 = vst.msk [vmem:[#allocation2 + $0x1e8] sm:$0xff] %vm2267, %v2499
  %2516 = vst.msk [vmem:[#allocation2 + $0x30] sm:$0xff] %vm2226, %v2147
  %2517 = vst.msk [vmem:[#allocation2 + $0x70] sm:$0xff] %vm2226, %v2149
  %2518 = vst.msk [vmem:[#allocation2 + $0xb0] sm:$0xff] %vm2226, %v2152
  %2519 = vst.msk [vmem:[#allocation2 + $0xf0] sm:$0xff] %vm2226, %v2154
  %2520 = vst.msk [vmem:[#allocation2 + $0x130] sm:$0xff] %vm2226, %v2157
  %2521 = vst.msk [vmem:[#allocation2 + $0x170] sm:$0xff] %vm2226, %v2159
  %2522 = vst.msk [vmem:[#allocation2 + $0x1b0] sm:$0xff] %vm2226, %v2162
  %2523 = vst.msk [vmem:[#allocation2 + $0x1f0] sm:$0xff] %vm2226, %v2164
  %2532 = vrot.lane.b32.xlu0 %v2167, 64
  %v2533 = vpop.permute.xlu0 %2532
  %2534 = vrot.lane.b32.xlu0 %v2169, 64
  %v2535 = vpop.permute.xlu0 %2534
  %2536 = vrot.lane.b32.xlu0 %v2172, 64
  %v2537 = vpop.permute.xlu0 %2536
  %2538 = vrot.lane.b32.xlu0 %v2174, 64
  %v2539 = vpop.permute.xlu0 %2538
  %2540 = vrot.lane.b32.xlu0 %v2177, 64
  %v2541 = vpop.permute.xlu0 %2540
  %2542 = vrot.lane.b32.xlu0 %v2179, 64
  %v2543 = vpop.permute.xlu0 %2542
  %2544 = vrot.lane.b32.xlu0 %v2182, 64
  %v2545 = vpop.permute.xlu0 %2544
  %2546 = vrot.lane.b32.xlu0 %v2184, 64
  %v2547 = vpop.permute.xlu0 %2546
  %2556 = vst.msk [vmem:[#allocation2 + $0x30] sm:$0xff] %vm2267, %v2533
  %2557 = vst.msk [vmem:[#allocation2 + $0x70] sm:$0xff] %vm2267, %v2535
  %2558 = vst.msk [vmem:[#allocation2 + $0xb0] sm:$0xff] %vm2267, %v2537
  %2559 = vst.msk [vmem:[#allocation2 + $0xf0] sm:$0xff] %vm2267, %v2539
  %2560 = vst.msk [vmem:[#allocation2 + $0x130] sm:$0xff] %vm2267, %v2541
  %2561 = vst.msk [vmem:[#allocation2 + $0x170] sm:$0xff] %vm2267, %v2543
  %2562 = vst.msk [vmem:[#allocation2 + $0x1b0] sm:$0xff] %vm2267, %v2545
  %2563 = vst.msk [vmem:[#allocation2 + $0x1f0] sm:$0xff] %vm2267, %v2547
  %2564 = vst.msk [vmem:[#allocation2 + $0x38] sm:$0xff] %vm2226, %v2187
  %2565 = vst.msk [vmem:[#allocation2 + $0x78] sm:$0xff] %vm2226, %v2189
  %2566 = vst.msk [vmem:[#allocation2 + $0xb8] sm:$0xff] %vm2226, %v2192
  %2567 = vst.msk [vmem:[#allocation2 + $0xf8] sm:$0xff] %vm2226, %v2194
  %2568 = vst.msk [vmem:[#allocation2 + $0x138] sm:$0xff] %vm2226, %v2197
  %2569 = vst.msk [vmem:[#allocation2 + $0x178] sm:$0xff] %vm2226, %v2199
  %2570 = vst.msk [vmem:[#allocation2 + $0x1b8] sm:$0xff] %vm2226, %v2202
  %2571 = vst.msk [vmem:[#allocation2 + $0x1f8] sm:$0xff] %vm2226, %v2204
  %2580 = vrot.lane.b32.xlu0 %v2207, 64
  %v2581 = vpop.permute.xlu0 %2580
  %2582 = vrot.lane.b32.xlu0 %v2209, 64
  %v2583 = vpop.permute.xlu0 %2582
  %2584 = vrot.lane.b32.xlu0 %v2212, 64
  %v2585 = vpop.permute.xlu0 %2584
  %2586 = vrot.lane.b32.xlu0 %v2214, 64
  %v2587 = vpop.permute.xlu0 %2586
  %2588 = vrot.lane.b32.xlu0 %v2217, 64
  %v2589 = vpop.permute.xlu0 %2588
  %2590 = vrot.lane.b32.xlu0 %v2219, 64
  %v2591 = vpop.permute.xlu0 %2590
  %2592 = vrot.lane.b32.xlu0 %v2222, 64
  %v2593 = vpop.permute.xlu0 %2592
  %2594 = vrot.lane.b32.xlu0 %v2224, 64
  %v2595 = vpop.permute.xlu0 %2594
  %2604 = vst.msk [vmem:[#allocation2 + $0x38] sm:$0xff] %vm2267, %v2581
  %2605 = vst.msk [vmem:[#allocation2 + $0x78] sm:$0xff] %vm2267, %v2583
  %2606 = vst.msk [vmem:[#allocation2 + $0xb8] sm:$0xff] %vm2267, %v2585
  %2607 = vst.msk [vmem:[#allocation2 + $0xf8] sm:$0xff] %vm2267, %v2587
  %2608 = vst.msk [vmem:[#allocation2 + $0x138] sm:$0xff] %vm2267, %v2589
  %2609 = vst.msk [vmem:[#allocation2 + $0x178] sm:$0xff] %vm2267, %v2591
  %2610 = vst.msk [vmem:[#allocation2 + $0x1b8] sm:$0xff] %vm2267, %v2593
  %2611 = vst.msk [vmem:[#allocation2 + $0x1f8] sm:$0xff] %vm2267, %v2595
  %v2612 = vld [vmem:[#allocation2] sm:$0xff]
  %v2613 = vld [vmem:[#allocation2 + $0x8] sm:$0xff]
  %v2614 = vld [vmem:[#allocation2 + $0x10] sm:$0xff]
  %v2615 = vld [vmem:[#allocation2 + $0x18] sm:$0xff]
  %v2616 = vld [vmem:[#allocation2 + $0x20] sm:$0xff]
  %v2617 = vld [vmem:[#allocation2 + $0x28] sm:$0xff]
  %v2618 = vld [vmem:[#allocation2 + $0x30] sm:$0xff]
  %v2619 = vld [vmem:[#allocation2 + $0x38] sm:$0xff]
  %v2620 = vld [vmem:[#allocation2 + $0x40] sm:$0xff]
  %v2621 = vld [vmem:[#allocation2 + $0x48] sm:$0xff]
  %v2622 = vld [vmem:[#allocation2 + $0x50] sm:$0xff]
  %v2623 = vld [vmem:[#allocation2 + $0x58] sm:$0xff]
  %v2624 = vld [vmem:[#allocation2 + $0x60] sm:$0xff]
  %v2625 = vld [vmem:[#allocation2 + $0x68] sm:$0xff]
  %v2626 = vld [vmem:[#allocation2 + $0x70] sm:$0xff]
  %v2627 = vld [vmem:[#allocation2 + $0x78] sm:$0xff]
  %v2628 = vld [vmem:[#allocation2 + $0x80] sm:$0xff]
  %v2629 = vld [vmem:[#allocation2 + $0x88] sm:$0xff]
  %v2630 = vld [vmem:[#allocation2 + $0x90] sm:$0xff]
  %v2631 = vld [vmem:[#allocation2 + $0x98] sm:$0xff]
  %v2632 = vld [vmem:[#allocation2 + $0xa0] sm:$0xff]
  %v2633 = vld [vmem:[#allocation2 + $0xa8] sm:$0xff]
  %v2634 = vld [vmem:[#allocation2 + $0xb0] sm:$0xff]
  %v2635 = vld [vmem:[#allocation2 + $0xb8] sm:$0xff]
  %v2636 = vld [vmem:[#allocation2 + $0xc0] sm:$0xff]
  %v2637 = vld [vmem:[#allocation2 + $0xc8] sm:$0xff]
  %v2638 = vld [vmem:[#allocation2 + $0xd0] sm:$0xff]
  %v2639 = vld [vmem:[#allocation2 + $0xd8] sm:$0xff]
  %v2640 = vld [vmem:[#allocation2 + $0xe0] sm:$0xff]
  %v2641 = vld [vmem:[#allocation2 + $0xe8] sm:$0xff]
  %v2642 = vld [vmem:[#allocation2 + $0xf0] sm:$0xff]
  %v2643 = vld [vmem:[#allocation2 + $0xf8] sm:$0xff]
  %v2644 = vld [vmem:[#allocation2 + $0x100] sm:$0xff]
  %v2645 = vld [vmem:[#allocation2 + $0x108] sm:$0xff]
  %v2646 = vld [vmem:[#allocation2 + $0x110] sm:$0xff]
  %v2647 = vld [vmem:[#allocation2 + $0x118] sm:$0xff]
  %v2648 = vld [vmem:[#allocation2 + $0x120] sm:$0xff]
  %v2649 = vld [vmem:[#allocation2 + $0x128] sm:$0xff]
  %v2650 = vld [vmem:[#allocation2 + $0x130] sm:$0xff]
  %v2651 = vld [vmem:[#allocation2 + $0x138] sm:$0xff]
  %v2652 = vld [vmem:[#allocation2 + $0x140] sm:$0xff]
  %v2653 = vld [vmem:[#allocation2 + $0x148] sm:$0xff]
  %v2654 = vld [vmem:[#allocation2 + $0x150] sm:$0xff]
  %v2655 = vld [vmem:[#allocation2 + $0x158] sm:$0xff]
  %v2656 = vld [vmem:[#allocation2 + $0x160] sm:$0xff]
  %v2657 = vld [vmem:[#allocation2 + $0x168] sm:$0xff]
  %v2658 = vld [vmem:[#allocation2 + $0x170] sm:$0xff]
  %v2659 = vld [vmem:[#allocation2 + $0x178] sm:$0xff]
  %v2660 = vld [vmem:[#allocation2 + $0x180] sm:$0xff]
  %v2661 = vld [vmem:[#allocation2 + $0x188] sm:$0xff]
  %v2662 = vld [vmem:[#allocation2 + $0x190] sm:$0xff]
  %v2663 = vld [vmem:[#allocation2 + $0x198] sm:$0xff]
  %v2664 = vld [vmem:[#allocation2 + $0x1a0] sm:$0xff]
  %v2665 = vld [vmem:[#allocation2 + $0x1a8] sm:$0xff]
  %v2666 = vld [vmem:[#allocation2 + $0x1b0] sm:$0xff]
  %v2667 = vld [vmem:[#allocation2 + $0x1b8] sm:$0xff]
  %v2668 = vld [vmem:[#allocation2 + $0x1c0] sm:$0xff]
  %v2669 = vld [vmem:[#allocation2 + $0x1c8] sm:$0xff]
  %v2670 = vld [vmem:[#allocation2 + $0x1d0] sm:$0xff]
  %v2671 = vld [vmem:[#allocation2 + $0x1d8] sm:$0xff]
  %v2672 = vld [vmem:[#allocation2 + $0x1e0] sm:$0xff]
  %v2673 = vld [vmem:[#allocation2 + $0x1e8] sm:$0xff]
  %v2674 = vld [vmem:[#allocation2 + $0x1f0] sm:$0xff]
  %v2675 = vld [vmem:[#allocation2 + $0x1f8] sm:$0xff]
  %v2676 = vpack.c.bf16 %v2620, %v2612
  %v2677 = vpack.c.bf16 %v2621, %v2613
  %v2678 = vpack.c.bf16 %v2622, %v2614
  %v2679 = vpack.c.bf16 %v2623, %v2615
  %v2680 = vpack.c.bf16 %v2624, %v2616
  %v2681 = vpack.c.bf16 %v2625, %v2617
  %v2682 = vpack.c.bf16 %v2626, %v2618
  %v2683 = vpack.c.bf16 %v2627, %v2619
  %v2684 = vpack.c.bf16 %v2636, %v2628
  %v2685 = vpack.c.bf16 %v2637, %v2629
  %v2686 = vpack.c.bf16 %v2638, %v2630
  %v2687 = vpack.c.bf16 %v2639, %v2631
  %v2688 = vpack.c.bf16 %v2640, %v2632
  %v2689 = vpack.c.bf16 %v2641, %v2633
  %v2690 = vpack.c.bf16 %v2642, %v2634
  %v2691 = vpack.c.bf16 %v2643, %v2635
  %v2692 = vpack.c.bf16 %v2652, %v2644
  %v2693 = vpack.c.bf16 %v2653, %v2645
  %v2694 = vpack.c.bf16 %v2654, %v2646
  %v2695 = vpack.c.bf16 %v2655, %v2647
  %v2696 = vpack.c.bf16 %v2656, %v2648
  %v2697 = vpack.c.bf16 %v2657, %v2649
  %v2698 = vpack.c.bf16 %v2658, %v2650
  %v2699 = vpack.c.bf16 %v2659, %v2651
  %v2700 = vpack.c.bf16 %v2668, %v2660
  %v2701 = vpack.c.bf16 %v2669, %v2661
  %v2702 = vpack.c.bf16 %v2670, %v2662
  %v2703 = vpack.c.bf16 %v2671, %v2663
  %v2704 = vpack.c.bf16 %v2672, %v2664
  %v2705 = vpack.c.bf16 %v2673, %v2665
  %v2706 = vpack.c.bf16 %v2674, %v2666
  %v2707 = vpack.c.bf16 %v2675, %v2667
  %v2836 = vunpack.c.l.b16 %v784
  %v2837 = vunpack.c.l.b16 %v785
  %v2838 = vunpack.c.l.b16 %v786
  %v2839 = vunpack.c.l.b16 %v787
  %v2840 = vunpack.c.l.b16 %v788
  %v2841 = vunpack.c.l.b16 %v789
  %v2842 = vunpack.c.l.b16 %v790
  %v2843 = vunpack.c.l.b16 %v791
  %v2844 = vunpack.c.l.b16 %v792
  %v2845 = vunpack.c.l.b16 %v793
  %v2846 = vunpack.c.l.b16 %v794
  %v2847 = vunpack.c.l.b16 %v795
  %v2848 = vunpack.c.l.b16 %v796
  %v2849 = vunpack.c.l.b16 %v797
  %v2850 = vunpack.c.l.b16 %v798
  %v2851 = vunpack.c.l.b16 %v799
  %v2852 = vunpack.c.l.b16 %v800
  %v2853 = vunpack.c.l.b16 %v801
  %v2854 = vunpack.c.l.b16 %v802
  %v2855 = vunpack.c.l.b16 %v803
  %v2856 = vunpack.c.l.b16 %v804
  %v2857 = vunpack.c.l.b16 %v805
  %v2858 = vunpack.c.l.b16 %v806
  %v2859 = vunpack.c.l.b16 %v807
  %v2860 = vunpack.c.l.b16 %v808
  %v2861 = vunpack.c.l.b16 %v809
  %v2862 = vunpack.c.l.b16 %v810
  %v2863 = vunpack.c.l.b16 %v811
  %v2864 = vunpack.c.l.b16 %v812
  %v2865 = vunpack.c.l.b16 %v813
  %v2866 = vunpack.c.l.b16 %v814
  %v2867 = vunpack.c.l.b16 %v815
  %v2868 = vunpack.c.l.b16 %v816
  %v2869 = vunpack.c.l.b16 %v817
  %v2870 = vunpack.c.l.b16 %v818
  %v2871 = vunpack.c.l.b16 %v819
  %v2872 = vunpack.c.l.b16 %v820
  %v2873 = vunpack.c.l.b16 %v821
  %v2874 = vunpack.c.l.b16 %v822
  %v2875 = vunpack.c.l.b16 %v823
  %v2876 = vunpack.c.l.b16 %v824
  %v2877 = vunpack.c.l.b16 %v825
  %v2878 = vunpack.c.l.b16 %v826
  %v2879 = vunpack.c.l.b16 %v827
  %v2880 = vunpack.c.l.b16 %v828
  %v2881 = vunpack.c.l.b16 %v829
  %v2882 = vunpack.c.l.b16 %v830
  %v2883 = vunpack.c.l.b16 %v831
  %v2884 = vunpack.c.l.b16 %v832
  %v2885 = vunpack.c.l.b16 %v833
  %v2886 = vunpack.c.l.b16 %v834
  %v2887 = vunpack.c.l.b16 %v835
  %v2888 = vunpack.c.l.b16 %v836
  %v2889 = vunpack.c.l.b16 %v837
  %v2890 = vunpack.c.l.b16 %v838
  %v2891 = vunpack.c.l.b16 %v839
  %v2892 = vunpack.c.l.b16 %v840
  %v2893 = vunpack.c.l.b16 %v841
  %v2894 = vunpack.c.l.b16 %v842
  %v2895 = vunpack.c.l.b16 %v843
  %v2896 = vunpack.c.l.b16 %v844
  %v2897 = vunpack.c.l.b16 %v845
  %v2898 = vunpack.c.l.b16 %v846
  %v2899 = vunpack.c.l.b16 %v847
  %v2900 = vunpack.c.l.b16 %v848
  %v2901 = vunpack.c.l.b16 %v849
  %v2902 = vunpack.c.l.b16 %v850
  %v2903 = vunpack.c.l.b16 %v851
  %v2904 = vunpack.c.l.b16 %v852
  %v2905 = vunpack.c.l.b16 %v853
  %v2906 = vunpack.c.l.b16 %v854
  %v2907 = vunpack.c.l.b16 %v855
  %v2908 = vunpack.c.l.b16 %v856
  %v2909 = vunpack.c.l.b16 %v857
  %v2910 = vunpack.c.l.b16 %v858
  %v2911 = vunpack.c.l.b16 %v859
  %v2912 = vunpack.c.l.b16 %v860
  %v2913 = vunpack.c.l.b16 %v861
  %v2914 = vunpack.c.l.b16 %v862
  %v2915 = vunpack.c.l.b16 %v863
  %v2916 = vunpack.c.l.b16 %v864
  %v2917 = vunpack.c.l.b16 %v865
  %v2918 = vunpack.c.l.b16 %v866
  %v2919 = vunpack.c.l.b16 %v867
  %v2920 = vunpack.c.l.b16 %v868
  %v2921 = vunpack.c.l.b16 %v869
  %v2922 = vunpack.c.l.b16 %v870
  %v2923 = vunpack.c.l.b16 %v871
  %v2924 = vunpack.c.l.b16 %v872
  %v2925 = vunpack.c.l.b16 %v873
  %v2926 = vunpack.c.l.b16 %v874
  %v2927 = vunpack.c.l.b16 %v875
  %v2928 = vunpack.c.l.b16 %v876
  %v2929 = vunpack.c.l.b16 %v877
  %v2930 = vunpack.c.l.b16 %v878
  %v2931 = vunpack.c.l.b16 %v879
  %v2932 = vunpack.c.l.b16 %v880
  %v2933 = vunpack.c.l.b16 %v881
  %v2934 = vunpack.c.l.b16 %v882
  %v2935 = vunpack.c.l.b16 %v883
  %v2936 = vunpack.c.l.b16 %v884
  %v2937 = vunpack.c.l.b16 %v885
  %v2938 = vunpack.c.l.b16 %v886
  %v2939 = vunpack.c.l.b16 %v887
  %v2940 = vunpack.c.l.b16 %v888
  %v2941 = vunpack.c.l.b16 %v889
  %v2942 = vunpack.c.l.b16 %v890
  %v2943 = vunpack.c.l.b16 %v891
  %v2944 = vunpack.c.l.b16 %v892
  %v2945 = vunpack.c.l.b16 %v893
  %v2946 = vunpack.c.l.b16 %v894
  %v2947 = vunpack.c.l.b16 %v895
  %v2948 = vunpack.c.l.b16 %v896
  %v2949 = vunpack.c.l.b16 %v897
  %v2950 = vunpack.c.l.b16 %v898
  %v2951 = vunpack.c.l.b16 %v899
  %v2952 = vunpack.c.l.b16 %v900
  %v2953 = vunpack.c.l.b16 %v901
  %v2954 = vunpack.c.l.b16 %v902
  %v2955 = vunpack.c.l.b16 %v903
  %v2956 = vunpack.c.l.b16 %v904
  %v2957 = vunpack.c.l.b16 %v905
  %v2958 = vunpack.c.l.b16 %v906
  %v2959 = vunpack.c.l.b16 %v907
  %v2960 = vunpack.c.l.b16 %v908
  %v2961 = vunpack.c.l.b16 %v909
  %v2962 = vunpack.c.l.b16 %v910
  %v2963 = vunpack.c.l.b16 %v911
  %v2964 = vpack.c.b16 %v2837, %v2836
  %v2965 = vpack.c.b16 %v2839, %v2838
  %v2966 = vpack.c.b16 %v2841, %v2840
  %v2967 = vpack.c.b16 %v2843, %v2842
  %v2968 = vpack.c.b16 %v2845, %v2844
  %v2969 = vpack.c.b16 %v2847, %v2846
  %v2970 = vpack.c.b16 %v2849, %v2848
  %v2971 = vpack.c.b16 %v2851, %v2850
  %v2972 = vpack.c.b16 %v2853, %v2852
  %v2973 = vpack.c.b16 %v2855, %v2854
  %v2974 = vpack.c.b16 %v2857, %v2856
  %v2975 = vpack.c.b16 %v2859, %v2858
  %v2976 = vpack.c.b16 %v2861, %v2860
  %v2977 = vpack.c.b16 %v2863, %v2862
  %v2978 = vpack.c.b16 %v2865, %v2864
  %v2979 = vpack.c.b16 %v2867, %v2866
  %v2980 = vpack.c.b16 %v2869, %v2868
  %v2981 = vpack.c.b16 %v2871, %v2870
  %v2982 = vpack.c.b16 %v2873, %v2872
  %v2983 = vpack.c.b16 %v2875, %v2874
  %v2984 = vpack.c.b16 %v2877, %v2876
  %v2985 = vpack.c.b16 %v2879, %v2878
  %v2986 = vpack.c.b16 %v2881, %v2880
  %v2987 = vpack.c.b16 %v2883, %v2882
  %v2988 = vpack.c.b16 %v2885, %v2884
  %v2989 = vpack.c.b16 %v2887, %v2886
  %v2990 = vpack.c.b16 %v2889, %v2888
  %v2991 = vpack.c.b16 %v2891, %v2890
  %v2992 = vpack.c.b16 %v2893, %v2892
  %v2993 = vpack.c.b16 %v2895, %v2894
  %v2994 = vpack.c.b16 %v2897, %v2896
  %v2995 = vpack.c.b16 %v2899, %v2898
  %v2996 = vpack.c.b16 %v2901, %v2900
  %v2997 = vpack.c.b16 %v2903, %v2902
  %v2998 = vpack.c.b16 %v2905, %v2904
  %v2999 = vpack.c.b16 %v2907, %v2906
  %v3000 = vpack.c.b16 %v2909, %v2908
  %v3001 = vpack.c.b16 %v2911, %v2910
  %v3002 = vpack.c.b16 %v2913, %v2912
  %v3003 = vpack.c.b16 %v2915, %v2914
  %v3004 = vpack.c.b16 %v2917, %v2916
  %v3005 = vpack.c.b16 %v2919, %v2918
  %v3006 = vpack.c.b16 %v2921, %v2920
  %v3007 = vpack.c.b16 %v2923, %v2922
  %v3008 = vpack.c.b16 %v2925, %v2924
  %v3009 = vpack.c.b16 %v2927, %v2926
  %v3010 = vpack.c.b16 %v2929, %v2928
  %v3011 = vpack.c.b16 %v2931, %v2930
  %v3012 = vpack.c.b16 %v2933, %v2932
  %v3013 = vpack.c.b16 %v2935, %v2934
  %v3014 = vpack.c.b16 %v2937, %v2936
  %v3015 = vpack.c.b16 %v2939, %v2938
  %v3016 = vpack.c.b16 %v2941, %v2940
  %v3017 = vpack.c.b16 %v2943, %v2942
  %v3018 = vpack.c.b16 %v2945, %v2944
  %v3019 = vpack.c.b16 %v2947, %v2946
  %v3020 = vpack.c.b16 %v2949, %v2948
  %v3021 = vpack.c.b16 %v2951, %v2950
  %v3022 = vpack.c.b16 %v2953, %v2952
  %v3023 = vpack.c.b16 %v2955, %v2954
  %v3024 = vpack.c.b16 %v2957, %v2956
  %v3025 = vpack.c.b16 %v2959, %v2958
  %v3026 = vpack.c.b16 %v2961, %v2960
  %v3027 = vpack.c.b16 %v2963, %v2962
  %3092 = vmatpush.bf16.msra.mxu0 %v2971
  %3093 = vmatpush.bf16.msra.mxu0 %v2970
  %3094 = vmatpush.bf16.msra.mxu0 %v2969
  %3095 = vmatpush.bf16.msra.mxu0 %v2968
  %3096 = vmatpush.bf16.msra.mxu0 %v2967
  %3097 = vmatpush.bf16.msra.mxu0 %v2966
  %3098 = vmatpush.bf16.msra.mxu0 %v2965
  %3099 = vmatpush.bf16.msra.mxu0 %v2964
  %3100 = vmatmul.bf16.gmra.mxu0 %v2676
  %v3101 = vpop.f32.mrf.mxu0
  %v3102 = vadd.f32 0.0, %v3101
  %v3103 = vpop.f32.mrf.mxu0
  %v3104 = vadd.f32 0.0, %v3103
  %3105 = vmatmul.bf16.gmra.mxu0 %v2684
  %v3106 = vpop.f32.mrf.mxu0
  %v3107 = vadd.f32 0.0, %v3106
  %v3108 = vpop.f32.mrf.mxu0
  %v3109 = vadd.f32 0.0, %v3108
  %3110 = vmatmul.bf16.gmra.mxu0 %v2692
  %v3111 = vpop.f32.mrf.mxu0
  %v3112 = vadd.f32 0.0, %v3111
  %v3113 = vpop.f32.mrf.mxu0
  %v3114 = vadd.f32 0.0, %v3113
  %3115 = vmatmul.bf16.gmra.mxu0 %v2700
  %v3116 = vpop.f32.mrf.mxu0
  %v3117 = vadd.f32 0.0, %v3116
  %v3118 = vpop.f32.mrf.mxu0
  %v3119 = vadd.f32 0.0, %v3118
  %3120 = vdwg.mxu0
  %3121 = vmatpush.bf16.msra.mxu0 %v2979
  %3122 = vmatpush.bf16.msra.mxu0 %v2978
  %3123 = vmatpush.bf16.msra.mxu0 %v2977
  %3124 = vmatpush.bf16.msra.mxu0 %v2976
  %3125 = vmatpush.bf16.msra.mxu0 %v2975
  %3126 = vmatpush.bf16.msra.mxu0 %v2974
  %3127 = vmatpush.bf16.msra.mxu0 %v2973
  %3128 = vmatpush.bf16.msra.mxu0 %v2972
  %3129 = vmatmul.bf16.gmra.mxu0 %v2677
  %v3130 = vpop.f32.mrf.mxu0
  %v3131 = vadd.f32 %v3102, %v3130
  %v3132 = vpop.f32.mrf.mxu0
  %v3133 = vadd.f32 %v3104, %v3132
  %3134 = vmatmul.bf16.gmra.mxu0 %v2685
  %v3135 = vpop.f32.mrf.mxu0
  %v3136 = vadd.f32 %v3107, %v3135
  %v3137 = vpop.f32.mrf.mxu0
  %v3138 = vadd.f32 %v3109, %v3137
  %3139 = vmatmul.bf16.gmra.mxu0 %v2693
  %v3140 = vpop.f32.mrf.mxu0
  %v3141 = vadd.f32 %v3112, %v3140
  %v3142 = vpop.f32.mrf.mxu0
  %v3143 = vadd.f32 %v3114, %v3142
  %3144 = vmatmul.bf16.gmra.mxu0 %v2701
  %v3145 = vpop.f32.mrf.mxu0
  %v3146 = vadd.f32 %v3117, %v3145
  %v3147 = vpop.f32.mrf.mxu0
  %v3148 = vadd.f32 %v3119, %v3147
  %3149 = vdwg.mxu0
  %3150 = vmatpush.bf16.msra.mxu0 %v2987
  %3151 = vmatpush.bf16.msra.mxu0 %v2986
  %3152 = vmatpush.bf16.msra.mxu0 %v2985
  %3153 = vmatpush.bf16.msra.mxu0 %v2984
  %3154 = vmatpush.bf16.msra.mxu0 %v2983
  %3155 = vmatpush.bf16.msra.mxu0 %v2982
  %3156 = vmatpush.bf16.msra.mxu0 %v2981
  %3157 = vmatpush.bf16.msra.mxu0 %v2980
  %3158 = vmatmul.bf16.gmra.mxu0 %v2678
  %v3159 = vpop.f32.mrf.mxu0
  %v3160 = vadd.f32 %v3131, %v3159
  %v3161 = vpop.f32.mrf.mxu0
  %v3162 = vadd.f32 %v3133, %v3161
  %3163 = vmatmul.bf16.gmra.mxu0 %v2686
  %v3164 = vpop.f32.mrf.mxu0
  %v3165 = vadd.f32 %v3136, %v3164
  %v3166 = vpop.f32.mrf.mxu0
  %v3167 = vadd.f32 %v3138, %v3166
  %3168 = vmatmul.bf16.gmra.mxu0 %v2694
  %v3169 = vpop.f32.mrf.mxu0
  %v3170 = vadd.f32 %v3141, %v3169
  %v3171 = vpop.f32.mrf.mxu0
  %v3172 = vadd.f32 %v3143, %v3171
  %3173 = vmatmul.bf16.gmra.mxu0 %v2702
  %v3174 = vpop.f32.mrf.mxu0
  %v3175 = vadd.f32 %v3146, %v3174
  %v3176 = vpop.f32.mrf.mxu0
  %v3177 = vadd.f32 %v3148, %v3176
  %3178 = vdwg.mxu0
  %3179 = vmatpush.bf16.msra.mxu0 %v2995
  %3180 = vmatpush.bf16.msra.mxu0 %v2994
  %3181 = vmatpush.bf16.msra.mxu0 %v2993
  %3182 = vmatpush.bf16.msra.mxu0 %v2992
  %3183 = vmatpush.bf16.msra.mxu0 %v2991
  %3184 = vmatpush.bf16.msra.mxu0 %v2990
  %3185 = vmatpush.bf16.msra.mxu0 %v2989
  %3186 = vmatpush.bf16.msra.mxu0 %v2988
  %3187 = vmatmul.bf16.gmra.mxu0 %v2679
  %v3188 = vpop.f32.mrf.mxu0
  %v3189 = vadd.f32 %v3160, %v3188
  %v3190 = vpop.f32.mrf.mxu0
  %v3191 = vadd.f32 %v3162, %v3190
  %3192 = vmatmul.bf16.gmra.mxu0 %v2687
  %v3193 = vpop.f32.mrf.mxu0
  %v3194 = vadd.f32 %v3165, %v3193
  %v3195 = vpop.f32.mrf.mxu0
  %v3196 = vadd.f32 %v3167, %v3195
  %3197 = vmatmul.bf16.gmra.mxu0 %v2695
  %v3198 = vpop.f32.mrf.mxu0
  %v3199 = vadd.f32 %v3170, %v3198
  %v3200 = vpop.f32.mrf.mxu0
  %v3201 = vadd.f32 %v3172, %v3200
  %3202 = vmatmul.bf16.gmra.mxu0 %v2703
  %v3203 = vpop.f32.mrf.mxu0
  %v3204 = vadd.f32 %v3175, %v3203
  %v3205 = vpop.f32.mrf.mxu0
  %v3206 = vadd.f32 %v3177, %v3205
  %3207 = vdwg.mxu0
  %3208 = vmatpush.bf16.msra.mxu0 %v3003
  %3209 = vmatpush.bf16.msra.mxu0 %v3002
  %3210 = vmatpush.bf16.msra.mxu0 %v3001
  %3211 = vmatpush.bf16.msra.mxu0 %v3000
  %3212 = vmatpush.bf16.msra.mxu0 %v2999
  %3213 = vmatpush.bf16.msra.mxu0 %v2998
  %3214 = vmatpush.bf16.msra.mxu0 %v2997
  %3215 = vmatpush.bf16.msra.mxu0 %v2996
  %3216 = vmatmul.bf16.gmra.mxu0 %v2680
  %v3217 = vpop.f32.mrf.mxu0
  %v3218 = vadd.f32 %v3189, %v3217
  %v3219 = vpop.f32.mrf.mxu0
  %v3220 = vadd.f32 %v3191, %v3219
  %3221 = vmatmul.bf16.gmra.mxu0 %v2688
  %v3222 = vpop.f32.mrf.mxu0
  %v3223 = vadd.f32 %v3194, %v3222
  %v3224 = vpop.f32.mrf.mxu0
  %v3225 = vadd.f32 %v3196, %v3224
  %3226 = vmatmul.bf16.gmra.mxu0 %v2696
  %v3227 = vpop.f32.mrf.mxu0
  %v3228 = vadd.f32 %v3199, %v3227
  %v3229 = vpop.f32.mrf.mxu0
  %v3230 = vadd.f32 %v3201, %v3229
  %3231 = vmatmul.bf16.gmra.mxu0 %v2704
  %v3232 = vpop.f32.mrf.mxu0
  %v3233 = vadd.f32 %v3204, %v3232
  %v3234 = vpop.f32.mrf.mxu0
  %v3235 = vadd.f32 %v3206, %v3234
  %3236 = vdwg.mxu0
  %3237 = vmatpush.bf16.msra.mxu0 %v3011
  %3238 = vmatpush.bf16.msra.mxu0 %v3010
  %3239 = vmatpush.bf16.msra.mxu0 %v3009
  %3240 = vmatpush.bf16.msra.mxu0 %v3008
  %3241 = vmatpush.bf16.msra.mxu0 %v3007
  %3242 = vmatpush.bf16.msra.mxu0 %v3006
  %3243 = vmatpush.bf16.msra.mxu0 %v3005
  %3244 = vmatpush.bf16.msra.mxu0 %v3004
  %3245 = vmatmul.bf16.gmra.mxu0 %v2681
  %v3246 = vpop.f32.mrf.mxu0
  %v3247 = vadd.f32 %v3218, %v3246
  %v3248 = vpop.f32.mrf.mxu0
  %v3249 = vadd.f32 %v3220, %v3248
  %3250 = vmatmul.bf16.gmra.mxu0 %v2689
  %v3251 = vpop.f32.mrf.mxu0
  %v3252 = vadd.f32 %v3223, %v3251
  %v3253 = vpop.f32.mrf.mxu0
  %v3254 = vadd.f32 %v3225, %v3253
  %3255 = vmatmul.bf16.gmra.mxu0 %v2697
  %v3256 = vpop.f32.mrf.mxu0
  %v3257 = vadd.f32 %v3228, %v3256
  %v3258 = vpop.f32.mrf.mxu0
  %v3259 = vadd.f32 %v3230, %v3258
  %3260 = vmatmul.bf16.gmra.mxu0 %v2705
  %v3261 = vpop.f32.mrf.mxu0
  %v3262 = vadd.f32 %v3233, %v3261
  %v3263 = vpop.f32.mrf.mxu0
  %v3264 = vadd.f32 %v3235, %v3263
  %3265 = vdwg.mxu0
  %3266 = vmatpush.bf16.msra.mxu0 %v3019
  %3267 = vmatpush.bf16.msra.mxu0 %v3018
  %3268 = vmatpush.bf16.msra.mxu0 %v3017
  %3269 = vmatpush.bf16.msra.mxu0 %v3016
  %3270 = vmatpush.bf16.msra.mxu0 %v3015
  %3271 = vmatpush.bf16.msra.mxu0 %v3014
  %3272 = vmatpush.bf16.msra.mxu0 %v3013
  %3273 = vmatpush.bf16.msra.mxu0 %v3012
  %3274 = vmatmul.bf16.gmra.mxu0 %v2682
  %v3275 = vpop.f32.mrf.mxu0
  %v3276 = vadd.f32 %v3247, %v3275
  %v3277 = vpop.f32.mrf.mxu0
  %v3278 = vadd.f32 %v3249, %v3277
  %3279 = vmatmul.bf16.gmra.mxu0 %v2690
  %v3280 = vpop.f32.mrf.mxu0
  %v3281 = vadd.f32 %v3252, %v3280
  %v3282 = vpop.f32.mrf.mxu0
  %v3283 = vadd.f32 %v3254, %v3282
  %3284 = vmatmul.bf16.gmra.mxu0 %v2698
  %v3285 = vpop.f32.mrf.mxu0
  %v3286 = vadd.f32 %v3257, %v3285
  %v3287 = vpop.f32.mrf.mxu0
  %v3288 = vadd.f32 %v3259, %v3287
  %3289 = vmatmul.bf16.gmra.mxu0 %v2706
  %v3290 = vpop.f32.mrf.mxu0
  %v3291 = vadd.f32 %v3262, %v3290
  %v3292 = vpop.f32.mrf.mxu0
  %v3293 = vadd.f32 %v3264, %v3292
  %3294 = vdwg.mxu0
  %3295 = vmatpush.bf16.msra.mxu0 %v3027
  %3296 = vmatpush.bf16.msra.mxu0 %v3026
  %3297 = vmatpush.bf16.msra.mxu0 %v3025
  %3298 = vmatpush.bf16.msra.mxu0 %v3024
  %3299 = vmatpush.bf16.msra.mxu0 %v3023
  %3300 = vmatpush.bf16.msra.mxu0 %v3022
  %3301 = vmatpush.bf16.msra.mxu0 %v3021
  %3302 = vmatpush.bf16.msra.mxu0 %v3020
  %3303 = vmatmul.bf16.gmra.mxu0 %v2683
  %v3304 = vpop.f32.mrf.mxu0
  %v3305 = vadd.f32 %v3276, %v3304
  %v3306 = vpop.f32.mrf.mxu0
  %v3307 = vadd.f32 %v3278, %v3306
  %3308 = vmatmul.bf16.gmra.mxu0 %v2691
  %v3309 = vpop.f32.mrf.mxu0
  %v3310 = vadd.f32 %v3281, %v3309
  %v3311 = vpop.f32.mrf.mxu0
  %v3312 = vadd.f32 %v3283, %v3311
  %3313 = vmatmul.bf16.gmra.mxu0 %v2699
  %v3314 = vpop.f32.mrf.mxu0
  %v3315 = vadd.f32 %v3286, %v3314
  %v3316 = vpop.f32.mrf.mxu0
  %v3317 = vadd.f32 %v3288, %v3316
  %3318 = vmatmul.bf16.gmra.mxu0 %v2707
  %v3319 = vpop.f32.mrf.mxu0
  %v3320 = vadd.f32 %v3291, %v3319
  %v3321 = vpop.f32.mrf.mxu0
  %v3322 = vadd.f32 %v3293, %v3321
  %3323 = vdwg.mxu0
  %v3324 = vpack.c.bf16 %v625, %v624
  %v3325 = vpack.c.bf16 %v627, %v626
  %v3326 = vpack.c.bf16 %v629, %v628
  %v3327 = vpack.c.bf16 %v631, %v630
  %v3328 = vpack.c.bf16 %v633, %v632
  %v3329 = vpack.c.bf16 %v635, %v634
  %v3330 = vpack.c.bf16 %v637, %v636
  %v3331 = vpack.c.bf16 %v639, %v638
  %v3332 = vpack.c.bf16 %v641, %v640
  %v3333 = vpack.c.bf16 %v643, %v642
  %v3334 = vpack.c.bf16 %v645, %v644
  %v3335 = vpack.c.bf16 %v647, %v646
  %v3336 = vpack.c.bf16 %v649, %v648
  %v3337 = vpack.c.bf16 %v651, %v650
  %v3338 = vpack.c.bf16 %v653, %v652
  %v3339 = vpack.c.bf16 %v655, %v654
  %3340 = vmatpush.bf16.msra.mxu0 %v3331
  %3341 = vmatpush.bf16.msra.mxu0 %v3330
  %3342 = vmatpush.bf16.msra.mxu0 %v3329
  %3343 = vmatpush.bf16.msra.mxu0 %v3328
  %3344 = vmatpush.bf16.msra.mxu0 %v3327
  %3345 = vmatpush.bf16.msra.mxu0 %v3326
  %3346 = vmatpush.bf16.msra.mxu0 %v3325
  %3347 = vmatpush.bf16.msra.mxu0 %v3324
  %3348 = vmatmul.bf16.gmra.mxu0 %v1312
  %v3349 = vpop.f32.mrf.mxu0
  %v3350 = vadd.f32 0.0, %v3349
  %v3351 = vpop.f32.mrf.mxu0
  %v3352 = vadd.f32 0.0, %v3351
  %3353 = vmatmul.bf16.gmra.mxu0 %v1314
  %v3354 = vpop.f32.mrf.mxu0
  %v3355 = vadd.f32 0.0, %v3354
  %v3356 = vpop.f32.mrf.mxu0
  %v3357 = vadd.f32 0.0, %v3356
  %3358 = vmatmul.bf16.gmra.mxu0 %v1316
  %v3359 = vpop.f32.mrf.mxu0
  %v3360 = vadd.f32 0.0, %v3359
  %v3361 = vpop.f32.mrf.mxu0
  %v3362 = vadd.f32 0.0, %v3361
  %3363 = vmatmul.bf16.gmra.mxu0 %v1318
  %v3364 = vpop.f32.mrf.mxu0
  %v3365 = vadd.f32 0.0, %v3364
  %v3366 = vpop.f32.mrf.mxu0
  %v3367 = vadd.f32 0.0, %v3366
  %3368 = vmatmul.bf16.gmra.mxu0 %v1320
  %v3369 = vpop.f32.mrf.mxu0
  %v3370 = vadd.f32 0.0, %v3369
  %v3371 = vpop.f32.mrf.mxu0
  %v3372 = vadd.f32 0.0, %v3371
  %3373 = vmatmul.bf16.gmra.mxu0 %v1322
  %v3374 = vpop.f32.mrf.mxu0
  %v3375 = vadd.f32 0.0, %v3374
  %v3376 = vpop.f32.mrf.mxu0
  %v3377 = vadd.f32 0.0, %v3376
  %3378 = vmatmul.bf16.gmra.mxu0 %v1324
  %v3379 = vpop.f32.mrf.mxu0
  %v3380 = vadd.f32 0.0, %v3379
  %v3381 = vpop.f32.mrf.mxu0
  %v3382 = vadd.f32 0.0, %v3381
  %3383 = vmatmul.bf16.gmra.mxu0 %v1326
  %v3384 = vpop.f32.mrf.mxu0
  %v3385 = vadd.f32 0.0, %v3384
  %v3386 = vpop.f32.mrf.mxu0
  %v3387 = vadd.f32 0.0, %v3386
  %3388 = vmatmul.bf16.gmra.mxu0 %v1328
  %v3389 = vpop.f32.mrf.mxu0
  %v3390 = vadd.f32 0.0, %v3389
  %v3391 = vpop.f32.mrf.mxu0
  %v3392 = vadd.f32 0.0, %v3391
  %3393 = vmatmul.bf16.gmra.mxu0 %v1330
  %v3394 = vpop.f32.mrf.mxu0
  %v3395 = vadd.f32 0.0, %v3394
  %v3396 = vpop.f32.mrf.mxu0
  %v3397 = vadd.f32 0.0, %v3396
  %3398 = vmatmul.bf16.gmra.mxu0 %v1332
  %v3399 = vpop.f32.mrf.mxu0
  %v3400 = vadd.f32 0.0, %v3399
  %v3401 = vpop.f32.mrf.mxu0
  %v3402 = vadd.f32 0.0, %v3401
  %3403 = vmatmul.bf16.gmra.mxu0 %v1334
  %v3404 = vpop.f32.mrf.mxu0
  %v3405 = vadd.f32 0.0, %v3404
  %v3406 = vpop.f32.mrf.mxu0
  %v3407 = vadd.f32 0.0, %v3406
  %3408 = vmatmul.bf16.gmra.mxu0 %v1336
  %v3409 = vpop.f32.mrf.mxu0
  %v3410 = vadd.f32 0.0, %v3409
  %v3411 = vpop.f32.mrf.mxu0
  %v3412 = vadd.f32 0.0, %v3411
  %3413 = vmatmul.bf16.gmra.mxu0 %v1338
  %v3414 = vpop.f32.mrf.mxu0
  %v3415 = vadd.f32 0.0, %v3414
  %v3416 = vpop.f32.mrf.mxu0
  %v3417 = vadd.f32 0.0, %v3416
  %3418 = vmatmul.bf16.gmra.mxu0 %v1340
  %v3419 = vpop.f32.mrf.mxu0
  %v3420 = vadd.f32 0.0, %v3419
  %v3421 = vpop.f32.mrf.mxu0
  %v3422 = vadd.f32 0.0, %v3421
  %3423 = vmatmul.bf16.gmra.mxu0 %v1342
  %v3424 = vpop.f32.mrf.mxu0
  %v3425 = vadd.f32 0.0, %v3424
  %v3426 = vpop.f32.mrf.mxu0
  %v3427 = vadd.f32 0.0, %v3426
  %3428 = vmatmul.bf16.gmra.mxu0 %v1344
  %v3429 = vpop.f32.mrf.mxu0
  %v3430 = vadd.f32 0.0, %v3429
  %v3431 = vpop.f32.mrf.mxu0
  %v3432 = vadd.f32 0.0, %v3431
  %3433 = vmatmul.bf16.gmra.mxu0 %v1346
  %v3434 = vpop.f32.mrf.mxu0
  %v3435 = vadd.f32 0.0, %v3434
  %v3436 = vpop.f32.mrf.mxu0
  %v3437 = vadd.f32 0.0, %v3436
  %3438 = vmatmul.bf16.gmra.mxu0 %v1348
  %v3439 = vpop.f32.mrf.mxu0
  %v3440 = vadd.f32 0.0, %v3439
  %v3441 = vpop.f32.mrf.mxu0
  %v3442 = vadd.f32 0.0, %v3441
  %3443 = vmatmul.bf16.gmra.mxu0 %v1350
  %v3444 = vpop.f32.mrf.mxu0
  %v3445 = vadd.f32 0.0, %v3444
  %v3446 = vpop.f32.mrf.mxu0
  %v3447 = vadd.f32 0.0, %v3446
  %3448 = vmatmul.bf16.gmra.mxu0 %v1352
  %v3449 = vpop.f32.mrf.mxu0
  %v3450 = vadd.f32 0.0, %v3449
  %v3451 = vpop.f32.mrf.mxu0
  %v3452 = vadd.f32 0.0, %v3451
  %3453 = vmatmul.bf16.gmra.mxu0 %v1354
  %v3454 = vpop.f32.mrf.mxu0
  %v3455 = vadd.f32 0.0, %v3454
  %v3456 = vpop.f32.mrf.mxu0
  %v3457 = vadd.f32 0.0, %v3456
  %3458 = vmatmul.bf16.gmra.mxu0 %v1356
  %v3459 = vpop.f32.mrf.mxu0
  %v3460 = vadd.f32 0.0, %v3459
  %v3461 = vpop.f32.mrf.mxu0
  %v3462 = vadd.f32 0.0, %v3461
  %3463 = vmatmul.bf16.gmra.mxu0 %v1358
  %v3464 = vpop.f32.mrf.mxu0
  %v3465 = vadd.f32 0.0, %v3464
  %v3466 = vpop.f32.mrf.mxu0
  %v3467 = vadd.f32 0.0, %v3466
  %3468 = vmatmul.bf16.gmra.mxu0 %v1360
  %v3469 = vpop.f32.mrf.mxu0
  %v3470 = vadd.f32 0.0, %v3469
  %v3471 = vpop.f32.mrf.mxu0
  %v3472 = vadd.f32 0.0, %v3471
  %3473 = vmatmul.bf16.gmra.mxu0 %v1362
  %v3474 = vpop.f32.mrf.mxu0
  %v3475 = vadd.f32 0.0, %v3474
  %v3476 = vpop.f32.mrf.mxu0
  %v3477 = vadd.f32 0.0, %v3476
  %3478 = vmatmul.bf16.gmra.mxu0 %v1364
  %v3479 = vpop.f32.mrf.mxu0
  %v3480 = vadd.f32 0.0, %v3479
  %v3481 = vpop.f32.mrf.mxu0
  %v3482 = vadd.f32 0.0, %v3481
  %3483 = vmatmul.bf16.gmra.mxu0 %v1366
  %v3484 = vpop.f32.mrf.mxu0
  %v3485 = vadd.f32 0.0, %v3484
  %v3486 = vpop.f32.mrf.mxu0
  %v3487 = vadd.f32 0.0, %v3486
  %3488 = vmatmul.bf16.gmra.mxu0 %v1368
  %v3489 = vpop.f32.mrf.mxu0
  %v3490 = vadd.f32 0.0, %v3489
  %v3491 = vpop.f32.mrf.mxu0
  %v3492 = vadd.f32 0.0, %v3491
  %3493 = vmatmul.bf16.gmra.mxu0 %v1370
  %v3494 = vpop.f32.mrf.mxu0
  %v3495 = vadd.f32 0.0, %v3494
  %v3496 = vpop.f32.mrf.mxu0
  %v3497 = vadd.f32 0.0, %v3496
  %3498 = vmatmul.bf16.gmra.mxu0 %v1372
  %v3499 = vpop.f32.mrf.mxu0
  %v3500 = vadd.f32 0.0, %v3499
  %v3501 = vpop.f32.mrf.mxu0
  %v3502 = vadd.f32 0.0, %v3501
  %3503 = vmatmul.bf16.gmra.mxu0 %v1374
  %v3504 = vpop.f32.mrf.mxu0
  %v3505 = vadd.f32 0.0, %v3504
  %v3506 = vpop.f32.mrf.mxu0
  %v3507 = vadd.f32 0.0, %v3506
  %3508 = vmatmul.bf16.gmra.mxu0 %v1376
  %v3509 = vpop.f32.mrf.mxu0
  %v3510 = vadd.f32 0.0, %v3509
  %v3511 = vpop.f32.mrf.mxu0
  %v3512 = vadd.f32 0.0, %v3511
  %3513 = vmatmul.bf16.gmra.mxu0 %v1378
  %v3514 = vpop.f32.mrf.mxu0
  %v3515 = vadd.f32 0.0, %v3514
  %v3516 = vpop.f32.mrf.mxu0
  %v3517 = vadd.f32 0.0, %v3516
  %3518 = vmatmul.bf16.gmra.mxu0 %v1380
  %v3519 = vpop.f32.mrf.mxu0
  %v3520 = vadd.f32 0.0, %v3519
  %v3521 = vpop.f32.mrf.mxu0
  %v3522 = vadd.f32 0.0, %v3521
  %3523 = vmatmul.bf16.gmra.mxu0 %v1382
  %v3524 = vpop.f32.mrf.mxu0
  %v3525 = vadd.f32 0.0, %v3524
  %v3526 = vpop.f32.mrf.mxu0
  %v3527 = vadd.f32 0.0, %v3526
  %3528 = vmatmul.bf16.gmra.mxu0 %v1384
  %v3529 = vpop.f32.mrf.mxu0
  %v3530 = vadd.f32 0.0, %v3529
  %v3531 = vpop.f32.mrf.mxu0
  %v3532 = vadd.f32 0.0, %v3531
  %3533 = vmatmul.bf16.gmra.mxu0 %v1386
  %v3534 = vpop.f32.mrf.mxu0
  %v3535 = vadd.f32 0.0, %v3534
  %v3536 = vpop.f32.mrf.mxu0
  %v3537 = vadd.f32 0.0, %v3536
  %3538 = vmatmul.bf16.gmra.mxu0 %v1388
  %v3539 = vpop.f32.mrf.mxu0
  %v3540 = vadd.f32 0.0, %v3539
  %v3541 = vpop.f32.mrf.mxu0
  %v3542 = vadd.f32 0.0, %v3541
  %3543 = vmatmul.bf16.gmra.mxu0 %v1390
  %v3544 = vpop.f32.mrf.mxu0
  %v3545 = vadd.f32 0.0, %v3544
  %v3546 = vpop.f32.mrf.mxu0
  %v3547 = vadd.f32 0.0, %v3546
  %3548 = vmatmul.bf16.gmra.mxu0 %v1392
  %v3549 = vpop.f32.mrf.mxu0
  %v3550 = vadd.f32 0.0, %v3549
  %v3551 = vpop.f32.mrf.mxu0
  %v3552 = vadd.f32 0.0, %v3551
  %3553 = vmatmul.bf16.gmra.mxu0 %v1394
  %v3554 = vpop.f32.mrf.mxu0
  %v3555 = vadd.f32 0.0, %v3554
  %v3556 = vpop.f32.mrf.mxu0
  %v3557 = vadd.f32 0.0, %v3556
  %3558 = vmatmul.bf16.gmra.mxu0 %v1396
  %v3559 = vpop.f32.mrf.mxu0
  %v3560 = vadd.f32 0.0, %v3559
  %v3561 = vpop.f32.mrf.mxu0
  %v3562 = vadd.f32 0.0, %v3561
  %3563 = vmatmul.bf16.gmra.mxu0 %v1398
  %v3564 = vpop.f32.mrf.mxu0
  %v3565 = vadd.f32 0.0, %v3564
  %v3566 = vpop.f32.mrf.mxu0
  %v3567 = vadd.f32 0.0, %v3566
  %3568 = vmatmul.bf16.gmra.mxu0 %v1400
  %v3569 = vpop.f32.mrf.mxu0
  %v3570 = vadd.f32 0.0, %v3569
  %v3571 = vpop.f32.mrf.mxu0
  %v3572 = vadd.f32 0.0, %v3571
  %3573 = vmatmul.bf16.gmra.mxu0 %v1402
  %v3574 = vpop.f32.mrf.mxu0
  %v3575 = vadd.f32 0.0, %v3574
  %v3576 = vpop.f32.mrf.mxu0
  %v3577 = vadd.f32 0.0, %v3576
  %3578 = vmatmul.bf16.gmra.mxu0 %v1404
  %v3579 = vpop.f32.mrf.mxu0
  %v3580 = vadd.f32 0.0, %v3579
  %v3581 = vpop.f32.mrf.mxu0
  %v3582 = vadd.f32 0.0, %v3581
  %3583 = vmatmul.bf16.gmra.mxu0 %v1406
  %v3584 = vpop.f32.mrf.mxu0
  %v3585 = vadd.f32 0.0, %v3584
  %v3586 = vpop.f32.mrf.mxu0
  %v3587 = vadd.f32 0.0, %v3586
  %3588 = vmatmul.bf16.gmra.mxu0 %v1408
  %v3589 = vpop.f32.mrf.mxu0
  %v3590 = vadd.f32 0.0, %v3589
  %v3591 = vpop.f32.mrf.mxu0
  %v3592 = vadd.f32 0.0, %v3591
  %3593 = vmatmul.bf16.gmra.mxu0 %v1410
  %v3594 = vpop.f32.mrf.mxu0
  %v3595 = vadd.f32 0.0, %v3594
  %v3596 = vpop.f32.mrf.mxu0
  %v3597 = vadd.f32 0.0, %v3596
  %3598 = vmatmul.bf16.gmra.mxu0 %v1412
  %v3599 = vpop.f32.mrf.mxu0
  %v3600 = vadd.f32 0.0, %v3599
  %v3601 = vpop.f32.mrf.mxu0
  %v3602 = vadd.f32 0.0, %v3601
  %3603 = vmatmul.bf16.gmra.mxu0 %v1414
  %v3604 = vpop.f32.mrf.mxu0
  %v3605 = vadd.f32 0.0, %v3604
  %v3606 = vpop.f32.mrf.mxu0
  %v3607 = vadd.f32 0.0, %v3606
  %3608 = vmatmul.bf16.gmra.mxu0 %v1416
  %v3609 = vpop.f32.mrf.mxu0
  %v3610 = vadd.f32 0.0, %v3609
  %v3611 = vpop.f32.mrf.mxu0
  %v3612 = vadd.f32 0.0, %v3611
  %3613 = vmatmul.bf16.gmra.mxu0 %v1418
  %v3614 = vpop.f32.mrf.mxu0
  %v3615 = vadd.f32 0.0, %v3614
  %v3616 = vpop.f32.mrf.mxu0
  %v3617 = vadd.f32 0.0, %v3616
  %3618 = vmatmul.bf16.gmra.mxu0 %v1420
  %v3619 = vpop.f32.mrf.mxu0
  %v3620 = vadd.f32 0.0, %v3619
  %v3621 = vpop.f32.mrf.mxu0
  %v3622 = vadd.f32 0.0, %v3621
  %3623 = vmatmul.bf16.gmra.mxu0 %v1422
  %v3624 = vpop.f32.mrf.mxu0
  %v3625 = vadd.f32 0.0, %v3624
  %v3626 = vpop.f32.mrf.mxu0
  %v3627 = vadd.f32 0.0, %v3626
  %3628 = vmatmul.bf16.gmra.mxu0 %v1424
  %v3629 = vpop.f32.mrf.mxu0
  %v3630 = vadd.f32 0.0, %v3629
  %v3631 = vpop.f32.mrf.mxu0
  %v3632 = vadd.f32 0.0, %v3631
  %3633 = vmatmul.bf16.gmra.mxu0 %v1426
  %v3634 = vpop.f32.mrf.mxu0
  %v3635 = vadd.f32 0.0, %v3634
  %v3636 = vpop.f32.mrf.mxu0
  %v3637 = vadd.f32 0.0, %v3636
  %3638 = vmatmul.bf16.gmra.mxu0 %v1428
  %v3639 = vpop.f32.mrf.mxu0
  %v3640 = vadd.f32 0.0, %v3639
  %v3641 = vpop.f32.mrf.mxu0
  %v3642 = vadd.f32 0.0, %v3641
  %3643 = vmatmul.bf16.gmra.mxu0 %v1430
  %v3644 = vpop.f32.mrf.mxu0
  %v3645 = vadd.f32 0.0, %v3644
  %v3646 = vpop.f32.mrf.mxu0
  %v3647 = vadd.f32 0.0, %v3646
  %3648 = vmatmul.bf16.gmra.mxu0 %v1432
  %v3649 = vpop.f32.mrf.mxu0
  %v3650 = vadd.f32 0.0, %v3649
  %v3651 = vpop.f32.mrf.mxu0
  %v3652 = vadd.f32 0.0, %v3651
  %3653 = vmatmul.bf16.gmra.mxu0 %v1434
  %v3654 = vpop.f32.mrf.mxu0
  %v3655 = vadd.f32 0.0, %v3654
  %v3656 = vpop.f32.mrf.mxu0
  %v3657 = vadd.f32 0.0, %v3656
  %3658 = vmatmul.bf16.gmra.mxu0 %v1436
  %v3659 = vpop.f32.mrf.mxu0
  %v3660 = vadd.f32 0.0, %v3659
  %v3661 = vpop.f32.mrf.mxu0
  %v3662 = vadd.f32 0.0, %v3661
  %3663 = vmatmul.bf16.gmra.mxu0 %v1438
  %v3664 = vpop.f32.mrf.mxu0
  %v3665 = vadd.f32 0.0, %v3664
  %v3666 = vpop.f32.mrf.mxu0
  %v3667 = vadd.f32 0.0, %v3666
  %3668 = vdwg.mxu0
  %3669 = vmatpush.bf16.msra.mxu0 %v3339
  %3670 = vmatpush.bf16.msra.mxu0 %v3338
  %3671 = vmatpush.bf16.msra.mxu0 %v3337
  %3672 = vmatpush.bf16.msra.mxu0 %v3336
  %3673 = vmatpush.bf16.msra.mxu0 %v3335
  %3674 = vmatpush.bf16.msra.mxu0 %v3334
  %3675 = vmatpush.bf16.msra.mxu0 %v3333
  %3676 = vmatpush.bf16.msra.mxu0 %v3332
  %3677 = vmatmul.bf16.gmra.mxu0 %v1313
  %v3678 = vpop.f32.mrf.mxu0
  %v3679 = vadd.f32 %v3350, %v3678
  %v3680 = vpop.f32.mrf.mxu0
  %v3681 = vadd.f32 %v3352, %v3680
  %3682 = vmatmul.bf16.gmra.mxu0 %v1315
  %v3683 = vpop.f32.mrf.mxu0
  %v3684 = vadd.f32 %v3355, %v3683
  %v3685 = vpop.f32.mrf.mxu0
  %v3686 = vadd.f32 %v3357, %v3685
  %3687 = vmatmul.bf16.gmra.mxu0 %v1317
  %v3688 = vpop.f32.mrf.mxu0
  %v3689 = vadd.f32 %v3360, %v3688
  %v3690 = vpop.f32.mrf.mxu0
  %v3691 = vadd.f32 %v3362, %v3690
  %3692 = vmatmul.bf16.gmra.mxu0 %v1319
  %v3693 = vpop.f32.mrf.mxu0
  %v3694 = vadd.f32 %v3365, %v3693
  %v3695 = vpop.f32.mrf.mxu0
  %v3696 = vadd.f32 %v3367, %v3695
  %3697 = vmatmul.bf16.gmra.mxu0 %v1321
  %v3698 = vpop.f32.mrf.mxu0
  %v3699 = vadd.f32 %v3370, %v3698
  %v3700 = vpop.f32.mrf.mxu0
  %v3701 = vadd.f32 %v3372, %v3700
  %3702 = vmatmul.bf16.gmra.mxu0 %v1323
  %v3703 = vpop.f32.mrf.mxu0
  %v3704 = vadd.f32 %v3375, %v3703
  %v3705 = vpop.f32.mrf.mxu0
  %v3706 = vadd.f32 %v3377, %v3705
  %3707 = vmatmul.bf16.gmra.mxu0 %v1325
  %v3708 = vpop.f32.mrf.mxu0
  %v3709 = vadd.f32 %v3380, %v3708
  %v3710 = vpop.f32.mrf.mxu0
  %v3711 = vadd.f32 %v3382, %v3710
  %3712 = vmatmul.bf16.gmra.mxu0 %v1327
  %v3713 = vpop.f32.mrf.mxu0
  %v3714 = vadd.f32 %v3385, %v3713
  %v3715 = vpop.f32.mrf.mxu0
  %v3716 = vadd.f32 %v3387, %v3715
  %3717 = vmatmul.bf16.gmra.mxu0 %v1329
  %v3718 = vpop.f32.mrf.mxu0
  %v3719 = vadd.f32 %v3390, %v3718
  %v3720 = vpop.f32.mrf.mxu0
  %v3721 = vadd.f32 %v3392, %v3720
  %3722 = vmatmul.bf16.gmra.mxu0 %v1331
  %v3723 = vpop.f32.mrf.mxu0
  %v3724 = vadd.f32 %v3395, %v3723
  %v3725 = vpop.f32.mrf.mxu0
  %v3726 = vadd.f32 %v3397, %v3725
  %3727 = vmatmul.bf16.gmra.mxu0 %v1333
  %v3728 = vpop.f32.mrf.mxu0
  %v3729 = vadd.f32 %v3400, %v3728
  %v3730 = vpop.f32.mrf.mxu0
  %v3731 = vadd.f32 %v3402, %v3730
  %3732 = vmatmul.bf16.gmra.mxu0 %v1335
  %v3733 = vpop.f32.mrf.mxu0
  %v3734 = vadd.f32 %v3405, %v3733
  %v3735 = vpop.f32.mrf.mxu0
  %v3736 = vadd.f32 %v3407, %v3735
  %3737 = vmatmul.bf16.gmra.mxu0 %v1337
  %v3738 = vpop.f32.mrf.mxu0
  %v3739 = vadd.f32 %v3410, %v3738
  %v3740 = vpop.f32.mrf.mxu0
  %v3741 = vadd.f32 %v3412, %v3740
  %3742 = vmatmul.bf16.gmra.mxu0 %v1339
  %v3743 = vpop.f32.mrf.mxu0
  %v3744 = vadd.f32 %v3415, %v3743
  %v3745 = vpop.f32.mrf.mxu0
  %v3746 = vadd.f32 %v3417, %v3745
  %3747 = vmatmul.bf16.gmra.mxu0 %v1341
  %v3748 = vpop.f32.mrf.mxu0
  %v3749 = vadd.f32 %v3420, %v3748
  %v3750 = vpop.f32.mrf.mxu0
  %v3751 = vadd.f32 %v3422, %v3750
  %3752 = vmatmul.bf16.gmra.mxu0 %v1343
  %v3753 = vpop.f32.mrf.mxu0
  %v3754 = vadd.f32 %v3425, %v3753
  %v3755 = vpop.f32.mrf.mxu0
  %v3756 = vadd.f32 %v3427, %v3755
  %3757 = vmatmul.bf16.gmra.mxu0 %v1345
  %v3758 = vpop.f32.mrf.mxu0
  %v3759 = vadd.f32 %v3430, %v3758
  %v3760 = vpop.f32.mrf.mxu0
  %v3761 = vadd.f32 %v3432, %v3760
  %3762 = vmatmul.bf16.gmra.mxu0 %v1347
  %v3763 = vpop.f32.mrf.mxu0
  %v3764 = vadd.f32 %v3435, %v3763
  %v3765 = vpop.f32.mrf.mxu0
  %v3766 = vadd.f32 %v3437, %v3765
  %3767 = vmatmul.bf16.gmra.mxu0 %v1349
  %v3768 = vpop.f32.mrf.mxu0
  %v3769 = vadd.f32 %v3440, %v3768
  %v3770 = vpop.f32.mrf.mxu0
  %v3771 = vadd.f32 %v3442, %v3770
  %3772 = vmatmul.bf16.gmra.mxu0 %v1351
  %v3773 = vpop.f32.mrf.mxu0
  %v3774 = vadd.f32 %v3445, %v3773
  %v3775 = vpop.f32.mrf.mxu0
  %v3776 = vadd.f32 %v3447, %v3775
  %3777 = vmatmul.bf16.gmra.mxu0 %v1353
  %v3778 = vpop.f32.mrf.mxu0
  %v3779 = vadd.f32 %v3450, %v3778
  %v3780 = vpop.f32.mrf.mxu0
  %v3781 = vadd.f32 %v3452, %v3780
  %3782 = vmatmul.bf16.gmra.mxu0 %v1355
  %v3783 = vpop.f32.mrf.mxu0
  %v3784 = vadd.f32 %v3455, %v3783
  %v3785 = vpop.f32.mrf.mxu0
  %v3786 = vadd.f32 %v3457, %v3785
  %3787 = vmatmul.bf16.gmra.mxu0 %v1357
  %v3788 = vpop.f32.mrf.mxu0
  %v3789 = vadd.f32 %v3460, %v3788
  %v3790 = vpop.f32.mrf.mxu0
  %v3791 = vadd.f32 %v3462, %v3790
  %3792 = vmatmul.bf16.gmra.mxu0 %v1359
  %v3793 = vpop.f32.mrf.mxu0
  %v3794 = vadd.f32 %v3465, %v3793
  %v3795 = vpop.f32.mrf.mxu0
  %v3796 = vadd.f32 %v3467, %v3795
  %3797 = vmatmul.bf16.gmra.mxu0 %v1361
  %v3798 = vpop.f32.mrf.mxu0
  %v3799 = vadd.f32 %v3470, %v3798
  %v3800 = vpop.f32.mrf.mxu0
  %v3801 = vadd.f32 %v3472, %v3800
  %3802 = vmatmul.bf16.gmra.mxu0 %v1363
  %v3803 = vpop.f32.mrf.mxu0
  %v3804 = vadd.f32 %v3475, %v3803
  %v3805 = vpop.f32.mrf.mxu0
  %v3806 = vadd.f32 %v3477, %v3805
  %3807 = vmatmul.bf16.gmra.mxu0 %v1365
  %v3808 = vpop.f32.mrf.mxu0
  %v3809 = vadd.f32 %v3480, %v3808
  %v3810 = vpop.f32.mrf.mxu0
  %v3811 = vadd.f32 %v3482, %v3810
  %3812 = vmatmul.bf16.gmra.mxu0 %v1367
  %v3813 = vpop.f32.mrf.mxu0
  %v3814 = vadd.f32 %v3485, %v3813
  %v3815 = vpop.f32.mrf.mxu0
  %v3816 = vadd.f32 %v3487, %v3815
  %3817 = vmatmul.bf16.gmra.mxu0 %v1369
  %v3818 = vpop.f32.mrf.mxu0
  %v3819 = vadd.f32 %v3490, %v3818
  %v3820 = vpop.f32.mrf.mxu0
  %v3821 = vadd.f32 %v3492, %v3820
  %3822 = vmatmul.bf16.gmra.mxu0 %v1371
  %v3823 = vpop.f32.mrf.mxu0
  %v3824 = vadd.f32 %v3495, %v3823
  %v3825 = vpop.f32.mrf.mxu0
  %v3826 = vadd.f32 %v3497, %v3825
  %3827 = vmatmul.bf16.gmra.mxu0 %v1373
  %v3828 = vpop.f32.mrf.mxu0
  %v3829 = vadd.f32 %v3500, %v3828
  %v3830 = vpop.f32.mrf.mxu0
  %v3831 = vadd.f32 %v3502, %v3830
  %3832 = vmatmul.bf16.gmra.mxu0 %v1375
  %v3833 = vpop.f32.mrf.mxu0
  %v3834 = vadd.f32 %v3505, %v3833
  %v3835 = vpop.f32.mrf.mxu0
  %v3836 = vadd.f32 %v3507, %v3835
  %3837 = vmatmul.bf16.gmra.mxu0 %v1377
  %v3838 = vpop.f32.mrf.mxu0
  %v3839 = vadd.f32 %v3510, %v3838
  %v3840 = vpop.f32.mrf.mxu0
  %v3841 = vadd.f32 %v3512, %v3840
  %3842 = vmatmul.bf16.gmra.mxu0 %v1379
  %v3843 = vpop.f32.mrf.mxu0
  %v3844 = vadd.f32 %v3515, %v3843
  %v3845 = vpop.f32.mrf.mxu0
  %v3846 = vadd.f32 %v3517, %v3845
  %3847 = vmatmul.bf16.gmra.mxu0 %v1381
  %v3848 = vpop.f32.mrf.mxu0
  %v3849 = vadd.f32 %v3520, %v3848
  %v3850 = vpop.f32.mrf.mxu0
  %v3851 = vadd.f32 %v3522, %v3850
  %3852 = vmatmul.bf16.gmra.mxu0 %v1383
  %v3853 = vpop.f32.mrf.mxu0
  %v3854 = vadd.f32 %v3525, %v3853
  %v3855 = vpop.f32.mrf.mxu0
  %v3856 = vadd.f32 %v3527, %v3855
  %3857 = vmatmul.bf16.gmra.mxu0 %v1385
  %v3858 = vpop.f32.mrf.mxu0
  %v3859 = vadd.f32 %v3530, %v3858
  %v3860 = vpop.f32.mrf.mxu0
  %v3861 = vadd.f32 %v3532, %v3860
  %3862 = vmatmul.bf16.gmra.mxu0 %v1387
  %v3863 = vpop.f32.mrf.mxu0
  %v3864 = vadd.f32 %v3535, %v3863
  %v3865 = vpop.f32.mrf.mxu0
  %v3866 = vadd.f32 %v3537, %v3865
  %3867 = vmatmul.bf16.gmra.mxu0 %v1389
  %v3868 = vpop.f32.mrf.mxu0
  %v3869 = vadd.f32 %v3540, %v3868
  %v3870 = vpop.f32.mrf.mxu0
  %v3871 = vadd.f32 %v3542, %v3870
  %3872 = vmatmul.bf16.gmra.mxu0 %v1391
  %v3873 = vpop.f32.mrf.mxu0
  %v3874 = vadd.f32 %v3545, %v3873
  %v3875 = vpop.f32.mrf.mxu0
  %v3876 = vadd.f32 %v3547, %v3875
  %3877 = vmatmul.bf16.gmra.mxu0 %v1393
  %v3878 = vpop.f32.mrf.mxu0
  %v3879 = vadd.f32 %v3550, %v3878
  %v3880 = vpop.f32.mrf.mxu0
  %v3881 = vadd.f32 %v3552, %v3880
  %3882 = vmatmul.bf16.gmra.mxu0 %v1395
  %v3883 = vpop.f32.mrf.mxu0
  %v3884 = vadd.f32 %v3555, %v3883
  %v3885 = vpop.f32.mrf.mxu0
  %v3886 = vadd.f32 %v3557, %v3885
  %3887 = vmatmul.bf16.gmra.mxu0 %v1397
  %v3888 = vpop.f32.mrf.mxu0
  %v3889 = vadd.f32 %v3560, %v3888
  %v3890 = vpop.f32.mrf.mxu0
  %v3891 = vadd.f32 %v3562, %v3890
  %3892 = vmatmul.bf16.gmra.mxu0 %v1399
  %v3893 = vpop.f32.mrf.mxu0
  %v3894 = vadd.f32 %v3565, %v3893
  %v3895 = vpop.f32.mrf.mxu0
  %v3896 = vadd.f32 %v3567, %v3895
  %3897 = vmatmul.bf16.gmra.mxu0 %v1401
  %v3898 = vpop.f32.mrf.mxu0
  %v3899 = vadd.f32 %v3570, %v3898
  %v3900 = vpop.f32.mrf.mxu0
  %v3901 = vadd.f32 %v3572, %v3900
  %3902 = vmatmul.bf16.gmra.mxu0 %v1403
  %v3903 = vpop.f32.mrf.mxu0
  %v3904 = vadd.f32 %v3575, %v3903
  %v3905 = vpop.f32.mrf.mxu0
  %v3906 = vadd.f32 %v3577, %v3905
  %3907 = vmatmul.bf16.gmra.mxu0 %v1405
  %v3908 = vpop.f32.mrf.mxu0
  %v3909 = vadd.f32 %v3580, %v3908
  %v3910 = vpop.f32.mrf.mxu0
  %v3911 = vadd.f32 %v3582, %v3910
  %3912 = vmatmul.bf16.gmra.mxu0 %v1407
  %v3913 = vpop.f32.mrf.mxu0
  %v3914 = vadd.f32 %v3585, %v3913
  %v3915 = vpop.f32.mrf.mxu0
  %v3916 = vadd.f32 %v3587, %v3915
  %3917 = vmatmul.bf16.gmra.mxu0 %v1409
  %v3918 = vpop.f32.mrf.mxu0
  %v3919 = vadd.f32 %v3590, %v3918
  %v3920 = vpop.f32.mrf.mxu0
  %v3921 = vadd.f32 %v3592, %v3920
  %3922 = vmatmul.bf16.gmra.mxu0 %v1411
  %v3923 = vpop.f32.mrf.mxu0
  %v3924 = vadd.f32 %v3595, %v3923
  %v3925 = vpop.f32.mrf.mxu0
  %v3926 = vadd.f32 %v3597, %v3925
  %3927 = vmatmul.bf16.gmra.mxu0 %v1413
  %v3928 = vpop.f32.mrf.mxu0
  %v3929 = vadd.f32 %v3600, %v3928
  %v3930 = vpop.f32.mrf.mxu0
  %v3931 = vadd.f32 %v3602, %v3930
  %3932 = vmatmul.bf16.gmra.mxu0 %v1415
  %v3933 = vpop.f32.mrf.mxu0
  %v3934 = vadd.f32 %v3605, %v3933
  %v3935 = vpop.f32.mrf.mxu0
  %v3936 = vadd.f32 %v3607, %v3935
  %3937 = vmatmul.bf16.gmra.mxu0 %v1417
  %v3938 = vpop.f32.mrf.mxu0
  %v3939 = vadd.f32 %v3610, %v3938
  %v3940 = vpop.f32.mrf.mxu0
  %v3941 = vadd.f32 %v3612, %v3940
  %3942 = vmatmul.bf16.gmra.mxu0 %v1419
  %v3943 = vpop.f32.mrf.mxu0
  %v3944 = vadd.f32 %v3615, %v3943
  %v3945 = vpop.f32.mrf.mxu0
  %v3946 = vadd.f32 %v3617, %v3945
  %3947 = vmatmul.bf16.gmra.mxu0 %v1421
  %v3948 = vpop.f32.mrf.mxu0
  %v3949 = vadd.f32 %v3620, %v3948
  %v3950 = vpop.f32.mrf.mxu0
  %v3951 = vadd.f32 %v3622, %v3950
  %3952 = vmatmul.bf16.gmra.mxu0 %v1423
  %v3953 = vpop.f32.mrf.mxu0
  %v3954 = vadd.f32 %v3625, %v3953
  %v3955 = vpop.f32.mrf.mxu0
  %v3956 = vadd.f32 %v3627, %v3955
  %3957 = vmatmul.bf16.gmra.mxu0 %v1425
  %v3958 = vpop.f32.mrf.mxu0
  %v3959 = vadd.f32 %v3630, %v3958
  %v3960 = vpop.f32.mrf.mxu0
  %v3961 = vadd.f32 %v3632, %v3960
  %3962 = vmatmul.bf16.gmra.mxu0 %v1427
  %v3963 = vpop.f32.mrf.mxu0
  %v3964 = vadd.f32 %v3635, %v3963
  %v3965 = vpop.f32.mrf.mxu0
  %v3966 = vadd.f32 %v3637, %v3965
  %3967 = vmatmul.bf16.gmra.mxu0 %v1429
  %v3968 = vpop.f32.mrf.mxu0
  %v3969 = vadd.f32 %v3640, %v3968
  %v3970 = vpop.f32.mrf.mxu0
  %v3971 = vadd.f32 %v3642, %v3970
  %3972 = vmatmul.bf16.gmra.mxu0 %v1431
  %v3973 = vpop.f32.mrf.mxu0
  %v3974 = vadd.f32 %v3645, %v3973
  %v3975 = vpop.f32.mrf.mxu0
  %v3976 = vadd.f32 %v3647, %v3975
  %3977 = vmatmul.bf16.gmra.mxu0 %v1433
  %v3978 = vpop.f32.mrf.mxu0
  %v3979 = vadd.f32 %v3650, %v3978
  %v3980 = vpop.f32.mrf.mxu0
  %v3981 = vadd.f32 %v3652, %v3980
  %3982 = vmatmul.bf16.gmra.mxu0 %v1435
  %v3983 = vpop.f32.mrf.mxu0
  %v3984 = vadd.f32 %v3655, %v3983
  %v3985 = vpop.f32.mrf.mxu0
  %v3986 = vadd.f32 %v3657, %v3985
  %3987 = vmatmul.bf16.gmra.mxu0 %v1437
  %v3988 = vpop.f32.mrf.mxu0
  %v3989 = vadd.f32 %v3660, %v3988
  %v3990 = vpop.f32.mrf.mxu0
  %v3991 = vadd.f32 %v3662, %v3990
  %3992 = vmatmul.bf16.gmra.mxu0 %v1439
  %v3993 = vpop.f32.mrf.mxu0
  %v3994 = vadd.f32 %v3665, %v3993
  %v3995 = vpop.f32.mrf.mxu0
  %v3996 = vadd.f32 %v3667, %v3995
  %3997 = vdwg.mxu0
  %3998 = vst.msk [vmem:[#allocation2] sm:$0xff] %vm2226, %v3679
  %3999 = vst.msk [vmem:[#allocation2 + $0x40] sm:$0xff] %vm2226, %v3681
  %4000 = vst.msk [vmem:[#allocation2 + $0x80] sm:$0xff] %vm2226, %v3684
  %4001 = vst.msk [vmem:[#allocation2 + $0xc0] sm:$0xff] %vm2226, %v3686
  %4002 = vst.msk [vmem:[#allocation2 + $0x100] sm:$0xff] %vm2226, %v3689
  %4003 = vst.msk [vmem:[#allocation2 + $0x140] sm:$0xff] %vm2226, %v3691
  %4004 = vst.msk [vmem:[#allocation2 + $0x180] sm:$0xff] %vm2226, %v3694
  %4005 = vst.msk [vmem:[#allocation2 + $0x1c0] sm:$0xff] %vm2226, %v3696
  %4014 = vrot.lane.b32.xlu0 %v3699, 64
  %v4015 = vpop.permute.xlu0 %4014
  %4016 = vrot.lane.b32.xlu0 %v3701, 64
  %v4017 = vpop.permute.xlu0 %4016
  %4018 = vrot.lane.b32.xlu0 %v3704, 64
  %v4019 = vpop.permute.xlu0 %4018
  %4020 = vrot.lane.b32.xlu0 %v3706, 64
  %v4021 = vpop.permute.xlu0 %4020
  %4022 = vrot.lane.b32.xlu0 %v3709, 64
  %v4023 = vpop.permute.xlu0 %4022
  %4024 = vrot.lane.b32.xlu0 %v3711, 64
  %v4025 = vpop.permute.xlu0 %4024
  %4026 = vrot.lane.b32.xlu0 %v3714, 64
  %v4027 = vpop.permute.xlu0 %4026
  %4028 = vrot.lane.b32.xlu0 %v3716, 64
  %v4029 = vpop.permute.xlu0 %4028
  %4038 = vst.msk [vmem:[#allocation2] sm:$0xff] %vm2267, %v4015
  %4039 = vst.msk [vmem:[#allocation2 + $0x40] sm:$0xff] %vm2267, %v4017
  %4040 = vst.msk [vmem:[#allocation2 + $0x80] sm:$0xff] %vm2267, %v4019
  %4041 = vst.msk [vmem:[#allocation2 + $0xc0] sm:$0xff] %vm2267, %v4021
  %4042 = vst.msk [vmem:[#allocation2 + $0x100] sm:$0xff] %vm2267, %v4023
  %4043 = vst.msk [vmem:[#allocation2 + $0x140] sm:$0xff] %vm2267, %v4025
  %4044 = vst.msk [vmem:[#allocation2 + $0x180] sm:$0xff] %vm2267, %v4027
  %4045 = vst.msk [vmem:[#allocation2 + $0x1c0] sm:$0xff] %vm2267, %v4029
  %4046 = vst.msk [vmem:[#allocation2 + $0x8] sm:$0xff] %vm2226, %v3719
  %4047 = vst.msk [vmem:[#allocation2 + $0x48] sm:$0xff] %vm2226, %v3721
  %4048 = vst.msk [vmem:[#allocation2 + $0x88] sm:$0xff] %vm2226, %v3724
  %4049 = vst.msk [vmem:[#allocation2 + $0xc8] sm:$0xff] %vm2226, %v3726
  %4050 = vst.msk [vmem:[#allocation2 + $0x108] sm:$0xff] %vm2226, %v3729
  %4051 = vst.msk [vmem:[#allocation2 + $0x148] sm:$0xff] %vm2226, %v3731
  %4052 = vst.msk [vmem:[#allocation2 + $0x188] sm:$0xff] %vm2226, %v3734
  %4053 = vst.msk [vmem:[#allocation2 + $0x1c8] sm:$0xff] %vm2226, %v3736
  %4062 = vrot.lane.b32.xlu0 %v3739, 64
  %v4063 = vpop.permute.xlu0 %4062
  %4064 = vrot.lane.b32.xlu0 %v3741, 64
  %v4065 = vpop.permute.xlu0 %4064
  %4066 = vrot.lane.b32.xlu0 %v3744, 64
  %v4067 = vpop.permute.xlu0 %4066
  %4068 = vrot.lane.b32.xlu0 %v3746, 64
  %v4069 = vpop.permute.xlu0 %4068
  %4070 = vrot.lane.b32.xlu0 %v3749, 64
  %v4071 = vpop.permute.xlu0 %4070
  %4072 = vrot.lane.b32.xlu0 %v3751, 64
  %v4073 = vpop.permute.xlu0 %4072
  %4074 = vrot.lane.b32.xlu0 %v3754, 64
  %v4075 = vpop.permute.xlu0 %4074
  %4076 = vrot.lane.b32.xlu0 %v3756, 64
  %v4077 = vpop.permute.xlu0 %4076
  %4086 = vst.msk [vmem:[#allocation2 + $0x8] sm:$0xff] %vm2267, %v4063
  %4087 = vst.msk [vmem:[#allocation2 + $0x48] sm:$0xff] %vm2267, %v4065
  %4088 = vst.msk [vmem:[#allocation2 + $0x88] sm:$0xff] %vm2267, %v4067
  %4089 = vst.msk [vmem:[#allocation2 + $0xc8] sm:$0xff] %vm2267, %v4069
  %4090 = vst.msk [vmem:[#allocation2 + $0x108] sm:$0xff] %vm2267, %v4071
  %4091 = vst.msk [vmem:[#allocation2 + $0x148] sm:$0xff] %vm2267, %v4073
  %4092 = vst.msk [vmem:[#allocation2 + $0x188] sm:$0xff] %vm2267, %v4075
  %4093 = vst.msk [vmem:[#allocation2 + $0x1c8] sm:$0xff] %vm2267, %v4077
  %4094 = vst.msk [vmem:[#allocation2 + $0x10] sm:$0xff] %vm2226, %v3759
  %4095 = vst.msk [vmem:[#allocation2 + $0x50] sm:$0xff] %vm2226, %v3761
  %4096 = vst.msk [vmem:[#allocation2 + $0x90] sm:$0xff] %vm2226, %v3764
  %4097 = vst.msk [vmem:[#allocation2 + $0xd0] sm:$0xff] %vm2226, %v3766
  %4098 = vst.msk [vmem:[#allocation2 + $0x110] sm:$0xff] %vm2226, %v3769
  %4099 = vst.msk [vmem:[#allocation2 + $0x150] sm:$0xff] %vm2226, %v3771
  %4100 = vst.msk [vmem:[#allocation2 + $0x190] sm:$0xff] %vm2226, %v3774
  %4101 = vst.msk [vmem:[#allocation2 + $0x1d0] sm:$0xff] %vm2226, %v3776
  %4110 = vrot.lane.b32.xlu0 %v3779, 64
  %v4111 = vpop.permute.xlu0 %4110
  %4112 = vrot.lane.b32.xlu0 %v3781, 64
  %v4113 = vpop.permute.xlu0 %4112
  %4114 = vrot.lane.b32.xlu0 %v3784, 64
  %v4115 = vpop.permute.xlu0 %4114
  %4116 = vrot.lane.b32.xlu0 %v3786, 64
  %v4117 = vpop.permute.xlu0 %4116
  %4118 = vrot.lane.b32.xlu0 %v3789, 64
  %v4119 = vpop.permute.xlu0 %4118
  %4120 = vrot.lane.b32.xlu0 %v3791, 64
  %v4121 = vpop.permute.xlu0 %4120
  %4122 = vrot.lane.b32.xlu0 %v3794, 64
  %v4123 = vpop.permute.xlu0 %4122
  %4124 = vrot.lane.b32.xlu0 %v3796, 64
  %v4125 = vpop.permute.xlu0 %4124
  %4134 = vst.msk [vmem:[#allocation2 + $0x10] sm:$0xff] %vm2267, %v4111
  %4135 = vst.msk [vmem:[#allocation2 + $0x50] sm:$0xff] %vm2267, %v4113
  %4136 = vst.msk [vmem:[#allocation2 + $0x90] sm:$0xff] %vm2267, %v4115
  %4137 = vst.msk [vmem:[#allocation2 + $0xd0] sm:$0xff] %vm2267, %v4117
  %4138 = vst.msk [vmem:[#allocation2 + $0x110] sm:$0xff] %vm2267, %v4119
  %4139 = vst.msk [vmem:[#allocation2 + $0x150] sm:$0xff] %vm2267, %v4121
  %4140 = vst.msk [vmem:[#allocation2 + $0x190] sm:$0xff] %vm2267, %v4123
  %4141 = vst.msk [vmem:[#allocation2 + $0x1d0] sm:$0xff] %vm2267, %v4125
  %4142 = vst.msk [vmem:[#allocation2 + $0x18] sm:$0xff] %vm2226, %v3799
  %4143 = vst.msk [vmem:[#allocation2 + $0x58] sm:$0xff] %vm2226, %v3801
  %4144 = vst.msk [vmem:[#allocation2 + $0x98] sm:$0xff] %vm2226, %v3804
  %4145 = vst.msk [vmem:[#allocation2 + $0xd8] sm:$0xff] %vm2226, %v3806
  %4146 = vst.msk [vmem:[#allocation2 + $0x118] sm:$0xff] %vm2226, %v3809
  %4147 = vst.msk [vmem:[#allocation2 + $0x158] sm:$0xff] %vm2226, %v3811
  %4148 = vst.msk [vmem:[#allocation2 + $0x198] sm:$0xff] %vm2226, %v3814
  %4149 = vst.msk [vmem:[#allocation2 + $0x1d8] sm:$0xff] %vm2226, %v3816
  %4158 = vrot.lane.b32.xlu0 %v3819, 64
  %v4159 = vpop.permute.xlu0 %4158
  %4160 = vrot.lane.b32.xlu0 %v3821, 64
  %v4161 = vpop.permute.xlu0 %4160
  %4162 = vrot.lane.b32.xlu0 %v3824, 64
  %v4163 = vpop.permute.xlu0 %4162
  %4164 = vrot.lane.b32.xlu0 %v3826, 64
  %v4165 = vpop.permute.xlu0 %4164
  %4166 = vrot.lane.b32.xlu0 %v3829, 64
  %v4167 = vpop.permute.xlu0 %4166
  %4168 = vrot.lane.b32.xlu0 %v3831, 64
  %v4169 = vpop.permute.xlu0 %4168
  %4170 = vrot.lane.b32.xlu0 %v3834, 64
  %v4171 = vpop.permute.xlu0 %4170
  %4172 = vrot.lane.b32.xlu0 %v3836, 64
  %v4173 = vpop.permute.xlu0 %4172
  %4182 = vst.msk [vmem:[#allocation2 + $0x18] sm:$0xff] %vm2267, %v4159
  %4183 = vst.msk [vmem:[#allocation2 + $0x58] sm:$0xff] %vm2267, %v4161
  %4184 = vst.msk [vmem:[#allocation2 + $0x98] sm:$0xff] %vm2267, %v4163
  %4185 = vst.msk [vmem:[#allocation2 + $0xd8] sm:$0xff] %vm2267, %v4165
  %4186 = vst.msk [vmem:[#allocation2 + $0x118] sm:$0xff] %vm2267, %v4167
  %4187 = vst.msk [vmem:[#allocation2 + $0x158] sm:$0xff] %vm2267, %v4169
  %4188 = vst.msk [vmem:[#allocation2 + $0x198] sm:$0xff] %vm2267, %v4171
  %4189 = vst.msk [vmem:[#allocation2 + $0x1d8] sm:$0xff] %vm2267, %v4173
  %4190 = vst.msk [vmem:[#allocation2 + $0x20] sm:$0xff] %vm2226, %v3839
  %4191 = vst.msk [vmem:[#allocation2 + $0x60] sm:$0xff] %vm2226, %v3841
  %4192 = vst.msk [vmem:[#allocation2 + $0xa0] sm:$0xff] %vm2226, %v3844
  %4193 = vst.msk [vmem:[#allocation2 + $0xe0] sm:$0xff] %vm2226, %v3846
  %4194 = vst.msk [vmem:[#allocation2 + $0x120] sm:$0xff] %vm2226, %v3849
  %4195 = vst.msk [vmem:[#allocation2 + $0x160] sm:$0xff] %vm2226, %v3851
  %4196 = vst.msk [vmem:[#allocation2 + $0x1a0] sm:$0xff] %vm2226, %v3854
  %4197 = vst.msk [vmem:[#allocation2 + $0x1e0] sm:$0xff] %vm2226, %v3856
  %4206 = vrot.lane.b32.xlu0 %v3859, 64
  %v4207 = vpop.permute.xlu0 %4206
  %4208 = vrot.lane.b32.xlu0 %v3861, 64
  %v4209 = vpop.permute.xlu0 %4208
  %4210 = vrot.lane.b32.xlu0 %v3864, 64
  %v4211 = vpop.permute.xlu0 %4210
  %4212 = vrot.lane.b32.xlu0 %v3866, 64
  %v4213 = vpop.permute.xlu0 %4212
  %4214 = vrot.lane.b32.xlu0 %v3869, 64
  %v4215 = vpop.permute.xlu0 %4214
  %4216 = vrot.lane.b32.xlu0 %v3871, 64
  %v4217 = vpop.permute.xlu0 %4216
  %4218 = vrot.lane.b32.xlu0 %v3874, 64
  %v4219 = vpop.permute.xlu0 %4218
  %4220 = vrot.lane.b32.xlu0 %v3876, 64
  %v4221 = vpop.permute.xlu0 %4220
  %4230 = vst.msk [vmem:[#allocation2 + $0x20] sm:$0xff] %vm2267, %v4207
  %4231 = vst.msk [vmem:[#allocation2 + $0x60] sm:$0xff] %vm2267, %v4209
  %4232 = vst.msk [vmem:[#allocation2 + $0xa0] sm:$0xff] %vm2267, %v4211
  %4233 = vst.msk [vmem:[#allocation2 + $0xe0] sm:$0xff] %vm2267, %v4213
  %4234 = vst.msk [vmem:[#allocation2 + $0x120] sm:$0xff] %vm2267, %v4215
  %4235 = vst.msk [vmem:[#allocation2 + $0x160] sm:$0xff] %vm2267, %v4217
  %4236 = vst.msk [vmem:[#allocation2 + $0x1a0] sm:$0xff] %vm2267, %v4219
  %4237 = vst.msk [vmem:[#allocation2 + $0x1e0] sm:$0xff] %vm2267, %v4221
  %4238 = vst.msk [vmem:[#allocation2 + $0x28] sm:$0xff] %vm2226, %v3879
  %4239 = vst.msk [vmem:[#allocation2 + $0x68] sm:$0xff] %vm2226, %v3881
  %4240 = vst.msk [vmem:[#allocation2 + $0xa8] sm:$0xff] %vm2226, %v3884
  %4241 = vst.msk [vmem:[#allocation2 + $0xe8] sm:$0xff] %vm2226, %v3886
  %4242 = vst.msk [vmem:[#allocation2 + $0x128] sm:$0xff] %vm2226, %v3889
  %4243 = vst.msk [vmem:[#allocation2 + $0x168] sm:$0xff] %vm2226, %v3891
  %4244 = vst.msk [vmem:[#allocation2 + $0x1a8] sm:$0xff] %vm2226, %v3894
  %4245 = vst.msk [vmem:[#allocation2 + $0x1e8] sm:$0xff] %vm2226, %v3896
  %4254 = vrot.lane.b32.xlu0 %v3899, 64
  %v4255 = vpop.permute.xlu0 %4254
  %4256 = vrot.lane.b32.xlu0 %v3901, 64
  %v4257 = vpop.permute.xlu0 %4256
  %4258 = vrot.lane.b32.xlu0 %v3904, 64
  %v4259 = vpop.permute.xlu0 %4258
  %4260 = vrot.lane.b32.xlu0 %v3906, 64
  %v4261 = vpop.permute.xlu0 %4260
  %4262 = vrot.lane.b32.xlu0 %v3909, 64
  %v4263 = vpop.permute.xlu0 %4262
  %4264 = vrot.lane.b32.xlu0 %v3911, 64
  %v4265 = vpop.permute.xlu0 %4264
  %4266 = vrot.lane.b32.xlu0 %v3914, 64
  %v4267 = vpop.permute.xlu0 %4266
  %4268 = vrot.lane.b32.xlu0 %v3916, 64
  %v4269 = vpop.permute.xlu0 %4268
  %4278 = vst.msk [vmem:[#allocation2 + $0x28] sm:$0xff] %vm2267, %v4255
  %4279 = vst.msk [vmem:[#allocation2 + $0x68] sm:$0xff] %vm2267, %v4257
  %4280 = vst.msk [vmem:[#allocation2 + $0xa8] sm:$0xff] %vm2267, %v4259
  %4281 = vst.msk [vmem:[#allocation2 + $0xe8] sm:$0xff] %vm2267, %v4261
  %4282 = vst.msk [vmem:[#allocation2 + $0x128] sm:$0xff] %vm2267, %v4263
  %4283 = vst.msk [vmem:[#allocation2 + $0x168] sm:$0xff] %vm2267, %v4265
  %4284 = vst.msk [vmem:[#allocation2 + $0x1a8] sm:$0xff] %vm2267, %v4267
  %4285 = vst.msk [vmem:[#allocation2 + $0x1e8] sm:$0xff] %vm2267, %v4269
  %4286 = vst.msk [vmem:[#allocation2 + $0x30] sm:$0xff] %vm2226, %v3919
  %4287 = vst.msk [vmem:[#allocation2 + $0x70] sm:$0xff] %vm2226, %v3921
  %4288 = vst.msk [vmem:[#allocation2 + $0xb0] sm:$0xff] %vm2226, %v3924
  %4289 = vst.msk [vmem:[#allocation2 + $0xf0] sm:$0xff] %vm2226, %v3926
  %4290 = vst.msk [vmem:[#allocation2 + $0x130] sm:$0xff] %vm2226, %v3929
  %4291 = vst.msk [vmem:[#allocation2 + $0x170] sm:$0xff] %vm2226, %v3931
  %4292 = vst.msk [vmem:[#allocation2 + $0x1b0] sm:$0xff] %vm2226, %v3934
  %4293 = vst.msk [vmem:[#allocation2 + $0x1f0] sm:$0xff] %vm2226, %v3936
  %4302 = vrot.lane.b32.xlu0 %v3939, 64
  %v4303 = vpop.permute.xlu0 %4302
  %4304 = vrot.lane.b32.xlu0 %v3941, 64
  %v4305 = vpop.permute.xlu0 %4304
  %4306 = vrot.lane.b32.xlu0 %v3944, 64
  %v4307 = vpop.permute.xlu0 %4306
  %4308 = vrot.lane.b32.xlu0 %v3946, 64
  %v4309 = vpop.permute.xlu0 %4308
  %4310 = vrot.lane.b32.xlu0 %v3949, 64
  %v4311 = vpop.permute.xlu0 %4310
  %4312 = vrot.lane.b32.xlu0 %v3951, 64
  %v4313 = vpop.permute.xlu0 %4312
  %4314 = vrot.lane.b32.xlu0 %v3954, 64
  %v4315 = vpop.permute.xlu0 %4314
  %4316 = vrot.lane.b32.xlu0 %v3956, 64
  %v4317 = vpop.permute.xlu0 %4316
  %4326 = vst.msk [vmem:[#allocation2 + $0x30] sm:$0xff] %vm2267, %v4303
  %4327 = vst.msk [vmem:[#allocation2 + $0x70] sm:$0xff] %vm2267, %v4305
  %4328 = vst.msk [vmem:[#allocation2 + $0xb0] sm:$0xff] %vm2267, %v4307
  %4329 = vst.msk [vmem:[#allocation2 + $0xf0] sm:$0xff] %vm2267, %v4309
  %4330 = vst.msk [vmem:[#allocation2 + $0x130] sm:$0xff] %vm2267, %v4311
  %4331 = vst.msk [vmem:[#allocation2 + $0x170] sm:$0xff] %vm2267, %v4313
  %4332 = vst.msk [vmem:[#allocation2 + $0x1b0] sm:$0xff] %vm2267, %v4315
  %4333 = vst.msk [vmem:[#allocation2 + $0x1f0] sm:$0xff] %vm2267, %v4317
  %4334 = vst.msk [vmem:[#allocation2 + $0x38] sm:$0xff] %vm2226, %v3959
  %4335 = vst.msk [vmem:[#allocation2 + $0x78] sm:$0xff] %vm2226, %v3961
  %4336 = vst.msk [vmem:[#allocation2 + $0xb8] sm:$0xff] %vm2226, %v3964
  %4337 = vst.msk [vmem:[#allocation2 + $0xf8] sm:$0xff] %vm2226, %v3966
  %4338 = vst.msk [vmem:[#allocation2 + $0x138] sm:$0xff] %vm2226, %v3969
  %4339 = vst.msk [vmem:[#allocation2 + $0x178] sm:$0xff] %vm2226, %v3971
  %4340 = vst.msk [vmem:[#allocation2 + $0x1b8] sm:$0xff] %vm2226, %v3974
  %4341 = vst.msk [vmem:[#allocation2 + $0x1f8] sm:$0xff] %vm2226, %v3976
  %4350 = vrot.lane.b32.xlu0 %v3979, 64
  %v4351 = vpop.permute.xlu0 %4350
  %4352 = vrot.lane.b32.xlu0 %v3981, 64
  %v4353 = vpop.permute.xlu0 %4352
  %4354 = vrot.lane.b32.xlu0 %v3984, 64
  %v4355 = vpop.permute.xlu0 %4354
  %4356 = vrot.lane.b32.xlu0 %v3986, 64
  %v4357 = vpop.permute.xlu0 %4356
  %4358 = vrot.lane.b32.xlu0 %v3989, 64
  %v4359 = vpop.permute.xlu0 %4358
  %4360 = vrot.lane.b32.xlu0 %v3991, 64
  %v4361 = vpop.permute.xlu0 %4360
  %4362 = vrot.lane.b32.xlu0 %v3994, 64
  %v4363 = vpop.permute.xlu0 %4362
  %4364 = vrot.lane.b32.xlu0 %v3996, 64
  %v4365 = vpop.permute.xlu0 %4364
  %4374 = vst.msk [vmem:[#allocation2 + $0x38] sm:$0xff] %vm2267, %v4351
  %4375 = vst.msk [vmem:[#allocation2 + $0x78] sm:$0xff] %vm2267, %v4353
  %4376 = vst.msk [vmem:[#allocation2 + $0xb8] sm:$0xff] %vm2267, %v4355
  %4377 = vst.msk [vmem:[#allocation2 + $0xf8] sm:$0xff] %vm2267, %v4357
  %4378 = vst.msk [vmem:[#allocation2 + $0x138] sm:$0xff] %vm2267, %v4359
  %4379 = vst.msk [vmem:[#allocation2 + $0x178] sm:$0xff] %vm2267, %v4361
  %4380 = vst.msk [vmem:[#allocation2 + $0x1b8] sm:$0xff] %vm2267, %v4363
  %4381 = vst.msk [vmem:[#allocation2 + $0x1f8] sm:$0xff] %vm2267, %v4365
  %v4382 = vld [vmem:[#allocation2] sm:$0xff]
  %v4383 = vld [vmem:[#allocation2 + $0x8] sm:$0xff]
  %v4384 = vld [vmem:[#allocation2 + $0x10] sm:$0xff]
  %v4385 = vld [vmem:[#allocation2 + $0x18] sm:$0xff]
  %v4386 = vld [vmem:[#allocation2 + $0x20] sm:$0xff]
  %v4387 = vld [vmem:[#allocation2 + $0x28] sm:$0xff]
  %v4388 = vld [vmem:[#allocation2 + $0x30] sm:$0xff]
  %v4389 = vld [vmem:[#allocation2 + $0x38] sm:$0xff]
  %v4390 = vld [vmem:[#allocation2 + $0x40] sm:$0xff]
  %v4391 = vld [vmem:[#allocation2 + $0x48] sm:$0xff]
  %v4392 = vld [vmem:[#allocation2 + $0x50] sm:$0xff]
  %v4393 = vld [vmem:[#allocation2 + $0x58] sm:$0xff]
  %v4394 = vld [vmem:[#allocation2 + $0x60] sm:$0xff]
  %v4395 = vld [vmem:[#allocation2 + $0x68] sm:$0xff]
  %v4396 = vld [vmem:[#allocation2 + $0x70] sm:$0xff]
  %v4397 = vld [vmem:[#allocation2 + $0x78] sm:$0xff]
  %v4398 = vld [vmem:[#allocation2 + $0x80] sm:$0xff]
  %v4399 = vld [vmem:[#allocation2 + $0x88] sm:$0xff]
  %v4400 = vld [vmem:[#allocation2 + $0x90] sm:$0xff]
  %v4401 = vld [vmem:[#allocation2 + $0x98] sm:$0xff]
  %v4402 = vld [vmem:[#allocation2 + $0xa0] sm:$0xff]
  %v4403 = vld [vmem:[#allocation2 + $0xa8] sm:$0xff]
  %v4404 = vld [vmem:[#allocation2 + $0xb0] sm:$0xff]
  %v4405 = vld [vmem:[#allocation2 + $0xb8] sm:$0xff]
  %v4406 = vld [vmem:[#allocation2 + $0xc0] sm:$0xff]
  %v4407 = vld [vmem:[#allocation2 + $0xc8] sm:$0xff]
  %v4408 = vld [vmem:[#allocation2 + $0xd0] sm:$0xff]
  %v4409 = vld [vmem:[#allocation2 + $0xd8] sm:$0xff]
  %v4410 = vld [vmem:[#allocation2 + $0xe0] sm:$0xff]
  %v4411 = vld [vmem:[#allocation2 + $0xe8] sm:$0xff]
  %v4412 = vld [vmem:[#allocation2 + $0xf0] sm:$0xff]
  %v4413 = vld [vmem:[#allocation2 + $0xf8] sm:$0xff]
  %v4414 = vld [vmem:[#allocation2 + $0x100] sm:$0xff]
  %v4415 = vld [vmem:[#allocation2 + $0x108] sm:$0xff]
  %v4416 = vld [vmem:[#allocation2 + $0x110] sm:$0xff]
  %v4417 = vld [vmem:[#allocation2 + $0x118] sm:$0xff]
  %v4418 = vld [vmem:[#allocation2 + $0x120] sm:$0xff]
  %v4419 = vld [vmem:[#allocation2 + $0x128] sm:$0xff]
  %v4420 = vld [vmem:[#allocation2 + $0x130] sm:$0xff]
  %v4421 = vld [vmem:[#allocation2 + $0x138] sm:$0xff]
  %v4422 = vld [vmem:[#allocation2 + $0x140] sm:$0xff]
  %v4423 = vld [vmem:[#allocation2 + $0x148] sm:$0xff]
  %v4424 = vld [vmem:[#allocation2 + $0x150] sm:$0xff]
  %v4425 = vld [vmem:[#allocation2 + $0x158] sm:$0xff]
  %v4426 = vld [vmem:[#allocation2 + $0x160] sm:$0xff]
  %v4427 = vld [vmem:[#allocation2 + $0x168] sm:$0xff]
  %v4428 = vld [vmem:[#allocation2 + $0x170] sm:$0xff]
  %v4429 = vld [vmem:[#allocation2 + $0x178] sm:$0xff]
  %v4430 = vld [vmem:[#allocation2 + $0x180] sm:$0xff]
  %v4431 = vld [vmem:[#allocation2 + $0x188] sm:$0xff]
  %v4432 = vld [vmem:[#allocation2 + $0x190] sm:$0xff]
  %v4433 = vld [vmem:[#allocation2 + $0x198] sm:$0xff]
  %v4434 = vld [vmem:[#allocation2 + $0x1a0] sm:$0xff]
  %v4435 = vld [vmem:[#allocation2 + $0x1a8] sm:$0xff]
  %v4436 = vld [vmem:[#allocation2 + $0x1b0] sm:$0xff]
  %v4437 = vld [vmem:[#allocation2 + $0x1b8] sm:$0xff]
  %v4438 = vld [vmem:[#allocation2 + $0x1c0] sm:$0xff]
  %v4439 = vld [vmem:[#allocation2 + $0x1c8] sm:$0xff]
  %v4440 = vld [vmem:[#allocation2 + $0x1d0] sm:$0xff]
  %v4441 = vld [vmem:[#allocation2 + $0x1d8] sm:$0xff]
  %v4442 = vld [vmem:[#allocation2 + $0x1e0] sm:$0xff]
  %v4443 = vld [vmem:[#allocation2 + $0x1e8] sm:$0xff]
  %v4444 = vld [vmem:[#allocation2 + $0x1f0] sm:$0xff]
  %v4445 = vld [vmem:[#allocation2 + $0x1f8] sm:$0xff]
  %v4446 = vpack.c.bf16 %v4390, %v4382
  %v4447 = vpack.c.bf16 %v4391, %v4383
  %v4448 = vpack.c.bf16 %v4392, %v4384
  %v4449 = vpack.c.bf16 %v4393, %v4385
  %v4450 = vpack.c.bf16 %v4394, %v4386
  %v4451 = vpack.c.bf16 %v4395, %v4387
  %v4452 = vpack.c.bf16 %v4396, %v4388
  %v4453 = vpack.c.bf16 %v4397, %v4389
  %v4454 = vpack.c.bf16 %v4406, %v4398
  %v4455 = vpack.c.bf16 %v4407, %v4399
  %v4456 = vpack.c.bf16 %v4408, %v4400
  %v4457 = vpack.c.bf16 %v4409, %v4401
  %v4458 = vpack.c.bf16 %v4410, %v4402
  %v4459 = vpack.c.bf16 %v4411, %v4403
  %v4460 = vpack.c.bf16 %v4412, %v4404
  %v4461 = vpack.c.bf16 %v4413, %v4405
  %v4462 = vpack.c.bf16 %v4422, %v4414
  %v4463 = vpack.c.bf16 %v4423, %v4415
  %v4464 = vpack.c.bf16 %v4424, %v4416
  %v4465 = vpack.c.bf16 %v4425, %v4417
  %v4466 = vpack.c.bf16 %v4426, %v4418
  %v4467 = vpack.c.bf16 %v4427, %v4419
  %v4468 = vpack.c.bf16 %v4428, %v4420
  %v4469 = vpack.c.bf16 %v4429, %v4421
  %v4470 = vpack.c.bf16 %v4438, %v4430
  %v4471 = vpack.c.bf16 %v4439, %v4431
  %v4472 = vpack.c.bf16 %v4440, %v4432
  %v4473 = vpack.c.bf16 %v4441, %v4433
  %v4474 = vpack.c.bf16 %v4442, %v4434
  %v4475 = vpack.c.bf16 %v4443, %v4435
  %v4476 = vpack.c.bf16 %v4444, %v4436
  %v4477 = vpack.c.bf16 %v4445, %v4437
  %4478 = vmatpush.bf16.msra.mxu0 %v2971
  %4479 = vmatpush.bf16.msra.mxu0 %v2970
  %4480 = vmatpush.bf16.msra.mxu0 %v2969
  %4481 = vmatpush.bf16.msra.mxu0 %v2968
  %4482 = vmatpush.bf16.msra.mxu0 %v2967
  %4483 = vmatpush.bf16.msra.mxu0 %v2966
  %4484 = vmatpush.bf16.msra.mxu0 %v2965
  %4485 = vmatpush.bf16.msra.mxu0 %v2964
  %4486 = vmatmul.bf16.gmra.mxu0 %v4446
  %v4487 = vpop.f32.mrf.mxu0
  %v4488 = vadd.f32 0.0, %v4487
  %v4489 = vpop.f32.mrf.mxu0
  %v4490 = vadd.f32 0.0, %v4489
  %4491 = vmatmul.bf16.gmra.mxu0 %v4454
  %v4492 = vpop.f32.mrf.mxu0
  %v4493 = vadd.f32 0.0, %v4492
  %v4494 = vpop.f32.mrf.mxu0
  %v4495 = vadd.f32 0.0, %v4494
  %4496 = vmatmul.bf16.gmra.mxu0 %v4462
  %v4497 = vpop.f32.mrf.mxu0
  %v4498 = vadd.f32 0.0, %v4497
  %v4499 = vpop.f32.mrf.mxu0
  %v4500 = vadd.f32 0.0, %v4499
  %4501 = vmatmul.bf16.gmra.mxu0 %v4470
  %v4502 = vpop.f32.mrf.mxu0
  %v4503 = vadd.f32 0.0, %v4502
  %v4504 = vpop.f32.mrf.mxu0
  %v4505 = vadd.f32 0.0, %v4504
  %4506 = vdwg.mxu0
  %4507 = vmatpush.bf16.msra.mxu0 %v2979
  %4508 = vmatpush.bf16.msra.mxu0 %v2978
  %4509 = vmatpush.bf16.msra.mxu0 %v2977
  %4510 = vmatpush.bf16.msra.mxu0 %v2976
  %4511 = vmatpush.bf16.msra.mxu0 %v2975
  %4512 = vmatpush.bf16.msra.mxu0 %v2974
  %4513 = vmatpush.bf16.msra.mxu0 %v2973
  %4514 = vmatpush.bf16.msra.mxu0 %v2972
  %4515 = vmatmul.bf16.gmra.mxu0 %v4447
  %v4516 = vpop.f32.mrf.mxu0
  %v4517 = vadd.f32 %v4488, %v4516
  %v4518 = vpop.f32.mrf.mxu0
  %v4519 = vadd.f32 %v4490, %v4518
  %4520 = vmatmul.bf16.gmra.mxu0 %v4455
  %v4521 = vpop.f32.mrf.mxu0
  %v4522 = vadd.f32 %v4493, %v4521
  %v4523 = vpop.f32.mrf.mxu0
  %v4524 = vadd.f32 %v4495, %v4523
  %4525 = vmatmul.bf16.gmra.mxu0 %v4463
  %v4526 = vpop.f32.mrf.mxu0
  %v4527 = vadd.f32 %v4498, %v4526
  %v4528 = vpop.f32.mrf.mxu0
  %v4529 = vadd.f32 %v4500, %v4528
  %4530 = vmatmul.bf16.gmra.mxu0 %v4471
  %v4531 = vpop.f32.mrf.mxu0
  %v4532 = vadd.f32 %v4503, %v4531
  %v4533 = vpop.f32.mrf.mxu0
  %v4534 = vadd.f32 %v4505, %v4533
  %4535 = vdwg.mxu0
  %4536 = vmatpush.bf16.msra.mxu0 %v2987
  %4537 = vmatpush.bf16.msra.mxu0 %v2986
  %4538 = vmatpush.bf16.msra.mxu0 %v2985
  %4539 = vmatpush.bf16.msra.mxu0 %v2984
  %4540 = vmatpush.bf16.msra.mxu0 %v2983
  %4541 = vmatpush.bf16.msra.mxu0 %v2982
  %4542 = vmatpush.bf16.msra.mxu0 %v2981
  %4543 = vmatpush.bf16.msra.mxu0 %v2980
  %4544 = vmatmul.bf16.gmra.mxu0 %v4448
  %v4545 = vpop.f32.mrf.mxu0
  %v4546 = vadd.f32 %v4517, %v4545
  %v4547 = vpop.f32.mrf.mxu0
  %v4548 = vadd.f32 %v4519, %v4547
  %4549 = vmatmul.bf16.gmra.mxu0 %v4456
  %v4550 = vpop.f32.mrf.mxu0
  %v4551 = vadd.f32 %v4522, %v4550
  %v4552 = vpop.f32.mrf.mxu0
  %v4553 = vadd.f32 %v4524, %v4552
  %4554 = vmatmul.bf16.gmra.mxu0 %v4464
  %v4555 = vpop.f32.mrf.mxu0
  %v4556 = vadd.f32 %v4527, %v4555
  %v4557 = vpop.f32.mrf.mxu0
  %v4558 = vadd.f32 %v4529, %v4557
  %4559 = vmatmul.bf16.gmra.mxu0 %v4472
  %v4560 = vpop.f32.mrf.mxu0
  %v4561 = vadd.f32 %v4532, %v4560
  %v4562 = vpop.f32.mrf.mxu0
  %v4563 = vadd.f32 %v4534, %v4562
  %4564 = vdwg.mxu0
  %4565 = vmatpush.bf16.msra.mxu0 %v2995
  %4566 = vmatpush.bf16.msra.mxu0 %v2994
  %4567 = vmatpush.bf16.msra.mxu0 %v2993
  %4568 = vmatpush.bf16.msra.mxu0 %v2992
  %4569 = vmatpush.bf16.msra.mxu0 %v2991
  %4570 = vmatpush.bf16.msra.mxu0 %v2990
  %4571 = vmatpush.bf16.msra.mxu0 %v2989
  %4572 = vmatpush.bf16.msra.mxu0 %v2988
  %4573 = vmatmul.bf16.gmra.mxu0 %v4449
  %v4574 = vpop.f32.mrf.mxu0
  %v4575 = vadd.f32 %v4546, %v4574
  %v4576 = vpop.f32.mrf.mxu0
  %v4577 = vadd.f32 %v4548, %v4576
  %4578 = vmatmul.bf16.gmra.mxu0 %v4457
  %v4579 = vpop.f32.mrf.mxu0
  %v4580 = vadd.f32 %v4551, %v4579
  %v4581 = vpop.f32.mrf.mxu0
  %v4582 = vadd.f32 %v4553, %v4581
  %4583 = vmatmul.bf16.gmra.mxu0 %v4465
  %v4584 = vpop.f32.mrf.mxu0
  %v4585 = vadd.f32 %v4556, %v4584
  %v4586 = vpop.f32.mrf.mxu0
  %v4587 = vadd.f32 %v4558, %v4586
  %4588 = vmatmul.bf16.gmra.mxu0 %v4473
  %v4589 = vpop.f32.mrf.mxu0
  %v4590 = vadd.f32 %v4561, %v4589
  %v4591 = vpop.f32.mrf.mxu0
  %v4592 = vadd.f32 %v4563, %v4591
  %4593 = vdwg.mxu0
  %4594 = vmatpush.bf16.msra.mxu0 %v3003
  %4595 = vmatpush.bf16.msra.mxu0 %v3002
  %4596 = vmatpush.bf16.msra.mxu0 %v3001
  %4597 = vmatpush.bf16.msra.mxu0 %v3000
  %4598 = vmatpush.bf16.msra.mxu0 %v2999
  %4599 = vmatpush.bf16.msra.mxu0 %v2998
  %4600 = vmatpush.bf16.msra.mxu0 %v2997
  %4601 = vmatpush.bf16.msra.mxu0 %v2996
  %4602 = vmatmul.bf16.gmra.mxu0 %v4450
  %v4603 = vpop.f32.mrf.mxu0
  %v4604 = vadd.f32 %v4575, %v4603
  %v4605 = vpop.f32.mrf.mxu0
  %v4606 = vadd.f32 %v4577, %v4605
  %4607 = vmatmul.bf16.gmra.mxu0 %v4458
  %v4608 = vpop.f32.mrf.mxu0
  %v4609 = vadd.f32 %v4580, %v4608
  %v4610 = vpop.f32.mrf.mxu0
  %v4611 = vadd.f32 %v4582, %v4610
  %4612 = vmatmul.bf16.gmra.mxu0 %v4466
  %v4613 = vpop.f32.mrf.mxu0
  %v4614 = vadd.f32 %v4585, %v4613
  %v4615 = vpop.f32.mrf.mxu0
  %v4616 = vadd.f32 %v4587, %v4615
  %4617 = vmatmul.bf16.gmra.mxu0 %v4474
  %v4618 = vpop.f32.mrf.mxu0
  %v4619 = vadd.f32 %v4590, %v4618
  %v4620 = vpop.f32.mrf.mxu0
  %v4621 = vadd.f32 %v4592, %v4620
  %4622 = vdwg.mxu0
  %4623 = vmatpush.bf16.msra.mxu0 %v3011
  %4624 = vmatpush.bf16.msra.mxu0 %v3010
  %4625 = vmatpush.bf16.msra.mxu0 %v3009
  %4626 = vmatpush.bf16.msra.mxu0 %v3008
  %4627 = vmatpush.bf16.msra.mxu0 %v3007
  %4628 = vmatpush.bf16.msra.mxu0 %v3006
  %4629 = vmatpush.bf16.msra.mxu0 %v3005
  %4630 = vmatpush.bf16.msra.mxu0 %v3004
  %4631 = vmatmul.bf16.gmra.mxu0 %v4451
  %v4632 = vpop.f32.mrf.mxu0
  %v4633 = vadd.f32 %v4604, %v4632
  %v4634 = vpop.f32.mrf.mxu0
  %v4635 = vadd.f32 %v4606, %v4634
  %4636 = vmatmul.bf16.gmra.mxu0 %v4459
  %v4637 = vpop.f32.mrf.mxu0
  %v4638 = vadd.f32 %v4609, %v4637
  %v4639 = vpop.f32.mrf.mxu0
  %v4640 = vadd.f32 %v4611, %v4639
  %4641 = vmatmul.bf16.gmra.mxu0 %v4467
  %v4642 = vpop.f32.mrf.mxu0
  %v4643 = vadd.f32 %v4614, %v4642
  %v4644 = vpop.f32.mrf.mxu0
  %v4645 = vadd.f32 %v4616, %v4644
  %4646 = vmatmul.bf16.gmra.mxu0 %v4475
  %v4647 = vpop.f32.mrf.mxu0
  %v4648 = vadd.f32 %v4619, %v4647
  %v4649 = vpop.f32.mrf.mxu0
  %v4650 = vadd.f32 %v4621, %v4649
  %4651 = vdwg.mxu0
  %4652 = vmatpush.bf16.msra.mxu0 %v3019
  %4653 = vmatpush.bf16.msra.mxu0 %v3018
  %4654 = vmatpush.bf16.msra.mxu0 %v3017
  %4655 = vmatpush.bf16.msra.mxu0 %v3016
  %4656 = vmatpush.bf16.msra.mxu0 %v3015
  %4657 = vmatpush.bf16.msra.mxu0 %v3014
  %4658 = vmatpush.bf16.msra.mxu0 %v3013
  %4659 = vmatpush.bf16.msra.mxu0 %v3012
  %4660 = vmatmul.bf16.gmra.mxu0 %v4452
  %v4661 = vpop.f32.mrf.mxu0
  %v4662 = vadd.f32 %v4633, %v4661
  %v4663 = vpop.f32.mrf.mxu0
  %v4664 = vadd.f32 %v4635, %v4663
  %4665 = vmatmul.bf16.gmra.mxu0 %v4460
  %v4666 = vpop.f32.mrf.mxu0
  %v4667 = vadd.f32 %v4638, %v4666
  %v4668 = vpop.f32.mrf.mxu0
  %v4669 = vadd.f32 %v4640, %v4668
  %4670 = vmatmul.bf16.gmra.mxu0 %v4468
  %v4671 = vpop.f32.mrf.mxu0
  %v4672 = vadd.f32 %v4643, %v4671
  %v4673 = vpop.f32.mrf.mxu0
  %v4674 = vadd.f32 %v4645, %v4673
  %4675 = vmatmul.bf16.gmra.mxu0 %v4476
  %v4676 = vpop.f32.mrf.mxu0
  %v4677 = vadd.f32 %v4648, %v4676
  %v4678 = vpop.f32.mrf.mxu0
  %v4679 = vadd.f32 %v4650, %v4678
  %4680 = vdwg.mxu0
  %4681 = vmatpush.bf16.msra.mxu0 %v3027
  %4682 = vmatpush.bf16.msra.mxu0 %v3026
  %4683 = vmatpush.bf16.msra.mxu0 %v3025
  %4684 = vmatpush.bf16.msra.mxu0 %v3024
  %4685 = vmatpush.bf16.msra.mxu0 %v3023
  %4686 = vmatpush.bf16.msra.mxu0 %v3022
  %4687 = vmatpush.bf16.msra.mxu0 %v3021
  %4688 = vmatpush.bf16.msra.mxu0 %v3020
  %4689 = vmatmul.bf16.gmra.mxu0 %v4453
  %v4690 = vpop.f32.mrf.mxu0
  %v4691 = vadd.f32 %v4662, %v4690
  %v4692 = vpop.f32.mrf.mxu0
  %v4693 = vadd.f32 %v4664, %v4692
  %4694 = vmatmul.bf16.gmra.mxu0 %v4461
  %v4695 = vpop.f32.mrf.mxu0
  %v4696 = vadd.f32 %v4667, %v4695
  %v4697 = vpop.f32.mrf.mxu0
  %v4698 = vadd.f32 %v4669, %v4697
  %4699 = vmatmul.bf16.gmra.mxu0 %v4469
  %v4700 = vpop.f32.mrf.mxu0
  %v4701 = vadd.f32 %v4672, %v4700
  %v4702 = vpop.f32.mrf.mxu0
  %v4703 = vadd.f32 %v4674, %v4702
  %4704 = vmatmul.bf16.gmra.mxu0 %v4477
  %v4705 = vpop.f32.mrf.mxu0
  %v4706 = vadd.f32 %v4677, %v4705
  %v4707 = vpop.f32.mrf.mxu0
  %v4708 = vadd.f32 %v4679, %v4707
  %4709 = vdwg.mxu0
  %v4710 = vld [vmem:[%s4] sm:$0x1]
  %v4711 = vld [vmem:[%s5] sm:$0x1]
  %v4712 = vadd.f32 %v3305, %v3307
  %v4713 = vadd.f32 %v4712, %v3310
  %v4714 = vadd.f32 %v4713, %v3312
  %v4715 = vadd.f32 %v4714, %v3315
  %v4716 = vadd.f32 %v4715, %v3317
  %v4717 = vadd.f32 %v4716, %v3320
  %v4718 = vadd.f32 %v4717, %v3322
  %v4719 = vadd.f32 %v4718, %v4691
  %v4720 = vadd.f32 %v4719, %v4693
  %v4721 = vadd.f32 %v4720, %v4696
  %v4722 = vadd.f32 %v4721, %v4698
  %v4723 = vadd.f32 %v4722, %v4701
  %v4724 = vadd.f32 %v4723, %v4703
  %v4725 = vadd.f32 %v4724, %v4706
  %v4726 = vadd.f32 %v4725, %v4708
  %v4727 = vrot.slane %v4726, 4
  %v4728 = vadd.f32 %v4726, %v4727
  %v4729 = vrot.slane %v4728, 2
  %v4730 = vadd.f32 %v4728, %v4729
  %v4731 = vrot.slane %v4730, 1
  %v4732 = vadd.f32 %v4730, %v4731
  %v4733 = vrcp.pop 128.0
  %v4734 = vmul.f32 128.0, %v4733
  %v4735 = vsub.f32 1.0, %v4734
  %v4736 = vmul.f32 %v4733, %v4735
  %v4737 = vadd.f32 %v4733, %v4736
  %vm4738 = vweird.f32 %v4733
  %v4739 = vsel %vm4738, %v4733, %v4737
  %v4740 = vmul.f32 %v4732, %v4739
  %v4741 = vsub.f32 %v3305, %v4740
  %v4742 = vsub.f32 %v3307, %v4740
  %v4743 = vsub.f32 %v3310, %v4740
  %v4744 = vsub.f32 %v3312, %v4740
  %v4745 = vsub.f32 %v3315, %v4740
  %v4746 = vsub.f32 %v3317, %v4740
  %v4747 = vsub.f32 %v3320, %v4740
  %v4748 = vsub.f32 %v3322, %v4740
  %v4749 = vsub.f32 %v4691, %v4740
  %v4750 = vsub.f32 %v4693, %v4740
  %v4751 = vsub.f32 %v4696, %v4740
  %v4752 = vsub.f32 %v4698, %v4740
  %v4753 = vsub.f32 %v4701, %v4740
  %v4754 = vsub.f32 %v4703, %v4740
  %v4755 = vsub.f32 %v4706, %v4740
  %v4756 = vsub.f32 %v4708, %v4740
  %v4757 = vmul.f32 %v4741, %v4741
  %v4758 = vmul.f32 %v4742, %v4742
  %v4759 = vmul.f32 %v4743, %v4743
  %v4760 = vmul.f32 %v4744, %v4744
  %v4761 = vmul.f32 %v4745, %v4745
  %v4762 = vmul.f32 %v4746, %v4746
  %v4763 = vmul.f32 %v4747, %v4747
  %v4764 = vmul.f32 %v4748, %v4748
  %v4765 = vmul.f32 %v4749, %v4749
  %v4766 = vmul.f32 %v4750, %v4750
  %v4767 = vmul.f32 %v4751, %v4751
  %v4768 = vmul.f32 %v4752, %v4752
  %v4769 = vmul.f32 %v4753, %v4753
  %v4770 = vmul.f32 %v4754, %v4754
  %v4771 = vmul.f32 %v4755, %v4755
  %v4772 = vmul.f32 %v4756, %v4756
  %v4773 = vadd.f32 %v4757, %v4758
  %v4774 = vadd.f32 %v4773, %v4759
  %v4775 = vadd.f32 %v4774, %v4760
  %v4776 = vadd.f32 %v4775, %v4761
  %v4777 = vadd.f32 %v4776, %v4762
  %v4778 = vadd.f32 %v4777, %v4763
  %v4779 = vadd.f32 %v4778, %v4764
  %v4780 = vadd.f32 %v4779, %v4765
  %v4781 = vadd.f32 %v4780, %v4766
  %v4782 = vadd.f32 %v4781, %v4767
  %v4783 = vadd.f32 %v4782, %v4768
  %v4784 = vadd.f32 %v4783, %v4769
  %v4785 = vadd.f32 %v4784, %v4770
  %v4786 = vadd.f32 %v4785, %v4771
  %v4787 = vadd.f32 %v4786, %v4772
  %v4788 = vrot.slane %v4787, 4
  %v4789 = vadd.f32 %v4787, %v4788
  %v4790 = vrot.slane %v4789, 2
  %v4791 = vadd.f32 %v4789, %v4790
  %v4792 = vrot.slane %v4791, 1
  %v4793 = vadd.f32 %v4791, %v4792
  %v4794 = vmul.f32 %v4793, %v4739
  %v4795 = vadd.f32 %v4794, 1e-05
  %v4796 = vrsqrt.pop %v4795
  %v4797 = vmul.f32 %v4796, %v4795
  %v4798 = vmul.f32 %v4797, %v4796
  %v4799 = vmul.f32 0.5, %v4798
  %v4800 = vsub.f32 1.5, %v4799
  %v4801 = vmul.f32 %v4796, %v4800
  %vm4802 = vweird.f32 %v4795
  %vm4803 = vweird.f32 %v4796
  %vm4804 = vmor %vm4802, %vm4803
  %v4805 = vsel %vm4804, %v4796, %v4801
  %v4806 = vmul.f32 %v4741, %v4805
  %v4807 = vmul.f32 %v4742, %v4805
  %v4808 = vmul.f32 %v4743, %v4805
  %v4809 = vmul.f32 %v4744, %v4805
  %v4810 = vmul.f32 %v4745, %v4805
  %v4811 = vmul.f32 %v4746, %v4805
  %v4812 = vmul.f32 %v4747, %v4805
  %v4813 = vmul.f32 %v4748, %v4805
  %v4814 = vmul.f32 %v4749, %v4805
  %v4815 = vmul.f32 %v4750, %v4805
  %v4816 = vmul.f32 %v4751, %v4805
  %v4817 = vmul.f32 %v4752, %v4805
  %v4818 = vmul.f32 %v4753, %v4805
  %v4819 = vmul.f32 %v4754, %v4805
  %v4820 = vmul.f32 %v4755, %v4805
  %v4821 = vmul.f32 %v4756, %v4805
  %v4823 = vperm.slane %v4710, 0
  %v4825 = vmul.f32 %v4806, %v4823
  %v4826 = vmul.f32 %v4807, %v4823
  %v4827 = vmul.f32 %v4808, %v4823
  %v4828 = vmul.f32 %v4809, %v4823
  %v4829 = vmul.f32 %v4810, %v4823
  %v4830 = vmul.f32 %v4811, %v4823
  %v4831 = vmul.f32 %v4812, %v4823
  %v4832 = vmul.f32 %v4813, %v4823
  %v4833 = vmul.f32 %v4814, %v4823
  %v4834 = vmul.f32 %v4815, %v4823
  %v4835 = vmul.f32 %v4816, %v4823
  %v4836 = vmul.f32 %v4817, %v4823
  %v4837 = vmul.f32 %v4818, %v4823
  %v4838 = vmul.f32 %v4819, %v4823
  %v4839 = vmul.f32 %v4820, %v4823
  %v4840 = vmul.f32 %v4821, %v4823
  %v4842 = vperm.slane %v4711, 0
  %v4844 = vadd.f32 %v4825, %v4842
  %v4845 = vadd.f32 %v4826, %v4842
  %v4846 = vadd.f32 %v4827, %v4842
  %v4847 = vadd.f32 %v4828, %v4842
  %v4848 = vadd.f32 %v4829, %v4842
  %v4849 = vadd.f32 %v4830, %v4842
  %v4850 = vadd.f32 %v4831, %v4842
  %v4851 = vadd.f32 %v4832, %v4842
  %v4852 = vadd.f32 %v4833, %v4842
  %v4853 = vadd.f32 %v4834, %v4842
  %v4854 = vadd.f32 %v4835, %v4842
  %v4855 = vadd.f32 %v4836, %v4842
  %v4856 = vadd.f32 %v4837, %v4842
  %v4857 = vadd.f32 %v4838, %v4842
  %v4858 = vadd.f32 %v4839, %v4842
  %v4859 = vadd.f32 %v4840, %v4842
  %v4860 = vmul.f32 %v4844, 0.2
  %v4861 = vmul.f32 %v4845, 0.2
  %v4862 = vmul.f32 %v4846, 0.2
  %v4863 = vmul.f32 %v4847, 0.2
  %v4864 = vmul.f32 %v4848, 0.2
  %v4865 = vmul.f32 %v4849, 0.2
  %v4866 = vmul.f32 %v4850, 0.2
  %v4867 = vmul.f32 %v4851, 0.2
  %v4868 = vmul.f32 %v4852, 0.2
  %v4869 = vmul.f32 %v4853, 0.2
  %v4870 = vmul.f32 %v4854, 0.2
  %v4871 = vmul.f32 %v4855, 0.2
  %v4872 = vmul.f32 %v4856, 0.2
  %v4873 = vmul.f32 %v4857, 0.2
  %v4874 = vmul.f32 %v4858, 0.2
  %v4875 = vmul.f32 %v4859, 0.2
  %v4876 = vmax.f32 %v4844, %v4860
  %v4877 = vmax.f32 %v4845, %v4861
  %v4878 = vmax.f32 %v4846, %v4862
  %v4879 = vmax.f32 %v4847, %v4863
  %v4880 = vmax.f32 %v4848, %v4864
  %v4881 = vmax.f32 %v4849, %v4865
  %v4882 = vmax.f32 %v4850, %v4866
  %v4883 = vmax.f32 %v4851, %v4867
  %v4884 = vmax.f32 %v4852, %v4868
  %v4885 = vmax.f32 %v4853, %v4869
  %v4886 = vmax.f32 %v4854, %v4870
  %v4887 = vmax.f32 %v4855, %v4871
  %v4888 = vmax.f32 %v4856, %v4872
  %v4889 = vmax.f32 %v4857, %v4873
  %v4890 = vmax.f32 %v4858, %v4874
  %v4891 = vmax.f32 %v4859, %v4875
  %v4892 = vld [vmem:[%s6] sm:$0xf]
  %v4893 = vld [vmem:[%s6 + $0x4] sm:$0xf]
  %v4894 = vld [vmem:[%s6 + $0x8] sm:$0xf]
  %v4895 = vld [vmem:[%s6 + $0xc] sm:$0xf]
  %v4896 = vld [vmem:[%s6 + $0x10] sm:$0xf]
  %v4897 = vld [vmem:[%s6 + $0x14] sm:$0xf]
  %v4898 = vld [vmem:[%s6 + $0x18] sm:$0xf]
  %v4899 = vld [vmem:[%s6 + $0x1c] sm:$0xf]
  %v4900 = vld [vmem:[%s6 + $0x20] sm:$0xf]
  %v4901 = vld [vmem:[%s6 + $0x24] sm:$0xf]
  %v4902 = vld [vmem:[%s6 + $0x28] sm:$0xf]
  %v4903 = vld [vmem:[%s6 + $0x2c] sm:$0xf]
  %v4904 = vld [vmem:[%s6 + $0x30] sm:$0xf]
  %v4905 = vld [vmem:[%s6 + $0x34] sm:$0xf]
  %v4906 = vld [vmem:[%s6 + $0x38] sm:$0xf]
  %v4907 = vld [vmem:[%s6 + $0x3c] sm:$0xf]
  %v4908 = vld [vmem:[%s6 + $0x40] sm:$0xf]
  %v4909 = vld [vmem:[%s6 + $0x44] sm:$0xf]
  %v4910 = vld [vmem:[%s6 + $0x48] sm:$0xf]
  %v4911 = vld [vmem:[%s6 + $0x4c] sm:$0xf]
  %v4912 = vld [vmem:[%s6 + $0x50] sm:$0xf]
  %v4913 = vld [vmem:[%s6 + $0x54] sm:$0xf]
  %v4914 = vld [vmem:[%s6 + $0x58] sm:$0xf]
  %v4915 = vld [vmem:[%s6 + $0x5c] sm:$0xf]
  %v4916 = vld [vmem:[%s6 + $0x60] sm:$0xf]
  %v4917 = vld [vmem:[%s6 + $0x64] sm:$0xf]
  %v4918 = vld [vmem:[%s6 + $0x68] sm:$0xf]
  %v4919 = vld [vmem:[%s6 + $0x6c] sm:$0xf]
  %v4920 = vld [vmem:[%s6 + $0x70] sm:$0xf]
  %v4921 = vld [vmem:[%s6 + $0x74] sm:$0xf]
  %v4922 = vld [vmem:[%s6 + $0x78] sm:$0xf]
  %v4923 = vld [vmem:[%s6 + $0x7c] sm:$0xf]
  %v4924 = vld [vmem:[%s7] sm:$0xff]
  %v4925 = vld [vmem:[%s7 + $0x8] sm:$0xff]
  %v4926 = vld [vmem:[%s7 + $0x10] sm:$0xff]
  %v4927 = vld [vmem:[%s7 + $0x18] sm:$0xff]
  %v4928 = vld [vmem:[%s7 + $0x20] sm:$0xff]
  %v4929 = vld [vmem:[%s7 + $0x28] sm:$0xff]
  %v4930 = vld [vmem:[%s7 + $0x30] sm:$0xff]
  %v4931 = vld [vmem:[%s7 + $0x38] sm:$0xff]
  %v4932 = vld [vmem:[%s7 + $0x40] sm:$0xff]
  %v4933 = vld [vmem:[%s7 + $0x48] sm:$0xff]
  %v4934 = vld [vmem:[%s7 + $0x50] sm:$0xff]
  %v4935 = vld [vmem:[%s7 + $0x58] sm:$0xff]
  %v4936 = vld [vmem:[%s7 + $0x60] sm:$0xff]
  %v4937 = vld [vmem:[%s7 + $0x68] sm:$0xff]
  %v4938 = vld [vmem:[%s7 + $0x70] sm:$0xff]
  %v4939 = vld [vmem:[%s7 + $0x78] sm:$0xff]
  %v4940 = vld [vmem:[%s7 + $0x80] sm:$0xff]
  %v4941 = vld [vmem:[%s7 + $0x88] sm:$0xff]
  %v4942 = vld [vmem:[%s7 + $0x90] sm:$0xff]
  %v4943 = vld [vmem:[%s7 + $0x98] sm:$0xff]
  %v4944 = vld [vmem:[%s7 + $0xa0] sm:$0xff]
  %v4945 = vld [vmem:[%s7 + $0xa8] sm:$0xff]
  %v4946 = vld [vmem:[%s7 + $0xb0] sm:$0xff]
  %v4947 = vld [vmem:[%s7 + $0xb8] sm:$0xff]
  %v4948 = vld [vmem:[%s7 + $0xc0] sm:$0xff]
  %v4949 = vld [vmem:[%s7 + $0xc8] sm:$0xff]
  %v4950 = vld [vmem:[%s7 + $0xd0] sm:$0xff]
  %v4951 = vld [vmem:[%s7 + $0xd8] sm:$0xff]
  %v4952 = vld [vmem:[%s7 + $0xe0] sm:$0xff]
  %v4953 = vld [vmem:[%s7 + $0xe8] sm:$0xff]
  %v4954 = vld [vmem:[%s7 + $0xf0] sm:$0xff]
  %v4955 = vld [vmem:[%s7 + $0xf8] sm:$0xff]
  %v4956 = vld [vmem:[%s7 + $0x100] sm:$0xff]
  %v4957 = vld [vmem:[%s7 + $0x108] sm:$0xff]
  %v4958 = vld [vmem:[%s7 + $0x110] sm:$0xff]
  %v4959 = vld [vmem:[%s7 + $0x118] sm:$0xff]
  %v4960 = vld [vmem:[%s7 + $0x120] sm:$0xff]
  %v4961 = vld [vmem:[%s7 + $0x128] sm:$0xff]
  %v4962 = vld [vmem:[%s7 + $0x130] sm:$0xff]
  %v4963 = vld [vmem:[%s7 + $0x138] sm:$0xff]
  %v4964 = vld [vmem:[%s7 + $0x140] sm:$0xff]
  %v4965 = vld [vmem:[%s7 + $0x148] sm:$0xff]
  %v4966 = vld [vmem:[%s7 + $0x150] sm:$0xff]
  %v4967 = vld [vmem:[%s7 + $0x158] sm:$0xff]
  %v4968 = vld [vmem:[%s7 + $0x160] sm:$0xff]
  %v4969 = vld [vmem:[%s7 + $0x168] sm:$0xff]
  %v4970 = vld [vmem:[%s7 + $0x170] sm:$0xff]
  %v4971 = vld [vmem:[%s7 + $0x178] sm:$0xff]
  %v4972 = vld [vmem:[%s7 + $0x180] sm:$0xff]
  %v4973 = vld [vmem:[%s7 + $0x188] sm:$0xff]
  %v4974 = vld [vmem:[%s7 + $0x190] sm:$0xff]
  %v4975 = vld [vmem:[%s7 + $0x198] sm:$0xff]
  %v4976 = vld [vmem:[%s7 + $0x1a0] sm:$0xff]
  %v4977 = vld [vmem:[%s7 + $0x1a8] sm:$0xff]
  %v4978 = vld [vmem:[%s7 + $0x1b0] sm:$0xff]
  %v4979 = vld [vmem:[%s7 + $0x1b8] sm:$0xff]
  %v4980 = vld [vmem:[%s7 + $0x1c0] sm:$0xff]
  %v4981 = vld [vmem:[%s7 + $0x1c8] sm:$0xff]
  %v4982 = vld [vmem:[%s7 + $0x1d0] sm:$0xff]
  %v4983 = vld [vmem:[%s7 + $0x1d8] sm:$0xff]
  %v4984 = vld [vmem:[%s7 + $0x1e0] sm:$0xff]
  %v4985 = vld [vmem:[%s7 + $0x1e8] sm:$0xff]
  %v4986 = vld [vmem:[%s7 + $0x1f0] sm:$0xff]
  %v4987 = vld [vmem:[%s7 + $0x1f8] sm:$0xff]
  %v4988 = vld [vmem:[%s7 + $0x200] sm:$0xff]
  %v4989 = vld [vmem:[%s7 + $0x208] sm:$0xff]
  %v4990 = vld [vmem:[%s7 + $0x210] sm:$0xff]
  %v4991 = vld [vmem:[%s7 + $0x218] sm:$0xff]
  %v4992 = vld [vmem:[%s7 + $0x220] sm:$0xff]
  %v4993 = vld [vmem:[%s7 + $0x228] sm:$0xff]
  %v4994 = vld [vmem:[%s7 + $0x230] sm:$0xff]
  %v4995 = vld [vmem:[%s7 + $0x238] sm:$0xff]
  %v4996 = vld [vmem:[%s7 + $0x240] sm:$0xff]
  %v4997 = vld [vmem:[%s7 + $0x248] sm:$0xff]
  %v4998 = vld [vmem:[%s7 + $0x250] sm:$0xff]
  %v4999 = vld [vmem:[%s7 + $0x258] sm:$0xff]
  %v5000 = vld [vmem:[%s7 + $0x260] sm:$0xff]
  %v5001 = vld [vmem:[%s7 + $0x268] sm:$0xff]
  %v5002 = vld [vmem:[%s7 + $0x270] sm:$0xff]
  %v5003 = vld [vmem:[%s7 + $0x278] sm:$0xff]
  %v5004 = vld [vmem:[%s7 + $0x280] sm:$0xff]
  %v5005 = vld [vmem:[%s7 + $0x288] sm:$0xff]
  %v5006 = vld [vmem:[%s7 + $0x290] sm:$0xff]
  %v5007 = vld [vmem:[%s7 + $0x298] sm:$0xff]
  %v5008 = vld [vmem:[%s7 + $0x2a0] sm:$0xff]
  %v5009 = vld [vmem:[%s7 + $0x2a8] sm:$0xff]
  %v5010 = vld [vmem:[%s7 + $0x2b0] sm:$0xff]
  %v5011 = vld [vmem:[%s7 + $0x2b8] sm:$0xff]
  %v5012 = vld [vmem:[%s7 + $0x2c0] sm:$0xff]
  %v5013 = vld [vmem:[%s7 + $0x2c8] sm:$0xff]
  %v5014 = vld [vmem:[%s7 + $0x2d0] sm:$0xff]
  %v5015 = vld [vmem:[%s7 + $0x2d8] sm:$0xff]
  %v5016 = vld [vmem:[%s7 + $0x2e0] sm:$0xff]
  %v5017 = vld [vmem:[%s7 + $0x2e8] sm:$0xff]
  %v5018 = vld [vmem:[%s7 + $0x2f0] sm:$0xff]
  %v5019 = vld [vmem:[%s7 + $0x2f8] sm:$0xff]
  %v5020 = vld [vmem:[%s7 + $0x300] sm:$0xff]
  %v5021 = vld [vmem:[%s7 + $0x308] sm:$0xff]
  %v5022 = vld [vmem:[%s7 + $0x310] sm:$0xff]
  %v5023 = vld [vmem:[%s7 + $0x318] sm:$0xff]
  %v5024 = vld [vmem:[%s7 + $0x320] sm:$0xff]
  %v5025 = vld [vmem:[%s7 + $0x328] sm:$0xff]
  %v5026 = vld [vmem:[%s7 + $0x330] sm:$0xff]
  %v5027 = vld [vmem:[%s7 + $0x338] sm:$0xff]
  %v5028 = vld [vmem:[%s7 + $0x340] sm:$0xff]
  %v5029 = vld [vmem:[%s7 + $0x348] sm:$0xff]
  %v5030 = vld [vmem:[%s7 + $0x350] sm:$0xff]
  %v5031 = vld [vmem:[%s7 + $0x358] sm:$0xff]
  %v5032 = vld [vmem:[%s7 + $0x360] sm:$0xff]
  %v5033 = vld [vmem:[%s7 + $0x368] sm:$0xff]
  %v5034 = vld [vmem:[%s7 + $0x370] sm:$0xff]
  %v5035 = vld [vmem:[%s7 + $0x378] sm:$0xff]
  %v5036 = vld [vmem:[%s7 + $0x380] sm:$0xff]
  %v5037 = vld [vmem:[%s7 + $0x388] sm:$0xff]
  %v5038 = vld [vmem:[%s7 + $0x390] sm:$0xff]
  %v5039 = vld [vmem:[%s7 + $0x398] sm:$0xff]
  %v5040 = vld [vmem:[%s7 + $0x3a0] sm:$0xff]
  %v5041 = vld [vmem:[%s7 + $0x3a8] sm:$0xff]
  %v5042 = vld [vmem:[%s7 + $0x3b0] sm:$0xff]
  %v5043 = vld [vmem:[%s7 + $0x3b8] sm:$0xff]
  %v5044 = vld [vmem:[%s7 + $0x3c0] sm:$0xff]
  %v5045 = vld [vmem:[%s7 + $0x3c8] sm:$0xff]
  %v5046 = vld [vmem:[%s7 + $0x3d0] sm:$0xff]
  %v5047 = vld [vmem:[%s7 + $0x3d8] sm:$0xff]
  %v5048 = vld [vmem:[%s7 + $0x3e0] sm:$0xff]
  %v5049 = vld [vmem:[%s7 + $0x3e8] sm:$0xff]
  %v5050 = vld [vmem:[%s7 + $0x3f0] sm:$0xff]
  %v5051 = vld [vmem:[%s7 + $0x3f8] sm:$0xff]
  %v5052 = vld [vmem:[%s7 + $0x400] sm:$0xff]
  %v5053 = vld [vmem:[%s7 + $0x408] sm:$0xff]
  %v5054 = vld [vmem:[%s7 + $0x410] sm:$0xff]
  %v5055 = vld [vmem:[%s7 + $0x418] sm:$0xff]
  %v5056 = vld [vmem:[%s7 + $0x420] sm:$0xff]
  %v5057 = vld [vmem:[%s7 + $0x428] sm:$0xff]
  %v5058 = vld [vmem:[%s7 + $0x430] sm:$0xff]
  %v5059 = vld [vmem:[%s7 + $0x438] sm:$0xff]
  %v5060 = vld [vmem:[%s7 + $0x440] sm:$0xff]
  %v5061 = vld [vmem:[%s7 + $0x448] sm:$0xff]
  %v5062 = vld [vmem:[%s7 + $0x450] sm:$0xff]
  %v5063 = vld [vmem:[%s7 + $0x458] sm:$0xff]
  %v5064 = vld [vmem:[%s7 + $0x460] sm:$0xff]
  %v5065 = vld [vmem:[%s7 + $0x468] sm:$0xff]
  %v5066 = vld [vmem:[%s7 + $0x470] sm:$0xff]
  %v5067 = vld [vmem:[%s7 + $0x478] sm:$0xff]
  %v5068 = vld [vmem:[%s7 + $0x480] sm:$0xff]
  %v5069 = vld [vmem:[%s7 + $0x488] sm:$0xff]
  %v5070 = vld [vmem:[%s7 + $0x490] sm:$0xff]
  %v5071 = vld [vmem:[%s7 + $0x498] sm:$0xff]
  %v5072 = vld [vmem:[%s7 + $0x4a0] sm:$0xff]
  %v5073 = vld [vmem:[%s7 + $0x4a8] sm:$0xff]
  %v5074 = vld [vmem:[%s7 + $0x4b0] sm:$0xff]
  %v5075 = vld [vmem:[%s7 + $0x4b8] sm:$0xff]
  %v5076 = vld [vmem:[%s7 + $0x4c0] sm:$0xff]
  %v5077 = vld [vmem:[%s7 + $0x4c8] sm:$0xff]
  %v5078 = vld [vmem:[%s7 + $0x4d0] sm:$0xff]
  %v5079 = vld [vmem:[%s7 + $0x4d8] sm:$0xff]
  %v5080 = vld [vmem:[%s7 + $0x4e0] sm:$0xff]
  %v5081 = vld [vmem:[%s7 + $0x4e8] sm:$0xff]
  %v5082 = vld [vmem:[%s7 + $0x4f0] sm:$0xff]
  %v5083 = vld [vmem:[%s7 + $0x4f8] sm:$0xff]
  %v5084 = vld [vmem:[%s7 + $0x500] sm:$0xff]
  %v5085 = vld [vmem:[%s7 + $0x508] sm:$0xff]
  %v5086 = vld [vmem:[%s7 + $0x510] sm:$0xff]
  %v5087 = vld [vmem:[%s7 + $0x518] sm:$0xff]
  %v5088 = vld [vmem:[%s7 + $0x520] sm:$0xff]
  %v5089 = vld [vmem:[%s7 + $0x528] sm:$0xff]
  %v5090 = vld [vmem:[%s7 + $0x530] sm:$0xff]
  %v5091 = vld [vmem:[%s7 + $0x538] sm:$0xff]
  %v5092 = vld [vmem:[%s7 + $0x540] sm:$0xff]
  %v5093 = vld [vmem:[%s7 + $0x548] sm:$0xff]
  %v5094 = vld [vmem:[%s7 + $0x550] sm:$0xff]
  %v5095 = vld [vmem:[%s7 + $0x558] sm:$0xff]
  %v5096 = vld [vmem:[%s7 + $0x560] sm:$0xff]
  %v5097 = vld [vmem:[%s7 + $0x568] sm:$0xff]
  %v5098 = vld [vmem:[%s7 + $0x570] sm:$0xff]
  %v5099 = vld [vmem:[%s7 + $0x578] sm:$0xff]
  %v5100 = vld [vmem:[%s7 + $0x580] sm:$0xff]
  %v5101 = vld [vmem:[%s7 + $0x588] sm:$0xff]
  %v5102 = vld [vmem:[%s7 + $0x590] sm:$0xff]
  %v5103 = vld [vmem:[%s7 + $0x598] sm:$0xff]
  %v5104 = vld [vmem:[%s7 + $0x5a0] sm:$0xff]
  %v5105 = vld [vmem:[%s7 + $0x5a8] sm:$0xff]
  %v5106 = vld [vmem:[%s7 + $0x5b0] sm:$0xff]
  %v5107 = vld [vmem:[%s7 + $0x5b8] sm:$0xff]
  %v5108 = vld [vmem:[%s7 + $0x5c0] sm:$0xff]
  %v5109 = vld [vmem:[%s7 + $0x5c8] sm:$0xff]
  %v5110 = vld [vmem:[%s7 + $0x5d0] sm:$0xff]
  %v5111 = vld [vmem:[%s7 + $0x5d8] sm:$0xff]
  %v5112 = vld [vmem:[%s7 + $0x5e0] sm:$0xff]
  %v5113 = vld [vmem:[%s7 + $0x5e8] sm:$0xff]
  %v5114 = vld [vmem:[%s7 + $0x5f0] sm:$0xff]
  %v5115 = vld [vmem:[%s7 + $0x5f8] sm:$0xff]
  %v5116 = vld [vmem:[%s7 + $0x600] sm:$0xff]
  %v5117 = vld [vmem:[%s7 + $0x608] sm:$0xff]
  %v5118 = vld [vmem:[%s7 + $0x610] sm:$0xff]
  %v5119 = vld [vmem:[%s7 + $0x618] sm:$0xff]
  %v5120 = vld [vmem:[%s7 + $0x620] sm:$0xff]
  %v5121 = vld [vmem:[%s7 + $0x628] sm:$0xff]
  %v5122 = vld [vmem:[%s7 + $0x630] sm:$0xff]
  %v5123 = vld [vmem:[%s7 + $0x638] sm:$0xff]
  %v5124 = vld [vmem:[%s7 + $0x640] sm:$0xff]
  %v5125 = vld [vmem:[%s7 + $0x648] sm:$0xff]
  %v5126 = vld [vmem:[%s7 + $0x650] sm:$0xff]
  %v5127 = vld [vmem:[%s7 + $0x658] sm:$0xff]
  %v5128 = vld [vmem:[%s7 + $0x660] sm:$0xff]
  %v5129 = vld [vmem:[%s7 + $0x668] sm:$0xff]
  %v5130 = vld [vmem:[%s7 + $0x670] sm:$0xff]
  %v5131 = vld [vmem:[%s7 + $0x678] sm:$0xff]
  %v5132 = vld [vmem:[%s7 + $0x680] sm:$0xff]
  %v5133 = vld [vmem:[%s7 + $0x688] sm:$0xff]
  %v5134 = vld [vmem:[%s7 + $0x690] sm:$0xff]
  %v5135 = vld [vmem:[%s7 + $0x698] sm:$0xff]
  %v5136 = vld [vmem:[%s7 + $0x6a0] sm:$0xff]
  %v5137 = vld [vmem:[%s7 + $0x6a8] sm:$0xff]
  %v5138 = vld [vmem:[%s7 + $0x6b0] sm:$0xff]
  %v5139 = vld [vmem:[%s7 + $0x6b8] sm:$0xff]
  %v5140 = vld [vmem:[%s7 + $0x6c0] sm:$0xff]
  %v5141 = vld [vmem:[%s7 + $0x6c8] sm:$0xff]
  %v5142 = vld [vmem:[%s7 + $0x6d0] sm:$0xff]
  %v5143 = vld [vmem:[%s7 + $0x6d8] sm:$0xff]
  %v5144 = vld [vmem:[%s7 + $0x6e0] sm:$0xff]
  %v5145 = vld [vmem:[%s7 + $0x6e8] sm:$0xff]
  %v5146 = vld [vmem:[%s7 + $0x6f0] sm:$0xff]
  %v5147 = vld [vmem:[%s7 + $0x6f8] sm:$0xff]
  %v5148 = vld [vmem:[%s7 + $0x700] sm:$0xff]
  %v5149 = vld [vmem:[%s7 + $0x708] sm:$0xff]
  %v5150 = vld [vmem:[%s7 + $0x710] sm:$0xff]
  %v5151 = vld [vmem:[%s7 + $0x718] sm:$0xff]
  %v5152 = vld [vmem:[%s7 + $0x720] sm:$0xff]
  %v5153 = vld [vmem:[%s7 + $0x728] sm:$0xff]
  %v5154 = vld [vmem:[%s7 + $0x730] sm:$0xff]
  %v5155 = vld [vmem:[%s7 + $0x738] sm:$0xff]
  %v5156 = vld [vmem:[%s7 + $0x740] sm:$0xff]
  %v5157 = vld [vmem:[%s7 + $0x748] sm:$0xff]
  %v5158 = vld [vmem:[%s7 + $0x750] sm:$0xff]
  %v5159 = vld [vmem:[%s7 + $0x758] sm:$0xff]
  %v5160 = vld [vmem:[%s7 + $0x760] sm:$0xff]
  %v5161 = vld [vmem:[%s7 + $0x768] sm:$0xff]
  %v5162 = vld [vmem:[%s7 + $0x770] sm:$0xff]
  %v5163 = vld [vmem:[%s7 + $0x778] sm:$0xff]
  %v5164 = vld [vmem:[%s7 + $0x780] sm:$0xff]
  %v5165 = vld [vmem:[%s7 + $0x788] sm:$0xff]
  %v5166 = vld [vmem:[%s7 + $0x790] sm:$0xff]
  %v5167 = vld [vmem:[%s7 + $0x798] sm:$0xff]
  %v5168 = vld [vmem:[%s7 + $0x7a0] sm:$0xff]
  %v5169 = vld [vmem:[%s7 + $0x7a8] sm:$0xff]
  %v5170 = vld [vmem:[%s7 + $0x7b0] sm:$0xff]
  %v5171 = vld [vmem:[%s7 + $0x7b8] sm:$0xff]
  %v5172 = vld [vmem:[%s7 + $0x7c0] sm:$0xff]
  %v5173 = vld [vmem:[%s7 + $0x7c8] sm:$0xff]
  %v5174 = vld [vmem:[%s7 + $0x7d0] sm:$0xff]
  %v5175 = vld [vmem:[%s7 + $0x7d8] sm:$0xff]
  %v5176 = vld [vmem:[%s7 + $0x7e0] sm:$0xff]
  %v5177 = vld [vmem:[%s7 + $0x7e8] sm:$0xff]
  %v5178 = vld [vmem:[%s7 + $0x7f0] sm:$0xff]
  %v5179 = vld [vmem:[%s7 + $0x7f8] sm:$0xff]
  %v5180 = vpack.c.bf16 %v4877, %v4876
  %v5181 = vpack.c.bf16 %v4879, %v4878
  %v5182 = vpack.c.bf16 %v4881, %v4880
  %v5183 = vpack.c.bf16 %v4883, %v4882
  %v5216 = vunpack.c.l.b16 %v4892
  %v5217 = vunpack.c.l.b16 %v4893
  %v5218 = vunpack.c.l.b16 %v4894
  %v5219 = vunpack.c.l.b16 %v4895
  %v5220 = vunpack.c.l.b16 %v4896
  %v5221 = vunpack.c.l.b16 %v4897
  %v5222 = vunpack.c.l.b16 %v4898
  %v5223 = vunpack.c.l.b16 %v4899
  %v5224 = vunpack.c.l.b16 %v4900
  %v5225 = vunpack.c.l.b16 %v4901
  %v5226 = vunpack.c.l.b16 %v4902
  %v5227 = vunpack.c.l.b16 %v4903
  %v5228 = vunpack.c.l.b16 %v4904
  %v5229 = vunpack.c.l.b16 %v4905
  %v5230 = vunpack.c.l.b16 %v4906
  %v5231 = vunpack.c.l.b16 %v4907
  %v5232 = vunpack.c.l.b16 %v4908
  %v5233 = vunpack.c.l.b16 %v4909
  %v5234 = vunpack.c.l.b16 %v4910
  %v5235 = vunpack.c.l.b16 %v4911
  %v5236 = vunpack.c.l.b16 %v4912
  %v5237 = vunpack.c.l.b16 %v4913
  %v5238 = vunpack.c.l.b16 %v4914
  %v5239 = vunpack.c.l.b16 %v4915
  %v5240 = vunpack.c.l.b16 %v4916
  %v5241 = vunpack.c.l.b16 %v4917
  %v5242 = vunpack.c.l.b16 %v4918
  %v5243 = vunpack.c.l.b16 %v4919
  %v5244 = vunpack.c.l.b16 %v4920
  %v5245 = vunpack.c.l.b16 %v4921
  %v5246 = vunpack.c.l.b16 %v4922
  %v5247 = vunpack.c.l.b16 %v4923
  %v5248 = vpack.c.b16 %v5217, %v5216
  %v5249 = vpack.c.b16 %v5219, %v5218
  %v5250 = vpack.c.b16 %v5221, %v5220
  %v5251 = vpack.c.b16 %v5223, %v5222
  %v5252 = vpack.c.b16 %v5225, %v5224
  %v5253 = vpack.c.b16 %v5227, %v5226
  %v5254 = vpack.c.b16 %v5229, %v5228
  %v5255 = vpack.c.b16 %v5231, %v5230
  %v5256 = vpack.c.b16 %v5233, %v5232
  %v5257 = vpack.c.b16 %v5235, %v5234
  %v5258 = vpack.c.b16 %v5237, %v5236
  %v5259 = vpack.c.b16 %v5239, %v5238
  %v5260 = vpack.c.b16 %v5241, %v5240
  %v5261 = vpack.c.b16 %v5243, %v5242
  %v5262 = vpack.c.b16 %v5245, %v5244
  %v5263 = vpack.c.b16 %v5247, %v5246
  %v5265 = vsel %vm2226, %v5248, 0
  %v5268 = vsel %vm2226, %v5249, 0
  %v5271 = vsel %vm2226, %v5250, 0
  %v5274 = vsel %vm2226, %v5251, 0
  %v5277 = vsel %vm2226, %v5252, 0
  %v5280 = vsel %vm2226, %v5253, 0
  %v5283 = vsel %vm2226, %v5254, 0
  %v5286 = vsel %vm2226, %v5255, 0
  %v5289 = vsel %vm2226, %v5256, 0
  %v5292 = vsel %vm2226, %v5257, 0
  %v5295 = vsel %vm2226, %v5258, 0
  %v5298 = vsel %vm2226, %v5259, 0
  %v5301 = vsel %vm2226, %v5260, 0
  %v5304 = vsel %vm2226, %v5261, 0
  %v5307 = vsel %vm2226, %v5262, 0
  %v5310 = vsel %vm2226, %v5263, 0
  %5312 = vmatpush.bf16.msra.mxu0 0
  %5313 = vmatpush.bf16.msra.mxu0 0
  %5314 = vmatpush.bf16.msra.mxu0 0
  %5315 = vmatpush.bf16.msra.mxu0 0
  %5316 = vmatpush.bf16.msra.mxu0 %v5183
  %5317 = vmatpush.bf16.msra.mxu0 %v5182
  %5318 = vmatpush.bf16.msra.mxu0 %v5181
  %5319 = vmatpush.bf16.msra.mxu0 %v5180
  %5320 = vmatmul.bf16.gmra.mxu0 %v5265
  %v5321 = vpop.f32.mrf.mxu0
  %v5322 = vadd.f32 0.0, %v5321
  %v5323 = vpop.f32.mrf.mxu0
  %v5324 = vadd.f32 0.0, %v5323
  %5325 = vmatmul.bf16.gmra.mxu0 %v5268
  %v5326 = vpop.f32.mrf.mxu0
  %v5327 = vadd.f32 0.0, %v5326
  %v5328 = vpop.f32.mrf.mxu0
  %v5329 = vadd.f32 0.0, %v5328
  %5330 = vmatmul.bf16.gmra.mxu0 %v5271
  %v5331 = vpop.f32.mrf.mxu0
  %v5332 = vadd.f32 0.0, %v5331
  %v5333 = vpop.f32.mrf.mxu0
  %v5334 = vadd.f32 0.0, %v5333
  %5335 = vmatmul.bf16.gmra.mxu0 %v5274
  %v5336 = vpop.f32.mrf.mxu0
  %v5337 = vadd.f32 0.0, %v5336
  %v5338 = vpop.f32.mrf.mxu0
  %v5339 = vadd.f32 0.0, %v5338
  %5340 = vmatmul.bf16.gmra.mxu0 %v5277
  %v5341 = vpop.f32.mrf.mxu0
  %v5342 = vadd.f32 0.0, %v5341
  %v5343 = vpop.f32.mrf.mxu0
  %v5344 = vadd.f32 0.0, %v5343
  %5345 = vmatmul.bf16.gmra.mxu0 %v5280
  %v5346 = vpop.f32.mrf.mxu0
  %v5347 = vadd.f32 0.0, %v5346
  %v5348 = vpop.f32.mrf.mxu0
  %v5349 = vadd.f32 0.0, %v5348
  %5350 = vmatmul.bf16.gmra.mxu0 %v5283
  %v5351 = vpop.f32.mrf.mxu0
  %v5352 = vadd.f32 0.0, %v5351
  %v5353 = vpop.f32.mrf.mxu0
  %v5354 = vadd.f32 0.0, %v5353
  %5355 = vmatmul.bf16.gmra.mxu0 %v5286
  %v5356 = vpop.f32.mrf.mxu0
  %v5357 = vadd.f32 0.0, %v5356
  %v5358 = vpop.f32.mrf.mxu0
  %v5359 = vadd.f32 0.0, %v5358
  %5360 = vmatmul.bf16.gmra.mxu0 %v5289
  %v5361 = vpop.f32.mrf.mxu0
  %v5362 = vadd.f32 0.0, %v5361
  %v5363 = vpop.f32.mrf.mxu0
  %v5364 = vadd.f32 0.0, %v5363
  %5365 = vmatmul.bf16.gmra.mxu0 %v5292
  %v5366 = vpop.f32.mrf.mxu0
  %v5367 = vadd.f32 0.0, %v5366
  %v5368 = vpop.f32.mrf.mxu0
  %v5369 = vadd.f32 0.0, %v5368
  %5370 = vmatmul.bf16.gmra.mxu0 %v5295
  %v5371 = vpop.f32.mrf.mxu0
  %v5372 = vadd.f32 0.0, %v5371
  %v5373 = vpop.f32.mrf.mxu0
  %v5374 = vadd.f32 0.0, %v5373
  %5375 = vmatmul.bf16.gmra.mxu0 %v5298
  %v5376 = vpop.f32.mrf.mxu0
  %v5377 = vadd.f32 0.0, %v5376
  %v5378 = vpop.f32.mrf.mxu0
  %v5379 = vadd.f32 0.0, %v5378
  %5380 = vmatmul.bf16.gmra.mxu0 %v5301
  %v5381 = vpop.f32.mrf.mxu0
  %v5382 = vadd.f32 0.0, %v5381
  %v5383 = vpop.f32.mrf.mxu0
  %v5384 = vadd.f32 0.0, %v5383
  %5385 = vmatmul.bf16.gmra.mxu0 %v5304
  %v5386 = vpop.f32.mrf.mxu0
  %v5387 = vadd.f32 0.0, %v5386
  %v5388 = vpop.f32.mrf.mxu0
  %v5389 = vadd.f32 0.0, %v5388
  %5390 = vmatmul.bf16.gmra.mxu0 %v5307
  %v5391 = vpop.f32.mrf.mxu0
  %v5392 = vadd.f32 0.0, %v5391
  %v5393 = vpop.f32.mrf.mxu0
  %v5394 = vadd.f32 0.0, %v5393
  %5395 = vmatmul.bf16.gmra.mxu0 %v5310
  %v5396 = vpop.f32.mrf.mxu0
  %v5397 = vadd.f32 0.0, %v5396
  %v5398 = vpop.f32.mrf.mxu0
  %v5399 = vadd.f32 0.0, %v5398
  %5400 = vdwg.mxu0
  %5401 = vst [vmem:[#allocation3] sm:$0xff] %v5322
  %5402 = vst [vmem:[#allocation3 + $0x80] sm:$0xff] %v5324
  %5403 = vst [vmem:[#allocation3 + $0x8] sm:$0xff] %v5327
  %5404 = vst [vmem:[#allocation3 + $0x88] sm:$0xff] %v5329
  %5405 = vst [vmem:[#allocation3 + $0x10] sm:$0xff] %v5332
  %5406 = vst [vmem:[#allocation3 + $0x90] sm:$0xff] %v5334
  %5407 = vst [vmem:[#allocation3 + $0x18] sm:$0xff] %v5337
  %5408 = vst [vmem:[#allocation3 + $0x98] sm:$0xff] %v5339
  %5409 = vst [vmem:[#allocation3 + $0x20] sm:$0xff] %v5342
  %5410 = vst [vmem:[#allocation3 + $0xa0] sm:$0xff] %v5344
  %5411 = vst [vmem:[#allocation3 + $0x28] sm:$0xff] %v5347
  %5412 = vst [vmem:[#allocation3 + $0xa8] sm:$0xff] %v5349
  %5413 = vst [vmem:[#allocation3 + $0x30] sm:$0xff] %v5352
  %5414 = vst [vmem:[#allocation3 + $0xb0] sm:$0xff] %v5354
  %5415 = vst [vmem:[#allocation3 + $0x38] sm:$0xff] %v5357
  %5416 = vst [vmem:[#allocation3 + $0xb8] sm:$0xff] %v5359
  %5417 = vst [vmem:[#allocation3 + $0x40] sm:$0xff] %v5362
  %5418 = vst [vmem:[#allocation3 + $0xc0] sm:$0xff] %v5364
  %5419 = vst [vmem:[#allocation3 + $0x48] sm:$0xff] %v5367
  %5420 = vst [vmem:[#allocation3 + $0xc8] sm:$0xff] %v5369
  %5421 = vst [vmem:[#allocation3 + $0x50] sm:$0xff] %v5372
  %5422 = vst [vmem:[#allocation3 + $0xd0] sm:$0xff] %v5374
  %5423 = vst [vmem:[#allocation3 + $0x58] sm:$0xff] %v5377
  %5424 = vst [vmem:[#allocation3 + $0xd8] sm:$0xff] %v5379
  %5425 = vst [vmem:[#allocation3 + $0x60] sm:$0xff] %v5382
  %5426 = vst [vmem:[#allocation3 + $0xe0] sm:$0xff] %v5384
  %5427 = vst [vmem:[#allocation3 + $0x68] sm:$0xff] %v5387
  %5428 = vst [vmem:[#allocation3 + $0xe8] sm:$0xff] %v5389
  %5429 = vst [vmem:[#allocation3 + $0x70] sm:$0xff] %v5392
  %5430 = vst [vmem:[#allocation3 + $0xf0] sm:$0xff] %v5394
  %5431 = vst [vmem:[#allocation3 + $0x78] sm:$0xff] %v5397
  %5432 = vst [vmem:[#allocation3 + $0xf8] sm:$0xff] %v5399
  %v5433 = vld [vmem:[#allocation3] sm:$0xff]
  %v5434 = vld [vmem:[#allocation3 + $0x8] sm:$0xff]
  %v5435 = vld [vmem:[#allocation3 + $0x10] sm:$0xff]
  %v5436 = vld [vmem:[#allocation3 + $0x18] sm:$0xff]
  %v5437 = vld [vmem:[#allocation3 + $0x20] sm:$0xff]
  %v5438 = vld [vmem:[#allocation3 + $0x28] sm:$0xff]
  %v5439 = vld [vmem:[#allocation3 + $0x30] sm:$0xff]
  %v5440 = vld [vmem:[#allocation3 + $0x38] sm:$0xff]
  %v5441 = vld [vmem:[#allocation3 + $0x40] sm:$0xff]
  %v5442 = vld [vmem:[#allocation3 + $0x48] sm:$0xff]
  %v5443 = vld [vmem:[#allocation3 + $0x50] sm:$0xff]
  %v5444 = vld [vmem:[#allocation3 + $0x58] sm:$0xff]
  %v5445 = vld [vmem:[#allocation3 + $0x60] sm:$0xff]
  %v5446 = vld [vmem:[#allocation3 + $0x68] sm:$0xff]
  %v5447 = vld [vmem:[#allocation3 + $0x70] sm:$0xff]
  %v5448 = vld [vmem:[#allocation3 + $0x78] sm:$0xff]
  %v5449 = vld [vmem:[#allocation3 + $0x80] sm:$0xff]
  %v5450 = vld [vmem:[#allocation3 + $0x88] sm:$0xff]
  %v5451 = vld [vmem:[#allocation3 + $0x90] sm:$0xff]
  %v5452 = vld [vmem:[#allocation3 + $0x98] sm:$0xff]
  %v5453 = vld [vmem:[#allocation3 + $0xa0] sm:$0xff]
  %v5454 = vld [vmem:[#allocation3 + $0xa8] sm:$0xff]
  %v5455 = vld [vmem:[#allocation3 + $0xb0] sm:$0xff]
  %v5456 = vld [vmem:[#allocation3 + $0xb8] sm:$0xff]
  %v5457 = vld [vmem:[#allocation3 + $0xc0] sm:$0xff]
  %v5458 = vld [vmem:[#allocation3 + $0xc8] sm:$0xff]
  %v5459 = vld [vmem:[#allocation3 + $0xd0] sm:$0xff]
  %v5460 = vld [vmem:[#allocation3 + $0xd8] sm:$0xff]
  %v5461 = vld [vmem:[#allocation3 + $0xe0] sm:$0xff]
  %v5462 = vld [vmem:[#allocation3 + $0xe8] sm:$0xff]
  %v5463 = vld [vmem:[#allocation3 + $0xf0] sm:$0xff]
  %v5464 = vld [vmem:[#allocation3 + $0xf8] sm:$0xff]
  %v5465 = vpack.c.bf16 %v5449, %v5433
  %v5466 = vpack.c.bf16 %v5450, %v5434
  %v5467 = vpack.c.bf16 %v5451, %v5435
  %v5468 = vpack.c.bf16 %v5452, %v5436
  %v5469 = vpack.c.bf16 %v5453, %v5437
  %v5470 = vpack.c.bf16 %v5454, %v5438
  %v5471 = vpack.c.bf16 %v5455, %v5439
  %v5472 = vpack.c.bf16 %v5456, %v5440
  %v5473 = vpack.c.bf16 %v5457, %v5441
  %v5474 = vpack.c.bf16 %v5458, %v5442
  %v5475 = vpack.c.bf16 %v5459, %v5443
  %v5476 = vpack.c.bf16 %v5460, %v5444
  %v5477 = vpack.c.bf16 %v5461, %v5445
  %v5478 = vpack.c.bf16 %v5462, %v5446
  %v5479 = vpack.c.bf16 %v5463, %v5447
  %v5480 = vpack.c.bf16 %v5464, %v5448
  %v5737 = vunpack.c.l.b16 %v4924
  %v5738 = vunpack.c.h.b16 %v4924
  %v5739 = vunpack.c.l.b16 %v4925
  %v5740 = vunpack.c.h.b16 %v4925
  %v5741 = vunpack.c.l.b16 %v4926
  %v5742 = vunpack.c.h.b16 %v4926
  %v5743 = vunpack.c.l.b16 %v4927
  %v5744 = vunpack.c.h.b16 %v4927
  %v5745 = vunpack.c.l.b16 %v4928
  %v5746 = vunpack.c.h.b16 %v4928
  %v5747 = vunpack.c.l.b16 %v4929
  %v5748 = vunpack.c.h.b16 %v4929
  %v5749 = vunpack.c.l.b16 %v4930
  %v5750 = vunpack.c.h.b16 %v4930
  %v5751 = vunpack.c.l.b16 %v4931
  %v5752 = vunpack.c.h.b16 %v4931
  %v5753 = vunpack.c.l.b16 %v4932
  %v5754 = vunpack.c.h.b16 %v4932
  %v5755 = vunpack.c.l.b16 %v4933
  %v5756 = vunpack.c.h.b16 %v4933
  %v5757 = vunpack.c.l.b16 %v4934
  %v5758 = vunpack.c.h.b16 %v4934
  %v5759 = vunpack.c.l.b16 %v4935
  %v5760 = vunpack.c.h.b16 %v4935
  %v5761 = vunpack.c.l.b16 %v4936
  %v5762 = vunpack.c.h.b16 %v4936
  %v5763 = vunpack.c.l.b16 %v4937
  %v5764 = vunpack.c.h.b16 %v4937
  %v5765 = vunpack.c.l.b16 %v4938
  %v5766 = vunpack.c.h.b16 %v4938
  %v5767 = vunpack.c.l.b16 %v4939
  %v5768 = vunpack.c.h.b16 %v4939
  %v5769 = vunpack.c.l.b16 %v4940
  %v5770 = vunpack.c.h.b16 %v4940
  %v5771 = vunpack.c.l.b16 %v4941
  %v5772 = vunpack.c.h.b16 %v4941
  %v5773 = vunpack.c.l.b16 %v4942
  %v5774 = vunpack.c.h.b16 %v4942
  %v5775 = vunpack.c.l.b16 %v4943
  %v5776 = vunpack.c.h.b16 %v4943
  %v5777 = vunpack.c.l.b16 %v4944
  %v5778 = vunpack.c.h.b16 %v4944
  %v5779 = vunpack.c.l.b16 %v4945
  %v5780 = vunpack.c.h.b16 %v4945
  %v5781 = vunpack.c.l.b16 %v4946
  %v5782 = vunpack.c.h.b16 %v4946
  %v5783 = vunpack.c.l.b16 %v4947
  %v5784 = vunpack.c.h.b16 %v4947
  %v5785 = vunpack.c.l.b16 %v4948
  %v5786 = vunpack.c.h.b16 %v4948
  %v5787 = vunpack.c.l.b16 %v4949
  %v5788 = vunpack.c.h.b16 %v4949
  %v5789 = vunpack.c.l.b16 %v4950
  %v5790 = vunpack.c.h.b16 %v4950
  %v5791 = vunpack.c.l.b16 %v4951
  %v5792 = vunpack.c.h.b16 %v4951
  %v5793 = vunpack.c.l.b16 %v4952
  %v5794 = vunpack.c.h.b16 %v4952
  %v5795 = vunpack.c.l.b16 %v4953
  %v5796 = vunpack.c.h.b16 %v4953
  %v5797 = vunpack.c.l.b16 %v4954
  %v5798 = vunpack.c.h.b16 %v4954
  %v5799 = vunpack.c.l.b16 %v4955
  %v5800 = vunpack.c.h.b16 %v4955
  %v5801 = vunpack.c.l.b16 %v4956
  %v5802 = vunpack.c.h.b16 %v4956
  %v5803 = vunpack.c.l.b16 %v4957
  %v5804 = vunpack.c.h.b16 %v4957
  %v5805 = vunpack.c.l.b16 %v4958
  %v5806 = vunpack.c.h.b16 %v4958
  %v5807 = vunpack.c.l.b16 %v4959
  %v5808 = vunpack.c.h.b16 %v4959
  %v5809 = vunpack.c.l.b16 %v4960
  %v5810 = vunpack.c.h.b16 %v4960
  %v5811 = vunpack.c.l.b16 %v4961
  %v5812 = vunpack.c.h.b16 %v4961
  %v5813 = vunpack.c.l.b16 %v4962
  %v5814 = vunpack.c.h.b16 %v4962
  %v5815 = vunpack.c.l.b16 %v4963
  %v5816 = vunpack.c.h.b16 %v4963
  %v5817 = vunpack.c.l.b16 %v4964
  %v5818 = vunpack.c.h.b16 %v4964
  %v5819 = vunpack.c.l.b16 %v4965
  %v5820 = vunpack.c.h.b16 %v4965
  %v5821 = vunpack.c.l.b16 %v4966
  %v5822 = vunpack.c.h.b16 %v4966
  %v5823 = vunpack.c.l.b16 %v4967
  %v5824 = vunpack.c.h.b16 %v4967
  %v5825 = vunpack.c.l.b16 %v4968
  %v5826 = vunpack.c.h.b16 %v4968
  %v5827 = vunpack.c.l.b16 %v4969
  %v5828 = vunpack.c.h.b16 %v4969
  %v5829 = vunpack.c.l.b16 %v4970
  %v5830 = vunpack.c.h.b16 %v4970
  %v5831 = vunpack.c.l.b16 %v4971
  %v5832 = vunpack.c.h.b16 %v4971
  %v5833 = vunpack.c.l.b16 %v4972
  %v5834 = vunpack.c.h.b16 %v4972
  %v5835 = vunpack.c.l.b16 %v4973
  %v5836 = vunpack.c.h.b16 %v4973
  %v5837 = vunpack.c.l.b16 %v4974
  %v5838 = vunpack.c.h.b16 %v4974
  %v5839 = vunpack.c.l.b16 %v4975
  %v5840 = vunpack.c.h.b16 %v4975
  %v5841 = vunpack.c.l.b16 %v4976
  %v5842 = vunpack.c.h.b16 %v4976
  %v5843 = vunpack.c.l.b16 %v4977
  %v5844 = vunpack.c.h.b16 %v4977
  %v5845 = vunpack.c.l.b16 %v4978
  %v5846 = vunpack.c.h.b16 %v4978
  %v5847 = vunpack.c.l.b16 %v4979
  %v5848 = vunpack.c.h.b16 %v4979
  %v5849 = vunpack.c.l.b16 %v4980
  %v5850 = vunpack.c.h.b16 %v4980
  %v5851 = vunpack.c.l.b16 %v4981
  %v5852 = vunpack.c.h.b16 %v4981
  %v5853 = vunpack.c.l.b16 %v4982
  %v5854 = vunpack.c.h.b16 %v4982
  %v5855 = vunpack.c.l.b16 %v4983
  %v5856 = vunpack.c.h.b16 %v4983
  %v5857 = vunpack.c.l.b16 %v4984
  %v5858 = vunpack.c.h.b16 %v4984
  %v5859 = vunpack.c.l.b16 %v4985
  %v5860 = vunpack.c.h.b16 %v4985
  %v5861 = vunpack.c.l.b16 %v4986
  %v5862 = vunpack.c.h.b16 %v4986
  %v5863 = vunpack.c.l.b16 %v4987
  %v5864 = vunpack.c.h.b16 %v4987
  %v5865 = vunpack.c.l.b16 %v4988
  %v5866 = vunpack.c.h.b16 %v4988
  %v5867 = vunpack.c.l.b16 %v4989
  %v5868 = vunpack.c.h.b16 %v4989
  %v5869 = vunpack.c.l.b16 %v4990
  %v5870 = vunpack.c.h.b16 %v4990
  %v5871 = vunpack.c.l.b16 %v4991
  %v5872 = vunpack.c.h.b16 %v4991
  %v5873 = vunpack.c.l.b16 %v4992
  %v5874 = vunpack.c.h.b16 %v4992
  %v5875 = vunpack.c.l.b16 %v4993
  %v5876 = vunpack.c.h.b16 %v4993
  %v5877 = vunpack.c.l.b16 %v4994
  %v5878 = vunpack.c.h.b16 %v4994
  %v5879 = vunpack.c.l.b16 %v4995
  %v5880 = vunpack.c.h.b16 %v4995
  %v5881 = vunpack.c.l.b16 %v4996
  %v5882 = vunpack.c.h.b16 %v4996
  %v5883 = vunpack.c.l.b16 %v4997
  %v5884 = vunpack.c.h.b16 %v4997
  %v5885 = vunpack.c.l.b16 %v4998
  %v5886 = vunpack.c.h.b16 %v4998
  %v5887 = vunpack.c.l.b16 %v4999
  %v5888 = vunpack.c.h.b16 %v4999
  %v5889 = vunpack.c.l.b16 %v5000
  %v5890 = vunpack.c.h.b16 %v5000
  %v5891 = vunpack.c.l.b16 %v5001
  %v5892 = vunpack.c.h.b16 %v5001
  %v5893 = vunpack.c.l.b16 %v5002
  %v5894 = vunpack.c.h.b16 %v5002
  %v5895 = vunpack.c.l.b16 %v5003
  %v5896 = vunpack.c.h.b16 %v5003
  %v5897 = vunpack.c.l.b16 %v5004
  %v5898 = vunpack.c.h.b16 %v5004
  %v5899 = vunpack.c.l.b16 %v5005
  %v5900 = vunpack.c.h.b16 %v5005
  %v5901 = vunpack.c.l.b16 %v5006
  %v5902 = vunpack.c.h.b16 %v5006
  %v5903 = vunpack.c.l.b16 %v5007
  %v5904 = vunpack.c.h.b16 %v5007
  %v5905 = vunpack.c.l.b16 %v5008
  %v5906 = vunpack.c.h.b16 %v5008
  %v5907 = vunpack.c.l.b16 %v5009
  %v5908 = vunpack.c.h.b16 %v5009
  %v5909 = vunpack.c.l.b16 %v5010
  %v5910 = vunpack.c.h.b16 %v5010
  %v5911 = vunpack.c.l.b16 %v5011
  %v5912 = vunpack.c.h.b16 %v5011
  %v5913 = vunpack.c.l.b16 %v5012
  %v5914 = vunpack.c.h.b16 %v5012
  %v5915 = vunpack.c.l.b16 %v5013
  %v5916 = vunpack.c.h.b16 %v5013
  %v5917 = vunpack.c.l.b16 %v5014
  %v5918 = vunpack.c.h.b16 %v5014
  %v5919 = vunpack.c.l.b16 %v5015
  %v5920 = vunpack.c.h.b16 %v5015
  %v5921 = vunpack.c.l.b16 %v5016
  %v5922 = vunpack.c.h.b16 %v5016
  %v5923 = vunpack.c.l.b16 %v5017
  %v5924 = vunpack.c.h.b16 %v5017
  %v5925 = vunpack.c.l.b16 %v5018
  %v5926 = vunpack.c.h.b16 %v5018
  %v5927 = vunpack.c.l.b16 %v5019
  %v5928 = vunpack.c.h.b16 %v5019
  %v5929 = vunpack.c.l.b16 %v5020
  %v5930 = vunpack.c.h.b16 %v5020
  %v5931 = vunpack.c.l.b16 %v5021
  %v5932 = vunpack.c.h.b16 %v5021
  %v5933 = vunpack.c.l.b16 %v5022
  %v5934 = vunpack.c.h.b16 %v5022
  %v5935 = vunpack.c.l.b16 %v5023
  %v5936 = vunpack.c.h.b16 %v5023
  %v5937 = vunpack.c.l.b16 %v5024
  %v5938 = vunpack.c.h.b16 %v5024
  %v5939 = vunpack.c.l.b16 %v5025
  %v5940 = vunpack.c.h.b16 %v5025
  %v5941 = vunpack.c.l.b16 %v5026
  %v5942 = vunpack.c.h.b16 %v5026
  %v5943 = vunpack.c.l.b16 %v5027
  %v5944 = vunpack.c.h.b16 %v5027
  %v5945 = vunpack.c.l.b16 %v5028
  %v5946 = vunpack.c.h.b16 %v5028
  %v5947 = vunpack.c.l.b16 %v5029
  %v5948 = vunpack.c.h.b16 %v5029
  %v5949 = vunpack.c.l.b16 %v5030
  %v5950 = vunpack.c.h.b16 %v5030
  %v5951 = vunpack.c.l.b16 %v5031
  %v5952 = vunpack.c.h.b16 %v5031
  %v5953 = vunpack.c.l.b16 %v5032
  %v5954 = vunpack.c.h.b16 %v5032
  %v5955 = vunpack.c.l.b16 %v5033
  %v5956 = vunpack.c.h.b16 %v5033
  %v5957 = vunpack.c.l.b16 %v5034
  %v5958 = vunpack.c.h.b16 %v5034
  %v5959 = vunpack.c.l.b16 %v5035
  %v5960 = vunpack.c.h.b16 %v5035
  %v5961 = vunpack.c.l.b16 %v5036
  %v5962 = vunpack.c.h.b16 %v5036
  %v5963 = vunpack.c.l.b16 %v5037
  %v5964 = vunpack.c.h.b16 %v5037
  %v5965 = vunpack.c.l.b16 %v5038
  %v5966 = vunpack.c.h.b16 %v5038
  %v5967 = vunpack.c.l.b16 %v5039
  %v5968 = vunpack.c.h.b16 %v5039
  %v5969 = vunpack.c.l.b16 %v5040
  %v5970 = vunpack.c.h.b16 %v5040
  %v5971 = vunpack.c.l.b16 %v5041
  %v5972 = vunpack.c.h.b16 %v5041
  %v5973 = vunpack.c.l.b16 %v5042
  %v5974 = vunpack.c.h.b16 %v5042
  %v5975 = vunpack.c.l.b16 %v5043
  %v5976 = vunpack.c.h.b16 %v5043
  %v5977 = vunpack.c.l.b16 %v5044
  %v5978 = vunpack.c.h.b16 %v5044
  %v5979 = vunpack.c.l.b16 %v5045
  %v5980 = vunpack.c.h.b16 %v5045
  %v5981 = vunpack.c.l.b16 %v5046
  %v5982 = vunpack.c.h.b16 %v5046
  %v5983 = vunpack.c.l.b16 %v5047
  %v5984 = vunpack.c.h.b16 %v5047
  %v5985 = vunpack.c.l.b16 %v5048
  %v5986 = vunpack.c.h.b16 %v5048
  %v5987 = vunpack.c.l.b16 %v5049
  %v5988 = vunpack.c.h.b16 %v5049
  %v5989 = vunpack.c.l.b16 %v5050
  %v5990 = vunpack.c.h.b16 %v5050
  %v5991 = vunpack.c.l.b16 %v5051
  %v5992 = vunpack.c.h.b16 %v5051
  %v5993 = vunpack.c.l.b16 %v5052
  %v5994 = vunpack.c.h.b16 %v5052
  %v5995 = vunpack.c.l.b16 %v5053
  %v5996 = vunpack.c.h.b16 %v5053
  %v5997 = vunpack.c.l.b16 %v5054
  %v5998 = vunpack.c.h.b16 %v5054
  %v5999 = vunpack.c.l.b16 %v5055
  %v6000 = vunpack.c.h.b16 %v5055
  %v6001 = vunpack.c.l.b16 %v5056
  %v6002 = vunpack.c.h.b16 %v5056
  %v6003 = vunpack.c.l.b16 %v5057
  %v6004 = vunpack.c.h.b16 %v5057
  %v6005 = vunpack.c.l.b16 %v5058
  %v6006 = vunpack.c.h.b16 %v5058
  %v6007 = vunpack.c.l.b16 %v5059
  %v6008 = vunpack.c.h.b16 %v5059
  %v6009 = vunpack.c.l.b16 %v5060
  %v6010 = vunpack.c.h.b16 %v5060
  %v6011 = vunpack.c.l.b16 %v5061
  %v6012 = vunpack.c.h.b16 %v5061
  %v6013 = vunpack.c.l.b16 %v5062
  %v6014 = vunpack.c.h.b16 %v5062
  %v6015 = vunpack.c.l.b16 %v5063
  %v6016 = vunpack.c.h.b16 %v5063
  %v6017 = vunpack.c.l.b16 %v5064
  %v6018 = vunpack.c.h.b16 %v5064
  %v6019 = vunpack.c.l.b16 %v5065
  %v6020 = vunpack.c.h.b16 %v5065
  %v6021 = vunpack.c.l.b16 %v5066
  %v6022 = vunpack.c.h.b16 %v5066
  %v6023 = vunpack.c.l.b16 %v5067
  %v6024 = vunpack.c.h.b16 %v5067
  %v6025 = vunpack.c.l.b16 %v5068
  %v6026 = vunpack.c.h.b16 %v5068
  %v6027 = vunpack.c.l.b16 %v5069
  %v6028 = vunpack.c.h.b16 %v5069
  %v6029 = vunpack.c.l.b16 %v5070
  %v6030 = vunpack.c.h.b16 %v5070
  %v6031 = vunpack.c.l.b16 %v5071
  %v6032 = vunpack.c.h.b16 %v5071
  %v6033 = vunpack.c.l.b16 %v5072
  %v6034 = vunpack.c.h.b16 %v5072
  %v6035 = vunpack.c.l.b16 %v5073
  %v6036 = vunpack.c.h.b16 %v5073
  %v6037 = vunpack.c.l.b16 %v5074
  %v6038 = vunpack.c.h.b16 %v5074
  %v6039 = vunpack.c.l.b16 %v5075
  %v6040 = vunpack.c.h.b16 %v5075
  %v6041 = vunpack.c.l.b16 %v5076
  %v6042 = vunpack.c.h.b16 %v5076
  %v6043 = vunpack.c.l.b16 %v5077
  %v6044 = vunpack.c.h.b16 %v5077
  %v6045 = vunpack.c.l.b16 %v5078
  %v6046 = vunpack.c.h.b16 %v5078
  %v6047 = vunpack.c.l.b16 %v5079
  %v6048 = vunpack.c.h.b16 %v5079
  %v6049 = vunpack.c.l.b16 %v5080
  %v6050 = vunpack.c.h.b16 %v5080
  %v6051 = vunpack.c.l.b16 %v5081
  %v6052 = vunpack.c.h.b16 %v5081
  %v6053 = vunpack.c.l.b16 %v5082
  %v6054 = vunpack.c.h.b16 %v5082
  %v6055 = vunpack.c.l.b16 %v5083
  %v6056 = vunpack.c.h.b16 %v5083
  %v6057 = vunpack.c.l.b16 %v5084
  %v6058 = vunpack.c.h.b16 %v5084
  %v6059 = vunpack.c.l.b16 %v5085
  %v6060 = vunpack.c.h.b16 %v5085
  %v6061 = vunpack.c.l.b16 %v5086
  %v6062 = vunpack.c.h.b16 %v5086
  %v6063 = vunpack.c.l.b16 %v5087
  %v6064 = vunpack.c.h.b16 %v5087
  %v6065 = vunpack.c.l.b16 %v5088
  %v6066 = vunpack.c.h.b16 %v5088
  %v6067 = vunpack.c.l.b16 %v5089
  %v6068 = vunpack.c.h.b16 %v5089
  %v6069 = vunpack.c.l.b16 %v5090
  %v6070 = vunpack.c.h.b16 %v5090
  %v6071 = vunpack.c.l.b16 %v5091
  %v6072 = vunpack.c.h.b16 %v5091
  %v6073 = vunpack.c.l.b16 %v5092
  %v6074 = vunpack.c.h.b16 %v5092
  %v6075 = vunpack.c.l.b16 %v5093
  %v6076 = vunpack.c.h.b16 %v5093
  %v6077 = vunpack.c.l.b16 %v5094
  %v6078 = vunpack.c.h.b16 %v5094
  %v6079 = vunpack.c.l.b16 %v5095
  %v6080 = vunpack.c.h.b16 %v5095
  %v6081 = vunpack.c.l.b16 %v5096
  %v6082 = vunpack.c.h.b16 %v5096
  %v6083 = vunpack.c.l.b16 %v5097
  %v6084 = vunpack.c.h.b16 %v5097
  %v6085 = vunpack.c.l.b16 %v5098
  %v6086 = vunpack.c.h.b16 %v5098
  %v6087 = vunpack.c.l.b16 %v5099
  %v6088 = vunpack.c.h.b16 %v5099
  %v6089 = vunpack.c.l.b16 %v5100
  %v6090 = vunpack.c.h.b16 %v5100
  %v6091 = vunpack.c.l.b16 %v5101
  %v6092 = vunpack.c.h.b16 %v5101
  %v6093 = vunpack.c.l.b16 %v5102
  %v6094 = vunpack.c.h.b16 %v5102
  %v6095 = vunpack.c.l.b16 %v5103
  %v6096 = vunpack.c.h.b16 %v5103
  %v6097 = vunpack.c.l.b16 %v5104
  %v6098 = vunpack.c.h.b16 %v5104
  %v6099 = vunpack.c.l.b16 %v5105
  %v6100 = vunpack.c.h.b16 %v5105
  %v6101 = vunpack.c.l.b16 %v5106
  %v6102 = vunpack.c.h.b16 %v5106
  %v6103 = vunpack.c.l.b16 %v5107
  %v6104 = vunpack.c.h.b16 %v5107
  %v6105 = vunpack.c.l.b16 %v5108
  %v6106 = vunpack.c.h.b16 %v5108
  %v6107 = vunpack.c.l.b16 %v5109
  %v6108 = vunpack.c.h.b16 %v5109
  %v6109 = vunpack.c.l.b16 %v5110
  %v6110 = vunpack.c.h.b16 %v5110
  %v6111 = vunpack.c.l.b16 %v5111
  %v6112 = vunpack.c.h.b16 %v5111
  %v6113 = vunpack.c.l.b16 %v5112
  %v6114 = vunpack.c.h.b16 %v5112
  %v6115 = vunpack.c.l.b16 %v5113
  %v6116 = vunpack.c.h.b16 %v5113
  %v6117 = vunpack.c.l.b16 %v5114
  %v6118 = vunpack.c.h.b16 %v5114
  %v6119 = vunpack.c.l.b16 %v5115
  %v6120 = vunpack.c.h.b16 %v5115
  %v6121 = vunpack.c.l.b16 %v5116
  %v6122 = vunpack.c.h.b16 %v5116
  %v6123 = vunpack.c.l.b16 %v5117
  %v6124 = vunpack.c.h.b16 %v5117
  %v6125 = vunpack.c.l.b16 %v5118
  %v6126 = vunpack.c.h.b16 %v5118
  %v6127 = vunpack.c.l.b16 %v5119
  %v6128 = vunpack.c.h.b16 %v5119
  %v6129 = vunpack.c.l.b16 %v5120
  %v6130 = vunpack.c.h.b16 %v5120
  %v6131 = vunpack.c.l.b16 %v5121
  %v6132 = vunpack.c.h.b16 %v5121
  %v6133 = vunpack.c.l.b16 %v5122
  %v6134 = vunpack.c.h.b16 %v5122
  %v6135 = vunpack.c.l.b16 %v5123
  %v6136 = vunpack.c.h.b16 %v5123
  %v6137 = vunpack.c.l.b16 %v5124
  %v6138 = vunpack.c.h.b16 %v5124
  %v6139 = vunpack.c.l.b16 %v5125
  %v6140 = vunpack.c.h.b16 %v5125
  %v6141 = vunpack.c.l.b16 %v5126
  %v6142 = vunpack.c.h.b16 %v5126
  %v6143 = vunpack.c.l.b16 %v5127
  %v6144 = vunpack.c.h.b16 %v5127
  %v6145 = vunpack.c.l.b16 %v5128
  %v6146 = vunpack.c.h.b16 %v5128
  %v6147 = vunpack.c.l.b16 %v5129
  %v6148 = vunpack.c.h.b16 %v5129
  %v6149 = vunpack.c.l.b16 %v5130
  %v6150 = vunpack.c.h.b16 %v5130
  %v6151 = vunpack.c.l.b16 %v5131
  %v6152 = vunpack.c.h.b16 %v5131
  %v6153 = vunpack.c.l.b16 %v5132
  %v6154 = vunpack.c.h.b16 %v5132
  %v6155 = vunpack.c.l.b16 %v5133
  %v6156 = vunpack.c.h.b16 %v5133
  %v6157 = vunpack.c.l.b16 %v5134
  %v6158 = vunpack.c.h.b16 %v5134
  %v6159 = vunpack.c.l.b16 %v5135
  %v6160 = vunpack.c.h.b16 %v5135
  %v6161 = vunpack.c.l.b16 %v5136
  %v6162 = vunpack.c.h.b16 %v5136
  %v6163 = vunpack.c.l.b16 %v5137
  %v6164 = vunpack.c.h.b16 %v5137
  %v6165 = vunpack.c.l.b16 %v5138
  %v6166 = vunpack.c.h.b16 %v5138
  %v6167 = vunpack.c.l.b16 %v5139
  %v6168 = vunpack.c.h.b16 %v5139
  %v6169 = vunpack.c.l.b16 %v5140
  %v6170 = vunpack.c.h.b16 %v5140
  %v6171 = vunpack.c.l.b16 %v5141
  %v6172 = vunpack.c.h.b16 %v5141
  %v6173 = vunpack.c.l.b16 %v5142
  %v6174 = vunpack.c.h.b16 %v5142
  %v6175 = vunpack.c.l.b16 %v5143
  %v6176 = vunpack.c.h.b16 %v5143
  %v6177 = vunpack.c.l.b16 %v5144
  %v6178 = vunpack.c.h.b16 %v5144
  %v6179 = vunpack.c.l.b16 %v5145
  %v6180 = vunpack.c.h.b16 %v5145
  %v6181 = vunpack.c.l.b16 %v5146
  %v6182 = vunpack.c.h.b16 %v5146
  %v6183 = vunpack.c.l.b16 %v5147
  %v6184 = vunpack.c.h.b16 %v5147
  %v6185 = vunpack.c.l.b16 %v5148
  %v6186 = vunpack.c.h.b16 %v5148
  %v6187 = vunpack.c.l.b16 %v5149
  %v6188 = vunpack.c.h.b16 %v5149
  %v6189 = vunpack.c.l.b16 %v5150
  %v6190 = vunpack.c.h.b16 %v5150
  %v6191 = vunpack.c.l.b16 %v5151
  %v6192 = vunpack.c.h.b16 %v5151
  %v6193 = vunpack.c.l.b16 %v5152
  %v6194 = vunpack.c.h.b16 %v5152
  %v6195 = vunpack.c.l.b16 %v5153
  %v6196 = vunpack.c.h.b16 %v5153
  %v6197 = vunpack.c.l.b16 %v5154
  %v6198 = vunpack.c.h.b16 %v5154
  %v6199 = vunpack.c.l.b16 %v5155
  %v6200 = vunpack.c.h.b16 %v5155
  %v6201 = vunpack.c.l.b16 %v5156
  %v6202 = vunpack.c.h.b16 %v5156
  %v6203 = vunpack.c.l.b16 %v5157
  %v6204 = vunpack.c.h.b16 %v5157
  %v6205 = vunpack.c.l.b16 %v5158
  %v6206 = vunpack.c.h.b16 %v5158
  %v6207 = vunpack.c.l.b16 %v5159
  %v6208 = vunpack.c.h.b16 %v5159
  %v6209 = vunpack.c.l.b16 %v5160
  %v6210 = vunpack.c.h.b16 %v5160
  %v6211 = vunpack.c.l.b16 %v5161
  %v6212 = vunpack.c.h.b16 %v5161
  %v6213 = vunpack.c.l.b16 %v5162
  %v6214 = vunpack.c.h.b16 %v5162
  %v6215 = vunpack.c.l.b16 %v5163
  %v6216 = vunpack.c.h.b16 %v5163
  %v6217 = vunpack.c.l.b16 %v5164
  %v6218 = vunpack.c.h.b16 %v5164
  %v6219 = vunpack.c.l.b16 %v5165
  %v6220 = vunpack.c.h.b16 %v5165
  %v6221 = vunpack.c.l.b16 %v5166
  %v6222 = vunpack.c.h.b16 %v5166
  %v6223 = vunpack.c.l.b16 %v5167
  %v6224 = vunpack.c.h.b16 %v5167
  %v6225 = vunpack.c.l.b16 %v5168
  %v6226 = vunpack.c.h.b16 %v5168
  %v6227 = vunpack.c.l.b16 %v5169
  %v6228 = vunpack.c.h.b16 %v5169
  %v6229 = vunpack.c.l.b16 %v5170
  %v6230 = vunpack.c.h.b16 %v5170
  %v6231 = vunpack.c.l.b16 %v5171
  %v6232 = vunpack.c.h.b16 %v5171
  %v6233 = vunpack.c.l.b16 %v5172
  %v6234 = vunpack.c.h.b16 %v5172
  %v6235 = vunpack.c.l.b16 %v5173
  %v6236 = vunpack.c.h.b16 %v5173
  %v6237 = vunpack.c.l.b16 %v5174
  %v6238 = vunpack.c.h.b16 %v5174
  %v6239 = vunpack.c.l.b16 %v5175
  %v6240 = vunpack.c.h.b16 %v5175
  %v6241 = vunpack.c.l.b16 %v5176
  %v6242 = vunpack.c.h.b16 %v5176
  %v6243 = vunpack.c.l.b16 %v5177
  %v6244 = vunpack.c.h.b16 %v5177
  %v6245 = vunpack.c.l.b16 %v5178
  %v6246 = vunpack.c.h.b16 %v5178
  %v6247 = vunpack.c.l.b16 %v5179
  %v6248 = vunpack.c.h.b16 %v5179
  %v6249 = vpack.c.b16 %v5739, %v5737
  %v6250 = vpack.c.b16 %v5740, %v5738
  %v6251 = vpack.c.b16 %v5743, %v5741
  %v6252 = vpack.c.b16 %v5744, %v5742
  %v6253 = vpack.c.b16 %v5747, %v5745
  %v6254 = vpack.c.b16 %v5748, %v5746
  %v6255 = vpack.c.b16 %v5751, %v5749
  %v6256 = vpack.c.b16 %v5752, %v5750
  %v6257 = vpack.c.b16 %v5755, %v5753
  %v6258 = vpack.c.b16 %v5756, %v5754
  %v6259 = vpack.c.b16 %v5759, %v5757
  %v6260 = vpack.c.b16 %v5760, %v5758
  %v6261 = vpack.c.b16 %v5763, %v5761
  %v6262 = vpack.c.b16 %v5764, %v5762
  %v6263 = vpack.c.b16 %v5767, %v5765
  %v6264 = vpack.c.b16 %v5768, %v5766
  %v6265 = vpack.c.b16 %v5771, %v5769
  %v6266 = vpack.c.b16 %v5772, %v5770
  %v6267 = vpack.c.b16 %v5775, %v5773
  %v6268 = vpack.c.b16 %v5776, %v5774
  %v6269 = vpack.c.b16 %v5779, %v5777
  %v6270 = vpack.c.b16 %v5780, %v5778
  %v6271 = vpack.c.b16 %v5783, %v5781
  %v6272 = vpack.c.b16 %v5784, %v5782
  %v6273 = vpack.c.b16 %v5787, %v5785
  %v6274 = vpack.c.b16 %v5788, %v5786
  %v6275 = vpack.c.b16 %v5791, %v5789
  %v6276 = vpack.c.b16 %v5792, %v5790
  %v6277 = vpack.c.b16 %v5795, %v5793
  %v6278 = vpack.c.b16 %v5796, %v5794
  %v6279 = vpack.c.b16 %v5799, %v5797
  %v6280 = vpack.c.b16 %v5800, %v5798
  %v6281 = vpack.c.b16 %v5803, %v5801
  %v6282 = vpack.c.b16 %v5804, %v5802
  %v6283 = vpack.c.b16 %v5807, %v5805
  %v6284 = vpack.c.b16 %v5808, %v5806
  %v6285 = vpack.c.b16 %v5811, %v5809
  %v6286 = vpack.c.b16 %v5812, %v5810
  %v6287 = vpack.c.b16 %v5815, %v5813
  %v6288 = vpack.c.b16 %v5816, %v5814
  %v6289 = vpack.c.b16 %v5819, %v5817
  %v6290 = vpack.c.b16 %v5820, %v5818
  %v6291 = vpack.c.b16 %v5823, %v5821
  %v6292 = vpack.c.b16 %v5824, %v5822
  %v6293 = vpack.c.b16 %v5827, %v5825
  %v6294 = vpack.c.b16 %v5828, %v5826
  %v6295 = vpack.c.b16 %v5831, %v5829
  %v6296 = vpack.c.b16 %v5832, %v5830
  %v6297 = vpack.c.b16 %v5835, %v5833
  %v6298 = vpack.c.b16 %v5836, %v5834
  %v6299 = vpack.c.b16 %v5839, %v5837
  %v6300 = vpack.c.b16 %v5840, %v5838
  %v6301 = vpack.c.b16 %v5843, %v5841
  %v6302 = vpack.c.b16 %v5844, %v5842
  %v6303 = vpack.c.b16 %v5847, %v5845
  %v6304 = vpack.c.b16 %v5848, %v5846
  %v6305 = vpack.c.b16 %v5851, %v5849
  %v6306 = vpack.c.b16 %v5852, %v5850
  %v6307 = vpack.c.b16 %v5855, %v5853
  %v6308 = vpack.c.b16 %v5856, %v5854
  %v6309 = vpack.c.b16 %v5859, %v5857
  %v6310 = vpack.c.b16 %v5860, %v5858
  %v6311 = vpack.c.b16 %v5863, %v5861
  %v6312 = vpack.c.b16 %v5864, %v5862
  %v6313 = vpack.c.b16 %v5867, %v5865
  %v6314 = vpack.c.b16 %v5868, %v5866
  %v6315 = vpack.c.b16 %v5871, %v5869
  %v6316 = vpack.c.b16 %v5872, %v5870
  %v6317 = vpack.c.b16 %v5875, %v5873
  %v6318 = vpack.c.b16 %v5876, %v5874
  %v6319 = vpack.c.b16 %v5879, %v5877
  %v6320 = vpack.c.b16 %v5880, %v5878
  %v6321 = vpack.c.b16 %v5883, %v5881
  %v6322 = vpack.c.b16 %v5884, %v5882
  %v6323 = vpack.c.b16 %v5887, %v5885
  %v6324 = vpack.c.b16 %v5888, %v5886
  %v6325 = vpack.c.b16 %v5891, %v5889
  %v6326 = vpack.c.b16 %v5892, %v5890
  %v6327 = vpack.c.b16 %v5895, %v5893
  %v6328 = vpack.c.b16 %v5896, %v5894
  %v6329 = vpack.c.b16 %v5899, %v5897
  %v6330 = vpack.c.b16 %v5900, %v5898
  %v6331 = vpack.c.b16 %v5903, %v5901
  %v6332 = vpack.c.b16 %v5904, %v5902
  %v6333 = vpack.c.b16 %v5907, %v5905
  %v6334 = vpack.c.b16 %v5908, %v5906
  %v6335 = vpack.c.b16 %v5911, %v5909
  %v6336 = vpack.c.b16 %v5912, %v5910
  %v6337 = vpack.c.b16 %v5915, %v5913
  %v6338 = vpack.c.b16 %v5916, %v5914
  %v6339 = vpack.c.b16 %v5919, %v5917
  %v6340 = vpack.c.b16 %v5920, %v5918
  %v6341 = vpack.c.b16 %v5923, %v5921
  %v6342 = vpack.c.b16 %v5924, %v5922
  %v6343 = vpack.c.b16 %v5927, %v5925
  %v6344 = vpack.c.b16 %v5928, %v5926
  %v6345 = vpack.c.b16 %v5931, %v5929
  %v6346 = vpack.c.b16 %v5932, %v5930
  %v6347 = vpack.c.b16 %v5935, %v5933
  %v6348 = vpack.c.b16 %v5936, %v5934
  %v6349 = vpack.c.b16 %v5939, %v5937
  %v6350 = vpack.c.b16 %v5940, %v5938
  %v6351 = vpack.c.b16 %v5943, %v5941
  %v6352 = vpack.c.b16 %v5944, %v5942
  %v6353 = vpack.c.b16 %v5947, %v5945
  %v6354 = vpack.c.b16 %v5948, %v5946
  %v6355 = vpack.c.b16 %v5951, %v5949
  %v6356 = vpack.c.b16 %v5952, %v5950
  %v6357 = vpack.c.b16 %v5955, %v5953
  %v6358 = vpack.c.b16 %v5956, %v5954
  %v6359 = vpack.c.b16 %v5959, %v5957
  %v6360 = vpack.c.b16 %v5960, %v5958
  %v6361 = vpack.c.b16 %v5963, %v5961
  %v6362 = vpack.c.b16 %v5964, %v5962
  %v6363 = vpack.c.b16 %v5967, %v5965
  %v6364 = vpack.c.b16 %v5968, %v5966
  %v6365 = vpack.c.b16 %v5971, %v5969
  %v6366 = vpack.c.b16 %v5972, %v5970
  %v6367 = vpack.c.b16 %v5975, %v5973
  %v6368 = vpack.c.b16 %v5976, %v5974
  %v6369 = vpack.c.b16 %v5979, %v5977
  %v6370 = vpack.c.b16 %v5980, %v5978
  %v6371 = vpack.c.b16 %v5983, %v5981
  %v6372 = vpack.c.b16 %v5984, %v5982
  %v6373 = vpack.c.b16 %v5987, %v5985
  %v6374 = vpack.c.b16 %v5988, %v5986
  %v6375 = vpack.c.b16 %v5991, %v5989
  %v6376 = vpack.c.b16 %v5992, %v5990
  %v6377 = vpack.c.b16 %v5995, %v5993
  %v6378 = vpack.c.b16 %v5996, %v5994
  %v6379 = vpack.c.b16 %v5999, %v5997
  %v6380 = vpack.c.b16 %v6000, %v5998
  %v6381 = vpack.c.b16 %v6003, %v6001
  %v6382 = vpack.c.b16 %v6004, %v6002
  %v6383 = vpack.c.b16 %v6007, %v6005
  %v6384 = vpack.c.b16 %v6008, %v6006
  %v6385 = vpack.c.b16 %v6011, %v6009
  %v6386 = vpack.c.b16 %v6012, %v6010
  %v6387 = vpack.c.b16 %v6015, %v6013
  %v6388 = vpack.c.b16 %v6016, %v6014
  %v6389 = vpack.c.b16 %v6019, %v6017
  %v6390 = vpack.c.b16 %v6020, %v6018
  %v6391 = vpack.c.b16 %v6023, %v6021
  %v6392 = vpack.c.b16 %v6024, %v6022
  %v6393 = vpack.c.b16 %v6027, %v6025
  %v6394 = vpack.c.b16 %v6028, %v6026
  %v6395 = vpack.c.b16 %v6031, %v6029
  %v6396 = vpack.c.b16 %v6032, %v6030
  %v6397 = vpack.c.b16 %v6035, %v6033
  %v6398 = vpack.c.b16 %v6036, %v6034
  %v6399 = vpack.c.b16 %v6039, %v6037
  %v6400 = vpack.c.b16 %v6040, %v6038
  %v6401 = vpack.c.b16 %v6043, %v6041
  %v6402 = vpack.c.b16 %v6044, %v6042
  %v6403 = vpack.c.b16 %v6047, %v6045
  %v6404 = vpack.c.b16 %v6048, %v6046
  %v6405 = vpack.c.b16 %v6051, %v6049
  %v6406 = vpack.c.b16 %v6052, %v6050
  %v6407 = vpack.c.b16 %v6055, %v6053
  %v6408 = vpack.c.b16 %v6056, %v6054
  %v6409 = vpack.c.b16 %v6059, %v6057
  %v6410 = vpack.c.b16 %v6060, %v6058
  %v6411 = vpack.c.b16 %v6063, %v6061
  %v6412 = vpack.c.b16 %v6064, %v6062
  %v6413 = vpack.c.b16 %v6067, %v6065
  %v6414 = vpack.c.b16 %v6068, %v6066
  %v6415 = vpack.c.b16 %v6071, %v6069
  %v6416 = vpack.c.b16 %v6072, %v6070
  %v6417 = vpack.c.b16 %v6075, %v6073
  %v6418 = vpack.c.b16 %v6076, %v6074
  %v6419 = vpack.c.b16 %v6079, %v6077
  %v6420 = vpack.c.b16 %v6080, %v6078
  %v6421 = vpack.c.b16 %v6083, %v6081
  %v6422 = vpack.c.b16 %v6084, %v6082
  %v6423 = vpack.c.b16 %v6087, %v6085
  %v6424 = vpack.c.b16 %v6088, %v6086
  %v6425 = vpack.c.b16 %v6091, %v6089
  %v6426 = vpack.c.b16 %v6092, %v6090
  %v6427 = vpack.c.b16 %v6095, %v6093
  %v6428 = vpack.c.b16 %v6096, %v6094
  %v6429 = vpack.c.b16 %v6099, %v6097
  %v6430 = vpack.c.b16 %v6100, %v6098
  %v6431 = vpack.c.b16 %v6103, %v6101
  %v6432 = vpack.c.b16 %v6104, %v6102
  %v6433 = vpack.c.b16 %v6107, %v6105
  %v6434 = vpack.c.b16 %v6108, %v6106
  %v6435 = vpack.c.b16 %v6111, %v6109
  %v6436 = vpack.c.b16 %v6112, %v6110
  %v6437 = vpack.c.b16 %v6115, %v6113
  %v6438 = vpack.c.b16 %v6116, %v6114
  %v6439 = vpack.c.b16 %v6119, %v6117
  %v6440 = vpack.c.b16 %v6120, %v6118
  %v6441 = vpack.c.b16 %v6123, %v6121
  %v6442 = vpack.c.b16 %v6124, %v6122
  %v6443 = vpack.c.b16 %v6127, %v6125
  %v6444 = vpack.c.b16 %v6128, %v6126
  %v6445 = vpack.c.b16 %v6131, %v6129
  %v6446 = vpack.c.b16 %v6132, %v6130
  %v6447 = vpack.c.b16 %v6135, %v6133
  %v6448 = vpack.c.b16 %v6136, %v6134
  %v6449 = vpack.c.b16 %v6139, %v6137
  %v6450 = vpack.c.b16 %v6140, %v6138
  %v6451 = vpack.c.b16 %v6143, %v6141
  %v6452 = vpack.c.b16 %v6144, %v6142
  %v6453 = vpack.c.b16 %v6147, %v6145
  %v6454 = vpack.c.b16 %v6148, %v6146
  %v6455 = vpack.c.b16 %v6151, %v6149
  %v6456 = vpack.c.b16 %v6152, %v6150
  %v6457 = vpack.c.b16 %v6155, %v6153
  %v6458 = vpack.c.b16 %v6156, %v6154
  %v6459 = vpack.c.b16 %v6159, %v6157
  %v6460 = vpack.c.b16 %v6160, %v6158
  %v6461 = vpack.c.b16 %v6163, %v6161
  %v6462 = vpack.c.b16 %v6164, %v6162
  %v6463 = vpack.c.b16 %v6167, %v6165
  %v6464 = vpack.c.b16 %v6168, %v6166
  %v6465 = vpack.c.b16 %v6171, %v6169
  %v6466 = vpack.c.b16 %v6172, %v6170
  %v6467 = vpack.c.b16 %v6175, %v6173
  %v6468 = vpack.c.b16 %v6176, %v6174
  %v6469 = vpack.c.b16 %v6179, %v6177
  %v6470 = vpack.c.b16 %v6180, %v6178
  %v6471 = vpack.c.b16 %v6183, %v6181
  %v6472 = vpack.c.b16 %v6184, %v6182
  %v6473 = vpack.c.b16 %v6187, %v6185
  %v6474 = vpack.c.b16 %v6188, %v6186
  %v6475 = vpack.c.b16 %v6191, %v6189
  %v6476 = vpack.c.b16 %v6192, %v6190
  %v6477 = vpack.c.b16 %v6195, %v6193
  %v6478 = vpack.c.b16 %v6196, %v6194
  %v6479 = vpack.c.b16 %v6199, %v6197
  %v6480 = vpack.c.b16 %v6200, %v6198
  %v6481 = vpack.c.b16 %v6203, %v6201
  %v6482 = vpack.c.b16 %v6204, %v6202
  %v6483 = vpack.c.b16 %v6207, %v6205
  %v6484 = vpack.c.b16 %v6208, %v6206
  %v6485 = vpack.c.b16 %v6211, %v6209
  %v6486 = vpack.c.b16 %v6212, %v6210
  %v6487 = vpack.c.b16 %v6215, %v6213
  %v6488 = vpack.c.b16 %v6216, %v6214
  %v6489 = vpack.c.b16 %v6219, %v6217
  %v6490 = vpack.c.b16 %v6220, %v6218
  %v6491 = vpack.c.b16 %v6223, %v6221
  %v6492 = vpack.c.b16 %v6224, %v6222
  %v6493 = vpack.c.b16 %v6227, %v6225
  %v6494 = vpack.c.b16 %v6228, %v6226
  %v6495 = vpack.c.b16 %v6231, %v6229
  %v6496 = vpack.c.b16 %v6232, %v6230
  %v6497 = vpack.c.b16 %v6235, %v6233
  %v6498 = vpack.c.b16 %v6236, %v6234
  %v6499 = vpack.c.b16 %v6239, %v6237
  %v6500 = vpack.c.b16 %v6240, %v6238
  %v6501 = vpack.c.b16 %v6243, %v6241
  %v6502 = vpack.c.b16 %v6244, %v6242
  %v6503 = vpack.c.b16 %v6247, %v6245
  %v6504 = vpack.c.b16 %v6248, %v6246
  %6761 = vmatpush.bf16.msra.mxu0 %v6263
  %6762 = vmatpush.bf16.msra.mxu0 %v6261
  %6763 = vmatpush.bf16.msra.mxu0 %v6259
  %6764 = vmatpush.bf16.msra.mxu0 %v6257
  %6765 = vmatpush.bf16.msra.mxu0 %v6255
  %6766 = vmatpush.bf16.msra.mxu0 %v6253
  %6767 = vmatpush.bf16.msra.mxu0 %v6251
  %6768 = vmatpush.bf16.msra.mxu0 %v6249
  %6769 = vmatmul.bf16.gmra.mxu0 %v5465
  %v6770 = vpop.f32.mrf.mxu0
  %v6771 = vadd.f32 0.0, %v6770
  %v6772 = vpop.f32.mrf.mxu0
  %v6773 = vadd.f32 0.0, %v6772
  %6774 = vdwg.mxu0
  %6775 = vmatpush.bf16.msra.mxu0 %v6279
  %6776 = vmatpush.bf16.msra.mxu0 %v6277
  %6777 = vmatpush.bf16.msra.mxu0 %v6275
  %6778 = vmatpush.bf16.msra.mxu0 %v6273
  %6779 = vmatpush.bf16.msra.mxu0 %v6271
  %6780 = vmatpush.bf16.msra.mxu0 %v6269
  %6781 = vmatpush.bf16.msra.mxu0 %v6267
  %6782 = vmatpush.bf16.msra.mxu0 %v6265
  %6783 = vmatmul.bf16.gmra.mxu0 %v5466
  %v6784 = vpop.f32.mrf.mxu0
  %v6785 = vadd.f32 %v6771, %v6784
  %v6786 = vpop.f32.mrf.mxu0
  %v6787 = vadd.f32 %v6773, %v6786
  %6788 = vdwg.mxu0
  %6789 = vmatpush.bf16.msra.mxu0 %v6295
  %6790 = vmatpush.bf16.msra.mxu0 %v6293
  %6791 = vmatpush.bf16.msra.mxu0 %v6291
  %6792 = vmatpush.bf16.msra.mxu0 %v6289
  %6793 = vmatpush.bf16.msra.mxu0 %v6287
  %6794 = vmatpush.bf16.msra.mxu0 %v6285
  %6795 = vmatpush.bf16.msra.mxu0 %v6283
  %6796 = vmatpush.bf16.msra.mxu0 %v6281
  %6797 = vmatmul.bf16.gmra.mxu0 %v5467
  %v6798 = vpop.f32.mrf.mxu0
  %v6799 = vadd.f32 %v6785, %v6798
  %v6800 = vpop.f32.mrf.mxu0
  %v6801 = vadd.f32 %v6787, %v6800
  %6802 = vdwg.mxu0
  %6803 = vmatpush.bf16.msra.mxu0 %v6311
  %6804 = vmatpush.bf16.msra.mxu0 %v6309
  %6805 = vmatpush.bf16.msra.mxu0 %v6307
  %6806 = vmatpush.bf16.msra.mxu0 %v6305
  %6807 = vmatpush.bf16.msra.mxu0 %v6303
  %6808 = vmatpush.bf16.msra.mxu0 %v6301
  %6809 = vmatpush.bf16.msra.mxu0 %v6299
  %6810 = vmatpush.bf16.msra.mxu0 %v6297
  %6811 = vmatmul.bf16.gmra.mxu0 %v5468
  %v6812 = vpop.f32.mrf.mxu0
  %v6813 = vadd.f32 %v6799, %v6812
  %v6814 = vpop.f32.mrf.mxu0
  %v6815 = vadd.f32 %v6801, %v6814
  %6816 = vdwg.mxu0
  %6817 = vmatpush.bf16.msra.mxu0 %v6327
  %6818 = vmatpush.bf16.msra.mxu0 %v6325
  %6819 = vmatpush.bf16.msra.mxu0 %v6323
  %6820 = vmatpush.bf16.msra.mxu0 %v6321
  %6821 = vmatpush.bf16.msra.mxu0 %v6319
  %6822 = vmatpush.bf16.msra.mxu0 %v6317
  %6823 = vmatpush.bf16.msra.mxu0 %v6315
  %6824 = vmatpush.bf16.msra.mxu0 %v6313
  %6825 = vmatmul.bf16.gmra.mxu0 %v5469
  %v6826 = vpop.f32.mrf.mxu0
  %v6827 = vadd.f32 %v6813, %v6826
  %v6828 = vpop.f32.mrf.mxu0
  %v6829 = vadd.f32 %v6815, %v6828
  %6830 = vdwg.mxu0
  %6831 = vmatpush.bf16.msra.mxu0 %v6343
  %6832 = vmatpush.bf16.msra.mxu0 %v6341
  %6833 = vmatpush.bf16.msra.mxu0 %v6339
  %6834 = vmatpush.bf16.msra.mxu0 %v6337
  %6835 = vmatpush.bf16.msra.mxu0 %v6335
  %6836 = vmatpush.bf16.msra.mxu0 %v6333
  %6837 = vmatpush.bf16.msra.mxu0 %v6331
  %6838 = vmatpush.bf16.msra.mxu0 %v6329
  %6839 = vmatmul.bf16.gmra.mxu0 %v5470
  %v6840 = vpop.f32.mrf.mxu0
  %v6841 = vadd.f32 %v6827, %v6840
  %v6842 = vpop.f32.mrf.mxu0
  %v6843 = vadd.f32 %v6829, %v6842
  %6844 = vdwg.mxu0
  %6845 = vmatpush.bf16.msra.mxu0 %v6359
  %6846 = vmatpush.bf16.msra.mxu0 %v6357
  %6847 = vmatpush.bf16.msra.mxu0 %v6355
  %6848 = vmatpush.bf16.msra.mxu0 %v6353
  %6849 = vmatpush.bf16.msra.mxu0 %v6351
  %6850 = vmatpush.bf16.msra.mxu0 %v6349
  %6851 = vmatpush.bf16.msra.mxu0 %v6347
  %6852 = vmatpush.bf16.msra.mxu0 %v6345
  %6853 = vmatmul.bf16.gmra.mxu0 %v5471
  %v6854 = vpop.f32.mrf.mxu0
  %v6855 = vadd.f32 %v6841, %v6854
  %v6856 = vpop.f32.mrf.mxu0
  %v6857 = vadd.f32 %v6843, %v6856
  %6858 = vdwg.mxu0
  %6859 = vmatpush.bf16.msra.mxu0 %v6375
  %6860 = vmatpush.bf16.msra.mxu0 %v6373
  %6861 = vmatpush.bf16.msra.mxu0 %v6371
  %6862 = vmatpush.bf16.msra.mxu0 %v6369
  %6863 = vmatpush.bf16.msra.mxu0 %v6367
  %6864 = vmatpush.bf16.msra.mxu0 %v6365
  %6865 = vmatpush.bf16.msra.mxu0 %v6363
  %6866 = vmatpush.bf16.msra.mxu0 %v6361
  %6867 = vmatmul.bf16.gmra.mxu0 %v5472
  %v6868 = vpop.f32.mrf.mxu0
  %v6869 = vadd.f32 %v6855, %v6868
  %v6870 = vpop.f32.mrf.mxu0
  %v6871 = vadd.f32 %v6857, %v6870
  %6872 = vdwg.mxu0
  %6873 = vmatpush.bf16.msra.mxu0 %v6391
  %6874 = vmatpush.bf16.msra.mxu0 %v6389
  %6875 = vmatpush.bf16.msra.mxu0 %v6387
  %6876 = vmatpush.bf16.msra.mxu0 %v6385
  %6877 = vmatpush.bf16.msra.mxu0 %v6383
  %6878 = vmatpush.bf16.msra.mxu0 %v6381
  %6879 = vmatpush.bf16.msra.mxu0 %v6379
  %6880 = vmatpush.bf16.msra.mxu0 %v6377
  %6881 = vmatmul.bf16.gmra.mxu0 %v5473
  %v6882 = vpop.f32.mrf.mxu0
  %v6883 = vadd.f32 %v6869, %v6882
  %v6884 = vpop.f32.mrf.mxu0
  %v6885 = vadd.f32 %v6871, %v6884
  %6886 = vdwg.mxu0
  %6887 = vmatpush.bf16.msra.mxu0 %v6407
  %6888 = vmatpush.bf16.msra.mxu0 %v6405
  %6889 = vmatpush.bf16.msra.mxu0 %v6403
  %6890 = vmatpush.bf16.msra.mxu0 %v6401
  %6891 = vmatpush.bf16.msra.mxu0 %v6399
  %6892 = vmatpush.bf16.msra.mxu0 %v6397
  %6893 = vmatpush.bf16.msra.mxu0 %v6395
  %6894 = vmatpush.bf16.msra.mxu0 %v6393
  %6895 = vmatmul.bf16.gmra.mxu0 %v5474
  %v6896 = vpop.f32.mrf.mxu0
  %v6897 = vadd.f32 %v6883, %v6896
  %v6898 = vpop.f32.mrf.mxu0
  %v6899 = vadd.f32 %v6885, %v6898
  %6900 = vdwg.mxu0
  %6901 = vmatpush.bf16.msra.mxu0 %v6423
  %6902 = vmatpush.bf16.msra.mxu0 %v6421
  %6903 = vmatpush.bf16.msra.mxu0 %v6419
  %6904 = vmatpush.bf16.msra.mxu0 %v6417
  %6905 = vmatpush.bf16.msra.mxu0 %v6415
  %6906 = vmatpush.bf16.msra.mxu0 %v6413
  %6907 = vmatpush.bf16.msra.mxu0 %v6411
  %6908 = vmatpush.bf16.msra.mxu0 %v6409
  %6909 = vmatmul.bf16.gmra.mxu0 %v5475
  %v6910 = vpop.f32.mrf.mxu0
  %v6911 = vadd.f32 %v6897, %v6910
  %v6912 = vpop.f32.mrf.mxu0
  %v6913 = vadd.f32 %v6899, %v6912
  %6914 = vdwg.mxu0
  %6915 = vmatpush.bf16.msra.mxu0 %v6439
  %6916 = vmatpush.bf16.msra.mxu0 %v6437
  %6917 = vmatpush.bf16.msra.mxu0 %v6435
  %6918 = vmatpush.bf16.msra.mxu0 %v6433
  %6919 = vmatpush.bf16.msra.mxu0 %v6431
  %6920 = vmatpush.bf16.msra.mxu0 %v6429
  %6921 = vmatpush.bf16.msra.mxu0 %v6427
  %6922 = vmatpush.bf16.msra.mxu0 %v6425
  %6923 = vmatmul.bf16.gmra.mxu0 %v5476
  %v6924 = vpop.f32.mrf.mxu0
  %v6925 = vadd.f32 %v6911, %v6924
  %v6926 = vpop.f32.mrf.mxu0
  %v6927 = vadd.f32 %v6913, %v6926
  %6928 = vdwg.mxu0
  %6929 = vmatpush.bf16.msra.mxu0 %v6455
  %6930 = vmatpush.bf16.msra.mxu0 %v6453
  %6931 = vmatpush.bf16.msra.mxu0 %v6451
  %6932 = vmatpush.bf16.msra.mxu0 %v6449
  %6933 = vmatpush.bf16.msra.mxu0 %v6447
  %6934 = vmatpush.bf16.msra.mxu0 %v6445
  %6935 = vmatpush.bf16.msra.mxu0 %v6443
  %6936 = vmatpush.bf16.msra.mxu0 %v6441
  %6937 = vmatmul.bf16.gmra.mxu0 %v5477
  %v6938 = vpop.f32.mrf.mxu0
  %v6939 = vadd.f32 %v6925, %v6938
  %v6940 = vpop.f32.mrf.mxu0
  %v6941 = vadd.f32 %v6927, %v6940
  %6942 = vdwg.mxu0
  %6943 = vmatpush.bf16.msra.mxu0 %v6471
  %6944 = vmatpush.bf16.msra.mxu0 %v6469
  %6945 = vmatpush.bf16.msra.mxu0 %v6467
  %6946 = vmatpush.bf16.msra.mxu0 %v6465
  %6947 = vmatpush.bf16.msra.mxu0 %v6463
  %6948 = vmatpush.bf16.msra.mxu0 %v6461
  %6949 = vmatpush.bf16.msra.mxu0 %v6459
  %6950 = vmatpush.bf16.msra.mxu0 %v6457
  %6951 = vmatmul.bf16.gmra.mxu0 %v5478
  %v6952 = vpop.f32.mrf.mxu0
  %v6953 = vadd.f32 %v6939, %v6952
  %v6954 = vpop.f32.mrf.mxu0
  %v6955 = vadd.f32 %v6941, %v6954
  %6956 = vdwg.mxu0
  %6957 = vmatpush.bf16.msra.mxu0 %v6487
  %6958 = vmatpush.bf16.msra.mxu0 %v6485
  %6959 = vmatpush.bf16.msra.mxu0 %v6483
  %6960 = vmatpush.bf16.msra.mxu0 %v6481
  %6961 = vmatpush.bf16.msra.mxu0 %v6479
  %6962 = vmatpush.bf16.msra.mxu0 %v6477
  %6963 = vmatpush.bf16.msra.mxu0 %v6475
  %6964 = vmatpush.bf16.msra.mxu0 %v6473
  %6965 = vmatmul.bf16.gmra.mxu0 %v5479
  %v6966 = vpop.f32.mrf.mxu0
  %v6967 = vadd.f32 %v6953, %v6966
  %v6968 = vpop.f32.mrf.mxu0
  %v6969 = vadd.f32 %v6955, %v6968
  %6970 = vdwg.mxu0
  %6971 = vmatpush.bf16.msra.mxu0 %v6503
  %6972 = vmatpush.bf16.msra.mxu0 %v6501
  %6973 = vmatpush.bf16.msra.mxu0 %v6499
  %6974 = vmatpush.bf16.msra.mxu0 %v6497
  %6975 = vmatpush.bf16.msra.mxu0 %v6495
  %6976 = vmatpush.bf16.msra.mxu0 %v6493
  %6977 = vmatpush.bf16.msra.mxu0 %v6491
  %6978 = vmatpush.bf16.msra.mxu0 %v6489
  %6979 = vmatmul.bf16.gmra.mxu0 %v5480
  %v6980 = vpop.f32.mrf.mxu0
  %v6981 = vadd.f32 %v6967, %v6980
  %v6982 = vpop.f32.mrf.mxu0
  %v6983 = vadd.f32 %v6969, %v6982
  %6984 = vdwg.mxu0
  %6985 = vmatpush.bf16.msra.mxu0 %v6264
  %6986 = vmatpush.bf16.msra.mxu0 %v6262
  %6987 = vmatpush.bf16.msra.mxu0 %v6260
  %6988 = vmatpush.bf16.msra.mxu0 %v6258
  %6989 = vmatpush.bf16.msra.mxu0 %v6256
  %6990 = vmatpush.bf16.msra.mxu0 %v6254
  %6991 = vmatpush.bf16.msra.mxu0 %v6252
  %6992 = vmatpush.bf16.msra.mxu0 %v6250
  %6993 = vmatmul.bf16.gmra.mxu0 %v5465
  %v6994 = vpop.f32.mrf.mxu0
  %v6995 = vadd.f32 0.0, %v6994
  %v6996 = vpop.f32.mrf.mxu0
  %v6997 = vadd.f32 0.0, %v6996
  %6998 = vdwg.mxu0
  %6999 = vmatpush.bf16.msra.mxu0 %v6280
  %7000 = vmatpush.bf16.msra.mxu0 %v6278
  %7001 = vmatpush.bf16.msra.mxu0 %v6276
  %7002 = vmatpush.bf16.msra.mxu0 %v6274
  %7003 = vmatpush.bf16.msra.mxu0 %v6272
  %7004 = vmatpush.bf16.msra.mxu0 %v6270
  %7005 = vmatpush.bf16.msra.mxu0 %v6268
  %7006 = vmatpush.bf16.msra.mxu0 %v6266
  %7007 = vmatmul.bf16.gmra.mxu0 %v5466
  %v7008 = vpop.f32.mrf.mxu0
  %v7009 = vadd.f32 %v6995, %v7008
  %v7010 = vpop.f32.mrf.mxu0
  %v7011 = vadd.f32 %v6997, %v7010
  %7012 = vdwg.mxu0
  %7013 = vmatpush.bf16.msra.mxu0 %v6296
  %7014 = vmatpush.bf16.msra.mxu0 %v6294
  %7015 = vmatpush.bf16.msra.mxu0 %v6292
  %7016 = vmatpush.bf16.msra.mxu0 %v6290
  %7017 = vmatpush.bf16.msra.mxu0 %v6288
  %7018 = vmatpush.bf16.msra.mxu0 %v6286
  %7019 = vmatpush.bf16.msra.mxu0 %v6284
  %7020 = vmatpush.bf16.msra.mxu0 %v6282
  %7021 = vmatmul.bf16.gmra.mxu0 %v5467
  %v7022 = vpop.f32.mrf.mxu0
  %v7023 = vadd.f32 %v7009, %v7022
  %v7024 = vpop.f32.mrf.mxu0
  %v7025 = vadd.f32 %v7011, %v7024
  %7026 = vdwg.mxu0
  %7027 = vmatpush.bf16.msra.mxu0 %v6312
  %7028 = vmatpush.bf16.msra.mxu0 %v6310
  %7029 = vmatpush.bf16.msra.mxu0 %v6308
  %7030 = vmatpush.bf16.msra.mxu0 %v6306
  %7031 = vmatpush.bf16.msra.mxu0 %v6304
  %7032 = vmatpush.bf16.msra.mxu0 %v6302
  %7033 = vmatpush.bf16.msra.mxu0 %v6300
  %7034 = vmatpush.bf16.msra.mxu0 %v6298
  %7035 = vmatmul.bf16.gmra.mxu0 %v5468
  %v7036 = vpop.f32.mrf.mxu0
  %v7037 = vadd.f32 %v7023, %v7036
  %v7038 = vpop.f32.mrf.mxu0
  %v7039 = vadd.f32 %v7025, %v7038
  %7040 = vdwg.mxu0
  %7041 = vmatpush.bf16.msra.mxu0 %v6328
  %7042 = vmatpush.bf16.msra.mxu0 %v6326
  %7043 = vmatpush.bf16.msra.mxu0 %v6324
  %7044 = vmatpush.bf16.msra.mxu0 %v6322
  %7045 = vmatpush.bf16.msra.mxu0 %v6320
  %7046 = vmatpush.bf16.msra.mxu0 %v6318
  %7047 = vmatpush.bf16.msra.mxu0 %v6316
  %7048 = vmatpush.bf16.msra.mxu0 %v6314
  %7049 = vmatmul.bf16.gmra.mxu0 %v5469
  %v7050 = vpop.f32.mrf.mxu0
  %v7051 = vadd.f32 %v7037, %v7050
  %v7052 = vpop.f32.mrf.mxu0
  %v7053 = vadd.f32 %v7039, %v7052
  %7054 = vdwg.mxu0
  %7055 = vmatpush.bf16.msra.mxu0 %v6344
  %7056 = vmatpush.bf16.msra.mxu0 %v6342
  %7057 = vmatpush.bf16.msra.mxu0 %v6340
  %7058 = vmatpush.bf16.msra.mxu0 %v6338
  %7059 = vmatpush.bf16.msra.mxu0 %v6336
  %7060 = vmatpush.bf16.msra.mxu0 %v6334
  %7061 = vmatpush.bf16.msra.mxu0 %v6332
  %7062 = vmatpush.bf16.msra.mxu0 %v6330
  %7063 = vmatmul.bf16.gmra.mxu0 %v5470
  %v7064 = vpop.f32.mrf.mxu0
  %v7065 = vadd.f32 %v7051, %v7064
  %v7066 = vpop.f32.mrf.mxu0
  %v7067 = vadd.f32 %v7053, %v7066
  %7068 = vdwg.mxu0
  %7069 = vmatpush.bf16.msra.mxu0 %v6360
  %7070 = vmatpush.bf16.msra.mxu0 %v6358
  %7071 = vmatpush.bf16.msra.mxu0 %v6356
  %7072 = vmatpush.bf16.msra.mxu0 %v6354
  %7073 = vmatpush.bf16.msra.mxu0 %v6352
  %7074 = vmatpush.bf16.msra.mxu0 %v6350
  %7075 = vmatpush.bf16.msra.mxu0 %v6348
  %7076 = vmatpush.bf16.msra.mxu0 %v6346
  %7077 = vmatmul.bf16.gmra.mxu0 %v5471
  %v7078 = vpop.f32.mrf.mxu0
  %v7079 = vadd.f32 %v7065, %v7078
  %v7080 = vpop.f32.mrf.mxu0
  %v7081 = vadd.f32 %v7067, %v7080
  %7082 = vdwg.mxu0
  %7083 = vmatpush.bf16.msra.mxu0 %v6376
  %7084 = vmatpush.bf16.msra.mxu0 %v6374
  %7085 = vmatpush.bf16.msra.mxu0 %v6372
  %7086 = vmatpush.bf16.msra.mxu0 %v6370
  %7087 = vmatpush.bf16.msra.mxu0 %v6368
  %7088 = vmatpush.bf16.msra.mxu0 %v6366
  %7089 = vmatpush.bf16.msra.mxu0 %v6364
  %7090 = vmatpush.bf16.msra.mxu0 %v6362
  %7091 = vmatmul.bf16.gmra.mxu0 %v5472
  %v7092 = vpop.f32.mrf.mxu0
  %v7093 = vadd.f32 %v7079, %v7092
  %v7094 = vpop.f32.mrf.mxu0
  %v7095 = vadd.f32 %v7081, %v7094
  %7096 = vdwg.mxu0
  %7097 = vmatpush.bf16.msra.mxu0 %v6392
  %7098 = vmatpush.bf16.msra.mxu0 %v6390
  %7099 = vmatpush.bf16.msra.mxu0 %v6388
  %7100 = vmatpush.bf16.msra.mxu0 %v6386
  %7101 = vmatpush.bf16.msra.mxu0 %v6384
  %7102 = vmatpush.bf16.msra.mxu0 %v6382
  %7103 = vmatpush.bf16.msra.mxu0 %v6380
  %7104 = vmatpush.bf16.msra.mxu0 %v6378
  %7105 = vmatmul.bf16.gmra.mxu0 %v5473
  %v7106 = vpop.f32.mrf.mxu0
  %v7107 = vadd.f32 %v7093, %v7106
  %v7108 = vpop.f32.mrf.mxu0
  %v7109 = vadd.f32 %v7095, %v7108
  %7110 = vdwg.mxu0
  %7111 = vmatpush.bf16.msra.mxu0 %v6408
  %7112 = vmatpush.bf16.msra.mxu0 %v6406
  %7113 = vmatpush.bf16.msra.mxu0 %v6404
  %7114 = vmatpush.bf16.msra.mxu0 %v6402
  %7115 = vmatpush.bf16.msra.mxu0 %v6400
  %7116 = vmatpush.bf16.msra.mxu0 %v6398
  %7117 = vmatpush.bf16.msra.mxu0 %v6396
  %7118 = vmatpush.bf16.msra.mxu0 %v6394
  %7119 = vmatmul.bf16.gmra.mxu0 %v5474
  %v7120 = vpop.f32.mrf.mxu0
  %v7121 = vadd.f32 %v7107, %v7120
  %v7122 = vpop.f32.mrf.mxu0
  %v7123 = vadd.f32 %v7109, %v7122
  %7124 = vdwg.mxu0
  %7125 = vmatpush.bf16.msra.mxu0 %v6424
  %7126 = vmatpush.bf16.msra.mxu0 %v6422
  %7127 = vmatpush.bf16.msra.mxu0 %v6420
  %7128 = vmatpush.bf16.msra.mxu0 %v6418
  %7129 = vmatpush.bf16.msra.mxu0 %v6416
  %7130 = vmatpush.bf16.msra.mxu0 %v6414
  %7131 = vmatpush.bf16.msra.mxu0 %v6412
  %7132 = vmatpush.bf16.msra.mxu0 %v6410
  %7133 = vmatmul.bf16.gmra.mxu0 %v5475
  %v7134 = vpop.f32.mrf.mxu0
  %v7135 = vadd.f32 %v7121, %v7134
  %v7136 = vpop.f32.mrf.mxu0
  %v7137 = vadd.f32 %v7123, %v7136
  %7138 = vdwg.mxu0
  %7139 = vmatpush.bf16.msra.mxu0 %v6440
  %7140 = vmatpush.bf16.msra.mxu0 %v6438
  %7141 = vmatpush.bf16.msra.mxu0 %v6436
  %7142 = vmatpush.bf16.msra.mxu0 %v6434
  %7143 = vmatpush.bf16.msra.mxu0 %v6432
  %7144 = vmatpush.bf16.msra.mxu0 %v6430
  %7145 = vmatpush.bf16.msra.mxu0 %v6428
  %7146 = vmatpush.bf16.msra.mxu0 %v6426
  %7147 = vmatmul.bf16.gmra.mxu0 %v5476
  %v7148 = vpop.f32.mrf.mxu0
  %v7149 = vadd.f32 %v7135, %v7148
  %v7150 = vpop.f32.mrf.mxu0
  %v7151 = vadd.f32 %v7137, %v7150
  %7152 = vdwg.mxu0
  %7153 = vmatpush.bf16.msra.mxu0 %v6456
  %7154 = vmatpush.bf16.msra.mxu0 %v6454
  %7155 = vmatpush.bf16.msra.mxu0 %v6452
  %7156 = vmatpush.bf16.msra.mxu0 %v6450
  %7157 = vmatpush.bf16.msra.mxu0 %v6448
  %7158 = vmatpush.bf16.msra.mxu0 %v6446
  %7159 = vmatpush.bf16.msra.mxu0 %v6444
  %7160 = vmatpush.bf16.msra.mxu0 %v6442
  %7161 = vmatmul.bf16.gmra.mxu0 %v5477
  %v7162 = vpop.f32.mrf.mxu0
  %v7163 = vadd.f32 %v7149, %v7162
  %v7164 = vpop.f32.mrf.mxu0
  %v7165 = vadd.f32 %v7151, %v7164
  %7166 = vdwg.mxu0
  %7167 = vmatpush.bf16.msra.mxu0 %v6472
  %7168 = vmatpush.bf16.msra.mxu0 %v6470
  %7169 = vmatpush.bf16.msra.mxu0 %v6468
  %7170 = vmatpush.bf16.msra.mxu0 %v6466
  %7171 = vmatpush.bf16.msra.mxu0 %v6464
  %7172 = vmatpush.bf16.msra.mxu0 %v6462
  %7173 = vmatpush.bf16.msra.mxu0 %v6460
  %7174 = vmatpush.bf16.msra.mxu0 %v6458
  %7175 = vmatmul.bf16.gmra.mxu0 %v5478
  %v7176 = vpop.f32.mrf.mxu0
  %v7177 = vadd.f32 %v7163, %v7176
  %v7178 = vpop.f32.mrf.mxu0
  %v7179 = vadd.f32 %v7165, %v7178
  %7180 = vdwg.mxu0
  %7181 = vmatpush.bf16.msra.mxu0 %v6488
  %7182 = vmatpush.bf16.msra.mxu0 %v6486
  %7183 = vmatpush.bf16.msra.mxu0 %v6484
  %7184 = vmatpush.bf16.msra.mxu0 %v6482
  %7185 = vmatpush.bf16.msra.mxu0 %v6480
  %7186 = vmatpush.bf16.msra.mxu0 %v6478
  %7187 = vmatpush.bf16.msra.mxu0 %v6476
  %7188 = vmatpush.bf16.msra.mxu0 %v6474
  %7189 = vmatmul.bf16.gmra.mxu0 %v5479
  %v7190 = vpop.f32.mrf.mxu0
  %v7191 = vadd.f32 %v7177, %v7190
  %v7192 = vpop.f32.mrf.mxu0
  %v7193 = vadd.f32 %v7179, %v7192
  %7194 = vdwg.mxu0
  %7195 = vmatpush.bf16.msra.mxu0 %v6504
  %7196 = vmatpush.bf16.msra.mxu0 %v6502
  %7197 = vmatpush.bf16.msra.mxu0 %v6500
  %7198 = vmatpush.bf16.msra.mxu0 %v6498
  %7199 = vmatpush.bf16.msra.mxu0 %v6496
  %7200 = vmatpush.bf16.msra.mxu0 %v6494
  %7201 = vmatpush.bf16.msra.mxu0 %v6492
  %7202 = vmatpush.bf16.msra.mxu0 %v6490
  %7203 = vmatmul.bf16.gmra.mxu0 %v5480
  %v7204 = vpop.f32.mrf.mxu0
  %v7205 = vadd.f32 %v7191, %v7204
  %v7206 = vpop.f32.mrf.mxu0
  %v7207 = vadd.f32 %v7193, %v7206
  %7208 = vdwg.mxu0
  %v7209 = vpack.c.bf16 %v4885, %v4884
  %v7210 = vpack.c.bf16 %v4887, %v4886
  %v7211 = vpack.c.bf16 %v4889, %v4888
  %v7212 = vpack.c.bf16 %v4891, %v4890
  %7213 = vmatpush.bf16.msra.mxu0 0
  %7214 = vmatpush.bf16.msra.mxu0 0
  %7215 = vmatpush.bf16.msra.mxu0 0
  %7216 = vmatpush.bf16.msra.mxu0 0
  %7217 = vmatpush.bf16.msra.mxu0 %v7212
  %7218 = vmatpush.bf16.msra.mxu0 %v7211
  %7219 = vmatpush.bf16.msra.mxu0 %v7210
  %7220 = vmatpush.bf16.msra.mxu0 %v7209
  %7221 = vmatmul.bf16.gmra.mxu0 %v5265
  %v7222 = vpop.f32.mrf.mxu0
  %v7223 = vadd.f32 0.0, %v7222
  %v7224 = vpop.f32.mrf.mxu0
  %v7225 = vadd.f32 0.0, %v7224
  %7226 = vmatmul.bf16.gmra.mxu0 %v5268
  %v7227 = vpop.f32.mrf.mxu0
  %v7228 = vadd.f32 0.0, %v7227
  %v7229 = vpop.f32.mrf.mxu0
  %v7230 = vadd.f32 0.0, %v7229
  %7231 = vmatmul.bf16.gmra.mxu0 %v5271
  %v7232 = vpop.f32.mrf.mxu0
  %v7233 = vadd.f32 0.0, %v7232
  %v7234 = vpop.f32.mrf.mxu0
  %v7235 = vadd.f32 0.0, %v7234
  %7236 = vmatmul.bf16.gmra.mxu0 %v5274
  %v7237 = vpop.f32.mrf.mxu0
  %v7238 = vadd.f32 0.0, %v7237
  %v7239 = vpop.f32.mrf.mxu0
  %v7240 = vadd.f32 0.0, %v7239
  %7241 = vmatmul.bf16.gmra.mxu0 %v5277
  %v7242 = vpop.f32.mrf.mxu0
  %v7243 = vadd.f32 0.0, %v7242
  %v7244 = vpop.f32.mrf.mxu0
  %v7245 = vadd.f32 0.0, %v7244
  %7246 = vmatmul.bf16.gmra.mxu0 %v5280
  %v7247 = vpop.f32.mrf.mxu0
  %v7248 = vadd.f32 0.0, %v7247
  %v7249 = vpop.f32.mrf.mxu0
  %v7250 = vadd.f32 0.0, %v7249
  %7251 = vmatmul.bf16.gmra.mxu0 %v5283
  %v7252 = vpop.f32.mrf.mxu0
  %v7253 = vadd.f32 0.0, %v7252
  %v7254 = vpop.f32.mrf.mxu0
  %v7255 = vadd.f32 0.0, %v7254
  %7256 = vmatmul.bf16.gmra.mxu0 %v5286
  %v7257 = vpop.f32.mrf.mxu0
  %v7258 = vadd.f32 0.0, %v7257
  %v7259 = vpop.f32.mrf.mxu0
  %v7260 = vadd.f32 0.0, %v7259
  %7261 = vmatmul.bf16.gmra.mxu0 %v5289
  %v7262 = vpop.f32.mrf.mxu0
  %v7263 = vadd.f32 0.0, %v7262
  %v7264 = vpop.f32.mrf.mxu0
  %v7265 = vadd.f32 0.0, %v7264
  %7266 = vmatmul.bf16.gmra.mxu0 %v5292
  %v7267 = vpop.f32.mrf.mxu0
  %v7268 = vadd.f32 0.0, %v7267
  %v7269 = vpop.f32.mrf.mxu0
  %v7270 = vadd.f32 0.0, %v7269
  %7271 = vmatmul.bf16.gmra.mxu0 %v5295
  %v7272 = vpop.f32.mrf.mxu0
  %v7273 = vadd.f32 0.0, %v7272
  %v7274 = vpop.f32.mrf.mxu0
  %v7275 = vadd.f32 0.0, %v7274
  %7276 = vmatmul.bf16.gmra.mxu0 %v5298
  %v7277 = vpop.f32.mrf.mxu0
  %v7278 = vadd.f32 0.0, %v7277
  %v7279 = vpop.f32.mrf.mxu0
  %v7280 = vadd.f32 0.0, %v7279
  %7281 = vmatmul.bf16.gmra.mxu0 %v5301
  %v7282 = vpop.f32.mrf.mxu0
  %v7283 = vadd.f32 0.0, %v7282
  %v7284 = vpop.f32.mrf.mxu0
  %v7285 = vadd.f32 0.0, %v7284
  %7286 = vmatmul.bf16.gmra.mxu0 %v5304
  %v7287 = vpop.f32.mrf.mxu0
  %v7288 = vadd.f32 0.0, %v7287
  %v7289 = vpop.f32.mrf.mxu0
  %v7290 = vadd.f32 0.0, %v7289
  %7291 = vmatmul.bf16.gmra.mxu0 %v5307
  %v7292 = vpop.f32.mrf.mxu0
  %v7293 = vadd.f32 0.0, %v7292
  %v7294 = vpop.f32.mrf.mxu0
  %v7295 = vadd.f32 0.0, %v7294
  %7296 = vmatmul.bf16.gmra.mxu0 %v5310
  %v7297 = vpop.f32.mrf.mxu0
  %v7298 = vadd.f32 0.0, %v7297
  %v7299 = vpop.f32.mrf.mxu0
  %v7300 = vadd.f32 0.0, %v7299
  %7301 = vdwg.mxu0
  %7302 = vst [vmem:[#allocation3] sm:$0xff] %v7223
  %7303 = vst [vmem:[#allocation3 + $0x80] sm:$0xff] %v7225
  %7304 = vst [vmem:[#allocation3 + $0x8] sm:$0xff] %v7228
  %7305 = vst [vmem:[#allocation3 + $0x88] sm:$0xff] %v7230
  %7306 = vst [vmem:[#allocation3 + $0x10] sm:$0xff] %v7233
  %7307 = vst [vmem:[#allocation3 + $0x90] sm:$0xff] %v7235
  %7308 = vst [vmem:[#allocation3 + $0x18] sm:$0xff] %v7238
  %7309 = vst [vmem:[#allocation3 + $0x98] sm:$0xff] %v7240
  %7310 = vst [vmem:[#allocation3 + $0x20] sm:$0xff] %v7243
  %7311 = vst [vmem:[#allocation3 + $0xa0] sm:$0xff] %v7245
  %7312 = vst [vmem:[#allocation3 + $0x28] sm:$0xff] %v7248
  %7313 = vst [vmem:[#allocation3 + $0xa8] sm:$0xff] %v7250
  %7314 = vst [vmem:[#allocation3 + $0x30] sm:$0xff] %v7253
  %7315 = vst [vmem:[#allocation3 + $0xb0] sm:$0xff] %v7255
  %7316 = vst [vmem:[#allocation3 + $0x38] sm:$0xff] %v7258
  %7317 = vst [vmem:[#allocation3 + $0xb8] sm:$0xff] %v7260
  %7318 = vst [vmem:[#allocation3 + $0x40] sm:$0xff] %v7263
  %7319 = vst [vmem:[#allocation3 + $0xc0] sm:$0xff] %v7265
  %7320 = vst [vmem:[#allocation3 + $0x48] sm:$0xff] %v7268
  %7321 = vst [vmem:[#allocation3 + $0xc8] sm:$0xff] %v7270
  %7322 = vst [vmem:[#allocation3 + $0x50] sm:$0xff] %v7273
  %7323 = vst [vmem:[#allocation3 + $0xd0] sm:$0xff] %v7275
  %7324 = vst [vmem:[#allocation3 + $0x58] sm:$0xff] %v7278
  %7325 = vst [vmem:[#allocation3 + $0xd8] sm:$0xff] %v7280
  %7326 = vst [vmem:[#allocation3 + $0x60] sm:$0xff] %v7283
  %7327 = vst [vmem:[#allocation3 + $0xe0] sm:$0xff] %v7285
  %7328 = vst [vmem:[#allocation3 + $0x68] sm:$0xff] %v7288
  %7329 = vst [vmem:[#allocation3 + $0xe8] sm:$0xff] %v7290
  %7330 = vst [vmem:[#allocation3 + $0x70] sm:$0xff] %v7293
  %7331 = vst [vmem:[#allocation3 + $0xf0] sm:$0xff] %v7295
  %7332 = vst [vmem:[#allocation3 + $0x78] sm:$0xff] %v7298
  %7333 = vst [vmem:[#allocation3 + $0xf8] sm:$0xff] %v7300
  %v7334 = vld [vmem:[#allocation3] sm:$0xff]
  %v7335 = vld [vmem:[#allocation3 + $0x8] sm:$0xff]
  %v7336 = vld [vmem:[#allocation3 + $0x10] sm:$0xff]
  %v7337 = vld [vmem:[#allocation3 + $0x18] sm:$0xff]
  %v7338 = vld [vmem:[#allocation3 + $0x20] sm:$0xff]
  %v7339 = vld [vmem:[#allocation3 + $0x28] sm:$0xff]
  %v7340 = vld [vmem:[#allocation3 + $0x30] sm:$0xff]
  %v7341 = vld [vmem:[#allocation3 + $0x38] sm:$0xff]
  %v7342 = vld [vmem:[#allocation3 + $0x40] sm:$0xff]
  %v7343 = vld [vmem:[#allocation3 + $0x48] sm:$0xff]
  %v7344 = vld [vmem:[#allocation3 + $0x50] sm:$0xff]
  %v7345 = vld [vmem:[#allocation3 + $0x58] sm:$0xff]
  %v7346 = vld [vmem:[#allocation3 + $0x60] sm:$0xff]
  %v7347 = vld [vmem:[#allocation3 + $0x68] sm:$0xff]
  %v7348 = vld [vmem:[#allocation3 + $0x70] sm:$0xff]
  %v7349 = vld [vmem:[#allocation3 + $0x78] sm:$0xff]
  %v7350 = vld [vmem:[#allocation3 + $0x80] sm:$0xff]
  %v7351 = vld [vmem:[#allocation3 + $0x88] sm:$0xff]
  %v7352 = vld [vmem:[#allocation3 + $0x90] sm:$0xff]
  %v7353 = vld [vmem:[#allocation3 + $0x98] sm:$0xff]
  %v7354 = vld [vmem:[#allocation3 + $0xa0] sm:$0xff]
  %v7355 = vld [vmem:[#allocation3 + $0xa8] sm:$0xff]
  %v7356 = vld [vmem:[#allocation3 + $0xb0] sm:$0xff]
  %v7357 = vld [vmem:[#allocation3 + $0xb8] sm:$0xff]
  %v7358 = vld [vmem:[#allocation3 + $0xc0] sm:$0xff]
  %v7359 = vld [vmem:[#allocation3 + $0xc8] sm:$0xff]
  %v7360 = vld [vmem:[#allocation3 + $0xd0] sm:$0xff]
  %v7361 = vld [vmem:[#allocation3 + $0xd8] sm:$0xff]
  %v7362 = vld [vmem:[#allocation3 + $0xe0] sm:$0xff]
  %v7363 = vld [vmem:[#allocation3 + $0xe8] sm:$0xff]
  %v7364 = vld [vmem:[#allocation3 + $0xf0] sm:$0xff]
  %v7365 = vld [vmem:[#allocation3 + $0xf8] sm:$0xff]
  %v7366 = vpack.c.bf16 %v7350, %v7334
  %v7367 = vpack.c.bf16 %v7351, %v7335
  %v7368 = vpack.c.bf16 %v7352, %v7336
  %v7369 = vpack.c.bf16 %v7353, %v7337
  %v7370 = vpack.c.bf16 %v7354, %v7338
  %v7371 = vpack.c.bf16 %v7355, %v7339
  %v7372 = vpack.c.bf16 %v7356, %v7340
  %v7373 = vpack.c.bf16 %v7357, %v7341
  %v7374 = vpack.c.bf16 %v7358, %v7342
  %v7375 = vpack.c.bf16 %v7359, %v7343
  %v7376 = vpack.c.bf16 %v7360, %v7344
  %v7377 = vpack.c.bf16 %v7361, %v7345
  %v7378 = vpack.c.bf16 %v7362, %v7346
  %v7379 = vpack.c.bf16 %v7363, %v7347
  %v7380 = vpack.c.bf16 %v7364, %v7348
  %v7381 = vpack.c.bf16 %v7365, %v7349
  %7382 = vmatpush.bf16.msra.mxu0 %v6263
  %7383 = vmatpush.bf16.msra.mxu0 %v6261
  %7384 = vmatpush.bf16.msra.mxu0 %v6259
  %7385 = vmatpush.bf16.msra.mxu0 %v6257
  %7386 = vmatpush.bf16.msra.mxu0 %v6255
  %7387 = vmatpush.bf16.msra.mxu0 %v6253
  %7388 = vmatpush.bf16.msra.mxu0 %v6251
  %7389 = vmatpush.bf16.msra.mxu0 %v6249
  %7390 = vmatmul.bf16.gmra.mxu0 %v7366
  %v7391 = vpop.f32.mrf.mxu0
  %v7392 = vadd.f32 0.0, %v7391
  %v7393 = vpop.f32.mrf.mxu0
  %v7394 = vadd.f32 0.0, %v7393
  %7395 = vdwg.mxu0
  %7396 = vmatpush.bf16.msra.mxu0 %v6279
  %7397 = vmatpush.bf16.msra.mxu0 %v6277
  %7398 = vmatpush.bf16.msra.mxu0 %v6275
  %7399 = vmatpush.bf16.msra.mxu0 %v6273
  %7400 = vmatpush.bf16.msra.mxu0 %v6271
  %7401 = vmatpush.bf16.msra.mxu0 %v6269
  %7402 = vmatpush.bf16.msra.mxu0 %v6267
  %7403 = vmatpush.bf16.msra.mxu0 %v6265
  %7404 = vmatmul.bf16.gmra.mxu0 %v7367
  %v7405 = vpop.f32.mrf.mxu0
  %v7406 = vadd.f32 %v7392, %v7405
  %v7407 = vpop.f32.mrf.mxu0
  %v7408 = vadd.f32 %v7394, %v7407
  %7409 = vdwg.mxu0
  %7410 = vmatpush.bf16.msra.mxu0 %v6295
  %7411 = vmatpush.bf16.msra.mxu0 %v6293
  %7412 = vmatpush.bf16.msra.mxu0 %v6291
  %7413 = vmatpush.bf16.msra.mxu0 %v6289
  %7414 = vmatpush.bf16.msra.mxu0 %v6287
  %7415 = vmatpush.bf16.msra.mxu0 %v6285
  %7416 = vmatpush.bf16.msra.mxu0 %v6283
  %7417 = vmatpush.bf16.msra.mxu0 %v6281
  %7418 = vmatmul.bf16.gmra.mxu0 %v7368
  %v7419 = vpop.f32.mrf.mxu0
  %v7420 = vadd.f32 %v7406, %v7419
  %v7421 = vpop.f32.mrf.mxu0
  %v7422 = vadd.f32 %v7408, %v7421
  %7423 = vdwg.mxu0
  %7424 = vmatpush.bf16.msra.mxu0 %v6311
  %7425 = vmatpush.bf16.msra.mxu0 %v6309
  %7426 = vmatpush.bf16.msra.mxu0 %v6307
  %7427 = vmatpush.bf16.msra.mxu0 %v6305
  %7428 = vmatpush.bf16.msra.mxu0 %v6303
  %7429 = vmatpush.bf16.msra.mxu0 %v6301
  %7430 = vmatpush.bf16.msra.mxu0 %v6299
  %7431 = vmatpush.bf16.msra.mxu0 %v6297
  %7432 = vmatmul.bf16.gmra.mxu0 %v7369
  %v7433 = vpop.f32.mrf.mxu0
  %v7434 = vadd.f32 %v7420, %v7433
  %v7435 = vpop.f32.mrf.mxu0
  %v7436 = vadd.f32 %v7422, %v7435
  %7437 = vdwg.mxu0
  %7438 = vmatpush.bf16.msra.mxu0 %v6327
  %7439 = vmatpush.bf16.msra.mxu0 %v6325
  %7440 = vmatpush.bf16.msra.mxu0 %v6323
  %7441 = vmatpush.bf16.msra.mxu0 %v6321
  %7442 = vmatpush.bf16.msra.mxu0 %v6319
  %7443 = vmatpush.bf16.msra.mxu0 %v6317
  %7444 = vmatpush.bf16.msra.mxu0 %v6315
  %7445 = vmatpush.bf16.msra.mxu0 %v6313
  %7446 = vmatmul.bf16.gmra.mxu0 %v7370
  %v7447 = vpop.f32.mrf.mxu0
  %v7448 = vadd.f32 %v7434, %v7447
  %v7449 = vpop.f32.mrf.mxu0
  %v7450 = vadd.f32 %v7436, %v7449
  %7451 = vdwg.mxu0
  %7452 = vmatpush.bf16.msra.mxu0 %v6343
  %7453 = vmatpush.bf16.msra.mxu0 %v6341
  %7454 = vmatpush.bf16.msra.mxu0 %v6339
  %7455 = vmatpush.bf16.msra.mxu0 %v6337
  %7456 = vmatpush.bf16.msra.mxu0 %v6335
  %7457 = vmatpush.bf16.msra.mxu0 %v6333
  %7458 = vmatpush.bf16.msra.mxu0 %v6331
  %7459 = vmatpush.bf16.msra.mxu0 %v6329
  %7460 = vmatmul.bf16.gmra.mxu0 %v7371
  %v7461 = vpop.f32.mrf.mxu0
  %v7462 = vadd.f32 %v7448, %v7461
  %v7463 = vpop.f32.mrf.mxu0
  %v7464 = vadd.f32 %v7450, %v7463
  %7465 = vdwg.mxu0
  %7466 = vmatpush.bf16.msra.mxu0 %v6359
  %7467 = vmatpush.bf16.msra.mxu0 %v6357
  %7468 = vmatpush.bf16.msra.mxu0 %v6355
  %7469 = vmatpush.bf16.msra.mxu0 %v6353
  %7470 = vmatpush.bf16.msra.mxu0 %v6351
  %7471 = vmatpush.bf16.msra.mxu0 %v6349
  %7472 = vmatpush.bf16.msra.mxu0 %v6347
  %7473 = vmatpush.bf16.msra.mxu0 %v6345
  %7474 = vmatmul.bf16.gmra.mxu0 %v7372
  %v7475 = vpop.f32.mrf.mxu0
  %v7476 = vadd.f32 %v7462, %v7475
  %v7477 = vpop.f32.mrf.mxu0
  %v7478 = vadd.f32 %v7464, %v7477
  %7479 = vdwg.mxu0
  %7480 = vmatpush.bf16.msra.mxu0 %v6375
  %7481 = vmatpush.bf16.msra.mxu0 %v6373
  %7482 = vmatpush.bf16.msra.mxu0 %v6371
  %7483 = vmatpush.bf16.msra.mxu0 %v6369
  %7484 = vmatpush.bf16.msra.mxu0 %v6367
  %7485 = vmatpush.bf16.msra.mxu0 %v6365
  %7486 = vmatpush.bf16.msra.mxu0 %v6363
  %7487 = vmatpush.bf16.msra.mxu0 %v6361
  %7488 = vmatmul.bf16.gmra.mxu0 %v7373
  %v7489 = vpop.f32.mrf.mxu0
  %v7490 = vadd.f32 %v7476, %v7489
  %v7491 = vpop.f32.mrf.mxu0
  %v7492 = vadd.f32 %v7478, %v7491
  %7493 = vdwg.mxu0
  %7494 = vmatpush.bf16.msra.mxu0 %v6391
  %7495 = vmatpush.bf16.msra.mxu0 %v6389
  %7496 = vmatpush.bf16.msra.mxu0 %v6387
  %7497 = vmatpush.bf16.msra.mxu0 %v6385
  %7498 = vmatpush.bf16.msra.mxu0 %v6383
  %7499 = vmatpush.bf16.msra.mxu0 %v6381
  %7500 = vmatpush.bf16.msra.mxu0 %v6379
  %7501 = vmatpush.bf16.msra.mxu0 %v6377
  %7502 = vmatmul.bf16.gmra.mxu0 %v7374
  %v7503 = vpop.f32.mrf.mxu0
  %v7504 = vadd.f32 %v7490, %v7503
  %v7505 = vpop.f32.mrf.mxu0
  %v7506 = vadd.f32 %v7492, %v7505
  %7507 = vdwg.mxu0
  %7508 = vmatpush.bf16.msra.mxu0 %v6407
  %7509 = vmatpush.bf16.msra.mxu0 %v6405
  %7510 = vmatpush.bf16.msra.mxu0 %v6403
  %7511 = vmatpush.bf16.msra.mxu0 %v6401
  %7512 = vmatpush.bf16.msra.mxu0 %v6399
  %7513 = vmatpush.bf16.msra.mxu0 %v6397
  %7514 = vmatpush.bf16.msra.mxu0 %v6395
  %7515 = vmatpush.bf16.msra.mxu0 %v6393
  %7516 = vmatmul.bf16.gmra.mxu0 %v7375
  %v7517 = vpop.f32.mrf.mxu0
  %v7518 = vadd.f32 %v7504, %v7517
  %v7519 = vpop.f32.mrf.mxu0
  %v7520 = vadd.f32 %v7506, %v7519
  %7521 = vdwg.mxu0
  %7522 = vmatpush.bf16.msra.mxu0 %v6423
  %7523 = vmatpush.bf16.msra.mxu0 %v6421
  %7524 = vmatpush.bf16.msra.mxu0 %v6419
  %7525 = vmatpush.bf16.msra.mxu0 %v6417
  %7526 = vmatpush.bf16.msra.mxu0 %v6415
  %7527 = vmatpush.bf16.msra.mxu0 %v6413
  %7528 = vmatpush.bf16.msra.mxu0 %v6411
  %7529 = vmatpush.bf16.msra.mxu0 %v6409
  %7530 = vmatmul.bf16.gmra.mxu0 %v7376
  %v7531 = vpop.f32.mrf.mxu0
  %v7532 = vadd.f32 %v7518, %v7531
  %v7533 = vpop.f32.mrf.mxu0
  %v7534 = vadd.f32 %v7520, %v7533
  %7535 = vdwg.mxu0
  %7536 = vmatpush.bf16.msra.mxu0 %v6439
  %7537 = vmatpush.bf16.msra.mxu0 %v6437
  %7538 = vmatpush.bf16.msra.mxu0 %v6435
  %7539 = vmatpush.bf16.msra.mxu0 %v6433
  %7540 = vmatpush.bf16.msra.mxu0 %v6431
  %7541 = vmatpush.bf16.msra.mxu0 %v6429
  %7542 = vmatpush.bf16.msra.mxu0 %v6427
  %7543 = vmatpush.bf16.msra.mxu0 %v6425
  %7544 = vmatmul.bf16.gmra.mxu0 %v7377
  %v7545 = vpop.f32.mrf.mxu0
  %v7546 = vadd.f32 %v7532, %v7545
  %v7547 = vpop.f32.mrf.mxu0
  %v7548 = vadd.f32 %v7534, %v7547
  %7549 = vdwg.mxu0
  %7550 = vmatpush.bf16.msra.mxu0 %v6455
  %7551 = vmatpush.bf16.msra.mxu0 %v6453
  %7552 = vmatpush.bf16.msra.mxu0 %v6451
  %7553 = vmatpush.bf16.msra.mxu0 %v6449
  %7554 = vmatpush.bf16.msra.mxu0 %v6447
  %7555 = vmatpush.bf16.msra.mxu0 %v6445
  %7556 = vmatpush.bf16.msra.mxu0 %v6443
  %7557 = vmatpush.bf16.msra.mxu0 %v6441
  %7558 = vmatmul.bf16.gmra.mxu0 %v7378
  %v7559 = vpop.f32.mrf.mxu0
  %v7560 = vadd.f32 %v7546, %v7559
  %v7561 = vpop.f32.mrf.mxu0
  %v7562 = vadd.f32 %v7548, %v7561
  %7563 = vdwg.mxu0
  %7564 = vmatpush.bf16.msra.mxu0 %v6471
  %7565 = vmatpush.bf16.msra.mxu0 %v6469
  %7566 = vmatpush.bf16.msra.mxu0 %v6467
  %7567 = vmatpush.bf16.msra.mxu0 %v6465
  %7568 = vmatpush.bf16.msra.mxu0 %v6463
  %7569 = vmatpush.bf16.msra.mxu0 %v6461
  %7570 = vmatpush.bf16.msra.mxu0 %v6459
  %7571 = vmatpush.bf16.msra.mxu0 %v6457
  %7572 = vmatmul.bf16.gmra.mxu0 %v7379
  %v7573 = vpop.f32.mrf.mxu0
  %v7574 = vadd.f32 %v7560, %v7573
  %v7575 = vpop.f32.mrf.mxu0
  %v7576 = vadd.f32 %v7562, %v7575
  %7577 = vdwg.mxu0
  %7578 = vmatpush.bf16.msra.mxu0 %v6487
  %7579 = vmatpush.bf16.msra.mxu0 %v6485
  %7580 = vmatpush.bf16.msra.mxu0 %v6483
  %7581 = vmatpush.bf16.msra.mxu0 %v6481
  %7582 = vmatpush.bf16.msra.mxu0 %v6479
  %7583 = vmatpush.bf16.msra.mxu0 %v6477
  %7584 = vmatpush.bf16.msra.mxu0 %v6475
  %7585 = vmatpush.bf16.msra.mxu0 %v6473
  %7586 = vmatmul.bf16.gmra.mxu0 %v7380
  %v7587 = vpop.f32.mrf.mxu0
  %v7588 = vadd.f32 %v7574, %v7587
  %v7589 = vpop.f32.mrf.mxu0
  %v7590 = vadd.f32 %v7576, %v7589
  %7591 = vdwg.mxu0
  %7592 = vmatpush.bf16.msra.mxu0 %v6503
  %7593 = vmatpush.bf16.msra.mxu0 %v6501
  %7594 = vmatpush.bf16.msra.mxu0 %v6499
  %7595 = vmatpush.bf16.msra.mxu0 %v6497
  %7596 = vmatpush.bf16.msra.mxu0 %v6495
  %7597 = vmatpush.bf16.msra.mxu0 %v6493
  %7598 = vmatpush.bf16.msra.mxu0 %v6491
  %7599 = vmatpush.bf16.msra.mxu0 %v6489
  %7600 = vmatmul.bf16.gmra.mxu0 %v7381
  %v7601 = vpop.f32.mrf.mxu0
  %v7602 = vadd.f32 %v7588, %v7601
  %v7603 = vpop.f32.mrf.mxu0
  %v7604 = vadd.f32 %v7590, %v7603
  %7605 = vdwg.mxu0
  %7606 = vmatpush.bf16.msra.mxu0 %v6264
  %7607 = vmatpush.bf16.msra.mxu0 %v6262
  %7608 = vmatpush.bf16.msra.mxu0 %v6260
  %7609 = vmatpush.bf16.msra.mxu0 %v6258
  %7610 = vmatpush.bf16.msra.mxu0 %v6256
  %7611 = vmatpush.bf16.msra.mxu0 %v6254
  %7612 = vmatpush.bf16.msra.mxu0 %v6252
  %7613 = vmatpush.bf16.msra.mxu0 %v6250
  %7614 = vmatmul.bf16.gmra.mxu0 %v7366
  %v7615 = vpop.f32.mrf.mxu0
  %v7616 = vadd.f32 0.0, %v7615
  %v7617 = vpop.f32.mrf.mxu0
  %v7618 = vadd.f32 0.0, %v7617
  %7619 = vdwg.mxu0
  %7620 = vmatpush.bf16.msra.mxu0 %v6280
  %7621 = vmatpush.bf16.msra.mxu0 %v6278
  %7622 = vmatpush.bf16.msra.mxu0 %v6276
  %7623 = vmatpush.bf16.msra.mxu0 %v6274
  %7624 = vmatpush.bf16.msra.mxu0 %v6272
  %7625 = vmatpush.bf16.msra.mxu0 %v6270
  %7626 = vmatpush.bf16.msra.mxu0 %v6268
  %7627 = vmatpush.bf16.msra.mxu0 %v6266
  %7628 = vmatmul.bf16.gmra.mxu0 %v7367
  %v7629 = vpop.f32.mrf.mxu0
  %v7630 = vadd.f32 %v7616, %v7629
  %v7631 = vpop.f32.mrf.mxu0
  %v7632 = vadd.f32 %v7618, %v7631
  %7633 = vdwg.mxu0
  %7634 = vmatpush.bf16.msra.mxu0 %v6296
  %7635 = vmatpush.bf16.msra.mxu0 %v6294
  %7636 = vmatpush.bf16.msra.mxu0 %v6292
  %7637 = vmatpush.bf16.msra.mxu0 %v6290
  %7638 = vmatpush.bf16.msra.mxu0 %v6288
  %7639 = vmatpush.bf16.msra.mxu0 %v6286
  %7640 = vmatpush.bf16.msra.mxu0 %v6284
  %7641 = vmatpush.bf16.msra.mxu0 %v6282
  %7642 = vmatmul.bf16.gmra.mxu0 %v7368
  %v7643 = vpop.f32.mrf.mxu0
  %v7644 = vadd.f32 %v7630, %v7643
  %v7645 = vpop.f32.mrf.mxu0
  %v7646 = vadd.f32 %v7632, %v7645
  %7647 = vdwg.mxu0
  %7648 = vmatpush.bf16.msra.mxu0 %v6312
  %7649 = vmatpush.bf16.msra.mxu0 %v6310
  %7650 = vmatpush.bf16.msra.mxu0 %v6308
  %7651 = vmatpush.bf16.msra.mxu0 %v6306
  %7652 = vmatpush.bf16.msra.mxu0 %v6304
  %7653 = vmatpush.bf16.msra.mxu0 %v6302
  %7654 = vmatpush.bf16.msra.mxu0 %v6300
  %7655 = vmatpush.bf16.msra.mxu0 %v6298
  %7656 = vmatmul.bf16.gmra.mxu0 %v7369
  %v7657 = vpop.f32.mrf.mxu0
  %v7658 = vadd.f32 %v7644, %v7657
  %v7659 = vpop.f32.mrf.mxu0
  %v7660 = vadd.f32 %v7646, %v7659
  %7661 = vdwg.mxu0
  %7662 = vmatpush.bf16.msra.mxu0 %v6328
  %7663 = vmatpush.bf16.msra.mxu0 %v6326
  %7664 = vmatpush.bf16.msra.mxu0 %v6324
  %7665 = vmatpush.bf16.msra.mxu0 %v6322
  %7666 = vmatpush.bf16.msra.mxu0 %v6320
  %7667 = vmatpush.bf16.msra.mxu0 %v6318
  %7668 = vmatpush.bf16.msra.mxu0 %v6316
  %7669 = vmatpush.bf16.msra.mxu0 %v6314
  %7670 = vmatmul.bf16.gmra.mxu0 %v7370
  %v7671 = vpop.f32.mrf.mxu0
  %v7672 = vadd.f32 %v7658, %v7671
  %v7673 = vpop.f32.mrf.mxu0
  %v7674 = vadd.f32 %v7660, %v7673
  %7675 = vdwg.mxu0
  %7676 = vmatpush.bf16.msra.mxu0 %v6344
  %7677 = vmatpush.bf16.msra.mxu0 %v6342
  %7678 = vmatpush.bf16.msra.mxu0 %v6340
  %7679 = vmatpush.bf16.msra.mxu0 %v6338
  %7680 = vmatpush.bf16.msra.mxu0 %v6336
  %7681 = vmatpush.bf16.msra.mxu0 %v6334
  %7682 = vmatpush.bf16.msra.mxu0 %v6332
  %7683 = vmatpush.bf16.msra.mxu0 %v6330
  %7684 = vmatmul.bf16.gmra.mxu0 %v7371
  %v7685 = vpop.f32.mrf.mxu0
  %v7686 = vadd.f32 %v7672, %v7685
  %v7687 = vpop.f32.mrf.mxu0
  %v7688 = vadd.f32 %v7674, %v7687
  %7689 = vdwg.mxu0
  %7690 = vmatpush.bf16.msra.mxu0 %v6360
  %7691 = vmatpush.bf16.msra.mxu0 %v6358
  %7692 = vmatpush.bf16.msra.mxu0 %v6356
  %7693 = vmatpush.bf16.msra.mxu0 %v6354
  %7694 = vmatpush.bf16.msra.mxu0 %v6352
  %7695 = vmatpush.bf16.msra.mxu0 %v6350
  %7696 = vmatpush.bf16.msra.mxu0 %v6348
  %7697 = vmatpush.bf16.msra.mxu0 %v6346
  %7698 = vmatmul.bf16.gmra.mxu0 %v7372
  %v7699 = vpop.f32.mrf.mxu0
  %v7700 = vadd.f32 %v7686, %v7699
  %v7701 = vpop.f32.mrf.mxu0
  %v7702 = vadd.f32 %v7688, %v7701
  %7703 = vdwg.mxu0
  %7704 = vmatpush.bf16.msra.mxu0 %v6376
  %7705 = vmatpush.bf16.msra.mxu0 %v6374
  %7706 = vmatpush.bf16.msra.mxu0 %v6372
  %7707 = vmatpush.bf16.msra.mxu0 %v6370
  %7708 = vmatpush.bf16.msra.mxu0 %v6368
  %7709 = vmatpush.bf16.msra.mxu0 %v6366
  %7710 = vmatpush.bf16.msra.mxu0 %v6364
  %7711 = vmatpush.bf16.msra.mxu0 %v6362
  %7712 = vmatmul.bf16.gmra.mxu0 %v7373
  %v7713 = vpop.f32.mrf.mxu0
  %v7714 = vadd.f32 %v7700, %v7713
  %v7715 = vpop.f32.mrf.mxu0
  %v7716 = vadd.f32 %v7702, %v7715
  %7717 = vdwg.mxu0
  %7718 = vmatpush.bf16.msra.mxu0 %v6392
  %7719 = vmatpush.bf16.msra.mxu0 %v6390
  %7720 = vmatpush.bf16.msra.mxu0 %v6388
  %7721 = vmatpush.bf16.msra.mxu0 %v6386
  %7722 = vmatpush.bf16.msra.mxu0 %v6384
  %7723 = vmatpush.bf16.msra.mxu0 %v6382
  %7724 = vmatpush.bf16.msra.mxu0 %v6380
  %7725 = vmatpush.bf16.msra.mxu0 %v6378
  %7726 = vmatmul.bf16.gmra.mxu0 %v7374
  %v7727 = vpop.f32.mrf.mxu0
  %v7728 = vadd.f32 %v7714, %v7727
  %v7729 = vpop.f32.mrf.mxu0
  %v7730 = vadd.f32 %v7716, %v7729
  %7731 = vdwg.mxu0
  %7732 = vmatpush.bf16.msra.mxu0 %v6408
  %7733 = vmatpush.bf16.msra.mxu0 %v6406
  %7734 = vmatpush.bf16.msra.mxu0 %v6404
  %7735 = vmatpush.bf16.msra.mxu0 %v6402
  %7736 = vmatpush.bf16.msra.mxu0 %v6400
  %7737 = vmatpush.bf16.msra.mxu0 %v6398
  %7738 = vmatpush.bf16.msra.mxu0 %v6396
  %7739 = vmatpush.bf16.msra.mxu0 %v6394
  %7740 = vmatmul.bf16.gmra.mxu0 %v7375
  %v7741 = vpop.f32.mrf.mxu0
  %v7742 = vadd.f32 %v7728, %v7741
  %v7743 = vpop.f32.mrf.mxu0
  %v7744 = vadd.f32 %v7730, %v7743
  %7745 = vdwg.mxu0
  %7746 = vmatpush.bf16.msra.mxu0 %v6424
  %7747 = vmatpush.bf16.msra.mxu0 %v6422
  %7748 = vmatpush.bf16.msra.mxu0 %v6420
  %7749 = vmatpush.bf16.msra.mxu0 %v6418
  %7750 = vmatpush.bf16.msra.mxu0 %v6416
  %7751 = vmatpush.bf16.msra.mxu0 %v6414
  %7752 = vmatpush.bf16.msra.mxu0 %v6412
  %7753 = vmatpush.bf16.msra.mxu0 %v6410
  %7754 = vmatmul.bf16.gmra.mxu0 %v7376
  %v7755 = vpop.f32.mrf.mxu0
  %v7756 = vadd.f32 %v7742, %v7755
  %v7757 = vpop.f32.mrf.mxu0
  %v7758 = vadd.f32 %v7744, %v7757
  %7759 = vdwg.mxu0
  %7760 = vmatpush.bf16.msra.mxu0 %v6440
  %7761 = vmatpush.bf16.msra.mxu0 %v6438
  %7762 = vmatpush.bf16.msra.mxu0 %v6436
  %7763 = vmatpush.bf16.msra.mxu0 %v6434
  %7764 = vmatpush.bf16.msra.mxu0 %v6432
  %7765 = vmatpush.bf16.msra.mxu0 %v6430
  %7766 = vmatpush.bf16.msra.mxu0 %v6428
  %7767 = vmatpush.bf16.msra.mxu0 %v6426
  %7768 = vmatmul.bf16.gmra.mxu0 %v7377
  %v7769 = vpop.f32.mrf.mxu0
  %v7770 = vadd.f32 %v7756, %v7769
  %v7771 = vpop.f32.mrf.mxu0
  %v7772 = vadd.f32 %v7758, %v7771
  %7773 = vdwg.mxu0
  %7774 = vmatpush.bf16.msra.mxu0 %v6456
  %7775 = vmatpush.bf16.msra.mxu0 %v6454
  %7776 = vmatpush.bf16.msra.mxu0 %v6452
  %7777 = vmatpush.bf16.msra.mxu0 %v6450
  %7778 = vmatpush.bf16.msra.mxu0 %v6448
  %7779 = vmatpush.bf16.msra.mxu0 %v6446
  %7780 = vmatpush.bf16.msra.mxu0 %v6444
  %7781 = vmatpush.bf16.msra.mxu0 %v6442
  %7782 = vmatmul.bf16.gmra.mxu0 %v7378
  %v7783 = vpop.f32.mrf.mxu0
  %v7784 = vadd.f32 %v7770, %v7783
  %v7785 = vpop.f32.mrf.mxu0
  %v7786 = vadd.f32 %v7772, %v7785
  %7787 = vdwg.mxu0
  %7788 = vmatpush.bf16.msra.mxu0 %v6472
  %7789 = vmatpush.bf16.msra.mxu0 %v6470
  %7790 = vmatpush.bf16.msra.mxu0 %v6468
  %7791 = vmatpush.bf16.msra.mxu0 %v6466
  %7792 = vmatpush.bf16.msra.mxu0 %v6464
  %7793 = vmatpush.bf16.msra.mxu0 %v6462
  %7794 = vmatpush.bf16.msra.mxu0 %v6460
  %7795 = vmatpush.bf16.msra.mxu0 %v6458
  %7796 = vmatmul.bf16.gmra.mxu0 %v7379
  %v7797 = vpop.f32.mrf.mxu0
  %v7798 = vadd.f32 %v7784, %v7797
  %v7799 = vpop.f32.mrf.mxu0
  %v7800 = vadd.f32 %v7786, %v7799
  %7801 = vdwg.mxu0
  %7802 = vmatpush.bf16.msra.mxu0 %v6488
  %7803 = vmatpush.bf16.msra.mxu0 %v6486
  %7804 = vmatpush.bf16.msra.mxu0 %v6484
  %7805 = vmatpush.bf16.msra.mxu0 %v6482
  %7806 = vmatpush.bf16.msra.mxu0 %v6480
  %7807 = vmatpush.bf16.msra.mxu0 %v6478
  %7808 = vmatpush.bf16.msra.mxu0 %v6476
  %7809 = vmatpush.bf16.msra.mxu0 %v6474
  %7810 = vmatmul.bf16.gmra.mxu0 %v7380
  %v7811 = vpop.f32.mrf.mxu0
  %v7812 = vadd.f32 %v7798, %v7811
  %v7813 = vpop.f32.mrf.mxu0
  %v7814 = vadd.f32 %v7800, %v7813
  %7815 = vdwg.mxu0
  %7816 = vmatpush.bf16.msra.mxu0 %v6504
  %7817 = vmatpush.bf16.msra.mxu0 %v6502
  %7818 = vmatpush.bf16.msra.mxu0 %v6500
  %7819 = vmatpush.bf16.msra.mxu0 %v6498
  %7820 = vmatpush.bf16.msra.mxu0 %v6496
  %7821 = vmatpush.bf16.msra.mxu0 %v6494
  %7822 = vmatpush.bf16.msra.mxu0 %v6492
  %7823 = vmatpush.bf16.msra.mxu0 %v6490
  %7824 = vmatmul.bf16.gmra.mxu0 %v7381
  %v7825 = vpop.f32.mrf.mxu0
  %v7826 = vadd.f32 %v7812, %v7825
  %v7827 = vpop.f32.mrf.mxu0
  %v7828 = vadd.f32 %v7814, %v7827
  %7829 = vdwg.mxu0
  %v7830 = vld [vmem:[%s8] sm:$0x3]
  %v7831 = vld [vmem:[%s9] sm:$0x3]
  %v7832 = vadd.f32 %v6981, %v6983
  %v7833 = vadd.f32 %v7832, %v7602
  %v7834 = vadd.f32 %v7833, %v7604
  %v7835 = vrot.slane %v7834, 4
  %v7836 = vadd.f32 %v7834, %v7835
  %v7837 = vrot.slane %v7836, 2
  %v7838 = vadd.f32 %v7836, %v7837
  %v7839 = vrot.slane %v7838, 1
  %v7840 = vadd.f32 %v7838, %v7839
  %v7841 = vadd.f32 %v7205, %v7207
  %v7842 = vadd.f32 %v7841, %v7826
  %v7843 = vadd.f32 %v7842, %v7828
  %v7844 = vrot.slane %v7843, 4
  %v7845 = vadd.f32 %v7843, %v7844
  %v7846 = vrot.slane %v7845, 2
  %v7847 = vadd.f32 %v7845, %v7846
  %v7848 = vrot.slane %v7847, 1
  %v7849 = vadd.f32 %v7847, %v7848
  %v7850 = vrcp.pop 32.0
  %v7851 = vmul.f32 32.0, %v7850
  %v7852 = vsub.f32 1.0, %v7851
  %v7853 = vmul.f32 %v7850, %v7852
  %v7854 = vadd.f32 %v7850, %v7853
  %vm7855 = vweird.f32 %v7850
  %v7856 = vsel %vm7855, %v7850, %v7854
  %v7857 = vmul.f32 %v7840, %v7856
  %v7858 = vmul.f32 %v7849, %v7856
  %v7859 = vsub.f32 %v6981, %v7857
  %v7860 = vsub.f32 %v7205, %v7858
  %v7861 = vsub.f32 %v6983, %v7857
  %v7862 = vsub.f32 %v7207, %v7858
  %v7863 = vsub.f32 %v7602, %v7857
  %v7864 = vsub.f32 %v7826, %v7858
  %v7865 = vsub.f32 %v7604, %v7857
  %v7866 = vsub.f32 %v7828, %v7858
  %v7867 = vmul.f32 %v7859, %v7859
  %v7868 = vmul.f32 %v7860, %v7860
  %v7869 = vmul.f32 %v7861, %v7861
  %v7870 = vmul.f32 %v7862, %v7862
  %v7871 = vmul.f32 %v7863, %v7863
  %v7872 = vmul.f32 %v7864, %v7864
  %v7873 = vmul.f32 %v7865, %v7865
  %v7874 = vmul.f32 %v7866, %v7866
  %v7875 = vadd.f32 %v7867, %v7869
  %v7876 = vadd.f32 %v7875, %v7871
  %v7877 = vadd.f32 %v7876, %v7873
  %v7878 = vrot.slane %v7877, 4
  %v7879 = vadd.f32 %v7877, %v7878
  %v7880 = vrot.slane %v7879, 2
  %v7881 = vadd.f32 %v7879, %v7880
  %v7882 = vrot.slane %v7881, 1
  %v7883 = vadd.f32 %v7881, %v7882
  %v7884 = vadd.f32 %v7868, %v7870
  %v7885 = vadd.f32 %v7884, %v7872
  %v7886 = vadd.f32 %v7885, %v7874
  %v7887 = vrot.slane %v7886, 4
  %v7888 = vadd.f32 %v7886, %v7887
  %v7889 = vrot.slane %v7888, 2
  %v7890 = vadd.f32 %v7888, %v7889
  %v7891 = vrot.slane %v7890, 1
  %v7892 = vadd.f32 %v7890, %v7891
  %v7893 = vmul.f32 %v7883, %v7856
  %v7894 = vmul.f32 %v7892, %v7856
  %v7895 = vadd.f32 %v7893, 1e-05
  %v7896 = vadd.f32 %v7894, 1e-05
  %v7897 = vrsqrt.pop %v7895
  %v7898 = vmul.f32 %v7897, %v7895
  %v7899 = vmul.f32 %v7898, %v7897
  %v7900 = vmul.f32 0.5, %v7899
  %v7901 = vsub.f32 1.5, %v7900
  %v7902 = vmul.f32 %v7897, %v7901
  %vm7903 = vweird.f32 %v7895
  %vm7904 = vweird.f32 %v7897
  %vm7905 = vmor %vm7903, %vm7904
  %v7906 = vsel %vm7905, %v7897, %v7902
  %v7907 = vrsqrt.pop %v7896
  %v7908 = vmul.f32 %v7907, %v7896
  %v7909 = vmul.f32 %v7908, %v7907
  %v7910 = vmul.f32 0.5, %v7909
  %v7911 = vsub.f32 1.5, %v7910
  %v7912 = vmul.f32 %v7907, %v7911
  %vm7913 = vweird.f32 %v7896
  %vm7914 = vweird.f32 %v7907
  %vm7915 = vmor %vm7913, %vm7914
  %v7916 = vsel %vm7915, %v7907, %v7912
  %v7917 = vmul.f32 %v7859, %v7906
  %v7918 = vmul.f32 %v7860, %v7916
  %v7919 = vmul.f32 %v7861, %v7906
  %v7920 = vmul.f32 %v7862, %v7916
  %v7921 = vmul.f32 %v7863, %v7906
  %v7922 = vmul.f32 %v7864, %v7916
  %v7923 = vmul.f32 %v7865, %v7906
  %v7924 = vmul.f32 %v7866, %v7916
  %v7926 = vperm.slane %v7830, 0
  %v7927 = vperm.slane %v7830, 1
  %v7930 = vmul.f32 %v7917, %v7926
  %v7931 = vmul.f32 %v7918, %v7927
  %v7932 = vmul.f32 %v7919, %v7926
  %v7933 = vmul.f32 %v7920, %v7927
  %v7934 = vmul.f32 %v7921, %v7926
  %v7935 = vmul.f32 %v7922, %v7927
  %v7936 = vmul.f32 %v7923, %v7926
  %v7937 = vmul.f32 %v7924, %v7927
  %v7939 = vperm.slane %v7831, 0
  %v7940 = vperm.slane %v7831, 1
  %v7943 = vadd.f32 %v7930, %v7939
  %v7944 = vadd.f32 %v7931, %v7940
  %v7945 = vadd.f32 %v7932, %v7939
  %v7946 = vadd.f32 %v7933, %v7940
  %v7947 = vadd.f32 %v7934, %v7939
  %v7948 = vadd.f32 %v7935, %v7940
  %v7949 = vadd.f32 %v7936, %v7939
  %v7950 = vadd.f32 %v7937, %v7940
  %v7951 = vmul.f32 %v7943, 0.2
  %v7952 = vmul.f32 %v7944, 0.2
  %v7953 = vmul.f32 %v7945, 0.2
  %v7954 = vmul.f32 %v7946, 0.2
  %v7955 = vmul.f32 %v7947, 0.2
  %v7956 = vmul.f32 %v7948, 0.2
  %v7957 = vmul.f32 %v7949, 0.2
  %v7958 = vmul.f32 %v7950, 0.2
  %v7959 = vmax.f32 %v7943, %v7951
  %v7960 = vmax.f32 %v7944, %v7952
  %v7961 = vmax.f32 %v7945, %v7953
  %v7962 = vmax.f32 %v7946, %v7954
  %v7963 = vmax.f32 %v7947, %v7955
  %v7964 = vmax.f32 %v7948, %v7956
  %v7965 = vmax.f32 %v7949, %v7957
  %v7966 = vmax.f32 %v7950, %v7958
  %v7967 = vld [vmem:[%s10] sm:$0xff]
  %v7968 = vld [vmem:[%s10 + $0x8] sm:$0xff]
  %v7969 = vld [vmem:[%s10 + $0x10] sm:$0xff]
  %v7970 = vld [vmem:[%s10 + $0x18] sm:$0xff]
  %v7971 = vmul.f32 %v7959, %v7967
  %v7972 = vmul.f32 %v7960, %v7968
  %v7973 = vmul.f32 %v7961, %v7969
  %v7974 = vmul.f32 %v7962, %v7970
  %v7975 = vmul.f32 %v7963, %v7967
  %v7976 = vmul.f32 %v7964, %v7968
  %v7977 = vmul.f32 %v7965, %v7969
  %v7978 = vmul.f32 %v7966, %v7970
  %v7979 = vadd.f32 %v7971, %v7972
  %7980 = vadd.xlane.f32.xlu0 %v7979
  %v7981 = vpop.xlane.xlu0 %7980
  %v7982 = vadd.f32 %v7973, %v7974
  %7983 = vadd.xlane.f32.xlu0 %v7982
  %v7984 = vpop.xlane.xlu0 %7983
  %v7985 = vadd.f32 %v7975, %v7976
  %7986 = vadd.xlane.f32.xlu0 %v7985
  %v7987 = vpop.xlane.xlu0 %7986
  %v7988 = vadd.f32 %v7977, %v7978
  %7989 = vadd.xlane.f32.xlu0 %v7988
  %v7990 = vpop.xlane.xlu0 %7989
  %v7995 = vlaneseq
  %v7996 = vand.u32 %v7995, 127
  %v7997 = vperm.slane %v7981, %v7996
  %v7998 = vadd.s32 %v7996, 4294967288
  %v7999 = vperm.slane %v7984, %v7998
  %vm8000 = vcmask 130112
  %v8001 = vsel %vm8000, %v7999, %v7997
  %v8002 = vperm.slane %v7987, %v7996
  %v8003 = vperm.slane %v7990, %v7998
  %v8004 = vsel %vm8000, %v8003, %v8002
  %vm8005 = vcmask 1041409
  %v8006 = vsel %vm8005, %v8004, %v8001
  %vm8008 = vcmask 123904
  %v8009 = vsel %vm8008, %v8006, 0.0
  %8010 = vadd.xlane.f32.xlu0 %v8009
  %v8011 = vpop.xlane.xlu0 %8010
  %v8012 = vsub.f32 0.0, %v8011
  %v8013 = vmul.f32 %v8012, 1.442695
  %v8014 = vpow.pop %v8013
  %v8015 = vadd.f32 %v8014, 1.0
  %v8016 = vrcp.pop %v8015
  %v8017 = vmul.f32 %v8015, %v8016
  %v8018 = vsub.f32 1.0, %v8017
  %v8019 = vmul.f32 %v8016, %v8018
  %v8020 = vadd.f32 %v8016, %v8019
  %vm8021 = vweird.f32 %v8015
  %vm8022 = vweird.f32 %v8016
  %vm8023 = vmor %vm8021, %vm8022
  %v8024 = vsel %vm8023, %v8016, %v8020
  %v8025 = vand.u32 2147483647, %v8015
  %vm8026 = vcmp.eq.f32.partialorder %v8025, 8.507059e+37
  %v8027 = vand.u32 %v8015, 2147483648
  %v8028 = vor.u32 1.1754944e-38, %v8027
  %v8029 = vsel %vm8026, %v8028, %v8024
  %v8030 = vmul.f32 1.0, %v8029
  %8031 = vst [vmem:[%s11] sm:$0x3] %v8030
  // Predicated region
  $region46: #{dc_discriminator.1} parent=0 // pred_check
    _
  $region47: #{dc_discriminator.1} parent=0 // pred_check_branch
    %8033 = sbr.rel (0) target = $region49
  $region48: #{dc_discriminator.1} parent=0 // pred_region
    _
  $region49: #{dc_discriminator.1} parent=0 // pred_fallthru
    _
  // Predicated region
  $region50: #{dc_discriminator.1} parent=0 // pred_check
    _
  $region51: #{dc_discriminator.1} parent=0 // pred_check_branch
    %8035 = sbr.rel (0) target = $region53
  $region52: #{dc_discriminator.1} parent=0 // pred_region
    _
  $region53: #{dc_discriminator.1} parent=0 // pred_fallthru
    _

</llo_original>
